<compile_context>
chip_gen: v7x
topology: tpu7x:2x2x1
jax: 0.10.0
libtpu: 0.0.40
codegen_flags: <defaults>
</compile_context>

<pallas_src>
import jax
import jax.numpy as jnp
from jax.experimental import pallas as pl
from jax.experimental.pallas import tpu as pltpu

STATE_DIMM = 7        # per-target feature size (state_dimm in the PyTorch code)
H = 256               # hidden_dim (forced to 256 by lstm_parallel, see note)
A = 4                 # action_dim
B = 2                 # logical batch size
BP = 8                # batch padded to one full sublane group
T = 4                 # n_target (state viewed as (B, T, 7)); must be >= 2
A_PAD = 128           # lane-dense padded action width
MAX_ACTION = 2.0
LONG = 10.0           # default `long` argument of lstm_parallel.forward


def actor_kernel(state_ref, h0_ref, c0_ref,
                 wih_sp_ref, whh_s_ref, b_s_ref, whh_p_ref, b_p_ref,
                 wf12_ref, bf12_ref,
                 w_main_ref, b_m_ref,
                 wl2_ref, bl2_ref, wl3_ref, bl3_ref,
                 act_ref, hout_ref, cout_ref):
    f32 = jnp.float32
    bf16 = jnp.bfloat16

    x_all = state_ref[0]          # (T*BP, 7): row t*BP + b  <->  target t, batch b
    h0 = h0_ref[0]                # (BP, H) f32
    c0 = c0_ref[0]                # (BP, H) f32

    # Weights stay bf16 (no upcast); biases are f32.
    wih_sp = wih_sp_ref[...]      # (7, 8H) = [W_ih_serial | W_ih_parallel]
    whh_s = whh_s_ref[...]
    whh_p = whh_p_ref[...]
    wf12 = wf12_ref[...]          # (H, 256) = [W_f1 | W_f2]
    w_main = w_main_ref[...]      # (3H, 4H) = [W_ih_main ; W_hh_main]
    wl2 = wl2_ref[...]
    wl3 = wl3_ref[...]            # (H, A_PAD), zero-padded past A
    b_s, b_p, bf12 = b_s_ref[...], b_p_ref[...], bf12_ref[...]
    b_m, bl2, bl3 = b_m_ref[...], bl2_ref[...], bl3_ref[...]

    G = 4 * H
    TP = T - 1

    def bdot(x, w):
        # Native bf16 x bf16 MXU matmul with f32 accumulation; only the tiny
        # LHS activations are narrowed, elementwise math stays f32.
        return jnp.dot(x.astype(bf16), w, preferred_element_type=f32)

    def gates_to_hc(g, c_prev):   # PyTorch LSTM gate order: i, f, g, o
        i = jax.nn.sigmoid(g[..., 0 * H:1 * H])
        f = jax.nn.sigmoid(g[..., 1 * H:2 * H])
        gg = jnp.tanh(g[..., 2 * H:3 * H])
        o = jax.nn.sigmoid(g[..., 3 * H:4 * H])
        c_new = f * c_prev + i * gg
        return o * jnp.tanh(c_new), c_new

    # ---- hoisted input projections: one bf16 matmul feeds BOTH LSTMs -------
    gx = bdot(x_all, wih_sp)                          # (T*BP, 8H) f32
    gx_s = gx[:, :G] + b_s                            # serial gates, bias folded once

    # ---- lstm_serial: carried recurrence over targets T-1 .. 1 -------------
    # (a staged-RHS MXU variant reusing whh_s across steps was considered but
    #  kept on the portable jnp.dot path)
    h, c = h0, c0
    for i in range(T - 1, 0, -1):                     # static unroll, T is small
        g = gx_s[i * BP:(i + 1) * BP] + bdot(h, whh_s)
        h, c = gates_to_hc(g, c)
    serial_h = h                                      # (BP, H) f32

    # ---- lstm_parallel: targets 1..T-1 all start from (h0, c0) -> ONE
    # batched LSTM step; hc_p / c0 broadcast over the TP groups via a
    # leading-dim view instead of sublane-replicating concatenates.
    hc_p = bdot(h0, whh_p) + b_p                              # (BP, 4H)
    gp = gx[BP:, G:].reshape(TP, BP, G) + hc_p[None]          # (TP, BP, 4H)
    hp3, _ = gates_to_hc(gp, c0[None])                        # (TP, BP, H)
    hp = hp3.reshape(TP * BP, H)                              # (TP*BP, H)
    # TODO(synk): lstm_parallel also accumulates a "cell" buffer (parallel[1]);
    # the Actor never uses it, so it is intentionally not computed here.

    # fused f1|f2 projection + per-lane scale (lanes 0..127: s0/LONG, 128..255: s1)
    f12 = bdot(hp, wf12) + bf12                               # (TP*BP, 256)
    lane = jax.lax.broadcasted_iota(jnp.int32, (T * BP, 2 * 128), 1)
    scale = jnp.where(lane < 128, x_all[:, 0:1] * (1.0 / LONG), x_all[:, 1:2])
    contrib = f12 * scale[BP:]                                # targets 1..T-1
    hid_acc = bf12 * scale[:BP]       # target 0 has a zero hidden state -> bias only
    for t in range(TP):
        hid_acc = hid_acc + contrib[t * BP:(t + 1) * BP]      # (BP, 256)

    # ---- Actor trunk: main LSTM with all three projections fused into ONE
    # (BP, 3H) x (3H, 4H) matmul, then l2 -> relu -> l3 -> tanh.
    emb = jnp.concatenate([serial_h, hid_acc, h0], axis=1)    # (BP, 3H), 256-aligned
    gm = bdot(emb, w_main) + b_m                              # (BP, 4H)
    h_new, c_new = gates_to_hc(gm, c0)                        # (BP, H)

    a = jnp.maximum(bdot(h_new, wl2) + bl2, 0.0)
    a = jnp.tanh(bdot(a, wl3) + bl3)                          # (BP, A_PAD)

    act_ref[0] = MAX_ACTION * a
    hout_ref[0] = h_new
    cout_ref[0] = c_new


def _actor_call(state_n, h0_n, c0_n, kparams):
    """state_n: (N, T*BP, 7); h0_n/c0_n: (N, BP, H).  One grid step per stacked
    invocation; weight BlockSpecs use a constant index_map so the bf16 weights
    are DMA'd once and stay resident in VMEM across the grid (N >> 1 amortizes
    the weight DMA, which dominates at N=1)."""
    n = state_n.shape[0]
    w_specs = [pl.BlockSpec(p.shape, lambda i: (0, 0)) for p in kparams]
    in_specs = ([pl.BlockSpec((1, T * BP, STATE_DIMM), lambda i: (i, 0, 0)),
                 pl.BlockSpec((1, BP, H), lambda i: (i, 0, 0)),
                 pl.BlockSpec((1, BP, H), lambda i: (i, 0, 0))] + w_specs)
    out_specs = (pl.BlockSpec((1, BP, A_PAD), lambda i: (i, 0, 0)),
                 pl.BlockSpec((1, BP, H), lambda i: (i, 0, 0)),
                 pl.BlockSpec((1, BP, H), lambda i: (i, 0, 0)))
    out_shape = (jax.ShapeDtypeStruct((n, BP, A_PAD), jnp.float32),
                 jax.ShapeDtypeStruct((n, BP, H), jnp.float32),
                 jax.ShapeDtypeStruct((n, BP, H), jnp.float32))
    return pl.pallas_call(
        actor_kernel,
        grid=(n,),
        in_specs=in_specs,
        out_specs=out_specs,
        out_shape=out_shape,
        compiler_params=pltpu.CompilerParams(
            dimension_semantics=("arbitrary",),     # small N; avoids per-core weight DMA on v7x
            vmem_limit_bytes=16 * 1024 * 1024),
    )(state_n, h0_n, c0_n, *kparams)


def actor_forward(state, hidden, kparams):
    """state: (B, T, STATE_DIMM) (or (B, T*STATE_DIMM)); hidden: ((1,B,H),(1,B,H)).
    Returns (max_action * a) of shape (B, 1, A) and new hidden ((1,B,H),(1,B,H))."""
    b = state.shape[0]
    st = state.reshape(b, T, STATE_DIMM)
    st = jnp.transpose(st, (1, 0, 2))                          # (T, B, 7) target-major
    st = jnp.pad(st, ((0, 0), (0, BP - b), (0, 0)))            # (T, BP, 7)
    st = st.reshape(T * BP, STATE_DIMM)                        # (T*BP, 7)
    h0 = jnp.pad(hidden[0][0], ((0, BP - b), (0, 0)))          # (BP, H)
    c0 = jnp.pad(hidden[1][0], ((0, BP - b), (0, 0)))
    act, hn, cn = _actor_call(st[None], h0[None], c0[None], kparams)
    a = act[0, :b, :A]                                         # (B, A)
    return a[:, None, :], (hn[0, :b][None], cn[0, :b][None])


# ------------------------- parameter preparation ----------------------------
def quantize_weights_bf16(params):
    """Round weight matrices through bf16 (biases stay f32).  Returned values
    are f32 but exactly bf16-representable, so the reference and the bf16
    kernel weights agree bit-for-bit."""
    return tuple(p.astype(jnp.bfloat16).astype(jnp.float32) if p.shape[0] > 1 else p
                 for p in params)


def prepare_kernel_params(params):
    """Reference-layout f32 params -> kernel layout: fuse W_ih serial/parallel,
    fuse f1|f2, stack the main LSTM's W_ih with its W_hh (fused 3H x 4H dot),
    pad l3 to 128 lanes, weights -> bf16."""
    (wih_s, whh_s, b_s, wih_p, whh_p, b_p, wf1, bf1, wf2, bf2,
     wih_m, whh_m, b_m, wl2, bl2, wl3, bl3) = params
    bf16 = lambda w: w.astype(jnp.bfloat16)
    wih_sp = jnp.concatenate([wih_s, wih_p], axis=1)           # (7, 8H)
    wf12 = jnp.concatenate([wf1, wf2], axis=1)                 # (H, 256)
    bf12 = jnp.concatenate([bf1, bf2], axis=1)                 # (1, 256)
    w_main = jnp.concatenate([wih_m, whh_m], axis=0)           # (3H, 4H)
    wl3p = jnp.zeros((H, A_PAD), jnp.float32).at[:, :A].set(wl3)
    bl3p = jnp.zeros((1, A_PAD), jnp.float32).at[:, :A].set(bl3)
    return (bf16(wih_sp), bf16(whh_s), b_s, bf16(whh_p), b_p,
            bf16(wf12), bf12,
            bf16(w_main), b_m,
            bf16(wl2), bl2, bf16(wl3p), bl3p)


# ------------------------- plain-JAX reference ------------------------------
def actor_reference(state, hidden, params):
    """Mirrors the PyTorch forward; matmuls use bf16 operands with f32
    accumulation to match TPU MXU numerics (weights are already
    bf16-representable)."""
    (wih_s, whh_s, b_s, wih_p, whh_p, b_p, wf1, bf1, wf2, bf2,
     wih_m, whh_m, b_m, wl2, bl2, wl3, bl3) = params
    h0, c0 = hidden[0][0], hidden[1][0]

    def bdot(x, w):
        return jnp.dot(x.astype(jnp.bfloat16), w.astype(jnp.bfloat16),
                       preferred_element_type=jnp.float32)

    def step(x, h, c, wih, whh, b):
        g = bdot(x, wih) + bdot(h, whh) + b
        i = jax.nn.sigmoid(g[:, :H]); f = jax.nn.sigmoid(g[:, H:2 * H])
        gg = jnp.tanh(g[:, 2 * H:3 * H]); o = jax.nn.sigmoid(g[:, 3 * H:])
        c2 = f * c + i * gg
        return o * jnp.tanh(c2), c2

    h, c = h0, c0
    for i in range(T - 1, 0, -1):
        h, c = step(state[:, i, :], h, c, wih_s, whh_s, b_s)
    serial_h = h
    hid = jnp.zeros((B, H), jnp.float32)
    for i in range(T):
        hi = (jnp.zeros((B, H), jnp.float32) if i == 0
              else step(state[:, i, :], h0, c0, wih_p, whh_p, b_p)[0])
        s0 = state[:, i, 0:1]; s1 = state[:, i, 1:2]
        hid += jnp.concatenate([(bdot(hi, wf1) + bf1) * s0 / LONG,
                                (bdot(hi, wf2) + bf2) * s1], -1)
    emb = jnp.concatenate([serial_h, hid], -1)
    g = bdot(emb, wih_m) + bdot(h0, whh_m) + b_m
    i = jax.nn.sigmoid(g[:, :H]); f = jax.nn.sigmoid(g[:, H:2 * H])
    gg = jnp.tanh(g[:, 2 * H:3 * H]); o = jax.nn.sigmoid(g[:, 3 * H:])
    cn = f * c0 + i * gg
    hn = o * jnp.tanh(cn)
    a = jnp.maximum(bdot(hn, wl2) + bl2, 0.0)
    a = jnp.tanh(bdot(a, wl3) + bl3)
    return MAX_ACTION * a[:, None, :], (hn[None], cn[None])


# ------------------------- deterministic init -------------------------------
def init_params(key):
    def uni(k, shape, fan_in):
        bound = 1.0 / float(fan_in) ** 0.5
        return jax.random.uniform(k, shape, jnp.float32, -bound, bound)

    ks = list(jax.random.split(key, 26))

    def lstm_params(in_size, k0, k1, k2, k3):
        wih_t = uni(k0, (in_size, 4 * H), H)          # (in, 4H), pre-transposed
        whh_t = uni(k1, (H, 4 * H), H)
        b = (uni(k2, (1, 4 * H), H) + uni(k3, (1, 4 * H), H))  # b_ih + b_hh
        return wih_t, whh_t, b

    wih_s, whh_s, b_s = lstm_params(STATE_DIMM, *ks[0:4])
    wih_p, whh_p, b_p = lstm_params(STATE_DIMM, *ks[4:8])
    wih_m, whh_m, b_m = lstm_params(2 * H, *ks[8:12])
    wf1 = uni(ks[12], (H, 128), H); bf1 = uni(ks[13], (1, 128), H)
    wf2 = uni(ks[14], (H, 128), H); bf2 = uni(ks[15], (1, 128), H)
    wl2 = uni(ks[16], (H, H), H);   bl2 = uni(ks[17], (1, H), H)
    wl3 = uni(ks[18], (H, A), H);   bl3 = uni(ks[19], (1, A), H)
    return (wih_s, whh_s, b_s, wih_p, whh_p, b_p, wf1, bf1, wf2, bf2,
            wih_m, whh_m, b_m, wl2, bl2, wl3, bl3)


if __name__ == "__main__":
    key = jax.random.PRNGKey(0)
    k_state, k_h, k_c, k_par = jax.random.split(key, 4)

    state = jax.random.normal(k_state, (B, T, STATE_DIMM), jnp.float32)
    h0 = jax.random.normal(k_h, (1, B, H), jnp.float32) * 0.1
    c0 = jax.random.normal(k_c, (1, B, H), jnp.float32) * 0.1

    raw_params = init_params(k_par)
    ref_params = quantize_weights_bf16(raw_params)   # bf16-rounded values, f32 dtype
    kparams = prepare_kernel_params(ref_params)      # kernel layout, bf16 weights

    fwd = jax.jit(actor_forward)
    a, (hn, cn) = fwd(state, (h0, c0), kparams)
    jax.block_until_ready((a, hn, cn))

    a_ref, (hn_ref, cn_ref) = actor_reference(state, (h0, c0), ref_params)
    assert a.shape == (B, 1, A) and hn.shape == (1, B, H) and cn.shape == (1, B, H)
    assert jnp.allclose(a, a_ref, atol=2e-3, rtol=2e-3), float(jnp.abs(a - a_ref).max())
    assert jnp.allclose(hn, hn_ref, atol=2e-3, rtol=2e-3), float(jnp.abs(hn - hn_ref).max())
    assert jnp.allclose(cn, cn_ref, atol=2e-3, rtol=2e-3), float(jnp.abs(cn - cn_ref).max())

    print("KERNEL_OK")
</pallas_src>

<mosaic_0001>
module attributes {stable_mosaic.version = 11 : i64} {
  func.func @actor_kernel(%arg0: i32, %arg1: memref<1x32x7xf32, #tpu.memory_space<vmem>>, %arg2: memref<1x8x256xf32, #tpu.memory_space<vmem>>, %arg3: memref<1x8x256xf32, #tpu.memory_space<vmem>>, %arg4: memref<7x2048xbf16, #tpu.memory_space<vmem>>, %arg5: memref<256x1024xbf16, #tpu.memory_space<vmem>>, %arg6: memref<1x1024xf32, #tpu.memory_space<vmem>>, %arg7: memref<256x1024xbf16, #tpu.memory_space<vmem>>, %arg8: memref<1x1024xf32, #tpu.memory_space<vmem>>, %arg9: memref<256x256xbf16, #tpu.memory_space<vmem>>, %arg10: memref<1x256xf32, #tpu.memory_space<vmem>>, %arg11: memref<768x1024xbf16, #tpu.memory_space<vmem>>, %arg12: memref<1x1024xf32, #tpu.memory_space<vmem>>, %arg13: memref<256x256xbf16, #tpu.memory_space<vmem>>, %arg14: memref<1x256xf32, #tpu.memory_space<vmem>>, %arg15: memref<256x128xbf16, #tpu.memory_space<vmem>>, %arg16: memref<1x128xf32, #tpu.memory_space<vmem>>, %arg17: memref<1x8x128xf32, #tpu.memory_space<vmem>>, %arg18: memref<1x8x256xf32, #tpu.memory_space<vmem>>, %arg19: memref<1x8x256xf32, #tpu.memory_space<vmem>>) attributes {dimension_semantics = [#tpu.dimension_semantics<arbitrary>], iteration_bounds = array<i64: 1>, scalar_prefetch = 0 : i64, scratch_operands = 0 : i64, tpu.core_type = #tpu.core_type<tc>, window_params = [{transform_indices = @transform_0, window_bounds = array<i64: 1, 32, 7>}, {transform_indices = @transform_1, window_bounds = array<i64: 1, 8, 256>}, {transform_indices = @transform_2, window_bounds = array<i64: 1, 8, 256>}, {pipeline_mode = #tpu.pipeline_mode<synchronous>, transform_indices = @transform_3, window_bounds = array<i64: 7, 2048>}, {pipeline_mode = #tpu.pipeline_mode<synchronous>, transform_indices = @transform_4, window_bounds = array<i64: 256, 1024>}, {pipeline_mode = #tpu.pipeline_mode<synchronous>, transform_indices = @transform_5, window_bounds = array<i64: 1, 1024>}, {pipeline_mode = #tpu.pipeline_mode<synchronous>, transform_indices = @transform_6, window_bounds = array<i64: 256, 1024>}, {pipeline_mode = #tpu.pipeline_mode<synchronous>, transform_indices = @transform_7, window_bounds = array<i64: 1, 1024>}, {pipeline_mode = #tpu.pipeline_mode<synchronous>, transform_indices = @transform_8, window_bounds = array<i64: 256, 256>}, {pipeline_mode = #tpu.pipeline_mode<synchronous>, transform_indices = @transform_9, window_bounds = array<i64: 1, 256>}, {pipeline_mode = #tpu.pipeline_mode<synchronous>, transform_indices = @transform_10, window_bounds = array<i64: 768, 1024>}, {pipeline_mode = #tpu.pipeline_mode<synchronous>, transform_indices = @transform_11, window_bounds = array<i64: 1, 1024>}, {pipeline_mode = #tpu.pipeline_mode<synchronous>, transform_indices = @transform_12, window_bounds = array<i64: 256, 256>}, {pipeline_mode = #tpu.pipeline_mode<synchronous>, transform_indices = @transform_13, window_bounds = array<i64: 1, 256>}, {pipeline_mode = #tpu.pipeline_mode<synchronous>, transform_indices = @transform_14, window_bounds = array<i64: 256, 128>}, {pipeline_mode = #tpu.pipeline_mode<synchronous>, transform_indices = @transform_15, window_bounds = array<i64: 1, 128>}, {transform_indices = @transform_16, window_bounds = array<i64: 1, 8, 128>}, {transform_indices = @transform_17, window_bounds = array<i64: 1, 8, 256>}, {transform_indices = @transform_18, window_bounds = array<i64: 1, 8, 256>}]} {
    %c0 = arith.constant 0 : index
    %c0_0 = arith.constant 0 : index
    %c0_1 = arith.constant 0 : index
    %0 = vector.load %arg1[%c0, %c0_0, %c0_1] : memref<1x32x7xf32, #tpu.memory_space<vmem>>, vector<1x32x7xf32>
    %1 = vector.shape_cast %0 : vector<1x32x7xf32> to vector<32x7xf32>
    %c0_2 = arith.constant 0 : index
    %c0_3 = arith.constant 0 : index
    %c0_4 = arith.constant 0 : index
    %2 = vector.load %arg2[%c0_2, %c0_3, %c0_4] : memref<1x8x256xf32, #tpu.memory_space<vmem>>, vector<1x8x256xf32>
    %3 = vector.shape_cast %2 : vector<1x8x256xf32> to vector<8x256xf32>
    %c0_5 = arith.constant 0 : index
    %c0_6 = arith.constant 0 : index
    %c0_7 = arith.constant 0 : index
    %4 = vector.load %arg3[%c0_5, %c0_6, %c0_7] : memref<1x8x256xf32, #tpu.memory_space<vmem>>, vector<1x8x256xf32>
    %5 = vector.shape_cast %4 : vector<1x8x256xf32> to vector<8x256xf32>
    %c0_8 = arith.constant 0 : index
    %c0_9 = arith.constant 0 : index
    %6 = vector.load %arg4[%c0_8, %c0_9] : memref<7x2048xbf16, #tpu.memory_space<vmem>>, vector<7x2048xbf16>
    %c0_10 = arith.constant 0 : index
    %c0_11 = arith.constant 0 : index
    %7 = vector.load %arg5[%c0_10, %c0_11] : memref<256x1024xbf16, #tpu.memory_space<vmem>>, vector<256x1024xbf16>
    %c0_12 = arith.constant 0 : index
    %c0_13 = arith.constant 0 : index
    %8 = vector.load %arg7[%c0_12, %c0_13] : memref<256x1024xbf16, #tpu.memory_space<vmem>>, vector<256x1024xbf16>
    %c0_14 = arith.constant 0 : index
    %c0_15 = arith.constant 0 : index
    %9 = vector.load %arg9[%c0_14, %c0_15] : memref<256x256xbf16, #tpu.memory_space<vmem>>, vector<256x256xbf16>
    %c0_16 = arith.constant 0 : index
    %c0_17 = arith.constant 0 : index
    %10 = vector.load %arg11[%c0_16, %c0_17] : memref<768x1024xbf16, #tpu.memory_space<vmem>>, vector<768x1024xbf16>
    %c0_18 = arith.constant 0 : index
    %c0_19 = arith.constant 0 : index
    %11 = vector.load %arg13[%c0_18, %c0_19] : memref<256x256xbf16, #tpu.memory_space<vmem>>, vector<256x256xbf16>
    %c0_20 = arith.constant 0 : index
    %c0_21 = arith.constant 0 : index
    %12 = vector.load %arg15[%c0_20, %c0_21] : memref<256x128xbf16, #tpu.memory_space<vmem>>, vector<256x128xbf16>
    %c0_22 = arith.constant 0 : index
    %c0_23 = arith.constant 0 : index
    %13 = vector.load %arg6[%c0_22, %c0_23] : memref<1x1024xf32, #tpu.memory_space<vmem>>, vector<1x1024xf32>
    %c0_24 = arith.constant 0 : index
    %c0_25 = arith.constant 0 : index
    %14 = vector.load %arg8[%c0_24, %c0_25] : memref<1x1024xf32, #tpu.memory_space<vmem>>, vector<1x1024xf32>
    %c0_26 = arith.constant 0 : index
    %c0_27 = arith.constant 0 : index
    %15 = vector.load %arg10[%c0_26, %c0_27] : memref<1x256xf32, #tpu.memory_space<vmem>>, vector<1x256xf32>
    %c0_28 = arith.constant 0 : index
    %c0_29 = arith.constant 0 : index
    %16 = vector.load %arg12[%c0_28, %c0_29] : memref<1x1024xf32, #tpu.memory_space<vmem>>, vector<1x1024xf32>
    %c0_30 = arith.constant 0 : index
    %c0_31 = arith.constant 0 : index
    %17 = vector.load %arg14[%c0_30, %c0_31] : memref<1x256xf32, #tpu.memory_space<vmem>>, vector<1x256xf32>
    %c0_32 = arith.constant 0 : index
    %c0_33 = arith.constant 0 : index
    %18 = vector.load %arg16[%c0_32, %c0_33] : memref<1x128xf32, #tpu.memory_space<vmem>>, vector<1x128xf32>
    %19 = arith.truncf %1 : vector<32x7xf32> to vector<32x7xbf16>
    %cst = arith.constant dense<0.000000e+00> : vector<32x2048xf32>
    %20 = tpu.matmul %19, %6, %cst {dimension_numbers = #tpu.dot_dimension_numbers<[1], [0], [0], [1], [0, 0, 1, 1], [], []>} : vector<32x7xbf16>, vector<7x2048xbf16>, vector<32x2048xf32> -> vector<32x2048xf32>
    %21 = vector.extract_strided_slice %20 {offsets = [0, 0], sizes = [32, 1024], strides = [1, 1]} : vector<32x2048xf32> to vector<32x1024xf32>
    %22 = vector.broadcast %13 : vector<1x1024xf32> to vector<32x1024xf32>
    %23 = arith.addf %21, %22 : vector<32x1024xf32>
    %24 = vector.extract_strided_slice %23 {offsets = [24, 0], sizes = [8, 1024], strides = [1, 1]} : vector<32x1024xf32> to vector<8x1024xf32>
    %25 = arith.truncf %3 : vector<8x256xf32> to vector<8x256xbf16>
    %cst_34 = arith.constant dense<0.000000e+00> : vector<8x1024xf32>
    %26 = tpu.matmul %25, %7, %cst_34 {dimension_numbers = #tpu.dot_dimension_numbers<[1], [0], [0], [1], [0, 0, 1, 1], [], []>} : vector<8x256xbf16>, vector<256x1024xbf16>, vector<8x1024xf32> -> vector<8x1024xf32>
    %27 = arith.addf %24, %26 : vector<8x1024xf32>
    %28 = vector.extract_strided_slice %27 {offsets = [0, 0], sizes = [8, 256], strides = [1, 1]} : vector<8x1024xf32> to vector<8x256xf32>
    %29 = arith.negf %28 : vector<8x256xf32>
    %30 = math.exp %29 : vector<8x256xf32>
    %cst_35 = arith.constant 1.000000e+00 : f32
    %31 = vector.broadcast %cst_35 : f32 to vector<8x256xf32>
    %32 = arith.addf %31, %30 : vector<8x256xf32>
    %33 = arith.divf %31, %32 : vector<8x256xf32>
    %34 = vector.extract_strided_slice %27 {offsets = [0, 256], sizes = [8, 256], strides = [1, 1]} : vector<8x1024xf32> to vector<8x256xf32>
    %35 = arith.negf %34 : vector<8x256xf32>
    %36 = math.exp %35 : vector<8x256xf32>
    %cst_36 = arith.constant 1.000000e+00 : f32
    %37 = vector.broadcast %cst_36 : f32 to vector<8x256xf32>
    %38 = arith.addf %37, %36 : vector<8x256xf32>
    %39 = arith.divf %37, %38 : vector<8x256xf32>
    %40 = vector.extract_strided_slice %27 {offsets = [0, 512], sizes = [8, 256], strides = [1, 1]} : vector<8x1024xf32> to vector<8x256xf32>
    %41 = math.tanh %40 : vector<8x256xf32>
    %42 = vector.extract_strided_slice %27 {offsets = [0, 768], sizes = [8, 256], strides = [1, 1]} : vector<8x1024xf32> to vector<8x256xf32>
    %43 = arith.negf %42 : vector<8x256xf32>
    %44 = math.exp %43 : vector<8x256xf32>
    %cst_37 = arith.constant 1.000000e+00 : f32
    %45 = vector.broadcast %cst_37 : f32 to vector<8x256xf32>
    %46 = arith.addf %45, %44 : vector<8x256xf32>
    %47 = arith.divf %45, %46 : vector<8x256xf32>
    %48 = arith.mulf %39, %5 : vector<8x256xf32>
    %49 = arith.mulf %33, %41 : vector<8x256xf32>
    %50 = arith.addf %48, %49 : vector<8x256xf32>
    %51 = math.tanh %50 : vector<8x256xf32>
    %52 = arith.mulf %47, %51 : vector<8x256xf32>
    %53 = vector.extract_strided_slice %23 {offsets = [16, 0], sizes = [8, 1024], strides = [1, 1]} : vector<32x1024xf32> to vector<8x1024xf32>
    %54 = arith.truncf %52 : vector<8x256xf32> to vector<8x256xbf16>
    %cst_38 = arith.constant dense<0.000000e+00> : vector<8x1024xf32>
    %55 = tpu.matmul %54, %7, %cst_38 {dimension_numbers = #tpu.dot_dimension_numbers<[1], [0], [0], [1], [0, 0, 1, 1], [], []>} : vector<8x256xbf16>, vector<256x1024xbf16>, vector<8x1024xf32> -> vector<8x1024xf32>
    %56 = arith.addf %53, %55 : vector<8x1024xf32>
    %57 = vector.extract_strided_slice %56 {offsets = [0, 0], sizes = [8, 256], strides = [1, 1]} : vector<8x1024xf32> to vector<8x256xf32>
    %58 = arith.negf %57 : vector<8x256xf32>
    %59 = math.exp %58 : vector<8x256xf32>
    %cst_39 = arith.constant 1.000000e+00 : f32
    %60 = vector.broadcast %cst_39 : f32 to vector<8x256xf32>
    %61 = arith.addf %60, %59 : vector<8x256xf32>
    %62 = arith.divf %60, %61 : vector<8x256xf32>
    %63 = vector.extract_strided_slice %56 {offsets = [0, 256], sizes = [8, 256], strides = [1, 1]} : vector<8x1024xf32> to vector<8x256xf32>
    %64 = arith.negf %63 : vector<8x256xf32>
    %65 = math.exp %64 : vector<8x256xf32>
    %cst_40 = arith.constant 1.000000e+00 : f32
    %66 = vector.broadcast %cst_40 : f32 to vector<8x256xf32>
    %67 = arith.addf %66, %65 : vector<8x256xf32>
    %68 = arith.divf %66, %67 : vector<8x256xf32>
    %69 = vector.extract_strided_slice %56 {offsets = [0, 512], sizes = [8, 256], strides = [1, 1]} : vector<8x1024xf32> to vector<8x256xf32>
    %70 = math.tanh %69 : vector<8x256xf32>
    %71 = vector.extract_strided_slice %56 {offsets = [0, 768], sizes = [8, 256], strides = [1, 1]} : vector<8x1024xf32> to vector<8x256xf32>
    %72 = arith.negf %71 : vector<8x256xf32>
    %73 = math.exp %72 : vector<8x256xf32>
    %cst_41 = arith.constant 1.000000e+00 : f32
    %74 = vector.broadcast %cst_41 : f32 to vector<8x256xf32>
    %75 = arith.addf %74, %73 : vector<8x256xf32>
    %76 = arith.divf %74, %75 : vector<8x256xf32>
    %77 = arith.mulf %68, %50 : vector<8x256xf32>
    %78 = arith.mulf %62, %70 : vector<8x256xf32>
    %79 = arith.addf %77, %78 : vector<8x256xf32>
    %80 = math.tanh %79 : vector<8x256xf32>
    %81 = arith.mulf %76, %80 : vector<8x256xf32>
    %82 = vector.extract_strided_slice %23 {offsets = [8, 0], sizes = [8, 1024], strides = [1, 1]} : vector<32x1024xf32> to vector<8x1024xf32>
    %83 = arith.truncf %81 : vector<8x256xf32> to vector<8x256xbf16>
    %cst_42 = arith.constant dense<0.000000e+00> : vector<8x1024xf32>
    %84 = tpu.matmul %83, %7, %cst_42 {dimension_numbers = #tpu.dot_dimension_numbers<[1], [0], [0], [1], [0, 0, 1, 1], [], []>} : vector<8x256xbf16>, vector<256x1024xbf16>, vector<8x1024xf32> -> vector<8x1024xf32>
    %85 = arith.addf %82, %84 : vector<8x1024xf32>
    %86 = vector.extract_strided_slice %85 {offsets = [0, 0], sizes = [8, 256], strides = [1, 1]} : vector<8x1024xf32> to vector<8x256xf32>
    %87 = arith.negf %86 : vector<8x256xf32>
    %88 = math.exp %87 : vector<8x256xf32>
    %cst_43 = arith.constant 1.000000e+00 : f32
    %89 = vector.broadcast %cst_43 : f32 to vector<8x256xf32>
    %90 = arith.addf %89, %88 : vector<8x256xf32>
    %91 = arith.divf %89, %90 : vector<8x256xf32>
    %92 = vector.extract_strided_slice %85 {offsets = [0, 256], sizes = [8, 256], strides = [1, 1]} : vector<8x1024xf32> to vector<8x256xf32>
    %93 = arith.negf %92 : vector<8x256xf32>
    %94 = math.exp %93 : vector<8x256xf32>
    %cst_44 = arith.constant 1.000000e+00 : f32
    %95 = vector.broadcast %cst_44 : f32 to vector<8x256xf32>
    %96 = arith.addf %95, %94 : vector<8x256xf32>
    %97 = arith.divf %95, %96 : vector<8x256xf32>
    %98 = vector.extract_strided_slice %85 {offsets = [0, 512], sizes = [8, 256], strides = [1, 1]} : vector<8x1024xf32> to vector<8x256xf32>
    %99 = math.tanh %98 : vector<8x256xf32>
    %100 = vector.extract_strided_slice %85 {offsets = [0, 768], sizes = [8, 256], strides = [1, 1]} : vector<8x1024xf32> to vector<8x256xf32>
    %101 = arith.negf %100 : vector<8x256xf32>
    %102 = math.exp %101 : vector<8x256xf32>
    %cst_45 = arith.constant 1.000000e+00 : f32
    %103 = vector.broadcast %cst_45 : f32 to vector<8x256xf32>
    %104 = arith.addf %103, %102 : vector<8x256xf32>
    %105 = arith.divf %103, %104 : vector<8x256xf32>
    %106 = arith.mulf %97, %79 : vector<8x256xf32>
    %107 = arith.mulf %91, %99 : vector<8x256xf32>
    %108 = arith.addf %106, %107 : vector<8x256xf32>
    %109 = math.tanh %108 : vector<8x256xf32>
    %110 = arith.mulf %105, %109 : vector<8x256xf32>
    %111 = arith.truncf %3 : vector<8x256xf32> to vector<8x256xbf16>
    %cst_46 = arith.constant dense<0.000000e+00> : vector<8x1024xf32>
    %112 = tpu.matmul %111, %8, %cst_46 {dimension_numbers = #tpu.dot_dimension_numbers<[1], [0], [0], [1], [0, 0, 1, 1], [], []>} : vector<8x256xbf16>, vector<256x1024xbf16>, vector<8x1024xf32> -> vector<8x1024xf32>
    %113 = vector.broadcast %14 : vector<1x1024xf32> to vector<8x1024xf32>
    %114 = arith.addf %112, %113 : vector<8x1024xf32>
    %115 = vector.extract_strided_slice %20 {offsets = [8, 1024], sizes = [24, 1024], strides = [1, 1]} : vector<32x2048xf32> to vector<24x1024xf32>
    %116 = vector.shape_cast %115 : vector<24x1024xf32> to vector<3x8x1024xf32>
    %117 = vector.shape_cast %114 : vector<8x1024xf32> to vector<1x8x1024xf32>
    %118 = vector.broadcast %117 : vector<1x8x1024xf32> to vector<3x8x1024xf32>
    %119 = arith.addf %116, %118 : vector<3x8x1024xf32>
    %120 = vector.shape_cast %5 : vector<8x256xf32> to vector<1x8x256xf32>
    %121 = vector.extract_strided_slice %119 {offsets = [0, 0, 0], sizes = [3, 8, 256], strides = [1, 1, 1]} : vector<3x8x1024xf32> to vector<3x8x256xf32>
    %122 = arith.negf %121 : vector<3x8x256xf32>
    %123 = math.exp %122 : vector<3x8x256xf32>
    %cst_47 = arith.constant 1.000000e+00 : f32
    %124 = vector.broadcast %cst_47 : f32 to vector<3x8x256xf32>
    %125 = arith.addf %124, %123 : vector<3x8x256xf32>
    %126 = arith.divf %124, %125 : vector<3x8x256xf32>
    %127 = vector.extract_strided_slice %119 {offsets = [0, 0, 256], sizes = [3, 8, 256], strides = [1, 1, 1]} : vector<3x8x1024xf32> to vector<3x8x256xf32>
    %128 = arith.negf %127 : vector<3x8x256xf32>
    %129 = math.exp %128 : vector<3x8x256xf32>
    %cst_48 = arith.constant 1.000000e+00 : f32
    %130 = vector.broadcast %cst_48 : f32 to vector<3x8x256xf32>
    %131 = arith.addf %130, %129 : vector<3x8x256xf32>
    %132 = arith.divf %130, %131 : vector<3x8x256xf32>
    %133 = vector.extract_strided_slice %119 {offsets = [0, 0, 512], sizes = [3, 8, 256], strides = [1, 1, 1]} : vector<3x8x1024xf32> to vector<3x8x256xf32>
    %134 = math.tanh %133 : vector<3x8x256xf32>
    %135 = vector.extract_strided_slice %119 {offsets = [0, 0, 768], sizes = [3, 8, 256], strides = [1, 1, 1]} : vector<3x8x1024xf32> to vector<3x8x256xf32>
    %136 = arith.negf %135 : vector<3x8x256xf32>
    %137 = math.exp %136 : vector<3x8x256xf32>
    %cst_49 = arith.constant 1.000000e+00 : f32
    %138 = vector.broadcast %cst_49 : f32 to vector<3x8x256xf32>
    %139 = arith.addf %138, %137 : vector<3x8x256xf32>
    %140 = arith.divf %138, %139 : vector<3x8x256xf32>
    %141 = vector.broadcast %120 : vector<1x8x256xf32> to vector<3x8x256xf32>
    %142 = arith.mulf %132, %141 : vector<3x8x256xf32>
    %143 = arith.mulf %126, %134 : vector<3x8x256xf32>
    %144 = arith.addf %142, %143 : vector<3x8x256xf32>
    %145 = math.tanh %144 : vector<3x8x256xf32>
    %146 = arith.mulf %140, %145 : vector<3x8x256xf32>
    %147 = vector.shape_cast %146 : vector<3x8x256xf32> to vector<24x256xf32>
    %148 = arith.truncf %147 : vector<24x256xf32> to vector<24x256xbf16>
    %cst_50 = arith.constant dense<0.000000e+00> : vector<24x256xf32>
    %149 = tpu.matmul %148, %9, %cst_50 {dimension_numbers = #tpu.dot_dimension_numbers<[1], [0], [0], [1], [0, 0, 1, 1], [], []>} : vector<24x256xbf16>, vector<256x256xbf16>, vector<24x256xf32> -> vector<24x256xf32>
    %150 = vector.broadcast %15 : vector<1x256xf32> to vector<24x256xf32>
    %151 = arith.addf %149, %150 : vector<24x256xf32>
    %152 = tpu.iota {dimensions = array<i32: 1>} : vector<32x256xi32>
    %c128_i32 = arith.constant 128 : i32
    %153 = vector.broadcast %c128_i32 : i32 to vector<32x256xi32>
    %154 = arith.cmpi slt, %152, %153 : vector<32x256xi32>
    %155 = vector.extract_strided_slice %1 {offsets = [0, 0], sizes = [32, 1], strides = [1, 1]} : vector<32x7xf32> to vector<32x1xf32>
    %cst_51 = arith.constant 1.000000e-01 : f32
    %156 = vector.broadcast %cst_51 : f32 to vector<32x1xf32>
    %157 = arith.mulf %155, %156 : vector<32x1xf32>
    %158 = vector.extract_strided_slice %1 {offsets = [0, 1], sizes = [32, 1], strides = [1, 1]} : vector<32x7xf32> to vector<32x1xf32>
    %159 = vector.shape_cast %157 : vector<32x1xf32> to vector<32x1xf32>
    %160 = vector.broadcast %159 : vector<32x1xf32> to vector<32x256xf32>
    %161 = vector.shape_cast %158 : vector<32x1xf32> to vector<32x1xf32>
    %162 = vector.broadcast %161 : vector<32x1xf32> to vector<32x256xf32>
    %163 = arith.select %154, %160, %162 : vector<32x256xi1>, vector<32x256xf32>
    %164 = vector.extract_strided_slice %163 {offsets = [8, 0], sizes = [24, 256], strides = [1, 1]} : vector<32x256xf32> to vector<24x256xf32>
    %165 = arith.mulf %151, %164 : vector<24x256xf32>
    %166 = vector.extract_strided_slice %163 {offsets = [0, 0], sizes = [8, 256], strides = [1, 1]} : vector<32x256xf32> to vector<8x256xf32>
    %167 = vector.broadcast %15 : vector<1x256xf32> to vector<8x256xf32>
    %168 = arith.mulf %167, %166 : vector<8x256xf32>
    %169 = vector.extract_strided_slice %165 {offsets = [0, 0], sizes = [8, 256], strides = [1, 1]} : vector<24x256xf32> to vector<8x256xf32>
    %170 = arith.addf %168, %169 : vector<8x256xf32>
    %171 = vector.extract_strided_slice %165 {offsets = [8, 0], sizes = [8, 256], strides = [1, 1]} : vector<24x256xf32> to vector<8x256xf32>
    %172 = arith.addf %170, %171 : vector<8x256xf32>
    %173 = vector.extract_strided_slice %165 {offsets = [16, 0], sizes = [8, 256], strides = [1, 1]} : vector<24x256xf32> to vector<8x256xf32>
    %174 = arith.addf %172, %173 : vector<8x256xf32>
    %175 = tpu.concatenate %110, %174, %3 in 1 : vector<8x256xf32>, vector<8x256xf32>, vector<8x256xf32> -> vector<8x768xf32>
    %176 = arith.truncf %175 : vector<8x768xf32> to vector<8x768xbf16>
    %cst_52 = arith.constant dense<0.000000e+00> : vector<8x1024xf32>
    %177 = tpu.matmul %176, %10, %cst_52 {dimension_numbers = #tpu.dot_dimension_numbers<[1], [0], [0], [1], [0, 0, 1, 1], [], []>} : vector<8x768xbf16>, vector<768x1024xbf16>, vector<8x1024xf32> -> vector<8x1024xf32>
    %178 = vector.broadcast %16 : vector<1x1024xf32> to vector<8x1024xf32>
    %179 = arith.addf %177, %178 : vector<8x1024xf32>
    %180 = vector.extract_strided_slice %179 {offsets = [0, 0], sizes = [8, 256], strides = [1, 1]} : vector<8x1024xf32> to vector<8x256xf32>
    %181 = arith.negf %180 : vector<8x256xf32>
    %182 = math.exp %181 : vector<8x256xf32>
    %cst_53 = arith.constant 1.000000e+00 : f32
    %183 = vector.broadcast %cst_53 : f32 to vector<8x256xf32>
    %184 = arith.addf %183, %182 : vector<8x256xf32>
    %185 = arith.divf %183, %184 : vector<8x256xf32>
    %186 = vector.extract_strided_slice %179 {offsets = [0, 256], sizes = [8, 256], strides = [1, 1]} : vector<8x1024xf32> to vector<8x256xf32>
    %187 = arith.negf %186 : vector<8x256xf32>
    %188 = math.exp %187 : vector<8x256xf32>
    %cst_54 = arith.constant 1.000000e+00 : f32
    %189 = vector.broadcast %cst_54 : f32 to vector<8x256xf32>
    %190 = arith.addf %189, %188 : vector<8x256xf32>
    %191 = arith.divf %189, %190 : vector<8x256xf32>
    %192 = vector.extract_strided_slice %179 {offsets = [0, 512], sizes = [8, 256], strides = [1, 1]} : vector<8x1024xf32> to vector<8x256xf32>
    %193 = math.tanh %192 : vector<8x256xf32>
    %194 = vector.extract_strided_slice %179 {offsets = [0, 768], sizes = [8, 256], strides = [1, 1]} : vector<8x1024xf32> to vector<8x256xf32>
    %195 = arith.negf %194 : vector<8x256xf32>
    %196 = math.exp %195 : vector<8x256xf32>
    %cst_55 = arith.constant 1.000000e+00 : f32
    %197 = vector.broadcast %cst_55 : f32 to vector<8x256xf32>
    %198 = arith.addf %197, %196 : vector<8x256xf32>
    %199 = arith.divf %197, %198 : vector<8x256xf32>
    %200 = arith.mulf %191, %5 : vector<8x256xf32>
    %201 = arith.mulf %185, %193 : vector<8x256xf32>
    %202 = arith.addf %200, %201 : vector<8x256xf32>
    %203 = math.tanh %202 : vector<8x256xf32>
    %204 = arith.mulf %199, %203 : vector<8x256xf32>
    %205 = arith.truncf %204 : vector<8x256xf32> to vector<8x256xbf16>
    %cst_56 = arith.constant dense<0.000000e+00> : vector<8x256xf32>
    %206 = tpu.matmul %205, %11, %cst_56 {dimension_numbers = #tpu.dot_dimension_numbers<[1], [0], [0], [1], [0, 0, 1, 1], [], []>} : vector<8x256xbf16>, vector<256x256xbf16>, vector<8x256xf32> -> vector<8x256xf32>
    %207 = vector.broadcast %17 : vector<1x256xf32> to vector<8x256xf32>
    %208 = arith.addf %206, %207 : vector<8x256xf32>
    %cst_57 = arith.constant 0.000000e+00 : f32
    %209 = vector.broadcast %cst_57 : f32 to vector<8x256xf32>
    %210 = arith.maximumf %208, %209 : vector<8x256xf32>
    %211 = arith.truncf %210 : vector<8x256xf32> to vector<8x256xbf16>
    %cst_58 = arith.constant dense<0.000000e+00> : vector<8x128xf32>
    %212 = tpu.matmul %211, %12, %cst_58 {dimension_numbers = #tpu.dot_dimension_numbers<[1], [0], [0], [1], [0, 0, 1, 1], [], []>} : vector<8x256xbf16>, vector<256x128xbf16>, vector<8x128xf32> -> vector<8x128xf32>
    %213 = vector.broadcast %18 : vector<1x128xf32> to vector<8x128xf32>
    %214 = arith.addf %212, %213 : vector<8x128xf32>
    %215 = math.tanh %214 : vector<8x128xf32>
    %cst_59 = arith.constant 2.000000e+00 : f32
    %216 = vector.broadcast %cst_59 : f32 to vector<8x128xf32>
    %217 = arith.mulf %216, %215 : vector<8x128xf32>
    %c0_60 = arith.constant 0 : index
    %c0_61 = arith.constant 0 : index
    %c0_62 = arith.constant 0 : index
    %218 = vector.load %arg17[%c0_60, %c0_61, %c0_62] : memref<1x8x128xf32, #tpu.memory_space<vmem>>, vector<1x8x128xf32>
    %219 = vector.shape_cast %218 : vector<1x8x128xf32> to vector<8x128xf32>
    %220 = vector.shape_cast %217 : vector<8x128xf32> to vector<1x8x128xf32>
    tpu.vector_store %arg17[%c0_60, %c0_61, %c0_62], %220 {strides = array<i32>} : memref<1x8x128xf32, #tpu.memory_space<vmem>>, vector<1x8x128xf32>,
    %c0_63 = arith.constant 0 : index
    %c0_64 = arith.constant 0 : index
    %c0_65 = arith.constant 0 : index
    %221 = vector.load %arg18[%c0_63, %c0_64, %c0_65] : memref<1x8x256xf32, #tpu.memory_space<vmem>>, vector<1x8x256xf32>
    %222 = vector.shape_cast %221 : vector<1x8x256xf32> to vector<8x256xf32>
    %223 = vector.shape_cast %204 : vector<8x256xf32> to vector<1x8x256xf32>
    tpu.vector_store %arg18[%c0_63, %c0_64, %c0_65], %223 {strides = array<i32>} : memref<1x8x256xf32, #tpu.memory_space<vmem>>, vector<1x8x256xf32>,
    %c0_66 = arith.constant 0 : index
    %c0_67 = arith.constant 0 : index
    %c0_68 = arith.constant 0 : index
    %224 = vector.load %arg19[%c0_66, %c0_67, %c0_68] : memref<1x8x256xf32, #tpu.memory_space<vmem>>, vector<1x8x256xf32>
    %225 = vector.shape_cast %224 : vector<1x8x256xf32> to vector<8x256xf32>
    %226 = vector.shape_cast %202 : vector<8x256xf32> to vector<1x8x256xf32>
    tpu.vector_store %arg19[%c0_66, %c0_67, %c0_68], %226 {strides = array<i32>} : memref<1x8x256xf32, #tpu.memory_space<vmem>>, vector<1x8x256xf32>,
    return
  }
  func.func @transform_0(%arg0: i32) -> (i32, i32, i32) {
    %c0_i32 = arith.constant 0 : i32
    %c0_i32_0 = arith.constant 0 : i32
    %c0_i32_1 = arith.constant 0 : i32
    return %arg0, %c0_i32, %c0_i32_0 : i32, i32, i32
  }
  func.func @transform_1(%arg0: i32) -> (i32, i32, i32) {
    %c0_i32 = arith.constant 0 : i32
    %c0_i32_0 = arith.constant 0 : i32
    %c0_i32_1 = arith.constant 0 : i32
    return %arg0, %c0_i32, %c0_i32_0 : i32, i32, i32
  }
  func.func @transform_2(%arg0: i32) -> (i32, i32, i32) {
    %c0_i32 = arith.constant 0 : i32
    %c0_i32_0 = arith.constant 0 : i32
    %c0_i32_1 = arith.constant 0 : i32
    return %arg0, %c0_i32, %c0_i32_0 : i32, i32, i32
  }
  func.func @transform_3(%arg0: i32) -> (i32, i32) {
    %c0_i32 = arith.constant 0 : i32
    %c0_i32_0 = arith.constant 0 : i32
    %c0_i32_1 = arith.constant 0 : i32
    return %c0_i32, %c0_i32_0 : i32, i32
  }
  func.func @transform_4(%arg0: i32) -> (i32, i32) {
    %c0_i32 = arith.constant 0 : i32
    %c0_i32_0 = arith.constant 0 : i32
    %c0_i32_1 = arith.constant 0 : i32
    return %c0_i32, %c0_i32_0 : i32, i32
  }
  func.func @transform_5(%arg0: i32) -> (i32, i32) {
    %c0_i32 = arith.constant 0 : i32
    %c0_i32_0 = arith.constant 0 : i32
    %c0_i32_1 = arith.constant 0 : i32
    return %c0_i32, %c0_i32_0 : i32, i32
  }
  func.func @transform_6(%arg0: i32) -> (i32, i32) {
    %c0_i32 = arith.constant 0 : i32
    %c0_i32_0 = arith.constant 0 : i32
    %c0_i32_1 = arith.constant 0 : i32
    return %c0_i32, %c0_i32_0 : i32, i32
  }
  func.func @transform_7(%arg0: i32) -> (i32, i32) {
    %c0_i32 = arith.constant 0 : i32
    %c0_i32_0 = arith.constant 0 : i32
    %c0_i32_1 = arith.constant 0 : i32
    return %c0_i32, %c0_i32_0 : i32, i32
  }
  func.func @transform_8(%arg0: i32) -> (i32, i32) {
    %c0_i32 = arith.constant 0 : i32
    %c0_i32_0 = arith.constant 0 : i32
    %c0_i32_1 = arith.constant 0 : i32
    return %c0_i32, %c0_i32_0 : i32, i32
  }
  func.func @transform_9(%arg0: i32) -> (i32, i32) {
    %c0_i32 = arith.constant 0 : i32
    %c0_i32_0 = arith.constant 0 : i32
    %c0_i32_1 = arith.constant 0 : i32
    return %c0_i32, %c0_i32_0 : i32, i32
  }
  func.func @transform_10(%arg0: i32) -> (i32, i32) {
    %c0_i32 = arith.constant 0 : i32
    %c0_i32_0 = arith.constant 0 : i32
    %c0_i32_1 = arith.constant 0 : i32
    return %c0_i32, %c0_i32_0 : i32, i32
  }
  func.func @transform_11(%arg0: i32) -> (i32, i32) {
    %c0_i32 = arith.constant 0 : i32
    %c0_i32_0 = arith.constant 0 : i32
    %c0_i32_1 = arith.constant 0 : i32
    return %c0_i32, %c0_i32_0 : i32, i32
  }
  func.func @transform_12(%arg0: i32) -> (i32, i32) {
    %c0_i32 = arith.constant 0 : i32
    %c0_i32_0 = arith.constant 0 : i32
    %c0_i32_1 = arith.constant 0 : i32
    return %c0_i32, %c0_i32_0 : i32, i32
  }
  func.func @transform_13(%arg0: i32) -> (i32, i32) {
    %c0_i32 = arith.constant 0 : i32
    %c0_i32_0 = arith.constant 0 : i32
    %c0_i32_1 = arith.constant 0 : i32
    return %c0_i32, %c0_i32_0 : i32, i32
  }
  func.func @transform_14(%arg0: i32) -> (i32, i32) {
    %c0_i32 = arith.constant 0 : i32
    %c0_i32_0 = arith.constant 0 : i32
    %c0_i32_1 = arith.constant 0 : i32
    return %c0_i32, %c0_i32_0 : i32, i32
  }
  func.func @transform_15(%arg0: i32) -> (i32, i32) {
    %c0_i32 = arith.constant 0 : i32
    %c0_i32_0 = arith.constant 0 : i32
    %c0_i32_1 = arith.constant 0 : i32
    return %c0_i32, %c0_i32_0 : i32, i32
  }
  func.func @transform_16(%arg0: i32) -> (i32, i32, i32) {
    %c0_i32 = arith.constant 0 : i32
    %c0_i32_0 = arith.constant 0 : i32
    %c0_i32_1 = arith.constant 0 : i32
    return %arg0, %c0_i32, %c0_i32_0 : i32, i32, i32
  }
  func.func @transform_17(%arg0: i32) -> (i32, i32, i32) {
    %c0_i32 = arith.constant 0 : i32
    %c0_i32_0 = arith.constant 0 : i32
    %c0_i32_1 = arith.constant 0 : i32
    return %arg0, %c0_i32, %c0_i32_0 : i32, i32, i32
  }
  func.func @transform_18(%arg0: i32) -> (i32, i32, i32) {
    %c0_i32 = arith.constant 0 : i32
    %c0_i32_0 = arith.constant 0 : i32
    %c0_i32_1 = arith.constant 0 : i32
    return %arg0, %c0_i32, %c0_i32_0 : i32, i32, i32
  }
}

</mosaic_0001>

<llo_original>
// kernel: actor_forward.1
$region0: #{actor_forward.1}
  #allocation0 [shape = 'u32[]', space=smem, size = 0x4, offset = 0x4, fixed_abs, tag = 'smem constant byte address 0x4 - core index']
  #allocation1 [shape = 'u32[144,128]{1,0:T(1,128)}', space=vmem, size = 0x12000, scoped, tag = 'internal scratch']
  %s0 = inlined_call_operand.vmem [shape: f32[1,32,7], index: 0, kind: input, shape index: {}]
  %s1 = inlined_call_operand.vmem [shape: f32[1,8,256], index: 1, kind: input, shape index: {}]
  %s2 = inlined_call_operand.vmem [shape: f32[1,8,256], index: 2, kind: input, shape index: {}]
  %s3 = inlined_call_operand.hbm [shape: bf16[7,2048], index: 3, kind: input, shape index: {}]
  %s4 = inlined_call_operand.hbm [shape: bf16[256,1024], index: 4, kind: input, shape index: {}]
  %s5 = inlined_call_operand.hbm [shape: f32[1,1024], index: 5, kind: input, shape index: {}]
  %s6 = inlined_call_operand.hbm [shape: bf16[256,1024], index: 6, kind: input, shape index: {}]
  %s7 = inlined_call_operand.hbm [shape: f32[1,1024], index: 7, kind: input, shape index: {}]
  %s8 = inlined_call_operand.hbm [shape: bf16[256,256], index: 8, kind: input, shape index: {}]
  %s9 = inlined_call_operand.hbm [shape: f32[1,256], index: 9, kind: input, shape index: {}]
  %s10 = inlined_call_operand.hbm [shape: bf16[768,1024], index: 10, kind: input, shape index: {}]
  %s11 = inlined_call_operand.hbm [shape: f32[1,1024], index: 11, kind: input, shape index: {}]
  %s12 = inlined_call_operand.hbm [shape: bf16[256,256], index: 12, kind: input, shape index: {}]
  %s13 = inlined_call_operand.hbm [shape: f32[1,256], index: 13, kind: input, shape index: {}]
  %s14 = inlined_call_operand.hbm [shape: bf16[256,128], index: 14, kind: input, shape index: {}]
  %s15 = inlined_call_operand.hbm [shape: f32[1,128], index: 15, kind: input, shape index: {}]
  %s16 = inlined_call_operand.vmem [shape: f32[1,8,128], index: 16, kind: output, shape index: {0}]
  %s17 = inlined_call_operand.vmem [shape: f32[1,8,256], index: 17, kind: output, shape index: {1}]
  %s18 = inlined_call_operand.vmem [shape: f32[1,8,256], index: 18, kind: output, shape index: {2}]
  %19 = xla_tuple %s16, %s17, %s18
  %s20 = sld [smem:[#allocation0]]
  $region142: #{actor_forward.1} parent=0
    _
  %s22 = ssub.s32 1, %s20
  %s23 = scalar_select 0, %s22, %s20
  $region1: #{actor_forward.1} parent=0
    #allocation2 [shape = 'u8[32768]{0}', space=vmem, size = 0x8000, scoped, tag = 'input window, operand 3, single buffered']
    #allocation3 [shape = 's32[1]{0}', space=sflag, size = 0x4, scoped, tag = 'scoped memory for actor_forward.1']
    #allocation4 [shape = 'u8[524288]{0}', space=vmem, size = 0x80000, scoped, tag = 'input window, operand 4, single buffered']
    #allocation5 [shape = 's32[1]{0}', space=sflag, size = 0x4, scoped, tag = 'scoped memory for actor_forward.1']
    #allocation6 [shape = 'u8[4096]{0}', space=vmem, size = 0x1000, scoped, tag = 'input window, operand 5, single buffered']
    #allocation7 [shape = 'u8[524288]{0}', space=vmem, size = 0x80000, scoped, tag = 'input window, operand 6, single buffered']
    #allocation8 [shape = 's32[1]{0}', space=sflag, size = 0x4, scoped, tag = 'scoped memory for actor_forward.1']
    #allocation9 [shape = 'u8[4096]{0}', space=vmem, size = 0x1000, scoped, tag = 'input window, operand 7, single buffered']
    #allocation10 [shape = 'u8[131072]{0}', space=vmem, size = 0x20000, scoped, tag = 'input window, operand 8, single buffered']
    #allocation11 [shape = 's32[1]{0}', space=sflag, size = 0x4, scoped, tag = 'scoped memory for actor_forward.1']
    #allocation12 [shape = 'u8[1024]{0}', space=vmem, size = 0x400, scoped, tag = 'input window, operand 9, single buffered']
    #allocation13 [shape = 'u8[1572864]{0}', space=vmem, size = 0x180000, scoped, tag = 'input window, operand 10, single buffered']
    #allocation14 [shape = 's32[1]{0}', space=sflag, size = 0x4, scoped, tag = 'scoped memory for actor_forward.1']
    #allocation15 [shape = 'u8[4096]{0}', space=vmem, size = 0x1000, scoped, tag = 'input window, operand 11, single buffered']
    #allocation16 [shape = 'u8[131072]{0}', space=vmem, size = 0x20000, scoped, tag = 'input window, operand 12, single buffered']
    #allocation17 [shape = 's32[1]{0}', space=sflag, size = 0x4, scoped, tag = 'scoped memory for actor_forward.1']
    #allocation18 [shape = 'u8[1024]{0}', space=vmem, size = 0x400, scoped, tag = 'input window, operand 13, single buffered']
    #allocation19 [shape = 'u8[65536]{0}', space=vmem, size = 0x10000, scoped, tag = 'input window, operand 14, single buffered']
    #allocation20 [shape = 's32[1]{0}', space=sflag, size = 0x4, scoped, tag = 'scoped memory for actor_forward.1']
    #allocation21 [shape = 'u8[512]{0}', space=vmem, size = 0x400, scoped, tag = 'input window, operand 15, single buffered']
    %24 = vsyncpa [#allocation3], 0
    %25 = vsyncpa [#allocation5], 0
    %26 = vsyncpa [#allocation8], 0
    %27 = vsyncpa [#allocation11], 0
    %28 = vsyncpa [#allocation14], 0
    %29 = vsyncpa [#allocation17], 0
    %30 = vsyncpa [#allocation20], 0
    // Predicated region
    $region2: #{actor_forward.1} parent=1 // pred_check
      _
    $region3: #{actor_forward.1} parent=1 // pred_check_branch
      %32 = sbr.rel (0) target = $region5
    $region4: #{actor_forward.1} parent=1 // pred_region
      _
    $region5: #{actor_forward.1} parent=1 // pred_fallthru
      _
    // Predicated region
    $region6: #{actor_forward.1} parent=1 // pred_check
      _
    $region7: #{actor_forward.1} parent=1 // pred_check_branch
      %34 = sbr.rel (0) target = $region9
    $region8: #{actor_forward.1} parent=1 // pred_region
      _
    $region9: #{actor_forward.1} parent=1 // pred_fallthru
      _
    // Predicated region
    $region10: #{actor_forward.1} parent=1 // pred_check
      _
    $region11: #{actor_forward.1} parent=1 // pred_check_branch
      %36 = sbr.rel (0) target = $region13
    $region12: #{actor_forward.1} parent=1 // pred_region
      _
    $region13: #{actor_forward.1} parent=1 // pred_fallthru
      _
    // Predicated region
    $region14: #{actor_forward.1} parent=1 // pred_check
      _
    $region15: #{actor_forward.1} parent=1 // pred_check_branch
      %38 = sbr.rel (0) target = $region17
    $region16: #{actor_forward.1} parent=1 // pred_region
      %s40 = ssub.s32 1024, 1024
      %41 = vsyncadd [#allocation3], %s40
      %s43 = sshll.u32 [#allocation2], 4
      %s44 = int_to_ptr.vmem [resolvable:$true] %s43
      %46 = dma.hbm_to_vmem [thread:$0]  %s3, 1024, %s44, [#allocation3]
    $region17: #{actor_forward.1} parent=1 // pred_fallthru
      _
    // Predicated region
    $region18: #{actor_forward.1} parent=1 // pred_check
      _
    $region19: #{actor_forward.1} parent=1 // pred_check_branch
      %48 = sbr.rel (0) target = $region21
    $region20: #{actor_forward.1} parent=1 // pred_region
      %s50 = ssub.s32 16384, 16384
      %51 = vsyncadd [#allocation5], %s50
      %s52 = sshll.u32 [#allocation4], 4
      %s53 = int_to_ptr.vmem [resolvable:$true] %s52
      %58 = dma.hbm_to_vmem [thread:$0]  %s4, 16384, %s53, [#allocation5], 512, 512, 32
    $region21: #{actor_forward.1} parent=1 // pred_fallthru
      _
    // Predicated region
    $region22: #{actor_forward.1} parent=1 // pred_check
      _
    $region23: #{actor_forward.1} parent=1 // pred_check_branch
      %60 = sbr.rel (0) target = $region25
    $region24: #{actor_forward.1} parent=1 // pred_region
      %s62 = ssub.s32 128, 128
      %63 = vsyncadd [#allocation5], %s62
      %s65 = sshll.u32 [#allocation6], 4
      %s66 = int_to_ptr.vmem [resolvable:$true] %s65
      %68 = dma.hbm_to_vmem [thread:$0]  %s5, 128, %s66, [#allocation5]
    $region25: #{actor_forward.1} parent=1 // pred_fallthru
      _
    // Predicated region
    $region26: #{actor_forward.1} parent=1 // pred_check
      _
    $region27: #{actor_forward.1} parent=1 // pred_check_branch
      %70 = sbr.rel (0) target = $region29
    $region28: #{actor_forward.1} parent=1 // pred_region
      %s72 = ssub.s32 16384, 16384
      %73 = vsyncadd [#allocation8], %s72
      %s74 = sshll.u32 [#allocation7], 4
      %s75 = int_to_ptr.vmem [resolvable:$true] %s74
      %80 = dma.hbm_to_vmem [thread:$0]  %s6, 16384, %s75, [#allocation8], 512, 512, 32
    $region29: #{actor_forward.1} parent=1 // pred_fallthru
      _
    // Predicated region
    $region30: #{actor_forward.1} parent=1 // pred_check
      _
    $region31: #{actor_forward.1} parent=1 // pred_check_branch
      %82 = sbr.rel (0) target = $region33
    $region32: #{actor_forward.1} parent=1 // pred_region
      %s84 = ssub.s32 128, 128
      %85 = vsyncadd [#allocation8], %s84
      %s87 = sshll.u32 [#allocation9], 4
      %s88 = int_to_ptr.vmem [resolvable:$true] %s87
      %90 = dma.hbm_to_vmem [thread:$0]  %s7, 128, %s88, [#allocation8]
    $region33: #{actor_forward.1} parent=1 // pred_fallthru
      _
    // Predicated region
    $region34: #{actor_forward.1} parent=1 // pred_check
      _
    $region35: #{actor_forward.1} parent=1 // pred_check_branch
      %92 = sbr.rel (0) target = $region37
    $region36: #{actor_forward.1} parent=1 // pred_region
      %s94 = ssub.s32 4096, 4096
      %95 = vsyncadd [#allocation11], %s94
      %s96 = sshll.u32 [#allocation10], 4
      %s97 = int_to_ptr.vmem [resolvable:$true] %s96
      %102 = dma.hbm_to_vmem [thread:$0]  %s8, 4096, %s97, [#allocation11], 128, 128, 8
    $region37: #{actor_forward.1} parent=1 // pred_fallthru
      _
    // Predicated region
    $region38: #{actor_forward.1} parent=1 // pred_check
      _
    $region39: #{actor_forward.1} parent=1 // pred_check_branch
      %104 = sbr.rel (0) target = $region41
    $region40: #{actor_forward.1} parent=1 // pred_region
      %s106 = ssub.s32 32, 32
      %107 = vsyncadd [#allocation11], %s106
      %s109 = sshll.u32 [#allocation12], 4
      %s110 = int_to_ptr.vmem [resolvable:$true] %s109
      %112 = dma.hbm_to_vmem [thread:$0]  %s9, 32, %s110, [#allocation11]
    $region41: #{actor_forward.1} parent=1 // pred_fallthru
      _
    // Predicated region
    $region42: #{actor_forward.1} parent=1 // pred_check
      _
    $region43: #{actor_forward.1} parent=1 // pred_check_branch
      %114 = sbr.rel (0) target = $region45
    $region44: #{actor_forward.1} parent=1 // pred_region
      %s116 = ssub.s32 49152, 49152
      %117 = vsyncadd [#allocation14], %s116
      %s118 = sshll.u32 [#allocation13], 4
      %s119 = int_to_ptr.vmem [resolvable:$true] %s118
      %124 = dma.hbm_to_vmem [thread:$0]  %s10, 49152, %s119, [#allocation14], 512, 512, 32
    $region45: #{actor_forward.1} parent=1 // pred_fallthru
      _
    // Predicated region
    $region46: #{actor_forward.1} parent=1 // pred_check
      _
    $region47: #{actor_forward.1} parent=1 // pred_check_branch
      %126 = sbr.rel (0) target = $region49
    $region48: #{actor_forward.1} parent=1 // pred_region
      %s128 = ssub.s32 128, 128
      %129 = vsyncadd [#allocation14], %s128
      %s131 = sshll.u32 [#allocation15], 4
      %s132 = int_to_ptr.vmem [resolvable:$true] %s131
      %134 = dma.hbm_to_vmem [thread:$0]  %s11, 128, %s132, [#allocation14]
    $region49: #{actor_forward.1} parent=1 // pred_fallthru
      _
    // Predicated region
    $region50: #{actor_forward.1} parent=1 // pred_check
      _
    $region51: #{actor_forward.1} parent=1 // pred_check_branch
      %136 = sbr.rel (0) target = $region53
    $region52: #{actor_forward.1} parent=1 // pred_region
      %s138 = ssub.s32 4096, 4096
      %139 = vsyncadd [#allocation17], %s138
      %s140 = sshll.u32 [#allocation16], 4
      %s141 = int_to_ptr.vmem [resolvable:$true] %s140
      %146 = dma.hbm_to_vmem [thread:$0]  %s12, 4096, %s141, [#allocation17], 128, 128, 8
    $region53: #{actor_forward.1} parent=1 // pred_fallthru
      _
    // Predicated region
    $region54: #{actor_forward.1} parent=1 // pred_check
      _
    $region55: #{actor_forward.1} parent=1 // pred_check_branch
      %148 = sbr.rel (0) target = $region57
    $region56: #{actor_forward.1} parent=1 // pred_region
      %s150 = ssub.s32 32, 32
      %151 = vsyncadd [#allocation17], %s150
      %s153 = sshll.u32 [#allocation18], 4
      %s154 = int_to_ptr.vmem [resolvable:$true] %s153
      %156 = dma.hbm_to_vmem [thread:$0]  %s13, 32, %s154, [#allocation17]
    $region57: #{actor_forward.1} parent=1 // pred_fallthru
      _
    // Predicated region
    $region58: #{actor_forward.1} parent=1 // pred_check
      _
    $region59: #{actor_forward.1} parent=1 // pred_check_branch
      %158 = sbr.rel (0) target = $region61
    $region60: #{actor_forward.1} parent=1 // pred_region
      %s160 = ssub.s32 2048, 2048
      %161 = vsyncadd [#allocation20], %s160
      %s162 = sshll.u32 [#allocation19], 4
      %s163 = int_to_ptr.vmem [resolvable:$true] %s162
      %168 = dma.hbm_to_vmem [thread:$0]  %s14, 2048, %s163, [#allocation20], 64, 64, 4
    $region61: #{actor_forward.1} parent=1 // pred_fallthru
      _
    // Predicated region
    $region62: #{actor_forward.1} parent=1 // pred_check
      _
    $region63: #{actor_forward.1} parent=1 // pred_check_branch
      %170 = sbr.rel (0) target = $region65
    $region64: #{actor_forward.1} parent=1 // pred_region
      %s172 = ssub.s32 16, 16
      %173 = vsyncadd [#allocation20], %s172
      %s175 = sshll.u32 [#allocation21], 4
      %s176 = int_to_ptr.vmem [resolvable:$true] %s175
      %178 = dma.hbm_to_vmem [thread:$0]  %s15, 16, %s176, [#allocation20]
    $region65: #{actor_forward.1} parent=1 // pred_fallthru
      _
    // Predicated region
    $region66: #{actor_forward.1} parent=1 // pred_check
      _
    $region67: #{actor_forward.1} parent=1 // pred_check_branch
      %180 = sbr.rel (0) target = $region69
    $region68: #{actor_forward.1} parent=1 // pred_region
      %181 = dma.done [#allocation3], 1024
    $region69: #{actor_forward.1} parent=1 // pred_fallthru
      _
    // Predicated region
    $region70: #{actor_forward.1} parent=1 // pred_check
      _
    $region71: #{actor_forward.1} parent=1 // pred_check_branch
      %183 = sbr.rel (0) target = $region73
    $region72: #{actor_forward.1} parent=1 // pred_region
      %184 = dma.done [#allocation5], 16384
    $region73: #{actor_forward.1} parent=1 // pred_fallthru
      _
    // Predicated region
    $region74: #{actor_forward.1} parent=1 // pred_check
      _
    $region75: #{actor_forward.1} parent=1 // pred_check_branch
      %186 = sbr.rel (0) target = $region77
    $region76: #{actor_forward.1} parent=1 // pred_region
      %187 = dma.done [#allocation5], 128
    $region77: #{actor_forward.1} parent=1 // pred_fallthru
      _
    // Predicated region
    $region78: #{actor_forward.1} parent=1 // pred_check
      _
    $region79: #{actor_forward.1} parent=1 // pred_check_branch
      %189 = sbr.rel (0) target = $region81
    $region80: #{actor_forward.1} parent=1 // pred_region
      %190 = dma.done [#allocation8], 16384
    $region81: #{actor_forward.1} parent=1 // pred_fallthru
      _
    // Predicated region
    $region82: #{actor_forward.1} parent=1 // pred_check
      _
    $region83: #{actor_forward.1} parent=1 // pred_check_branch
      %192 = sbr.rel (0) target = $region85
    $region84: #{actor_forward.1} parent=1 // pred_region
      %193 = dma.done [#allocation8], 128
    $region85: #{actor_forward.1} parent=1 // pred_fallthru
      _
    // Predicated region
    $region86: #{actor_forward.1} parent=1 // pred_check
      _
    $region87: #{actor_forward.1} parent=1 // pred_check_branch
      %195 = sbr.rel (0) target = $region89
    $region88: #{actor_forward.1} parent=1 // pred_region
      %196 = dma.done [#allocation11], 4096
    $region89: #{actor_forward.1} parent=1 // pred_fallthru
      _
    // Predicated region
    $region90: #{actor_forward.1} parent=1 // pred_check
      _
    $region91: #{actor_forward.1} parent=1 // pred_check_branch
      %198 = sbr.rel (0) target = $region93
    $region92: #{actor_forward.1} parent=1 // pred_region
      %199 = dma.done [#allocation11], 32
    $region93: #{actor_forward.1} parent=1 // pred_fallthru
      _
    // Predicated region
    $region94: #{actor_forward.1} parent=1 // pred_check
      _
    $region95: #{actor_forward.1} parent=1 // pred_check_branch
      %201 = sbr.rel (0) target = $region97
    $region96: #{actor_forward.1} parent=1 // pred_region
      %202 = dma.done [#allocation14], 49152
    $region97: #{actor_forward.1} parent=1 // pred_fallthru
      _
    // Predicated region
    $region98: #{actor_forward.1} parent=1 // pred_check
      _
    $region99: #{actor_forward.1} parent=1 // pred_check_branch
      %204 = sbr.rel (0) target = $region101
    $region100: #{actor_forward.1} parent=1 // pred_region
      %205 = dma.done [#allocation14], 128
    $region101: #{actor_forward.1} parent=1 // pred_fallthru
      _
    // Predicated region
    $region102: #{actor_forward.1} parent=1 // pred_check
      _
    $region103: #{actor_forward.1} parent=1 // pred_check_branch
      %207 = sbr.rel (0) target = $region105
    $region104: #{actor_forward.1} parent=1 // pred_region
      %208 = dma.done [#allocation17], 4096
    $region105: #{actor_forward.1} parent=1 // pred_fallthru
      _
    // Predicated region
    $region106: #{actor_forward.1} parent=1 // pred_check
      _
    $region107: #{actor_forward.1} parent=1 // pred_check_branch
      %210 = sbr.rel (0) target = $region109
    $region108: #{actor_forward.1} parent=1 // pred_region
      %211 = dma.done [#allocation17], 32
    $region109: #{actor_forward.1} parent=1 // pred_fallthru
      _
    // Predicated region
    $region110: #{actor_forward.1} parent=1 // pred_check
      _
    $region111: #{actor_forward.1} parent=1 // pred_check_branch
      %213 = sbr.rel (0) target = $region113
    $region112: #{actor_forward.1} parent=1 // pred_region
      %214 = dma.done [#allocation20], 2048
    $region113: #{actor_forward.1} parent=1 // pred_fallthru
      _
    // Predicated region
    $region114: #{actor_forward.1} parent=1 // pred_check
      _
    $region115: #{actor_forward.1} parent=1 // pred_check_branch
      %216 = sbr.rel (0) target = $region117
    $region116: #{actor_forward.1} parent=1 // pred_region
      %217 = dma.done [#allocation20], 16
    $region117: #{actor_forward.1} parent=1 // pred_fallthru
      _
    %v219 = vld [vmem:[%s0] sm:$0xff]
    %v220 = vld [vmem:[%s0 + $0x8] sm:$0xff]
    %v221 = vld [vmem:[%s0 + $0x10] sm:$0xff]
    %v222 = vld [vmem:[%s0 + $0x18] sm:$0xff]
    %v223 = vld [vmem:[%s1] sm:$0xff]
    %v224 = vld [vmem:[%s1 + $0x8] sm:$0xff]
    %v225 = vld [vmem:[%s2] sm:$0xff]
    %v226 = vld [vmem:[%s2 + $0x8] sm:$0xff]
    %v227 = vld [vmem:[#allocation2] sm:$0xff]
    %v228 = vld [vmem:[#allocation2 + $0x8] sm:$0xff]
    %v229 = vld [vmem:[#allocation2 + $0x10] sm:$0xff]
    %v230 = vld [vmem:[#allocation2 + $0x18] sm:$0xff]
    %v231 = vld [vmem:[#allocation2 + $0x20] sm:$0xff]
    %v232 = vld [vmem:[#allocation2 + $0x28] sm:$0xff]
    %v233 = vld [vmem:[#allocation2 + $0x30] sm:$0xff]
    %v234 = vld [vmem:[#allocation2 + $0x38] sm:$0xff]
    %v235 = vld [vmem:[#allocation4] sm:$0xff]
    %v236 = vld [vmem:[#allocation4 + $0x8] sm:$0xff]
    %v237 = vld [vmem:[#allocation4 + $0x10] sm:$0xff]
    %v238 = vld [vmem:[#allocation4 + $0x18] sm:$0xff]
    %v239 = vld [vmem:[#allocation4 + $0x20] sm:$0xff]
    %v240 = vld [vmem:[#allocation4 + $0x28] sm:$0xff]
    %v241 = vld [vmem:[#allocation4 + $0x30] sm:$0xff]
    %v242 = vld [vmem:[#allocation4 + $0x38] sm:$0xff]
    %v243 = vld [vmem:[#allocation4 + $0x40] sm:$0xff]
    %v244 = vld [vmem:[#allocation4 + $0x48] sm:$0xff]
    %v245 = vld [vmem:[#allocation4 + $0x50] sm:$0xff]
    %v246 = vld [vmem:[#allocation4 + $0x58] sm:$0xff]
    %v247 = vld [vmem:[#allocation4 + $0x60] sm:$0xff]
    %v248 = vld [vmem:[#allocation4 + $0x68] sm:$0xff]
    %v249 = vld [vmem:[#allocation4 + $0x70] sm:$0xff]
    %v250 = vld [vmem:[#allocation4 + $0x78] sm:$0xff]
    %v251 = vld [vmem:[#allocation4 + $0x80] sm:$0xff]
    %v252 = vld [vmem:[#allocation4 + $0x88] sm:$0xff]
    %v253 = vld [vmem:[#allocation4 + $0x90] sm:$0xff]
    %v254 = vld [vmem:[#allocation4 + $0x98] sm:$0xff]
    %v255 = vld [vmem:[#allocation4 + $0xa0] sm:$0xff]
    %v256 = vld [vmem:[#allocation4 + $0xa8] sm:$0xff]
    %v257 = vld [vmem:[#allocation4 + $0xb0] sm:$0xff]
    %v258 = vld [vmem:[#allocation4 + $0xb8] sm:$0xff]
    %v259 = vld [vmem:[#allocation4 + $0xc0] sm:$0xff]
    %v260 = vld [vmem:[#allocation4 + $0xc8] sm:$0xff]
    %v261 = vld [vmem:[#allocation4 + $0xd0] sm:$0xff]
    %v262 = vld [vmem:[#allocation4 + $0xd8] sm:$0xff]
    %v263 = vld [vmem:[#allocation4 + $0xe0] sm:$0xff]
    %v264 = vld [vmem:[#allocation4 + $0xe8] sm:$0xff]
    %v265 = vld [vmem:[#allocation4 + $0xf0] sm:$0xff]
    %v266 = vld [vmem:[#allocation4 + $0xf8] sm:$0xff]
    %v267 = vld [vmem:[#allocation4 + $0x100] sm:$0xff]
    %v268 = vld [vmem:[#allocation4 + $0x108] sm:$0xff]
    %v269 = vld [vmem:[#allocation4 + $0x110] sm:$0xff]
    %v270 = vld [vmem:[#allocation4 + $0x118] sm:$0xff]
    %v271 = vld [vmem:[#allocation4 + $0x120] sm:$0xff]
    %v272 = vld [vmem:[#allocation4 + $0x128] sm:$0xff]
    %v273 = vld [vmem:[#allocation4 + $0x130] sm:$0xff]
    %v274 = vld [vmem:[#allocation4 + $0x138] sm:$0xff]
    %v275 = vld [vmem:[#allocation4 + $0x140] sm:$0xff]
    %v276 = vld [vmem:[#allocation4 + $0x148] sm:$0xff]
    %v277 = vld [vmem:[#allocation4 + $0x150] sm:$0xff]
    %v278 = vld [vmem:[#allocation4 + $0x158] sm:$0xff]
    %v279 = vld [vmem:[#allocation4 + $0x160] sm:$0xff]
    %v280 = vld [vmem:[#allocation4 + $0x168] sm:$0xff]
    %v281 = vld [vmem:[#allocation4 + $0x170] sm:$0xff]
    %v282 = vld [vmem:[#allocation4 + $0x178] sm:$0xff]
    %v283 = vld [vmem:[#allocation4 + $0x180] sm:$0xff]
    %v284 = vld [vmem:[#allocation4 + $0x188] sm:$0xff]
    %v285 = vld [vmem:[#allocation4 + $0x190] sm:$0xff]
    %v286 = vld [vmem:[#allocation4 + $0x198] sm:$0xff]
    %v287 = vld [vmem:[#allocation4 + $0x1a0] sm:$0xff]
    %v288 = vld [vmem:[#allocation4 + $0x1a8] sm:$0xff]
    %v289 = vld [vmem:[#allocation4 + $0x1b0] sm:$0xff]
    %v290 = vld [vmem:[#allocation4 + $0x1b8] sm:$0xff]
    %v291 = vld [vmem:[#allocation4 + $0x1c0] sm:$0xff]
    %v292 = vld [vmem:[#allocation4 + $0x1c8] sm:$0xff]
    %v293 = vld [vmem:[#allocation4 + $0x1d0] sm:$0xff]
    %v294 = vld [vmem:[#allocation4 + $0x1d8] sm:$0xff]
    %v295 = vld [vmem:[#allocation4 + $0x1e0] sm:$0xff]
    %v296 = vld [vmem:[#allocation4 + $0x1e8] sm:$0xff]
    %v297 = vld [vmem:[#allocation4 + $0x1f0] sm:$0xff]
    %v298 = vld [vmem:[#allocation4 + $0x1f8] sm:$0xff]
    %v299 = vld [vmem:[#allocation4 + $0x200] sm:$0xff]
    %v300 = vld [vmem:[#allocation4 + $0x208] sm:$0xff]
    %v301 = vld [vmem:[#allocation4 + $0x210] sm:$0xff]
    %v302 = vld [vmem:[#allocation4 + $0x218] sm:$0xff]
    %v303 = vld [vmem:[#allocation4 + $0x220] sm:$0xff]
    %v304 = vld [vmem:[#allocation4 + $0x228] sm:$0xff]
    %v305 = vld [vmem:[#allocation4 + $0x230] sm:$0xff]
    %v306 = vld [vmem:[#allocation4 + $0x238] sm:$0xff]
    %v307 = vld [vmem:[#allocation4 + $0x240] sm:$0xff]
    %v308 = vld [vmem:[#allocation4 + $0x248] sm:$0xff]
    %v309 = vld [vmem:[#allocation4 + $0x250] sm:$0xff]
    %v310 = vld [vmem:[#allocation4 + $0x258] sm:$0xff]
    %v311 = vld [vmem:[#allocation4 + $0x260] sm:$0xff]
    %v312 = vld [vmem:[#allocation4 + $0x268] sm:$0xff]
    %v313 = vld [vmem:[#allocation4 + $0x270] sm:$0xff]
    %v314 = vld [vmem:[#allocation4 + $0x278] sm:$0xff]
    %v315 = vld [vmem:[#allocation4 + $0x280] sm:$0xff]
    %v316 = vld [vmem:[#allocation4 + $0x288] sm:$0xff]
    %v317 = vld [vmem:[#allocation4 + $0x290] sm:$0xff]
    %v318 = vld [vmem:[#allocation4 + $0x298] sm:$0xff]
    %v319 = vld [vmem:[#allocation4 + $0x2a0] sm:$0xff]
    %v320 = vld [vmem:[#allocation4 + $0x2a8] sm:$0xff]
    %v321 = vld [vmem:[#allocation4 + $0x2b0] sm:$0xff]
    %v322 = vld [vmem:[#allocation4 + $0x2b8] sm:$0xff]
    %v323 = vld [vmem:[#allocation4 + $0x2c0] sm:$0xff]
    %v324 = vld [vmem:[#allocation4 + $0x2c8] sm:$0xff]
    %v325 = vld [vmem:[#allocation4 + $0x2d0] sm:$0xff]
    %v326 = vld [vmem:[#allocation4 + $0x2d8] sm:$0xff]
    %v327 = vld [vmem:[#allocation4 + $0x2e0] sm:$0xff]
    %v328 = vld [vmem:[#allocation4 + $0x2e8] sm:$0xff]
    %v329 = vld [vmem:[#allocation4 + $0x2f0] sm:$0xff]
    %v330 = vld [vmem:[#allocation4 + $0x2f8] sm:$0xff]
    %v331 = vld [vmem:[#allocation4 + $0x300] sm:$0xff]
    %v332 = vld [vmem:[#allocation4 + $0x308] sm:$0xff]
    %v333 = vld [vmem:[#allocation4 + $0x310] sm:$0xff]
    %v334 = vld [vmem:[#allocation4 + $0x318] sm:$0xff]
    %v335 = vld [vmem:[#allocation4 + $0x320] sm:$0xff]
    %v336 = vld [vmem:[#allocation4 + $0x328] sm:$0xff]
    %v337 = vld [vmem:[#allocation4 + $0x330] sm:$0xff]
    %v338 = vld [vmem:[#allocation4 + $0x338] sm:$0xff]
    %v339 = vld [vmem:[#allocation4 + $0x340] sm:$0xff]
    %v340 = vld [vmem:[#allocation4 + $0x348] sm:$0xff]
    %v341 = vld [vmem:[#allocation4 + $0x350] sm:$0xff]
    %v342 = vld [vmem:[#allocation4 + $0x358] sm:$0xff]
    %v343 = vld [vmem:[#allocation4 + $0x360] sm:$0xff]
    %v344 = vld [vmem:[#allocation4 + $0x368] sm:$0xff]
    %v345 = vld [vmem:[#allocation4 + $0x370] sm:$0xff]
    %v346 = vld [vmem:[#allocation4 + $0x378] sm:$0xff]
    %v347 = vld [vmem:[#allocation4 + $0x380] sm:$0xff]
    %v348 = vld [vmem:[#allocation4 + $0x388] sm:$0xff]
    %v349 = vld [vmem:[#allocation4 + $0x390] sm:$0xff]
    %v350 = vld [vmem:[#allocation4 + $0x398] sm:$0xff]
    %v351 = vld [vmem:[#allocation4 + $0x3a0] sm:$0xff]
    %v352 = vld [vmem:[#allocation4 + $0x3a8] sm:$0xff]
    %v353 = vld [vmem:[#allocation4 + $0x3b0] sm:$0xff]
    %v354 = vld [vmem:[#allocation4 + $0x3b8] sm:$0xff]
    %v355 = vld [vmem:[#allocation4 + $0x3c0] sm:$0xff]
    %v356 = vld [vmem:[#allocation4 + $0x3c8] sm:$0xff]
    %v357 = vld [vmem:[#allocation4 + $0x3d0] sm:$0xff]
    %v358 = vld [vmem:[#allocation4 + $0x3d8] sm:$0xff]
    %v359 = vld [vmem:[#allocation4 + $0x3e0] sm:$0xff]
    %v360 = vld [vmem:[#allocation4 + $0x3e8] sm:$0xff]
    %v361 = vld [vmem:[#allocation4 + $0x3f0] sm:$0xff]
    %v362 = vld [vmem:[#allocation4 + $0x3f8] sm:$0xff]
    %v363 = vld [vmem:[#allocation7] sm:$0xff]
    %v364 = vld [vmem:[#allocation7 + $0x8] sm:$0xff]
    %v365 = vld [vmem:[#allocation7 + $0x10] sm:$0xff]
    %v366 = vld [vmem:[#allocation7 + $0x18] sm:$0xff]
    %v367 = vld [vmem:[#allocation7 + $0x20] sm:$0xff]
    %v368 = vld [vmem:[#allocation7 + $0x28] sm:$0xff]
    %v369 = vld [vmem:[#allocation7 + $0x30] sm:$0xff]
    %v370 = vld [vmem:[#allocation7 + $0x38] sm:$0xff]
    %v371 = vld [vmem:[#allocation7 + $0x40] sm:$0xff]
    %v372 = vld [vmem:[#allocation7 + $0x48] sm:$0xff]
    %v373 = vld [vmem:[#allocation7 + $0x50] sm:$0xff]
    %v374 = vld [vmem:[#allocation7 + $0x58] sm:$0xff]
    %v375 = vld [vmem:[#allocation7 + $0x60] sm:$0xff]
    %v376 = vld [vmem:[#allocation7 + $0x68] sm:$0xff]
    %v377 = vld [vmem:[#allocation7 + $0x70] sm:$0xff]
    %v378 = vld [vmem:[#allocation7 + $0x78] sm:$0xff]
    %v379 = vld [vmem:[#allocation7 + $0x80] sm:$0xff]
    %v380 = vld [vmem:[#allocation7 + $0x88] sm:$0xff]
    %v381 = vld [vmem:[#allocation7 + $0x90] sm:$0xff]
    %v382 = vld [vmem:[#allocation7 + $0x98] sm:$0xff]
    %v383 = vld [vmem:[#allocation7 + $0xa0] sm:$0xff]
    %v384 = vld [vmem:[#allocation7 + $0xa8] sm:$0xff]
    %v385 = vld [vmem:[#allocation7 + $0xb0] sm:$0xff]
    %v386 = vld [vmem:[#allocation7 + $0xb8] sm:$0xff]
    %v387 = vld [vmem:[#allocation7 + $0xc0] sm:$0xff]
    %v388 = vld [vmem:[#allocation7 + $0xc8] sm:$0xff]
    %v389 = vld [vmem:[#allocation7 + $0xd0] sm:$0xff]
    %v390 = vld [vmem:[#allocation7 + $0xd8] sm:$0xff]
    %v391 = vld [vmem:[#allocation7 + $0xe0] sm:$0xff]
    %v392 = vld [vmem:[#allocation7 + $0xe8] sm:$0xff]
    %v393 = vld [vmem:[#allocation7 + $0xf0] sm:$0xff]
    %v394 = vld [vmem:[#allocation7 + $0xf8] sm:$0xff]
    %v395 = vld [vmem:[#allocation7 + $0x100] sm:$0xff]
    %v396 = vld [vmem:[#allocation7 + $0x108] sm:$0xff]
    %v397 = vld [vmem:[#allocation7 + $0x110] sm:$0xff]
    %v398 = vld [vmem:[#allocation7 + $0x118] sm:$0xff]
    %v399 = vld [vmem:[#allocation7 + $0x120] sm:$0xff]
    %v400 = vld [vmem:[#allocation7 + $0x128] sm:$0xff]
    %v401 = vld [vmem:[#allocation7 + $0x130] sm:$0xff]
    %v402 = vld [vmem:[#allocation7 + $0x138] sm:$0xff]
    %v403 = vld [vmem:[#allocation7 + $0x140] sm:$0xff]
    %v404 = vld [vmem:[#allocation7 + $0x148] sm:$0xff]
    %v405 = vld [vmem:[#allocation7 + $0x150] sm:$0xff]
    %v406 = vld [vmem:[#allocation7 + $0x158] sm:$0xff]
    %v407 = vld [vmem:[#allocation7 + $0x160] sm:$0xff]
    %v408 = vld [vmem:[#allocation7 + $0x168] sm:$0xff]
    %v409 = vld [vmem:[#allocation7 + $0x170] sm:$0xff]
    %v410 = vld [vmem:[#allocation7 + $0x178] sm:$0xff]
    %v411 = vld [vmem:[#allocation7 + $0x180] sm:$0xff]
    %v412 = vld [vmem:[#allocation7 + $0x188] sm:$0xff]
    %v413 = vld [vmem:[#allocation7 + $0x190] sm:$0xff]
    %v414 = vld [vmem:[#allocation7 + $0x198] sm:$0xff]
    %v415 = vld [vmem:[#allocation7 + $0x1a0] sm:$0xff]
    %v416 = vld [vmem:[#allocation7 + $0x1a8] sm:$0xff]
    %v417 = vld [vmem:[#allocation7 + $0x1b0] sm:$0xff]
    %v418 = vld [vmem:[#allocation7 + $0x1b8] sm:$0xff]
    %v419 = vld [vmem:[#allocation7 + $0x1c0] sm:$0xff]
    %v420 = vld [vmem:[#allocation7 + $0x1c8] sm:$0xff]
    %v421 = vld [vmem:[#allocation7 + $0x1d0] sm:$0xff]
    %v422 = vld [vmem:[#allocation7 + $0x1d8] sm:$0xff]
    %v423 = vld [vmem:[#allocation7 + $0x1e0] sm:$0xff]
    %v424 = vld [vmem:[#allocation7 + $0x1e8] sm:$0xff]
    %v425 = vld [vmem:[#allocation7 + $0x1f0] sm:$0xff]
    %v426 = vld [vmem:[#allocation7 + $0x1f8] sm:$0xff]
    %v427 = vld [vmem:[#allocation7 + $0x200] sm:$0xff]
    %v428 = vld [vmem:[#allocation7 + $0x208] sm:$0xff]
    %v429 = vld [vmem:[#allocation7 + $0x210] sm:$0xff]
    %v430 = vld [vmem:[#allocation7 + $0x218] sm:$0xff]
    %v431 = vld [vmem:[#allocation7 + $0x220] sm:$0xff]
    %v432 = vld [vmem:[#allocation7 + $0x228] sm:$0xff]
    %v433 = vld [vmem:[#allocation7 + $0x230] sm:$0xff]
    %v434 = vld [vmem:[#allocation7 + $0x238] sm:$0xff]
    %v435 = vld [vmem:[#allocation7 + $0x240] sm:$0xff]
    %v436 = vld [vmem:[#allocation7 + $0x248] sm:$0xff]
    %v437 = vld [vmem:[#allocation7 + $0x250] sm:$0xff]
    %v438 = vld [vmem:[#allocation7 + $0x258] sm:$0xff]
    %v439 = vld [vmem:[#allocation7 + $0x260] sm:$0xff]
    %v440 = vld [vmem:[#allocation7 + $0x268] sm:$0xff]
    %v441 = vld [vmem:[#allocation7 + $0x270] sm:$0xff]
    %v442 = vld [vmem:[#allocation7 + $0x278] sm:$0xff]
    %v443 = vld [vmem:[#allocation7 + $0x280] sm:$0xff]
    %v444 = vld [vmem:[#allocation7 + $0x288] sm:$0xff]
    %v445 = vld [vmem:[#allocation7 + $0x290] sm:$0xff]
    %v446 = vld [vmem:[#allocation7 + $0x298] sm:$0xff]
    %v447 = vld [vmem:[#allocation7 + $0x2a0] sm:$0xff]
    %v448 = vld [vmem:[#allocation7 + $0x2a8] sm:$0xff]
    %v449 = vld [vmem:[#allocation7 + $0x2b0] sm:$0xff]
    %v450 = vld [vmem:[#allocation7 + $0x2b8] sm:$0xff]
    %v451 = vld [vmem:[#allocation7 + $0x2c0] sm:$0xff]
    %v452 = vld [vmem:[#allocation7 + $0x2c8] sm:$0xff]
    %v453 = vld [vmem:[#allocation7 + $0x2d0] sm:$0xff]
    %v454 = vld [vmem:[#allocation7 + $0x2d8] sm:$0xff]
    %v455 = vld [vmem:[#allocation7 + $0x2e0] sm:$0xff]
    %v456 = vld [vmem:[#allocation7 + $0x2e8] sm:$0xff]
    %v457 = vld [vmem:[#allocation7 + $0x2f0] sm:$0xff]
    %v458 = vld [vmem:[#allocation7 + $0x2f8] sm:$0xff]
    %v459 = vld [vmem:[#allocation7 + $0x300] sm:$0xff]
    %v460 = vld [vmem:[#allocation7 + $0x308] sm:$0xff]
    %v461 = vld [vmem:[#allocation7 + $0x310] sm:$0xff]
    %v462 = vld [vmem:[#allocation7 + $0x318] sm:$0xff]
    %v463 = vld [vmem:[#allocation7 + $0x320] sm:$0xff]
    %v464 = vld [vmem:[#allocation7 + $0x328] sm:$0xff]
    %v465 = vld [vmem:[#allocation7 + $0x330] sm:$0xff]
    %v466 = vld [vmem:[#allocation7 + $0x338] sm:$0xff]
    %v467 = vld [vmem:[#allocation7 + $0x340] sm:$0xff]
    %v468 = vld [vmem:[#allocation7 + $0x348] sm:$0xff]
    %v469 = vld [vmem:[#allocation7 + $0x350] sm:$0xff]
    %v470 = vld [vmem:[#allocation7 + $0x358] sm:$0xff]
    %v471 = vld [vmem:[#allocation7 + $0x360] sm:$0xff]
    %v472 = vld [vmem:[#allocation7 + $0x368] sm:$0xff]
    %v473 = vld [vmem:[#allocation7 + $0x370] sm:$0xff]
    %v474 = vld [vmem:[#allocation7 + $0x378] sm:$0xff]
    %v475 = vld [vmem:[#allocation7 + $0x380] sm:$0xff]
    %v476 = vld [vmem:[#allocation7 + $0x388] sm:$0xff]
    %v477 = vld [vmem:[#allocation7 + $0x390] sm:$0xff]
    %v478 = vld [vmem:[#allocation7 + $0x398] sm:$0xff]
    %v479 = vld [vmem:[#allocation7 + $0x3a0] sm:$0xff]
    %v480 = vld [vmem:[#allocation7 + $0x3a8] sm:$0xff]
    %v481 = vld [vmem:[#allocation7 + $0x3b0] sm:$0xff]
    %v482 = vld [vmem:[#allocation7 + $0x3b8] sm:$0xff]
    %v483 = vld [vmem:[#allocation7 + $0x3c0] sm:$0xff]
    %v484 = vld [vmem:[#allocation7 + $0x3c8] sm:$0xff]
    %v485 = vld [vmem:[#allocation7 + $0x3d0] sm:$0xff]
    %v486 = vld [vmem:[#allocation7 + $0x3d8] sm:$0xff]
    %v487 = vld [vmem:[#allocation7 + $0x3e0] sm:$0xff]
    %v488 = vld [vmem:[#allocation7 + $0x3e8] sm:$0xff]
    %v489 = vld [vmem:[#allocation7 + $0x3f0] sm:$0xff]
    %v490 = vld [vmem:[#allocation7 + $0x3f8] sm:$0xff]
    %v491 = vld [vmem:[#allocation10] sm:$0xff]
    %v492 = vld [vmem:[#allocation10 + $0x8] sm:$0xff]
    %v493 = vld [vmem:[#allocation10 + $0x10] sm:$0xff]
    %v494 = vld [vmem:[#allocation10 + $0x18] sm:$0xff]
    %v495 = vld [vmem:[#allocation10 + $0x20] sm:$0xff]
    %v496 = vld [vmem:[#allocation10 + $0x28] sm:$0xff]
    %v497 = vld [vmem:[#allocation10 + $0x30] sm:$0xff]
    %v498 = vld [vmem:[#allocation10 + $0x38] sm:$0xff]
    %v499 = vld [vmem:[#allocation10 + $0x40] sm:$0xff]
    %v500 = vld [vmem:[#allocation10 + $0x48] sm:$0xff]
    %v501 = vld [vmem:[#allocation10 + $0x50] sm:$0xff]
    %v502 = vld [vmem:[#allocation10 + $0x58] sm:$0xff]
    %v503 = vld [vmem:[#allocation10 + $0x60] sm:$0xff]
    %v504 = vld [vmem:[#allocation10 + $0x68] sm:$0xff]
    %v505 = vld [vmem:[#allocation10 + $0x70] sm:$0xff]
    %v506 = vld [vmem:[#allocation10 + $0x78] sm:$0xff]
    %v507 = vld [vmem:[#allocation10 + $0x80] sm:$0xff]
    %v508 = vld [vmem:[#allocation10 + $0x88] sm:$0xff]
    %v509 = vld [vmem:[#allocation10 + $0x90] sm:$0xff]
    %v510 = vld [vmem:[#allocation10 + $0x98] sm:$0xff]
    %v511 = vld [vmem:[#allocation10 + $0xa0] sm:$0xff]
    %v512 = vld [vmem:[#allocation10 + $0xa8] sm:$0xff]
    %v513 = vld [vmem:[#allocation10 + $0xb0] sm:$0xff]
    %v514 = vld [vmem:[#allocation10 + $0xb8] sm:$0xff]
    %v515 = vld [vmem:[#allocation10 + $0xc0] sm:$0xff]
    %v516 = vld [vmem:[#allocation10 + $0xc8] sm:$0xff]
    %v517 = vld [vmem:[#allocation10 + $0xd0] sm:$0xff]
    %v518 = vld [vmem:[#allocation10 + $0xd8] sm:$0xff]
    %v519 = vld [vmem:[#allocation10 + $0xe0] sm:$0xff]
    %v520 = vld [vmem:[#allocation10 + $0xe8] sm:$0xff]
    %v521 = vld [vmem:[#allocation10 + $0xf0] sm:$0xff]
    %v522 = vld [vmem:[#allocation10 + $0xf8] sm:$0xff]
    %v523 = vld [vmem:[#allocation13] sm:$0xff]
    %v524 = vld [vmem:[#allocation13 + $0x8] sm:$0xff]
    %v525 = vld [vmem:[#allocation13 + $0x10] sm:$0xff]
    %v526 = vld [vmem:[#allocation13 + $0x18] sm:$0xff]
    %v527 = vld [vmem:[#allocation13 + $0x20] sm:$0xff]
    %v528 = vld [vmem:[#allocation13 + $0x28] sm:$0xff]
    %v529 = vld [vmem:[#allocation13 + $0x30] sm:$0xff]
    %v530 = vld [vmem:[#allocation13 + $0x38] sm:$0xff]
    %v531 = vld [vmem:[#allocation13 + $0x40] sm:$0xff]
    %v532 = vld [vmem:[#allocation13 + $0x48] sm:$0xff]
    %v533 = vld [vmem:[#allocation13 + $0x50] sm:$0xff]
    %v534 = vld [vmem:[#allocation13 + $0x58] sm:$0xff]
    %v535 = vld [vmem:[#allocation13 + $0x60] sm:$0xff]
    %v536 = vld [vmem:[#allocation13 + $0x68] sm:$0xff]
    %v537 = vld [vmem:[#allocation13 + $0x70] sm:$0xff]
    %v538 = vld [vmem:[#allocation13 + $0x78] sm:$0xff]
    %v539 = vld [vmem:[#allocation13 + $0x80] sm:$0xff]
    %v540 = vld [vmem:[#allocation13 + $0x88] sm:$0xff]
    %v541 = vld [vmem:[#allocation13 + $0x90] sm:$0xff]
    %v542 = vld [vmem:[#allocation13 + $0x98] sm:$0xff]
    %v543 = vld [vmem:[#allocation13 + $0xa0] sm:$0xff]
    %v544 = vld [vmem:[#allocation13 + $0xa8] sm:$0xff]
    %v545 = vld [vmem:[#allocation13 + $0xb0] sm:$0xff]
    %v546 = vld [vmem:[#allocation13 + $0xb8] sm:$0xff]
    %v547 = vld [vmem:[#allocation13 + $0xc0] sm:$0xff]
    %v548 = vld [vmem:[#allocation13 + $0xc8] sm:$0xff]
    %v549 = vld [vmem:[#allocation13 + $0xd0] sm:$0xff]
    %v550 = vld [vmem:[#allocation13 + $0xd8] sm:$0xff]
    %v551 = vld [vmem:[#allocation13 + $0xe0] sm:$0xff]
    %v552 = vld [vmem:[#allocation13 + $0xe8] sm:$0xff]
    %v553 = vld [vmem:[#allocation13 + $0xf0] sm:$0xff]
    %v554 = vld [vmem:[#allocation13 + $0xf8] sm:$0xff]
    %v555 = vld [vmem:[#allocation13 + $0x100] sm:$0xff]
    %v556 = vld [vmem:[#allocation13 + $0x108] sm:$0xff]
    %v557 = vld [vmem:[#allocation13 + $0x110] sm:$0xff]
    %v558 = vld [vmem:[#allocation13 + $0x118] sm:$0xff]
    %v559 = vld [vmem:[#allocation13 + $0x120] sm:$0xff]
    %v560 = vld [vmem:[#allocation13 + $0x128] sm:$0xff]
    %v561 = vld [vmem:[#allocation13 + $0x130] sm:$0xff]
    %v562 = vld [vmem:[#allocation13 + $0x138] sm:$0xff]
    %v563 = vld [vmem:[#allocation13 + $0x140] sm:$0xff]
    %v564 = vld [vmem:[#allocation13 + $0x148] sm:$0xff]
    %v565 = vld [vmem:[#allocation13 + $0x150] sm:$0xff]
    %v566 = vld [vmem:[#allocation13 + $0x158] sm:$0xff]
    %v567 = vld [vmem:[#allocation13 + $0x160] sm:$0xff]
    %v568 = vld [vmem:[#allocation13 + $0x168] sm:$0xff]
    %v569 = vld [vmem:[#allocation13 + $0x170] sm:$0xff]
    %v570 = vld [vmem:[#allocation13 + $0x178] sm:$0xff]
    %v571 = vld [vmem:[#allocation13 + $0x180] sm:$0xff]
    %v572 = vld [vmem:[#allocation13 + $0x188] sm:$0xff]
    %v573 = vld [vmem:[#allocation13 + $0x190] sm:$0xff]
    %v574 = vld [vmem:[#allocation13 + $0x198] sm:$0xff]
    %v575 = vld [vmem:[#allocation13 + $0x1a0] sm:$0xff]
    %v576 = vld [vmem:[#allocation13 + $0x1a8] sm:$0xff]
    %v577 = vld [vmem:[#allocation13 + $0x1b0] sm:$0xff]
    %v578 = vld [vmem:[#allocation13 + $0x1b8] sm:$0xff]
    %v579 = vld [vmem:[#allocation13 + $0x1c0] sm:$0xff]
    %v580 = vld [vmem:[#allocation13 + $0x1c8] sm:$0xff]
    %v581 = vld [vmem:[#allocation13 + $0x1d0] sm:$0xff]
    %v582 = vld [vmem:[#allocation13 + $0x1d8] sm:$0xff]
    %v583 = vld [vmem:[#allocation13 + $0x1e0] sm:$0xff]
    %v584 = vld [vmem:[#allocation13 + $0x1e8] sm:$0xff]
    %v585 = vld [vmem:[#allocation13 + $0x1f0] sm:$0xff]
    %v586 = vld [vmem:[#allocation13 + $0x1f8] sm:$0xff]
    %v587 = vld [vmem:[#allocation13 + $0x200] sm:$0xff]
    %v588 = vld [vmem:[#allocation13 + $0x208] sm:$0xff]
    %v589 = vld [vmem:[#allocation13 + $0x210] sm:$0xff]
    %v590 = vld [vmem:[#allocation13 + $0x218] sm:$0xff]
    %v591 = vld [vmem:[#allocation13 + $0x220] sm:$0xff]
    %v592 = vld [vmem:[#allocation13 + $0x228] sm:$0xff]
    %v593 = vld [vmem:[#allocation13 + $0x230] sm:$0xff]
    %v594 = vld [vmem:[#allocation13 + $0x238] sm:$0xff]
    %v595 = vld [vmem:[#allocation13 + $0x240] sm:$0xff]
    %v596 = vld [vmem:[#allocation13 + $0x248] sm:$0xff]
    %v597 = vld [vmem:[#allocation13 + $0x250] sm:$0xff]
    %v598 = vld [vmem:[#allocation13 + $0x258] sm:$0xff]
    %v599 = vld [vmem:[#allocation13 + $0x260] sm:$0xff]
    %v600 = vld [vmem:[#allocation13 + $0x268] sm:$0xff]
    %v601 = vld [vmem:[#allocation13 + $0x270] sm:$0xff]
    %v602 = vld [vmem:[#allocation13 + $0x278] sm:$0xff]
    %v603 = vld [vmem:[#allocation13 + $0x280] sm:$0xff]
    %v604 = vld [vmem:[#allocation13 + $0x288] sm:$0xff]
    %v605 = vld [vmem:[#allocation13 + $0x290] sm:$0xff]
    %v606 = vld [vmem:[#allocation13 + $0x298] sm:$0xff]
    %v607 = vld [vmem:[#allocation13 + $0x2a0] sm:$0xff]
    %v608 = vld [vmem:[#allocation13 + $0x2a8] sm:$0xff]
    %v609 = vld [vmem:[#allocation13 + $0x2b0] sm:$0xff]
    %v610 = vld [vmem:[#allocation13 + $0x2b8] sm:$0xff]
    %v611 = vld [vmem:[#allocation13 + $0x2c0] sm:$0xff]
    %v612 = vld [vmem:[#allocation13 + $0x2c8] sm:$0xff]
    %v613 = vld [vmem:[#allocation13 + $0x2d0] sm:$0xff]
    %v614 = vld [vmem:[#allocation13 + $0x2d8] sm:$0xff]
    %v615 = vld [vmem:[#allocation13 + $0x2e0] sm:$0xff]
    %v616 = vld [vmem:[#allocation13 + $0x2e8] sm:$0xff]
    %v617 = vld [vmem:[#allocation13 + $0x2f0] sm:$0xff]
    %v618 = vld [vmem:[#allocation13 + $0x2f8] sm:$0xff]
    %v619 = vld [vmem:[#allocation13 + $0x300] sm:$0xff]
    %v620 = vld [vmem:[#allocation13 + $0x308] sm:$0xff]
    %v621 = vld [vmem:[#allocation13 + $0x310] sm:$0xff]
    %v622 = vld [vmem:[#allocation13 + $0x318] sm:$0xff]
    %v623 = vld [vmem:[#allocation13 + $0x320] sm:$0xff]
    %v624 = vld [vmem:[#allocation13 + $0x328] sm:$0xff]
    %v625 = vld [vmem:[#allocation13 + $0x330] sm:$0xff]
    %v626 = vld [vmem:[#allocation13 + $0x338] sm:$0xff]
    %v627 = vld [vmem:[#allocation13 + $0x340] sm:$0xff]
    %v628 = vld [vmem:[#allocation13 + $0x348] sm:$0xff]
    %v629 = vld [vmem:[#allocation13 + $0x350] sm:$0xff]
    %v630 = vld [vmem:[#allocation13 + $0x358] sm:$0xff]
    %v631 = vld [vmem:[#allocation13 + $0x360] sm:$0xff]
    %v632 = vld [vmem:[#allocation13 + $0x368] sm:$0xff]
    %v633 = vld [vmem:[#allocation13 + $0x370] sm:$0xff]
    %v634 = vld [vmem:[#allocation13 + $0x378] sm:$0xff]
    %v635 = vld [vmem:[#allocation13 + $0x380] sm:$0xff]
    %v636 = vld [vmem:[#allocation13 + $0x388] sm:$0xff]
    %v637 = vld [vmem:[#allocation13 + $0x390] sm:$0xff]
    %v638 = vld [vmem:[#allocation13 + $0x398] sm:$0xff]
    %v639 = vld [vmem:[#allocation13 + $0x3a0] sm:$0xff]
    %v640 = vld [vmem:[#allocation13 + $0x3a8] sm:$0xff]
    %v641 = vld [vmem:[#allocation13 + $0x3b0] sm:$0xff]
    %v642 = vld [vmem:[#allocation13 + $0x3b8] sm:$0xff]
    %v643 = vld [vmem:[#allocation13 + $0x3c0] sm:$0xff]
    %v644 = vld [vmem:[#allocation13 + $0x3c8] sm:$0xff]
    %v645 = vld [vmem:[#allocation13 + $0x3d0] sm:$0xff]
    %v646 = vld [vmem:[#allocation13 + $0x3d8] sm:$0xff]
    %v647 = vld [vmem:[#allocation13 + $0x3e0] sm:$0xff]
    %v648 = vld [vmem:[#allocation13 + $0x3e8] sm:$0xff]
    %v649 = vld [vmem:[#allocation13 + $0x3f0] sm:$0xff]
    %v650 = vld [vmem:[#allocation13 + $0x3f8] sm:$0xff]
    %v651 = vld [vmem:[#allocation13 + $0x400] sm:$0xff]
    %v652 = vld [vmem:[#allocation13 + $0x408] sm:$0xff]
    %v653 = vld [vmem:[#allocation13 + $0x410] sm:$0xff]
    %v654 = vld [vmem:[#allocation13 + $0x418] sm:$0xff]
    %v655 = vld [vmem:[#allocation13 + $0x420] sm:$0xff]
    %v656 = vld [vmem:[#allocation13 + $0x428] sm:$0xff]
    %v657 = vld [vmem:[#allocation13 + $0x430] sm:$0xff]
    %v658 = vld [vmem:[#allocation13 + $0x438] sm:$0xff]
    %v659 = vld [vmem:[#allocation13 + $0x440] sm:$0xff]
    %v660 = vld [vmem:[#allocation13 + $0x448] sm:$0xff]
    %v661 = vld [vmem:[#allocation13 + $0x450] sm:$0xff]
    %v662 = vld [vmem:[#allocation13 + $0x458] sm:$0xff]
    %v663 = vld [vmem:[#allocation13 + $0x460] sm:$0xff]
    %v664 = vld [vmem:[#allocation13 + $0x468] sm:$0xff]
    %v665 = vld [vmem:[#allocation13 + $0x470] sm:$0xff]
    %v666 = vld [vmem:[#allocation13 + $0x478] sm:$0xff]
    %v667 = vld [vmem:[#allocation13 + $0x480] sm:$0xff]
    %v668 = vld [vmem:[#allocation13 + $0x488] sm:$0xff]
    %v669 = vld [vmem:[#allocation13 + $0x490] sm:$0xff]
    %v670 = vld [vmem:[#allocation13 + $0x498] sm:$0xff]
    %v671 = vld [vmem:[#allocation13 + $0x4a0] sm:$0xff]
    %v672 = vld [vmem:[#allocation13 + $0x4a8] sm:$0xff]
    %v673 = vld [vmem:[#allocation13 + $0x4b0] sm:$0xff]
    %v674 = vld [vmem:[#allocation13 + $0x4b8] sm:$0xff]
    %v675 = vld [vmem:[#allocation13 + $0x4c0] sm:$0xff]
    %v676 = vld [vmem:[#allocation13 + $0x4c8] sm:$0xff]
    %v677 = vld [vmem:[#allocation13 + $0x4d0] sm:$0xff]
    %v678 = vld [vmem:[#allocation13 + $0x4d8] sm:$0xff]
    %v679 = vld [vmem:[#allocation13 + $0x4e0] sm:$0xff]
    %v680 = vld [vmem:[#allocation13 + $0x4e8] sm:$0xff]
    %v681 = vld [vmem:[#allocation13 + $0x4f0] sm:$0xff]
    %v682 = vld [vmem:[#allocation13 + $0x4f8] sm:$0xff]
    %v683 = vld [vmem:[#allocation13 + $0x500] sm:$0xff]
    %v684 = vld [vmem:[#allocation13 + $0x508] sm:$0xff]
    %v685 = vld [vmem:[#allocation13 + $0x510] sm:$0xff]
    %v686 = vld [vmem:[#allocation13 + $0x518] sm:$0xff]
    %v687 = vld [vmem:[#allocation13 + $0x520] sm:$0xff]
    %v688 = vld [vmem:[#allocation13 + $0x528] sm:$0xff]
    %v689 = vld [vmem:[#allocation13 + $0x530] sm:$0xff]
    %v690 = vld [vmem:[#allocation13 + $0x538] sm:$0xff]
    %v691 = vld [vmem:[#allocation13 + $0x540] sm:$0xff]
    %v692 = vld [vmem:[#allocation13 + $0x548] sm:$0xff]
    %v693 = vld [vmem:[#allocation13 + $0x550] sm:$0xff]
    %v694 = vld [vmem:[#allocation13 + $0x558] sm:$0xff]
    %v695 = vld [vmem:[#allocation13 + $0x560] sm:$0xff]
    %v696 = vld [vmem:[#allocation13 + $0x568] sm:$0xff]
    %v697 = vld [vmem:[#allocation13 + $0x570] sm:$0xff]
    %v698 = vld [vmem:[#allocation13 + $0x578] sm:$0xff]
    %v699 = vld [vmem:[#allocation13 + $0x580] sm:$0xff]
    %v700 = vld [vmem:[#allocation13 + $0x588] sm:$0xff]
    %v701 = vld [vmem:[#allocation13 + $0x590] sm:$0xff]
    %v702 = vld [vmem:[#allocation13 + $0x598] sm:$0xff]
    %v703 = vld [vmem:[#allocation13 + $0x5a0] sm:$0xff]
    %v704 = vld [vmem:[#allocation13 + $0x5a8] sm:$0xff]
    %v705 = vld [vmem:[#allocation13 + $0x5b0] sm:$0xff]
    %v706 = vld [vmem:[#allocation13 + $0x5b8] sm:$0xff]
    %v707 = vld [vmem:[#allocation13 + $0x5c0] sm:$0xff]
    %v708 = vld [vmem:[#allocation13 + $0x5c8] sm:$0xff]
    %v709 = vld [vmem:[#allocation13 + $0x5d0] sm:$0xff]
    %v710 = vld [vmem:[#allocation13 + $0x5d8] sm:$0xff]
    %v711 = vld [vmem:[#allocation13 + $0x5e0] sm:$0xff]
    %v712 = vld [vmem:[#allocation13 + $0x5e8] sm:$0xff]
    %v713 = vld [vmem:[#allocation13 + $0x5f0] sm:$0xff]
    %v714 = vld [vmem:[#allocation13 + $0x5f8] sm:$0xff]
    %v715 = vld [vmem:[#allocation13 + $0x600] sm:$0xff]
    %v716 = vld [vmem:[#allocation13 + $0x608] sm:$0xff]
    %v717 = vld [vmem:[#allocation13 + $0x610] sm:$0xff]
    %v718 = vld [vmem:[#allocation13 + $0x618] sm:$0xff]
    %v719 = vld [vmem:[#allocation13 + $0x620] sm:$0xff]
    %v720 = vld [vmem:[#allocation13 + $0x628] sm:$0xff]
    %v721 = vld [vmem:[#allocation13 + $0x630] sm:$0xff]
    %v722 = vld [vmem:[#allocation13 + $0x638] sm:$0xff]
    %v723 = vld [vmem:[#allocation13 + $0x640] sm:$0xff]
    %v724 = vld [vmem:[#allocation13 + $0x648] sm:$0xff]
    %v725 = vld [vmem:[#allocation13 + $0x650] sm:$0xff]
    %v726 = vld [vmem:[#allocation13 + $0x658] sm:$0xff]
    %v727 = vld [vmem:[#allocation13 + $0x660] sm:$0xff]
    %v728 = vld [vmem:[#allocation13 + $0x668] sm:$0xff]
    %v729 = vld [vmem:[#allocation13 + $0x670] sm:$0xff]
    %v730 = vld [vmem:[#allocation13 + $0x678] sm:$0xff]
    %v731 = vld [vmem:[#allocation13 + $0x680] sm:$0xff]
    %v732 = vld [vmem:[#allocation13 + $0x688] sm:$0xff]
    %v733 = vld [vmem:[#allocation13 + $0x690] sm:$0xff]
    %v734 = vld [vmem:[#allocation13 + $0x698] sm:$0xff]
    %v735 = vld [vmem:[#allocation13 + $0x6a0] sm:$0xff]
    %v736 = vld [vmem:[#allocation13 + $0x6a8] sm:$0xff]
    %v737 = vld [vmem:[#allocation13 + $0x6b0] sm:$0xff]
    %v738 = vld [vmem:[#allocation13 + $0x6b8] sm:$0xff]
    %v739 = vld [vmem:[#allocation13 + $0x6c0] sm:$0xff]
    %v740 = vld [vmem:[#allocation13 + $0x6c8] sm:$0xff]
    %v741 = vld [vmem:[#allocation13 + $0x6d0] sm:$0xff]
    %v742 = vld [vmem:[#allocation13 + $0x6d8] sm:$0xff]
    %v743 = vld [vmem:[#allocation13 + $0x6e0] sm:$0xff]
    %v744 = vld [vmem:[#allocation13 + $0x6e8] sm:$0xff]
    %v745 = vld [vmem:[#allocation13 + $0x6f0] sm:$0xff]
    %v746 = vld [vmem:[#allocation13 + $0x6f8] sm:$0xff]
    %v747 = vld [vmem:[#allocation13 + $0x700] sm:$0xff]
    %v748 = vld [vmem:[#allocation13 + $0x708] sm:$0xff]
    %v749 = vld [vmem:[#allocation13 + $0x710] sm:$0xff]
    %v750 = vld [vmem:[#allocation13 + $0x718] sm:$0xff]
    %v751 = vld [vmem:[#allocation13 + $0x720] sm:$0xff]
    %v752 = vld [vmem:[#allocation13 + $0x728] sm:$0xff]
    %v753 = vld [vmem:[#allocation13 + $0x730] sm:$0xff]
    %v754 = vld [vmem:[#allocation13 + $0x738] sm:$0xff]
    %v755 = vld [vmem:[#allocation13 + $0x740] sm:$0xff]
    %v756 = vld [vmem:[#allocation13 + $0x748] sm:$0xff]
    %v757 = vld [vmem:[#allocation13 + $0x750] sm:$0xff]
    %v758 = vld [vmem:[#allocation13 + $0x758] sm:$0xff]
    %v759 = vld [vmem:[#allocation13 + $0x760] sm:$0xff]
    %v760 = vld [vmem:[#allocation13 + $0x768] sm:$0xff]
    %v761 = vld [vmem:[#allocation13 + $0x770] sm:$0xff]
    %v762 = vld [vmem:[#allocation13 + $0x778] sm:$0xff]
    %v763 = vld [vmem:[#allocation13 + $0x780] sm:$0xff]
    %v764 = vld [vmem:[#allocation13 + $0x788] sm:$0xff]
    %v765 = vld [vmem:[#allocation13 + $0x790] sm:$0xff]
    %v766 = vld [vmem:[#allocation13 + $0x798] sm:$0xff]
    %v767 = vld [vmem:[#allocation13 + $0x7a0] sm:$0xff]
    %v768 = vld [vmem:[#allocation13 + $0x7a8] sm:$0xff]
    %v769 = vld [vmem:[#allocation13 + $0x7b0] sm:$0xff]
    %v770 = vld [vmem:[#allocation13 + $0x7b8] sm:$0xff]
    %v771 = vld [vmem:[#allocation13 + $0x7c0] sm:$0xff]
    %v772 = vld [vmem:[#allocation13 + $0x7c8] sm:$0xff]
    %v773 = vld [vmem:[#allocation13 + $0x7d0] sm:$0xff]
    %v774 = vld [vmem:[#allocation13 + $0x7d8] sm:$0xff]
    %v775 = vld [vmem:[#allocation13 + $0x7e0] sm:$0xff]
    %v776 = vld [vmem:[#allocation13 + $0x7e8] sm:$0xff]
    %v777 = vld [vmem:[#allocation13 + $0x7f0] sm:$0xff]
    %v778 = vld [vmem:[#allocation13 + $0x7f8] sm:$0xff]
    %v779 = vld [vmem:[#allocation13 + $0x800] sm:$0xff]
    %v780 = vld [vmem:[#allocation13 + $0x808] sm:$0xff]
    %v781 = vld [vmem:[#allocation13 + $0x810] sm:$0xff]
    %v782 = vld [vmem:[#allocation13 + $0x818] sm:$0xff]
    %v783 = vld [vmem:[#allocation13 + $0x820] sm:$0xff]
    %v784 = vld [vmem:[#allocation13 + $0x828] sm:$0xff]
    %v785 = vld [vmem:[#allocation13 + $0x830] sm:$0xff]
    %v786 = vld [vmem:[#allocation13 + $0x838] sm:$0xff]
    %v787 = vld [vmem:[#allocation13 + $0x840] sm:$0xff]
    %v788 = vld [vmem:[#allocation13 + $0x848] sm:$0xff]
    %v789 = vld [vmem:[#allocation13 + $0x850] sm:$0xff]
    %v790 = vld [vmem:[#allocation13 + $0x858] sm:$0xff]
    %v791 = vld [vmem:[#allocation13 + $0x860] sm:$0xff]
    %v792 = vld [vmem:[#allocation13 + $0x868] sm:$0xff]
    %v793 = vld [vmem:[#allocation13 + $0x870] sm:$0xff]
    %v794 = vld [vmem:[#allocation13 + $0x878] sm:$0xff]
    %v795 = vld [vmem:[#allocation13 + $0x880] sm:$0xff]
    %v796 = vld [vmem:[#allocation13 + $0x888] sm:$0xff]
    %v797 = vld [vmem:[#allocation13 + $0x890] sm:$0xff]
    %v798 = vld [vmem:[#allocation13 + $0x898] sm:$0xff]
    %v799 = vld [vmem:[#allocation13 + $0x8a0] sm:$0xff]
    %v800 = vld [vmem:[#allocation13 + $0x8a8] sm:$0xff]
    %v801 = vld [vmem:[#allocation13 + $0x8b0] sm:$0xff]
    %v802 = vld [vmem:[#allocation13 + $0x8b8] sm:$0xff]
    %v803 = vld [vmem:[#allocation13 + $0x8c0] sm:$0xff]
    %v804 = vld [vmem:[#allocation13 + $0x8c8] sm:$0xff]
    %v805 = vld [vmem:[#allocation13 + $0x8d0] sm:$0xff]
    %v806 = vld [vmem:[#allocation13 + $0x8d8] sm:$0xff]
    %v807 = vld [vmem:[#allocation13 + $0x8e0] sm:$0xff]
    %v808 = vld [vmem:[#allocation13 + $0x8e8] sm:$0xff]
    %v809 = vld [vmem:[#allocation13 + $0x8f0] sm:$0xff]
    %v810 = vld [vmem:[#allocation13 + $0x8f8] sm:$0xff]
    %v811 = vld [vmem:[#allocation13 + $0x900] sm:$0xff]
    %v812 = vld [vmem:[#allocation13 + $0x908] sm:$0xff]
    %v813 = vld [vmem:[#allocation13 + $0x910] sm:$0xff]
    %v814 = vld [vmem:[#allocation13 + $0x918] sm:$0xff]
    %v815 = vld [vmem:[#allocation13 + $0x920] sm:$0xff]
    %v816 = vld [vmem:[#allocation13 + $0x928] sm:$0xff]
    %v817 = vld [vmem:[#allocation13 + $0x930] sm:$0xff]
    %v818 = vld [vmem:[#allocation13 + $0x938] sm:$0xff]
    %v819 = vld [vmem:[#allocation13 + $0x940] sm:$0xff]
    %v820 = vld [vmem:[#allocation13 + $0x948] sm:$0xff]
    %v821 = vld [vmem:[#allocation13 + $0x950] sm:$0xff]
    %v822 = vld [vmem:[#allocation13 + $0x958] sm:$0xff]
    %v823 = vld [vmem:[#allocation13 + $0x960] sm:$0xff]
    %v824 = vld [vmem:[#allocation13 + $0x968] sm:$0xff]
    %v825 = vld [vmem:[#allocation13 + $0x970] sm:$0xff]
    %v826 = vld [vmem:[#allocation13 + $0x978] sm:$0xff]
    %v827 = vld [vmem:[#allocation13 + $0x980] sm:$0xff]
    %v828 = vld [vmem:[#allocation13 + $0x988] sm:$0xff]
    %v829 = vld [vmem:[#allocation13 + $0x990] sm:$0xff]
    %v830 = vld [vmem:[#allocation13 + $0x998] sm:$0xff]
    %v831 = vld [vmem:[#allocation13 + $0x9a0] sm:$0xff]
    %v832 = vld [vmem:[#allocation13 + $0x9a8] sm:$0xff]
    %v833 = vld [vmem:[#allocation13 + $0x9b0] sm:$0xff]
    %v834 = vld [vmem:[#allocation13 + $0x9b8] sm:$0xff]
    %v835 = vld [vmem:[#allocation13 + $0x9c0] sm:$0xff]
    %v836 = vld [vmem:[#allocation13 + $0x9c8] sm:$0xff]
    %v837 = vld [vmem:[#allocation13 + $0x9d0] sm:$0xff]
    %v838 = vld [vmem:[#allocation13 + $0x9d8] sm:$0xff]
    %v839 = vld [vmem:[#allocation13 + $0x9e0] sm:$0xff]
    %v840 = vld [vmem:[#allocation13 + $0x9e8] sm:$0xff]
    %v841 = vld [vmem:[#allocation13 + $0x9f0] sm:$0xff]
    %v842 = vld [vmem:[#allocation13 + $0x9f8] sm:$0xff]
    %v843 = vld [vmem:[#allocation13 + $0xa00] sm:$0xff]
    %v844 = vld [vmem:[#allocation13 + $0xa08] sm:$0xff]
    %v845 = vld [vmem:[#allocation13 + $0xa10] sm:$0xff]
    %v846 = vld [vmem:[#allocation13 + $0xa18] sm:$0xff]
    %v847 = vld [vmem:[#allocation13 + $0xa20] sm:$0xff]
    %v848 = vld [vmem:[#allocation13 + $0xa28] sm:$0xff]
    %v849 = vld [vmem:[#allocation13 + $0xa30] sm:$0xff]
    %v850 = vld [vmem:[#allocation13 + $0xa38] sm:$0xff]
    %v851 = vld [vmem:[#allocation13 + $0xa40] sm:$0xff]
    %v852 = vld [vmem:[#allocation13 + $0xa48] sm:$0xff]
    %v853 = vld [vmem:[#allocation13 + $0xa50] sm:$0xff]
    %v854 = vld [vmem:[#allocation13 + $0xa58] sm:$0xff]
    %v855 = vld [vmem:[#allocation13 + $0xa60] sm:$0xff]
    %v856 = vld [vmem:[#allocation13 + $0xa68] sm:$0xff]
    %v857 = vld [vmem:[#allocation13 + $0xa70] sm:$0xff]
    %v858 = vld [vmem:[#allocation13 + $0xa78] sm:$0xff]
    %v859 = vld [vmem:[#allocation13 + $0xa80] sm:$0xff]
    %v860 = vld [vmem:[#allocation13 + $0xa88] sm:$0xff]
    %v861 = vld [vmem:[#allocation13 + $0xa90] sm:$0xff]
    %v862 = vld [vmem:[#allocation13 + $0xa98] sm:$0xff]
    %v863 = vld [vmem:[#allocation13 + $0xaa0] sm:$0xff]
    %v864 = vld [vmem:[#allocation13 + $0xaa8] sm:$0xff]
    %v865 = vld [vmem:[#allocation13 + $0xab0] sm:$0xff]
    %v866 = vld [vmem:[#allocation13 + $0xab8] sm:$0xff]
    %v867 = vld [vmem:[#allocation13 + $0xac0] sm:$0xff]
    %v868 = vld [vmem:[#allocation13 + $0xac8] sm:$0xff]
    %v869 = vld [vmem:[#allocation13 + $0xad0] sm:$0xff]
    %v870 = vld [vmem:[#allocation13 + $0xad8] sm:$0xff]
    %v871 = vld [vmem:[#allocation13 + $0xae0] sm:$0xff]
    %v872 = vld [vmem:[#allocation13 + $0xae8] sm:$0xff]
    %v873 = vld [vmem:[#allocation13 + $0xaf0] sm:$0xff]
    %v874 = vld [vmem:[#allocation13 + $0xaf8] sm:$0xff]
    %v875 = vld [vmem:[#allocation13 + $0xb00] sm:$0xff]
    %v876 = vld [vmem:[#allocation13 + $0xb08] sm:$0xff]
    %v877 = vld [vmem:[#allocation13 + $0xb10] sm:$0xff]
    %v878 = vld [vmem:[#allocation13 + $0xb18] sm:$0xff]
    %v879 = vld [vmem:[#allocation13 + $0xb20] sm:$0xff]
    %v880 = vld [vmem:[#allocation13 + $0xb28] sm:$0xff]
    %v881 = vld [vmem:[#allocation13 + $0xb30] sm:$0xff]
    %v882 = vld [vmem:[#allocation13 + $0xb38] sm:$0xff]
    %v883 = vld [vmem:[#allocation13 + $0xb40] sm:$0xff]
    %v884 = vld [vmem:[#allocation13 + $0xb48] sm:$0xff]
    %v885 = vld [vmem:[#allocation13 + $0xb50] sm:$0xff]
    %v886 = vld [vmem:[#allocation13 + $0xb58] sm:$0xff]
    %v887 = vld [vmem:[#allocation13 + $0xb60] sm:$0xff]
    %v888 = vld [vmem:[#allocation13 + $0xb68] sm:$0xff]
    %v889 = vld [vmem:[#allocation13 + $0xb70] sm:$0xff]
    %v890 = vld [vmem:[#allocation13 + $0xb78] sm:$0xff]
    %v891 = vld [vmem:[#allocation13 + $0xb80] sm:$0xff]
    %v892 = vld [vmem:[#allocation13 + $0xb88] sm:$0xff]
    %v893 = vld [vmem:[#allocation13 + $0xb90] sm:$0xff]
    %v894 = vld [vmem:[#allocation13 + $0xb98] sm:$0xff]
    %v895 = vld [vmem:[#allocation13 + $0xba0] sm:$0xff]
    %v896 = vld [vmem:[#allocation13 + $0xba8] sm:$0xff]
    %v897 = vld [vmem:[#allocation13 + $0xbb0] sm:$0xff]
    %v898 = vld [vmem:[#allocation13 + $0xbb8] sm:$0xff]
    %v899 = vld [vmem:[#allocation13 + $0xbc0] sm:$0xff]
    %v900 = vld [vmem:[#allocation13 + $0xbc8] sm:$0xff]
    %v901 = vld [vmem:[#allocation13 + $0xbd0] sm:$0xff]
    %v902 = vld [vmem:[#allocation13 + $0xbd8] sm:$0xff]
    %v903 = vld [vmem:[#allocation13 + $0xbe0] sm:$0xff]
    %v904 = vld [vmem:[#allocation13 + $0xbe8] sm:$0xff]
    %v905 = vld [vmem:[#allocation13 + $0xbf0] sm:$0xff]
    %v906 = vld [vmem:[#allocation13 + $0xbf8] sm:$0xff]
    %v907 = vld [vmem:[#allocation16] sm:$0xff]
    %v908 = vld [vmem:[#allocation16 + $0x8] sm:$0xff]
    %v909 = vld [vmem:[#allocation16 + $0x10] sm:$0xff]
    %v910 = vld [vmem:[#allocation16 + $0x18] sm:$0xff]
    %v911 = vld [vmem:[#allocation16 + $0x20] sm:$0xff]
    %v912 = vld [vmem:[#allocation16 + $0x28] sm:$0xff]
    %v913 = vld [vmem:[#allocation16 + $0x30] sm:$0xff]
    %v914 = vld [vmem:[#allocation16 + $0x38] sm:$0xff]
    %v915 = vld [vmem:[#allocation16 + $0x40] sm:$0xff]
    %v916 = vld [vmem:[#allocation16 + $0x48] sm:$0xff]
    %v917 = vld [vmem:[#allocation16 + $0x50] sm:$0xff]
    %v918 = vld [vmem:[#allocation16 + $0x58] sm:$0xff]
    %v919 = vld [vmem:[#allocation16 + $0x60] sm:$0xff]
    %v920 = vld [vmem:[#allocation16 + $0x68] sm:$0xff]
    %v921 = vld [vmem:[#allocation16 + $0x70] sm:$0xff]
    %v922 = vld [vmem:[#allocation16 + $0x78] sm:$0xff]
    %v923 = vld [vmem:[#allocation16 + $0x80] sm:$0xff]
    %v924 = vld [vmem:[#allocation16 + $0x88] sm:$0xff]
    %v925 = vld [vmem:[#allocation16 + $0x90] sm:$0xff]
    %v926 = vld [vmem:[#allocation16 + $0x98] sm:$0xff]
    %v927 = vld [vmem:[#allocation16 + $0xa0] sm:$0xff]
    %v928 = vld [vmem:[#allocation16 + $0xa8] sm:$0xff]
    %v929 = vld [vmem:[#allocation16 + $0xb0] sm:$0xff]
    %v930 = vld [vmem:[#allocation16 + $0xb8] sm:$0xff]
    %v931 = vld [vmem:[#allocation16 + $0xc0] sm:$0xff]
    %v932 = vld [vmem:[#allocation16 + $0xc8] sm:$0xff]
    %v933 = vld [vmem:[#allocation16 + $0xd0] sm:$0xff]
    %v934 = vld [vmem:[#allocation16 + $0xd8] sm:$0xff]
    %v935 = vld [vmem:[#allocation16 + $0xe0] sm:$0xff]
    %v936 = vld [vmem:[#allocation16 + $0xe8] sm:$0xff]
    %v937 = vld [vmem:[#allocation16 + $0xf0] sm:$0xff]
    %v938 = vld [vmem:[#allocation16 + $0xf8] sm:$0xff]
    %v939 = vld [vmem:[#allocation19] sm:$0xf]
    %v940 = vld [vmem:[#allocation19 + $0x4] sm:$0xf]
    %v941 = vld [vmem:[#allocation19 + $0x8] sm:$0xf]
    %v942 = vld [vmem:[#allocation19 + $0xc] sm:$0xf]
    %v943 = vld [vmem:[#allocation19 + $0x10] sm:$0xf]
    %v944 = vld [vmem:[#allocation19 + $0x14] sm:$0xf]
    %v945 = vld [vmem:[#allocation19 + $0x18] sm:$0xf]
    %v946 = vld [vmem:[#allocation19 + $0x1c] sm:$0xf]
    %v947 = vld [vmem:[#allocation19 + $0x20] sm:$0xf]
    %v948 = vld [vmem:[#allocation19 + $0x24] sm:$0xf]
    %v949 = vld [vmem:[#allocation19 + $0x28] sm:$0xf]
    %v950 = vld [vmem:[#allocation19 + $0x2c] sm:$0xf]
    %v951 = vld [vmem:[#allocation19 + $0x30] sm:$0xf]
    %v952 = vld [vmem:[#allocation19 + $0x34] sm:$0xf]
    %v953 = vld [vmem:[#allocation19 + $0x38] sm:$0xf]
    %v954 = vld [vmem:[#allocation19 + $0x3c] sm:$0xf]
    %v955 = vld [vmem:[#allocation19 + $0x40] sm:$0xf]
    %v956 = vld [vmem:[#allocation19 + $0x44] sm:$0xf]
    %v957 = vld [vmem:[#allocation19 + $0x48] sm:$0xf]
    %v958 = vld [vmem:[#allocation19 + $0x4c] sm:$0xf]
    %v959 = vld [vmem:[#allocation19 + $0x50] sm:$0xf]
    %v960 = vld [vmem:[#allocation19 + $0x54] sm:$0xf]
    %v961 = vld [vmem:[#allocation19 + $0x58] sm:$0xf]
    %v962 = vld [vmem:[#allocation19 + $0x5c] sm:$0xf]
    %v963 = vld [vmem:[#allocation19 + $0x60] sm:$0xf]
    %v964 = vld [vmem:[#allocation19 + $0x64] sm:$0xf]
    %v965 = vld [vmem:[#allocation19 + $0x68] sm:$0xf]
    %v966 = vld [vmem:[#allocation19 + $0x6c] sm:$0xf]
    %v967 = vld [vmem:[#allocation19 + $0x70] sm:$0xf]
    %v968 = vld [vmem:[#allocation19 + $0x74] sm:$0xf]
    %v969 = vld [vmem:[#allocation19 + $0x78] sm:$0xf]
    %v970 = vld [vmem:[#allocation19 + $0x7c] sm:$0xf]
    %v971 = vld [vmem:[#allocation6] sm:$0xff]
    %v972 = vld [vmem:[#allocation9] sm:$0xff]
    %v973 = vld [vmem:[#allocation12] sm:$0x3]
    %v974 = vld [vmem:[#allocation15] sm:$0xff]
    %v975 = vld [vmem:[#allocation18] sm:$0x3]
    %v976 = vld [vmem:[#allocation21] sm:$0x1]
    %v977 = vpack.c.bf16 %v220, %v219
    %v978 = vpack.c.bf16 %v222, %v221
    %v987 = vunpack.c.l.b16 %v227
    %v988 = vunpack.c.h.b16 %v227
    %v989 = vunpack.c.l.b16 %v228
    %v990 = vunpack.c.h.b16 %v228
    %v991 = vunpack.c.l.b16 %v229
    %v992 = vunpack.c.h.b16 %v229
    %v993 = vunpack.c.l.b16 %v230
    %v994 = vunpack.c.h.b16 %v230
    %v995 = vunpack.c.l.b16 %v231
    %v996 = vunpack.c.h.b16 %v231
    %v997 = vunpack.c.l.b16 %v232
    %v998 = vunpack.c.h.b16 %v232
    %v999 = vunpack.c.l.b16 %v233
    %v1000 = vunpack.c.h.b16 %v233
    %v1001 = vunpack.c.l.b16 %v234
    %v1002 = vunpack.c.h.b16 %v234
    %v1003 = vpack.c.b16 %v987, %v987
    %v1004 = vpack.c.b16 %v988, %v988
    %v1005 = vpack.c.b16 %v989, %v989
    %v1006 = vpack.c.b16 %v990, %v990
    %v1007 = vpack.c.b16 %v991, %v991
    %v1008 = vpack.c.b16 %v992, %v992
    %v1009 = vpack.c.b16 %v993, %v993
    %v1010 = vpack.c.b16 %v994, %v994
    %v1011 = vpack.c.b16 %v995, %v995
    %v1012 = vpack.c.b16 %v996, %v996
    %v1013 = vpack.c.b16 %v997, %v997
    %v1014 = vpack.c.b16 %v998, %v998
    %v1015 = vpack.c.b16 %v999, %v999
    %v1016 = vpack.c.b16 %v1000, %v1000
    %v1017 = vpack.c.b16 %v1001, %v1001
    %v1018 = vpack.c.b16 %v1002, %v1002
    %vm1019 = vcmask 56320
    %v1021 = vsel %vm1019, %v977, 0
    %v1024 = vsel %vm1019, %v978, 0
    %vm1026 = vcmask 1042432
    %vm1027 = vcmask 1043456
    %v1028 = vsel %vm1026, 4294967295, 65535
    %v1029 = vsel %vm1027, %v1028, 0
    %v1031 = vand.u32 %v1003, %v1029
    %v1034 = vand.u32 %v1004, %v1029
    %v1037 = vand.u32 %v1005, %v1029
    %v1040 = vand.u32 %v1006, %v1029
    %v1043 = vand.u32 %v1007, %v1029
    %v1046 = vand.u32 %v1008, %v1029
    %v1049 = vand.u32 %v1009, %v1029
    %v1052 = vand.u32 %v1010, %v1029
    %v1055 = vand.u32 %v1011, %v1029
    %v1058 = vand.u32 %v1012, %v1029
    %v1061 = vand.u32 %v1013, %v1029
    %v1064 = vand.u32 %v1014, %v1029
    %v1067 = vand.u32 %v1015, %v1029
    %v1070 = vand.u32 %v1016, %v1029
    %v1073 = vand.u32 %v1017, %v1029
    %v1076 = vand.u32 %v1018, %v1029
    %1078 = vmatprep.subr.bf16.mxu0 %v1034
    %1079 = vmatpush1.bf16.msra.mxu0 %v1031
    %1080 = vmatprep.subr.bf16.mxu0 0
    %1081 = vmatpush1.bf16.msra.mxu0 0
    %1082 = vmatprep.subr.bf16.mxu0 0
    %1083 = vmatpush1.bf16.msra.mxu0 0
    %1084 = vmatprep.subr.bf16.mxu0 0
    %1085 = vmatpush1.bf16.msra.mxu0 0
    %1086 = vmatprep.subr.bf16.mxu0 0
    %1087 = vmatpush1.bf16.msra.mxu0 0
    %1088 = vmatprep.subr.bf16.mxu0 0
    %1089 = vmatpush1.bf16.msra.mxu0 0
    %1090 = vmatprep.subr.bf16.mxu0 0
    %1091 = vmatpush1.bf16.msra.mxu0 0
    %1092 = vmatprep.subr.bf16.mxu0 0
    %1093 = vmatpush1.bf16.msra.mxu0 0
    %1094 = vmatprep.subr.bf16.mxu0 0
    %1095 = vmatpush1.bf16.msra.mxu0 0
    %1096 = vmatprep.subr.bf16.mxu0 0
    %1097 = vmatpush1.bf16.msra.mxu0 0
    %1098 = vmatprep.subr.bf16.mxu0 0
    %1099 = vmatpush1.bf16.msra.mxu0 0
    %1100 = vmatprep.subr.bf16.mxu0 0
    %1101 = vmatpush1.bf16.msra.mxu0 0
    %1102 = vmatprep.subr.bf16.mxu0 0
    %1103 = vmatpush1.bf16.msra.mxu0 0
    %1104 = vmatprep.subr.bf16.mxu0 0
    %1105 = vmatpush1.bf16.msra.mxu0 0
    %1106 = vmatprep.subr.bf16.mxu0 0
    %1107 = vmatpush1.bf16.msra.mxu0 0
    %1108 = vmatprep.subr.bf16.mxu0 0
    %1109 = vmatpush1.bf16.msra.mxu0 0
    %1110 = vmatprep.mubr.bf16.mxu0 0
    %1111 = vmatmul.mubr.bf16.gmra.mrb[0].mxu0 %v1021
    %v1112 = vpop.f32.mrb[0].mxu0
    %v1113 = vpop.f32.mrb[0].mxu0
    %v1114 = vpop.f32.mrb[0].mxu0
    %v1115 = vadd.f32 0.0, %v1114
    %v1116 = vpop.f32.mrb[0].mxu0
    %v1117 = vadd.f32 0.0, %v1116
    %1118 = vmatprep.mubr.bf16.mxu0 0
    %1119 = vmatmul.mubr.bf16.gmra.mrb[0].mxu0 %v1024
    %v1120 = vpop.f32.mrb[0].mxu0
    %v1121 = vadd.f32 0.0, %v1120
    %v1122 = vpop.f32.mrb[0].mxu0
    %v1123 = vadd.f32 0.0, %v1122
    %v1124 = vpop.f32.mrb[0].mxu0
    %v1125 = vadd.f32 0.0, %v1124
    %v1126 = vpop.f32.mrb[0].mxu0
    %v1127 = vadd.f32 0.0, %v1126
    %1128 = vdwg.mxu0
    %1129 = vmatprep.subr.bf16.mxu0 %v1040
    %1130 = vmatpush1.bf16.msra.mxu0 %v1037
    %1131 = vmatprep.subr.bf16.mxu0 0
    %1132 = vmatpush1.bf16.msra.mxu0 0
    %1133 = vmatprep.subr.bf16.mxu0 0
    %1134 = vmatpush1.bf16.msra.mxu0 0
    %1135 = vmatprep.subr.bf16.mxu0 0
    %1136 = vmatpush1.bf16.msra.mxu0 0
    %1137 = vmatprep.subr.bf16.mxu0 0
    %1138 = vmatpush1.bf16.msra.mxu0 0
    %1139 = vmatprep.subr.bf16.mxu0 0
    %1140 = vmatpush1.bf16.msra.mxu0 0
    %1141 = vmatprep.subr.bf16.mxu0 0
    %1142 = vmatpush1.bf16.msra.mxu0 0
    %1143 = vmatprep.subr.bf16.mxu0 0
    %1144 = vmatpush1.bf16.msra.mxu0 0
    %1145 = vmatprep.subr.bf16.mxu0 0
    %1146 = vmatpush1.bf16.msra.mxu0 0
    %1147 = vmatprep.subr.bf16.mxu0 0
    %1148 = vmatpush1.bf16.msra.mxu0 0
    %1149 = vmatprep.subr.bf16.mxu0 0
    %1150 = vmatpush1.bf16.msra.mxu0 0
    %1151 = vmatprep.subr.bf16.mxu0 0
    %1152 = vmatpush1.bf16.msra.mxu0 0
    %1153 = vmatprep.subr.bf16.mxu0 0
    %1154 = vmatpush1.bf16.msra.mxu0 0
    %1155 = vmatprep.subr.bf16.mxu0 0
    %1156 = vmatpush1.bf16.msra.mxu0 0
    %1157 = vmatprep.subr.bf16.mxu0 0
    %1158 = vmatpush1.bf16.msra.mxu0 0
    %1159 = vmatprep.subr.bf16.mxu0 0
    %1160 = vmatpush1.bf16.msra.mxu0 0
    %1161 = vmatprep.mubr.bf16.mxu0 0
    %1162 = vmatmul.mubr.bf16.gmra.mrb[0].mxu0 %v1021
    %v1163 = vpop.f32.mrb[0].mxu0
    %v1164 = vpop.f32.mrb[0].mxu0
    %v1165 = vpop.f32.mrb[0].mxu0
    %v1166 = vadd.f32 0.0, %v1165
    %v1167 = vpop.f32.mrb[0].mxu0
    %v1168 = vadd.f32 0.0, %v1167
    %1169 = vmatprep.mubr.bf16.mxu0 0
    %1170 = vmatmul.mubr.bf16.gmra.mrb[0].mxu0 %v1024
    %v1171 = vpop.f32.mrb[0].mxu0
    %v1172 = vadd.f32 0.0, %v1171
    %v1173 = vpop.f32.mrb[0].mxu0
    %v1174 = vadd.f32 0.0, %v1173
    %v1175 = vpop.f32.mrb[0].mxu0
    %v1176 = vadd.f32 0.0, %v1175
    %v1177 = vpop.f32.mrb[0].mxu0
    %v1178 = vadd.f32 0.0, %v1177
    %1179 = vdwg.mxu0
    %1180 = vmatprep.subr.bf16.mxu0 %v1046
    %1181 = vmatpush1.bf16.msra.mxu0 %v1043
    %1182 = vmatprep.subr.bf16.mxu0 0
    %1183 = vmatpush1.bf16.msra.mxu0 0
    %1184 = vmatprep.subr.bf16.mxu0 0
    %1185 = vmatpush1.bf16.msra.mxu0 0
    %1186 = vmatprep.subr.bf16.mxu0 0
    %1187 = vmatpush1.bf16.msra.mxu0 0
    %1188 = vmatprep.subr.bf16.mxu0 0
    %1189 = vmatpush1.bf16.msra.mxu0 0
    %1190 = vmatprep.subr.bf16.mxu0 0
    %1191 = vmatpush1.bf16.msra.mxu0 0
    %1192 = vmatprep.subr.bf16.mxu0 0
    %1193 = vmatpush1.bf16.msra.mxu0 0
    %1194 = vmatprep.subr.bf16.mxu0 0
    %1195 = vmatpush1.bf16.msra.mxu0 0
    %1196 = vmatprep.subr.bf16.mxu0 0
    %1197 = vmatpush1.bf16.msra.mxu0 0
    %1198 = vmatprep.subr.bf16.mxu0 0
    %1199 = vmatpush1.bf16.msra.mxu0 0
    %1200 = vmatprep.subr.bf16.mxu0 0
    %1201 = vmatpush1.bf16.msra.mxu0 0
    %1202 = vmatprep.subr.bf16.mxu0 0
    %1203 = vmatpush1.bf16.msra.mxu0 0
    %1204 = vmatprep.subr.bf16.mxu0 0
    %1205 = vmatpush1.bf16.msra.mxu0 0
    %1206 = vmatprep.subr.bf16.mxu0 0
    %1207 = vmatpush1.bf16.msra.mxu0 0
    %1208 = vmatprep.subr.bf16.mxu0 0
    %1209 = vmatpush1.bf16.msra.mxu0 0
    %1210 = vmatprep.subr.bf16.mxu0 0
    %1211 = vmatpush1.bf16.msra.mxu0 0
    %1212 = vmatprep.mubr.bf16.mxu0 0
    %1213 = vmatmul.mubr.bf16.gmra.mrb[0].mxu0 %v1021
    %v1214 = vpop.f32.mrb[0].mxu0
    %v1215 = vpop.f32.mrb[0].mxu0
    %v1216 = vpop.f32.mrb[0].mxu0
    %v1217 = vadd.f32 0.0, %v1216
    %v1218 = vpop.f32.mrb[0].mxu0
    %v1219 = vadd.f32 0.0, %v1218
    %1220 = vmatprep.mubr.bf16.mxu0 0
    %1221 = vmatmul.mubr.bf16.gmra.mrb[0].mxu0 %v1024
    %v1222 = vpop.f32.mrb[0].mxu0
    %v1223 = vadd.f32 0.0, %v1222
    %v1224 = vpop.f32.mrb[0].mxu0
    %v1225 = vadd.f32 0.0, %v1224
    %v1226 = vpop.f32.mrb[0].mxu0
    %v1227 = vadd.f32 0.0, %v1226
    %v1228 = vpop.f32.mrb[0].mxu0
    %v1229 = vadd.f32 0.0, %v1228
    %1230 = vdwg.mxu0
    %1231 = vmatprep.subr.bf16.mxu0 %v1052
    %1232 = vmatpush1.bf16.msra.mxu0 %v1049
    %1233 = vmatprep.subr.bf16.mxu0 0
    %1234 = vmatpush1.bf16.msra.mxu0 0
    %1235 = vmatprep.subr.bf16.mxu0 0
    %1236 = vmatpush1.bf16.msra.mxu0 0
    %1237 = vmatprep.subr.bf16.mxu0 0
    %1238 = vmatpush1.bf16.msra.mxu0 0
    %1239 = vmatprep.subr.bf16.mxu0 0
    %1240 = vmatpush1.bf16.msra.mxu0 0
    %1241 = vmatprep.subr.bf16.mxu0 0
    %1242 = vmatpush1.bf16.msra.mxu0 0
    %1243 = vmatprep.subr.bf16.mxu0 0
    %1244 = vmatpush1.bf16.msra.mxu0 0
    %1245 = vmatprep.subr.bf16.mxu0 0
    %1246 = vmatpush1.bf16.msra.mxu0 0
    %1247 = vmatprep.subr.bf16.mxu0 0
    %1248 = vmatpush1.bf16.msra.mxu0 0
    %1249 = vmatprep.subr.bf16.mxu0 0
    %1250 = vmatpush1.bf16.msra.mxu0 0
    %1251 = vmatprep.subr.bf16.mxu0 0
    %1252 = vmatpush1.bf16.msra.mxu0 0
    %1253 = vmatprep.subr.bf16.mxu0 0
    %1254 = vmatpush1.bf16.msra.mxu0 0
    %1255 = vmatprep.subr.bf16.mxu0 0
    %1256 = vmatpush1.bf16.msra.mxu0 0
    %1257 = vmatprep.subr.bf16.mxu0 0
    %1258 = vmatpush1.bf16.msra.mxu0 0
    %1259 = vmatprep.subr.bf16.mxu0 0
    %1260 = vmatpush1.bf16.msra.mxu0 0
    %1261 = vmatprep.subr.bf16.mxu0 0
    %1262 = vmatpush1.bf16.msra.mxu0 0
    %1263 = vmatprep.mubr.bf16.mxu0 0
    %1264 = vmatmul.mubr.bf16.gmra.mrb[0].mxu0 %v1021
    %v1265 = vpop.f32.mrb[0].mxu0
    %v1266 = vpop.f32.mrb[0].mxu0
    %v1267 = vpop.f32.mrb[0].mxu0
    %v1268 = vadd.f32 0.0, %v1267
    %v1269 = vpop.f32.mrb[0].mxu0
    %v1270 = vadd.f32 0.0, %v1269
    %1271 = vmatprep.mubr.bf16.mxu0 0
    %1272 = vmatmul.mubr.bf16.gmra.mrb[0].mxu0 %v1024
    %v1273 = vpop.f32.mrb[0].mxu0
    %v1274 = vadd.f32 0.0, %v1273
    %v1275 = vpop.f32.mrb[0].mxu0
    %v1276 = vadd.f32 0.0, %v1275
    %v1277 = vpop.f32.mrb[0].mxu0
    %v1278 = vadd.f32 0.0, %v1277
    %v1279 = vpop.f32.mrb[0].mxu0
    %v1280 = vadd.f32 0.0, %v1279
    %1281 = vdwg.mxu0
    %1282 = vmatprep.subr.bf16.mxu0 %v1058
    %1283 = vmatpush1.bf16.msra.mxu0 %v1055
    %1284 = vmatprep.subr.bf16.mxu0 0
    %1285 = vmatpush1.bf16.msra.mxu0 0
    %1286 = vmatprep.subr.bf16.mxu0 0
    %1287 = vmatpush1.bf16.msra.mxu0 0
    %1288 = vmatprep.subr.bf16.mxu0 0
    %1289 = vmatpush1.bf16.msra.mxu0 0
    %1290 = vmatprep.subr.bf16.mxu0 0
    %1291 = vmatpush1.bf16.msra.mxu0 0
    %1292 = vmatprep.subr.bf16.mxu0 0
    %1293 = vmatpush1.bf16.msra.mxu0 0
    %1294 = vmatprep.subr.bf16.mxu0 0
    %1295 = vmatpush1.bf16.msra.mxu0 0
    %1296 = vmatprep.subr.bf16.mxu0 0
    %1297 = vmatpush1.bf16.msra.mxu0 0
    %1298 = vmatprep.subr.bf16.mxu0 0
    %1299 = vmatpush1.bf16.msra.mxu0 0
    %1300 = vmatprep.subr.bf16.mxu0 0
    %1301 = vmatpush1.bf16.msra.mxu0 0
    %1302 = vmatprep.subr.bf16.mxu0 0
    %1303 = vmatpush1.bf16.msra.mxu0 0
    %1304 = vmatprep.subr.bf16.mxu0 0
    %1305 = vmatpush1.bf16.msra.mxu0 0
    %1306 = vmatprep.subr.bf16.mxu0 0
    %1307 = vmatpush1.bf16.msra.mxu0 0
    %1308 = vmatprep.subr.bf16.mxu0 0
    %1309 = vmatpush1.bf16.msra.mxu0 0
    %1310 = vmatprep.subr.bf16.mxu0 0
    %1311 = vmatpush1.bf16.msra.mxu0 0
    %1312 = vmatprep.subr.bf16.mxu0 0
    %1313 = vmatpush1.bf16.msra.mxu0 0
    %1314 = vmatprep.mubr.bf16.mxu0 0
    %1315 = vmatmul.mubr.bf16.gmra.mrb[0].mxu0 %v1021
    %v1316 = vpop.f32.mrb[0].mxu0
    %v1317 = vpop.f32.mrb[0].mxu0
    %v1318 = vpop.f32.mrb[0].mxu0
    %v1319 = vadd.f32 0.0, %v1318
    %v1320 = vpop.f32.mrb[0].mxu0
    %v1321 = vadd.f32 0.0, %v1320
    %1322 = vmatprep.mubr.bf16.mxu0 0
    %1323 = vmatmul.mubr.bf16.gmra.mrb[0].mxu0 %v1024
    %v1324 = vpop.f32.mrb[0].mxu0
    %v1325 = vadd.f32 0.0, %v1324
    %v1326 = vpop.f32.mrb[0].mxu0
    %v1327 = vadd.f32 0.0, %v1326
    %v1328 = vpop.f32.mrb[0].mxu0
    %v1329 = vadd.f32 0.0, %v1328
    %v1330 = vpop.f32.mrb[0].mxu0
    %v1331 = vadd.f32 0.0, %v1330
    %1332 = vdwg.mxu0
    %1333 = vmatprep.subr.bf16.mxu0 %v1064
    %1334 = vmatpush1.bf16.msra.mxu0 %v1061
    %1335 = vmatprep.subr.bf16.mxu0 0
    %1336 = vmatpush1.bf16.msra.mxu0 0
    %1337 = vmatprep.subr.bf16.mxu0 0
    %1338 = vmatpush1.bf16.msra.mxu0 0
    %1339 = vmatprep.subr.bf16.mxu0 0
    %1340 = vmatpush1.bf16.msra.mxu0 0
    %1341 = vmatprep.subr.bf16.mxu0 0
    %1342 = vmatpush1.bf16.msra.mxu0 0
    %1343 = vmatprep.subr.bf16.mxu0 0
    %1344 = vmatpush1.bf16.msra.mxu0 0
    %1345 = vmatprep.subr.bf16.mxu0 0
    %1346 = vmatpush1.bf16.msra.mxu0 0
    %1347 = vmatprep.subr.bf16.mxu0 0
    %1348 = vmatpush1.bf16.msra.mxu0 0
    %1349 = vmatprep.subr.bf16.mxu0 0
    %1350 = vmatpush1.bf16.msra.mxu0 0
    %1351 = vmatprep.subr.bf16.mxu0 0
    %1352 = vmatpush1.bf16.msra.mxu0 0
    %1353 = vmatprep.subr.bf16.mxu0 0
    %1354 = vmatpush1.bf16.msra.mxu0 0
    %1355 = vmatprep.subr.bf16.mxu0 0
    %1356 = vmatpush1.bf16.msra.mxu0 0
    %1357 = vmatprep.subr.bf16.mxu0 0
    %1358 = vmatpush1.bf16.msra.mxu0 0
    %1359 = vmatprep.subr.bf16.mxu0 0
    %1360 = vmatpush1.bf16.msra.mxu0 0
    %1361 = vmatprep.subr.bf16.mxu0 0
    %1362 = vmatpush1.bf16.msra.mxu0 0
    %1363 = vmatprep.subr.bf16.mxu0 0
    %1364 = vmatpush1.bf16.msra.mxu0 0
    %1365 = vmatprep.mubr.bf16.mxu0 0
    %1366 = vmatmul.mubr.bf16.gmra.mrb[0].mxu0 %v1021
    %v1367 = vpop.f32.mrb[0].mxu0
    %v1368 = vpop.f32.mrb[0].mxu0
    %v1369 = vpop.f32.mrb[0].mxu0
    %v1370 = vadd.f32 0.0, %v1369
    %v1371 = vpop.f32.mrb[0].mxu0
    %v1372 = vadd.f32 0.0, %v1371
    %1373 = vmatprep.mubr.bf16.mxu0 0
    %1374 = vmatmul.mubr.bf16.gmra.mrb[0].mxu0 %v1024
    %v1375 = vpop.f32.mrb[0].mxu0
    %v1376 = vadd.f32 0.0, %v1375
    %v1377 = vpop.f32.mrb[0].mxu0
    %v1378 = vadd.f32 0.0, %v1377
    %v1379 = vpop.f32.mrb[0].mxu0
    %v1380 = vadd.f32 0.0, %v1379
    %v1381 = vpop.f32.mrb[0].mxu0
    %v1382 = vadd.f32 0.0, %v1381
    %1383 = vdwg.mxu0
    %1384 = vmatprep.subr.bf16.mxu0 %v1070
    %1385 = vmatpush1.bf16.msra.mxu0 %v1067
    %1386 = vmatprep.subr.bf16.mxu0 0
    %1387 = vmatpush1.bf16.msra.mxu0 0
    %1388 = vmatprep.subr.bf16.mxu0 0
    %1389 = vmatpush1.bf16.msra.mxu0 0
    %1390 = vmatprep.subr.bf16.mxu0 0
    %1391 = vmatpush1.bf16.msra.mxu0 0
    %1392 = vmatprep.subr.bf16.mxu0 0
    %1393 = vmatpush1.bf16.msra.mxu0 0
    %1394 = vmatprep.subr.bf16.mxu0 0
    %1395 = vmatpush1.bf16.msra.mxu0 0
    %1396 = vmatprep.subr.bf16.mxu0 0
    %1397 = vmatpush1.bf16.msra.mxu0 0
    %1398 = vmatprep.subr.bf16.mxu0 0
    %1399 = vmatpush1.bf16.msra.mxu0 0
    %1400 = vmatprep.subr.bf16.mxu0 0
    %1401 = vmatpush1.bf16.msra.mxu0 0
    %1402 = vmatprep.subr.bf16.mxu0 0
    %1403 = vmatpush1.bf16.msra.mxu0 0
    %1404 = vmatprep.subr.bf16.mxu0 0
    %1405 = vmatpush1.bf16.msra.mxu0 0
    %1406 = vmatprep.subr.bf16.mxu0 0
    %1407 = vmatpush1.bf16.msra.mxu0 0
    %1408 = vmatprep.subr.bf16.mxu0 0
    %1409 = vmatpush1.bf16.msra.mxu0 0
    %1410 = vmatprep.subr.bf16.mxu0 0
    %1411 = vmatpush1.bf16.msra.mxu0 0
    %1412 = vmatprep.subr.bf16.mxu0 0
    %1413 = vmatpush1.bf16.msra.mxu0 0
    %1414 = vmatprep.subr.bf16.mxu0 0
    %1415 = vmatpush1.bf16.msra.mxu0 0
    %1416 = vmatprep.mubr.bf16.mxu0 0
    %1417 = vmatmul.mubr.bf16.gmra.mrb[0].mxu0 %v1021
    %v1418 = vpop.f32.mrb[0].mxu0
    %v1419 = vpop.f32.mrb[0].mxu0
    %v1420 = vpop.f32.mrb[0].mxu0
    %v1421 = vadd.f32 0.0, %v1420
    %v1422 = vpop.f32.mrb[0].mxu0
    %v1423 = vadd.f32 0.0, %v1422
    %1424 = vmatprep.mubr.bf16.mxu0 0
    %1425 = vmatmul.mubr.bf16.gmra.mrb[0].mxu0 %v1024
    %v1426 = vpop.f32.mrb[0].mxu0
    %v1427 = vadd.f32 0.0, %v1426
    %v1428 = vpop.f32.mrb[0].mxu0
    %v1429 = vadd.f32 0.0, %v1428
    %v1430 = vpop.f32.mrb[0].mxu0
    %v1431 = vadd.f32 0.0, %v1430
    %v1432 = vpop.f32.mrb[0].mxu0
    %v1433 = vadd.f32 0.0, %v1432
    %1434 = vdwg.mxu0
    %1435 = vmatprep.subr.bf16.mxu0 %v1076
    %1436 = vmatpush1.bf16.msra.mxu0 %v1073
    %1437 = vmatprep.subr.bf16.mxu0 0
    %1438 = vmatpush1.bf16.msra.mxu0 0
    %1439 = vmatprep.subr.bf16.mxu0 0
    %1440 = vmatpush1.bf16.msra.mxu0 0
    %1441 = vmatprep.subr.bf16.mxu0 0
    %1442 = vmatpush1.bf16.msra.mxu0 0
    %1443 = vmatprep.subr.bf16.mxu0 0
    %1444 = vmatpush1.bf16.msra.mxu0 0
    %1445 = vmatprep.subr.bf16.mxu0 0
    %1446 = vmatpush1.bf16.msra.mxu0 0
    %1447 = vmatprep.subr.bf16.mxu0 0
    %1448 = vmatpush1.bf16.msra.mxu0 0
    %1449 = vmatprep.subr.bf16.mxu0 0
    %1450 = vmatpush1.bf16.msra.mxu0 0
    %1451 = vmatprep.subr.bf16.mxu0 0
    %1452 = vmatpush1.bf16.msra.mxu0 0
    %1453 = vmatprep.subr.bf16.mxu0 0
    %1454 = vmatpush1.bf16.msra.mxu0 0
    %1455 = vmatprep.subr.bf16.mxu0 0
    %1456 = vmatpush1.bf16.msra.mxu0 0
    %1457 = vmatprep.subr.bf16.mxu0 0
    %1458 = vmatpush1.bf16.msra.mxu0 0
    %1459 = vmatprep.subr.bf16.mxu0 0
    %1460 = vmatpush1.bf16.msra.mxu0 0
    %1461 = vmatprep.subr.bf16.mxu0 0
    %1462 = vmatpush1.bf16.msra.mxu0 0
    %1463 = vmatprep.subr.bf16.mxu0 0
    %1464 = vmatpush1.bf16.msra.mxu0 0
    %1465 = vmatprep.subr.bf16.mxu0 0
    %1466 = vmatpush1.bf16.msra.mxu0 0
    %1467 = vmatprep.mubr.bf16.mxu0 0
    %1468 = vmatmul.mubr.bf16.gmra.mrb[0].mxu0 %v1021
    %v1469 = vpop.f32.mrb[0].mxu0
    %v1470 = vpop.f32.mrb[0].mxu0
    %v1471 = vpop.f32.mrb[0].mxu0
    %v1472 = vadd.f32 0.0, %v1471
    %v1473 = vpop.f32.mrb[0].mxu0
    %v1474 = vadd.f32 0.0, %v1473
    %1475 = vmatprep.mubr.bf16.mxu0 0
    %1476 = vmatmul.mubr.bf16.gmra.mrb[0].mxu0 %v1024
    %v1477 = vpop.f32.mrb[0].mxu0
    %v1478 = vadd.f32 0.0, %v1477
    %v1479 = vpop.f32.mrb[0].mxu0
    %v1480 = vadd.f32 0.0, %v1479
    %v1481 = vpop.f32.mrb[0].mxu0
    %v1482 = vadd.f32 0.0, %v1481
    %v1483 = vpop.f32.mrb[0].mxu0
    %v1484 = vadd.f32 0.0, %v1483
    %1485 = vdwg.mxu0
    %v1487 = vlaneseq
    %v1488 = vshrl.u32 %v1487, 7
    %v1489 = vsub.s32 0, %v1488
    %v1490 = vrot.slane %v971, %v1489
    %v1491 = vlaneseq
    %v1492 = vshrl.u32 %v1491, 7
    %v1493 = vsub.s32 1, %v1492
    %v1494 = vrot.slane %v971, %v1493
    %v1495 = vlaneseq
    %v1496 = vshrl.u32 %v1495, 7
    %v1497 = vsub.s32 2, %v1496
    %v1498 = vrot.slane %v971, %v1497
    %v1499 = vlaneseq
    %v1500 = vshrl.u32 %v1499, 7
    %v1501 = vsub.s32 3, %v1500
    %v1502 = vrot.slane %v971, %v1501
    %v1503 = vlaneseq
    %v1504 = vshrl.u32 %v1503, 7
    %v1505 = vsub.s32 4, %v1504
    %v1506 = vrot.slane %v971, %v1505
    %v1507 = vlaneseq
    %v1508 = vshrl.u32 %v1507, 7
    %v1509 = vsub.s32 5, %v1508
    %v1510 = vrot.slane %v971, %v1509
    %v1511 = vlaneseq
    %v1512 = vshrl.u32 %v1511, 7
    %v1513 = vsub.s32 6, %v1512
    %v1514 = vrot.slane %v971, %v1513
    %v1515 = vlaneseq
    %v1516 = vshrl.u32 %v1515, 7
    %v1517 = vsub.s32 7, %v1516
    %v1518 = vrot.slane %v971, %v1517
    %v1527 = vadd.f32 %v1115, %v1490
    %v1528 = vadd.f32 %v1117, %v1494
    %v1529 = vadd.f32 %v1166, %v1498
    %v1530 = vadd.f32 %v1168, %v1502
    %v1531 = vadd.f32 %v1217, %v1506
    %v1532 = vadd.f32 %v1219, %v1510
    %v1533 = vadd.f32 %v1268, %v1514
    %v1534 = vadd.f32 %v1270, %v1518
    %v1535 = vadd.f32 %v1121, %v1490
    %v1536 = vadd.f32 %v1123, %v1494
    %v1537 = vadd.f32 %v1172, %v1498
    %v1538 = vadd.f32 %v1174, %v1502
    %v1539 = vadd.f32 %v1223, %v1506
    %v1540 = vadd.f32 %v1225, %v1510
    %v1541 = vadd.f32 %v1274, %v1514
    %v1542 = vadd.f32 %v1276, %v1518
    %v1543 = vadd.f32 %v1125, %v1490
    %v1544 = vadd.f32 %v1127, %v1494
    %v1545 = vadd.f32 %v1176, %v1498
    %v1546 = vadd.f32 %v1178, %v1502
    %v1547 = vadd.f32 %v1227, %v1506
    %v1548 = vadd.f32 %v1229, %v1510
    %v1549 = vadd.f32 %v1278, %v1514
    %v1550 = vadd.f32 %v1280, %v1518
    %v1551 = vpack.c.bf16 %v223, %v223
    %v1552 = vpack.c.bf16 %v224, %v224
    %v1681 = vunpack.c.l.b16 %v235
    %v1682 = vunpack.c.h.b16 %v235
    %v1683 = vunpack.c.l.b16 %v236
    %v1684 = vunpack.c.h.b16 %v236
    %v1685 = vunpack.c.l.b16 %v237
    %v1686 = vunpack.c.h.b16 %v237
    %v1687 = vunpack.c.l.b16 %v238
    %v1688 = vunpack.c.h.b16 %v238
    %v1689 = vunpack.c.l.b16 %v239
    %v1690 = vunpack.c.h.b16 %v239
    %v1691 = vunpack.c.l.b16 %v240
    %v1692 = vunpack.c.h.b16 %v240
    %v1693 = vunpack.c.l.b16 %v241
    %v1694 = vunpack.c.h.b16 %v241
    %v1695 = vunpack.c.l.b16 %v242
    %v1696 = vunpack.c.h.b16 %v242
    %v1697 = vunpack.c.l.b16 %v243
    %v1698 = vunpack.c.h.b16 %v243
    %v1699 = vunpack.c.l.b16 %v244
    %v1700 = vunpack.c.h.b16 %v244
    %v1701 = vunpack.c.l.b16 %v245
    %v1702 = vunpack.c.h.b16 %v245
    %v1703 = vunpack.c.l.b16 %v246
    %v1704 = vunpack.c.h.b16 %v246
    %v1705 = vunpack.c.l.b16 %v247
    %v1706 = vunpack.c.h.b16 %v247
    %v1707 = vunpack.c.l.b16 %v248
    %v1708 = vunpack.c.h.b16 %v248
    %v1709 = vunpack.c.l.b16 %v249
    %v1710 = vunpack.c.h.b16 %v249
    %v1711 = vunpack.c.l.b16 %v250
    %v1712 = vunpack.c.h.b16 %v250
    %v1713 = vunpack.c.l.b16 %v251
    %v1714 = vunpack.c.h.b16 %v251
    %v1715 = vunpack.c.l.b16 %v252
    %v1716 = vunpack.c.h.b16 %v252
    %v1717 = vunpack.c.l.b16 %v253
    %v1718 = vunpack.c.h.b16 %v253
    %v1719 = vunpack.c.l.b16 %v254
    %v1720 = vunpack.c.h.b16 %v254
    %v1721 = vunpack.c.l.b16 %v255
    %v1722 = vunpack.c.h.b16 %v255
    %v1723 = vunpack.c.l.b16 %v256
    %v1724 = vunpack.c.h.b16 %v256
    %v1725 = vunpack.c.l.b16 %v257
    %v1726 = vunpack.c.h.b16 %v257
    %v1727 = vunpack.c.l.b16 %v258
    %v1728 = vunpack.c.h.b16 %v258
    %v1729 = vunpack.c.l.b16 %v259
    %v1730 = vunpack.c.h.b16 %v259
    %v1731 = vunpack.c.l.b16 %v260
    %v1732 = vunpack.c.h.b16 %v260
    %v1733 = vunpack.c.l.b16 %v261
    %v1734 = vunpack.c.h.b16 %v261
    %v1735 = vunpack.c.l.b16 %v262
    %v1736 = vunpack.c.h.b16 %v262
    %v1737 = vunpack.c.l.b16 %v263
    %v1738 = vunpack.c.h.b16 %v263
    %v1739 = vunpack.c.l.b16 %v264
    %v1740 = vunpack.c.h.b16 %v264
    %v1741 = vunpack.c.l.b16 %v265
    %v1742 = vunpack.c.h.b16 %v265
    %v1743 = vunpack.c.l.b16 %v266
    %v1744 = vunpack.c.h.b16 %v266
    %v1745 = vunpack.c.l.b16 %v267
    %v1746 = vunpack.c.h.b16 %v267
    %v1747 = vunpack.c.l.b16 %v268
    %v1748 = vunpack.c.h.b16 %v268
    %v1749 = vunpack.c.l.b16 %v269
    %v1750 = vunpack.c.h.b16 %v269
    %v1751 = vunpack.c.l.b16 %v270
    %v1752 = vunpack.c.h.b16 %v270
    %v1753 = vunpack.c.l.b16 %v271
    %v1754 = vunpack.c.h.b16 %v271
    %v1755 = vunpack.c.l.b16 %v272
    %v1756 = vunpack.c.h.b16 %v272
    %v1757 = vunpack.c.l.b16 %v273
    %v1758 = vunpack.c.h.b16 %v273
    %v1759 = vunpack.c.l.b16 %v274
    %v1760 = vunpack.c.h.b16 %v274
    %v1761 = vunpack.c.l.b16 %v275
    %v1762 = vunpack.c.h.b16 %v275
    %v1763 = vunpack.c.l.b16 %v276
    %v1764 = vunpack.c.h.b16 %v276
    %v1765 = vunpack.c.l.b16 %v277
    %v1766 = vunpack.c.h.b16 %v277
    %v1767 = vunpack.c.l.b16 %v278
    %v1768 = vunpack.c.h.b16 %v278
    %v1769 = vunpack.c.l.b16 %v279
    %v1770 = vunpack.c.h.b16 %v279
    %v1771 = vunpack.c.l.b16 %v280
    %v1772 = vunpack.c.h.b16 %v280
    %v1773 = vunpack.c.l.b16 %v281
    %v1774 = vunpack.c.h.b16 %v281
    %v1775 = vunpack.c.l.b16 %v282
    %v1776 = vunpack.c.h.b16 %v282
    %v1777 = vunpack.c.l.b16 %v283
    %v1778 = vunpack.c.h.b16 %v283
    %v1779 = vunpack.c.l.b16 %v284
    %v1780 = vunpack.c.h.b16 %v284
    %v1781 = vunpack.c.l.b16 %v285
    %v1782 = vunpack.c.h.b16 %v285
    %v1783 = vunpack.c.l.b16 %v286
    %v1784 = vunpack.c.h.b16 %v286
    %v1785 = vunpack.c.l.b16 %v287
    %v1786 = vunpack.c.h.b16 %v287
    %v1787 = vunpack.c.l.b16 %v288
    %v1788 = vunpack.c.h.b16 %v288
    %v1789 = vunpack.c.l.b16 %v289
    %v1790 = vunpack.c.h.b16 %v289
    %v1791 = vunpack.c.l.b16 %v290
    %v1792 = vunpack.c.h.b16 %v290
    %v1793 = vunpack.c.l.b16 %v291
    %v1794 = vunpack.c.h.b16 %v291
    %v1795 = vunpack.c.l.b16 %v292
    %v1796 = vunpack.c.h.b16 %v292
    %v1797 = vunpack.c.l.b16 %v293
    %v1798 = vunpack.c.h.b16 %v293
    %v1799 = vunpack.c.l.b16 %v294
    %v1800 = vunpack.c.h.b16 %v294
    %v1801 = vunpack.c.l.b16 %v295
    %v1802 = vunpack.c.h.b16 %v295
    %v1803 = vunpack.c.l.b16 %v296
    %v1804 = vunpack.c.h.b16 %v296
    %v1805 = vunpack.c.l.b16 %v297
    %v1806 = vunpack.c.h.b16 %v297
    %v1807 = vunpack.c.l.b16 %v298
    %v1808 = vunpack.c.h.b16 %v298
    %v1809 = vunpack.c.l.b16 %v299
    %v1810 = vunpack.c.h.b16 %v299
    %v1811 = vunpack.c.l.b16 %v300
    %v1812 = vunpack.c.h.b16 %v300
    %v1813 = vunpack.c.l.b16 %v301
    %v1814 = vunpack.c.h.b16 %v301
    %v1815 = vunpack.c.l.b16 %v302
    %v1816 = vunpack.c.h.b16 %v302
    %v1817 = vunpack.c.l.b16 %v303
    %v1818 = vunpack.c.h.b16 %v303
    %v1819 = vunpack.c.l.b16 %v304
    %v1820 = vunpack.c.h.b16 %v304
    %v1821 = vunpack.c.l.b16 %v305
    %v1822 = vunpack.c.h.b16 %v305
    %v1823 = vunpack.c.l.b16 %v306
    %v1824 = vunpack.c.h.b16 %v306
    %v1825 = vunpack.c.l.b16 %v307
    %v1826 = vunpack.c.h.b16 %v307
    %v1827 = vunpack.c.l.b16 %v308
    %v1828 = vunpack.c.h.b16 %v308
    %v1829 = vunpack.c.l.b16 %v309
    %v1830 = vunpack.c.h.b16 %v309
    %v1831 = vunpack.c.l.b16 %v310
    %v1832 = vunpack.c.h.b16 %v310
    %v1833 = vunpack.c.l.b16 %v311
    %v1834 = vunpack.c.h.b16 %v311
    %v1835 = vunpack.c.l.b16 %v312
    %v1836 = vunpack.c.h.b16 %v312
    %v1837 = vunpack.c.l.b16 %v313
    %v1838 = vunpack.c.h.b16 %v313
    %v1839 = vunpack.c.l.b16 %v314
    %v1840 = vunpack.c.h.b16 %v314
    %v1841 = vunpack.c.l.b16 %v315
    %v1842 = vunpack.c.h.b16 %v315
    %v1843 = vunpack.c.l.b16 %v316
    %v1844 = vunpack.c.h.b16 %v316
    %v1845 = vunpack.c.l.b16 %v317
    %v1846 = vunpack.c.h.b16 %v317
    %v1847 = vunpack.c.l.b16 %v318
    %v1848 = vunpack.c.h.b16 %v318
    %v1849 = vunpack.c.l.b16 %v319
    %v1850 = vunpack.c.h.b16 %v319
    %v1851 = vunpack.c.l.b16 %v320
    %v1852 = vunpack.c.h.b16 %v320
    %v1853 = vunpack.c.l.b16 %v321
    %v1854 = vunpack.c.h.b16 %v321
    %v1855 = vunpack.c.l.b16 %v322
    %v1856 = vunpack.c.h.b16 %v322
    %v1857 = vunpack.c.l.b16 %v323
    %v1858 = vunpack.c.h.b16 %v323
    %v1859 = vunpack.c.l.b16 %v324
    %v1860 = vunpack.c.h.b16 %v324
    %v1861 = vunpack.c.l.b16 %v325
    %v1862 = vunpack.c.h.b16 %v325
    %v1863 = vunpack.c.l.b16 %v326
    %v1864 = vunpack.c.h.b16 %v326
    %v1865 = vunpack.c.l.b16 %v327
    %v1866 = vunpack.c.h.b16 %v327
    %v1867 = vunpack.c.l.b16 %v328
    %v1868 = vunpack.c.h.b16 %v328
    %v1869 = vunpack.c.l.b16 %v329
    %v1870 = vunpack.c.h.b16 %v329
    %v1871 = vunpack.c.l.b16 %v330
    %v1872 = vunpack.c.h.b16 %v330
    %v1873 = vunpack.c.l.b16 %v331
    %v1874 = vunpack.c.h.b16 %v331
    %v1875 = vunpack.c.l.b16 %v332
    %v1876 = vunpack.c.h.b16 %v332
    %v1877 = vunpack.c.l.b16 %v333
    %v1878 = vunpack.c.h.b16 %v333
    %v1879 = vunpack.c.l.b16 %v334
    %v1880 = vunpack.c.h.b16 %v334
    %v1881 = vunpack.c.l.b16 %v335
    %v1882 = vunpack.c.h.b16 %v335
    %v1883 = vunpack.c.l.b16 %v336
    %v1884 = vunpack.c.h.b16 %v336
    %v1885 = vunpack.c.l.b16 %v337
    %v1886 = vunpack.c.h.b16 %v337
    %v1887 = vunpack.c.l.b16 %v338
    %v1888 = vunpack.c.h.b16 %v338
    %v1889 = vunpack.c.l.b16 %v339
    %v1890 = vunpack.c.h.b16 %v339
    %v1891 = vunpack.c.l.b16 %v340
    %v1892 = vunpack.c.h.b16 %v340
    %v1893 = vunpack.c.l.b16 %v341
    %v1894 = vunpack.c.h.b16 %v341
    %v1895 = vunpack.c.l.b16 %v342
    %v1896 = vunpack.c.h.b16 %v342
    %v1897 = vunpack.c.l.b16 %v343
    %v1898 = vunpack.c.h.b16 %v343
    %v1899 = vunpack.c.l.b16 %v344
    %v1900 = vunpack.c.h.b16 %v344
    %v1901 = vunpack.c.l.b16 %v345
    %v1902 = vunpack.c.h.b16 %v345
    %v1903 = vunpack.c.l.b16 %v346
    %v1904 = vunpack.c.h.b16 %v346
    %v1905 = vunpack.c.l.b16 %v347
    %v1906 = vunpack.c.h.b16 %v347
    %v1907 = vunpack.c.l.b16 %v348
    %v1908 = vunpack.c.h.b16 %v348
    %v1909 = vunpack.c.l.b16 %v349
    %v1910 = vunpack.c.h.b16 %v349
    %v1911 = vunpack.c.l.b16 %v350
    %v1912 = vunpack.c.h.b16 %v350
    %v1913 = vunpack.c.l.b16 %v351
    %v1914 = vunpack.c.h.b16 %v351
    %v1915 = vunpack.c.l.b16 %v352
    %v1916 = vunpack.c.h.b16 %v352
    %v1917 = vunpack.c.l.b16 %v353
    %v1918 = vunpack.c.h.b16 %v353
    %v1919 = vunpack.c.l.b16 %v354
    %v1920 = vunpack.c.h.b16 %v354
    %v1921 = vunpack.c.l.b16 %v355
    %v1922 = vunpack.c.h.b16 %v355
    %v1923 = vunpack.c.l.b16 %v356
    %v1924 = vunpack.c.h.b16 %v356
    %v1925 = vunpack.c.l.b16 %v357
    %v1926 = vunpack.c.h.b16 %v357
    %v1927 = vunpack.c.l.b16 %v358
    %v1928 = vunpack.c.h.b16 %v358
    %v1929 = vunpack.c.l.b16 %v359
    %v1930 = vunpack.c.h.b16 %v359
    %v1931 = vunpack.c.l.b16 %v360
    %v1932 = vunpack.c.h.b16 %v360
    %v1933 = vunpack.c.l.b16 %v361
    %v1934 = vunpack.c.h.b16 %v361
    %v1935 = vunpack.c.l.b16 %v362
    %v1936 = vunpack.c.h.b16 %v362
    %v1937 = vpack.c.b16 %v1689, %v1681
    %v1938 = vpack.c.b16 %v1690, %v1682
    %v1939 = vpack.c.b16 %v1691, %v1683
    %v1940 = vpack.c.b16 %v1692, %v1684
    %v1941 = vpack.c.b16 %v1693, %v1685
    %v1942 = vpack.c.b16 %v1694, %v1686
    %v1943 = vpack.c.b16 %v1695, %v1687
    %v1944 = vpack.c.b16 %v1696, %v1688
    %v1945 = vpack.c.b16 %v1705, %v1697
    %v1946 = vpack.c.b16 %v1706, %v1698
    %v1947 = vpack.c.b16 %v1707, %v1699
    %v1948 = vpack.c.b16 %v1708, %v1700
    %v1949 = vpack.c.b16 %v1709, %v1701
    %v1950 = vpack.c.b16 %v1710, %v1702
    %v1951 = vpack.c.b16 %v1711, %v1703
    %v1952 = vpack.c.b16 %v1712, %v1704
    %v1953 = vpack.c.b16 %v1721, %v1713
    %v1954 = vpack.c.b16 %v1722, %v1714
    %v1955 = vpack.c.b16 %v1723, %v1715
    %v1956 = vpack.c.b16 %v1724, %v1716
    %v1957 = vpack.c.b16 %v1725, %v1717
    %v1958 = vpack.c.b16 %v1726, %v1718
    %v1959 = vpack.c.b16 %v1727, %v1719
    %v1960 = vpack.c.b16 %v1728, %v1720
    %v1961 = vpack.c.b16 %v1737, %v1729
    %v1962 = vpack.c.b16 %v1738, %v1730
    %v1963 = vpack.c.b16 %v1739, %v1731
    %v1964 = vpack.c.b16 %v1740, %v1732
    %v1965 = vpack.c.b16 %v1741, %v1733
    %v1966 = vpack.c.b16 %v1742, %v1734
    %v1967 = vpack.c.b16 %v1743, %v1735
    %v1968 = vpack.c.b16 %v1744, %v1736
    %v1969 = vpack.c.b16 %v1753, %v1745
    %v1970 = vpack.c.b16 %v1754, %v1746
    %v1971 = vpack.c.b16 %v1755, %v1747
    %v1972 = vpack.c.b16 %v1756, %v1748
    %v1973 = vpack.c.b16 %v1757, %v1749
    %v1974 = vpack.c.b16 %v1758, %v1750
    %v1975 = vpack.c.b16 %v1759, %v1751
    %v1976 = vpack.c.b16 %v1760, %v1752
    %v1977 = vpack.c.b16 %v1769, %v1761
    %v1978 = vpack.c.b16 %v1770, %v1762
    %v1979 = vpack.c.b16 %v1771, %v1763
    %v1980 = vpack.c.b16 %v1772, %v1764
    %v1981 = vpack.c.b16 %v1773, %v1765
    %v1982 = vpack.c.b16 %v1774, %v1766
    %v1983 = vpack.c.b16 %v1775, %v1767
    %v1984 = vpack.c.b16 %v1776, %v1768
    %v1985 = vpack.c.b16 %v1785, %v1777
    %v1986 = vpack.c.b16 %v1786, %v1778
    %v1987 = vpack.c.b16 %v1787, %v1779
    %v1988 = vpack.c.b16 %v1788, %v1780
    %v1989 = vpack.c.b16 %v1789, %v1781
    %v1990 = vpack.c.b16 %v1790, %v1782
    %v1991 = vpack.c.b16 %v1791, %v1783
    %v1992 = vpack.c.b16 %v1792, %v1784
    %v1993 = vpack.c.b16 %v1801, %v1793
    %v1994 = vpack.c.b16 %v1802, %v1794
    %v1995 = vpack.c.b16 %v1803, %v1795
    %v1996 = vpack.c.b16 %v1804, %v1796
    %v1997 = vpack.c.b16 %v1805, %v1797
    %v1998 = vpack.c.b16 %v1806, %v1798
    %v1999 = vpack.c.b16 %v1807, %v1799
    %v2000 = vpack.c.b16 %v1808, %v1800
    %v2001 = vpack.c.b16 %v1817, %v1809
    %v2002 = vpack.c.b16 %v1818, %v1810
    %v2003 = vpack.c.b16 %v1819, %v1811
    %v2004 = vpack.c.b16 %v1820, %v1812
    %v2005 = vpack.c.b16 %v1821, %v1813
    %v2006 = vpack.c.b16 %v1822, %v1814
    %v2007 = vpack.c.b16 %v1823, %v1815
    %v2008 = vpack.c.b16 %v1824, %v1816
    %v2009 = vpack.c.b16 %v1833, %v1825
    %v2010 = vpack.c.b16 %v1834, %v1826
    %v2011 = vpack.c.b16 %v1835, %v1827
    %v2012 = vpack.c.b16 %v1836, %v1828
    %v2013 = vpack.c.b16 %v1837, %v1829
    %v2014 = vpack.c.b16 %v1838, %v1830
    %v2015 = vpack.c.b16 %v1839, %v1831
    %v2016 = vpack.c.b16 %v1840, %v1832
    %v2017 = vpack.c.b16 %v1849, %v1841
    %v2018 = vpack.c.b16 %v1850, %v1842
    %v2019 = vpack.c.b16 %v1851, %v1843
    %v2020 = vpack.c.b16 %v1852, %v1844
    %v2021 = vpack.c.b16 %v1853, %v1845
    %v2022 = vpack.c.b16 %v1854, %v1846
    %v2023 = vpack.c.b16 %v1855, %v1847
    %v2024 = vpack.c.b16 %v1856, %v1848
    %v2025 = vpack.c.b16 %v1865, %v1857
    %v2026 = vpack.c.b16 %v1866, %v1858
    %v2027 = vpack.c.b16 %v1867, %v1859
    %v2028 = vpack.c.b16 %v1868, %v1860
    %v2029 = vpack.c.b16 %v1869, %v1861
    %v2030 = vpack.c.b16 %v1870, %v1862
    %v2031 = vpack.c.b16 %v1871, %v1863
    %v2032 = vpack.c.b16 %v1872, %v1864
    %v2033 = vpack.c.b16 %v1881, %v1873
    %v2034 = vpack.c.b16 %v1882, %v1874
    %v2035 = vpack.c.b16 %v1883, %v1875
    %v2036 = vpack.c.b16 %v1884, %v1876
    %v2037 = vpack.c.b16 %v1885, %v1877
    %v2038 = vpack.c.b16 %v1886, %v1878
    %v2039 = vpack.c.b16 %v1887, %v1879
    %v2040 = vpack.c.b16 %v1888, %v1880
    %v2041 = vpack.c.b16 %v1897, %v1889
    %v2042 = vpack.c.b16 %v1898, %v1890
    %v2043 = vpack.c.b16 %v1899, %v1891
    %v2044 = vpack.c.b16 %v1900, %v1892
    %v2045 = vpack.c.b16 %v1901, %v1893
    %v2046 = vpack.c.b16 %v1902, %v1894
    %v2047 = vpack.c.b16 %v1903, %v1895
    %v2048 = vpack.c.b16 %v1904, %v1896
    %v2049 = vpack.c.b16 %v1913, %v1905
    %v2050 = vpack.c.b16 %v1914, %v1906
    %v2051 = vpack.c.b16 %v1915, %v1907
    %v2052 = vpack.c.b16 %v1916, %v1908
    %v2053 = vpack.c.b16 %v1917, %v1909
    %v2054 = vpack.c.b16 %v1918, %v1910
    %v2055 = vpack.c.b16 %v1919, %v1911
    %v2056 = vpack.c.b16 %v1920, %v1912
    %v2057 = vpack.c.b16 %v1929, %v1921
    %v2058 = vpack.c.b16 %v1930, %v1922
    %v2059 = vpack.c.b16 %v1931, %v1923
    %v2060 = vpack.c.b16 %v1932, %v1924
    %v2061 = vpack.c.b16 %v1933, %v1925
    %v2062 = vpack.c.b16 %v1934, %v1926
    %v2063 = vpack.c.b16 %v1935, %v1927
    %v2064 = vpack.c.b16 %v1936, %v1928
    %2193 = vmatprep.subr.bf16.mxu0 %v1938
    %2194 = vmatpush1.bf16.msra.mxu0 %v1937
    %2195 = vmatprep.subr.bf16.mxu0 %v1946
    %2196 = vmatpush1.bf16.msra.mxu0 %v1945
    %2197 = vmatprep.subr.bf16.mxu0 %v1954
    %2198 = vmatpush1.bf16.msra.mxu0 %v1953
    %2199 = vmatprep.subr.bf16.mxu0 %v1962
    %2200 = vmatpush1.bf16.msra.mxu0 %v1961
    %2201 = vmatprep.subr.bf16.mxu0 %v1970
    %2202 = vmatpush1.bf16.msra.mxu0 %v1969
    %2203 = vmatprep.subr.bf16.mxu0 %v1978
    %2204 = vmatpush1.bf16.msra.mxu0 %v1977
    %2205 = vmatprep.subr.bf16.mxu0 %v1986
    %2206 = vmatpush1.bf16.msra.mxu0 %v1985
    %2207 = vmatprep.subr.bf16.mxu0 %v1994
    %2208 = vmatpush1.bf16.msra.mxu0 %v1993
    %2209 = vmatprep.subr.bf16.mxu0 %v2002
    %2210 = vmatpush1.bf16.msra.mxu0 %v2001
    %2211 = vmatprep.subr.bf16.mxu0 %v2010
    %2212 = vmatpush1.bf16.msra.mxu0 %v2009
    %2213 = vmatprep.subr.bf16.mxu0 %v2018
    %2214 = vmatpush1.bf16.msra.mxu0 %v2017
    %2215 = vmatprep.subr.bf16.mxu0 %v2026
    %2216 = vmatpush1.bf16.msra.mxu0 %v2025
    %2217 = vmatprep.subr.bf16.mxu0 %v2034
    %2218 = vmatpush1.bf16.msra.mxu0 %v2033
    %2219 = vmatprep.subr.bf16.mxu0 %v2042
    %2220 = vmatpush1.bf16.msra.mxu0 %v2041
    %2221 = vmatprep.subr.bf16.mxu0 %v2050
    %2222 = vmatpush1.bf16.msra.mxu0 %v2049
    %2223 = vmatprep.subr.bf16.mxu0 %v2058
    %2224 = vmatpush1.bf16.msra.mxu0 %v2057
    %2225 = vmatprep.mubr.bf16.mxu0 %v1552
    %2226 = vmatmul.mubr.bf16.gmra.mrb[0].mxu0 %v1551
    %v2227 = vpop.f32.mrb[0].mxu0
    %v2228 = vadd.f32 0.0, %v2227
    %v2229 = vpop.f32.mrb[0].mxu0
    %v2230 = vadd.f32 0.0, %v2229
    %v2231 = vpop.f32.mrb[0].mxu0
    %v2232 = vpop.f32.mrb[0].mxu0
    %2233 = vdwg.mxu0
    %2234 = vmatprep.subr.bf16.mxu0 %v1940
    %2235 = vmatpush1.bf16.msra.mxu0 %v1939
    %2236 = vmatprep.subr.bf16.mxu0 %v1948
    %2237 = vmatpush1.bf16.msra.mxu0 %v1947
    %2238 = vmatprep.subr.bf16.mxu0 %v1956
    %2239 = vmatpush1.bf16.msra.mxu0 %v1955
    %2240 = vmatprep.subr.bf16.mxu0 %v1964
    %2241 = vmatpush1.bf16.msra.mxu0 %v1963
    %2242 = vmatprep.subr.bf16.mxu0 %v1972
    %2243 = vmatpush1.bf16.msra.mxu0 %v1971
    %2244 = vmatprep.subr.bf16.mxu0 %v1980
    %2245 = vmatpush1.bf16.msra.mxu0 %v1979
    %2246 = vmatprep.subr.bf16.mxu0 %v1988
    %2247 = vmatpush1.bf16.msra.mxu0 %v1987
    %2248 = vmatprep.subr.bf16.mxu0 %v1996
    %2249 = vmatpush1.bf16.msra.mxu0 %v1995
    %2250 = vmatprep.subr.bf16.mxu0 %v2004
    %2251 = vmatpush1.bf16.msra.mxu0 %v2003
    %2252 = vmatprep.subr.bf16.mxu0 %v2012
    %2253 = vmatpush1.bf16.msra.mxu0 %v2011
    %2254 = vmatprep.subr.bf16.mxu0 %v2020
    %2255 = vmatpush1.bf16.msra.mxu0 %v2019
    %2256 = vmatprep.subr.bf16.mxu0 %v2028
    %2257 = vmatpush1.bf16.msra.mxu0 %v2027
    %2258 = vmatprep.subr.bf16.mxu0 %v2036
    %2259 = vmatpush1.bf16.msra.mxu0 %v2035
    %2260 = vmatprep.subr.bf16.mxu0 %v2044
    %2261 = vmatpush1.bf16.msra.mxu0 %v2043
    %2262 = vmatprep.subr.bf16.mxu0 %v2052
    %2263 = vmatpush1.bf16.msra.mxu0 %v2051
    %2264 = vmatprep.subr.bf16.mxu0 %v2060
    %2265 = vmatpush1.bf16.msra.mxu0 %v2059
    %2266 = vmatprep.mubr.bf16.mxu0 %v1552
    %2267 = vmatmul.mubr.bf16.gmra.mrb[0].mxu0 %v1551
    %v2268 = vpop.f32.mrb[0].mxu0
    %v2269 = vadd.f32 0.0, %v2268
    %v2270 = vpop.f32.mrb[0].mxu0
    %v2271 = vadd.f32 0.0, %v2270
    %v2272 = vpop.f32.mrb[0].mxu0
    %v2273 = vpop.f32.mrb[0].mxu0
    %2274 = vdwg.mxu0
    %2275 = vmatprep.subr.bf16.mxu0 %v1942
    %2276 = vmatpush1.bf16.msra.mxu0 %v1941
    %2277 = vmatprep.subr.bf16.mxu0 %v1950
    %2278 = vmatpush1.bf16.msra.mxu0 %v1949
    %2279 = vmatprep.subr.bf16.mxu0 %v1958
    %2280 = vmatpush1.bf16.msra.mxu0 %v1957
    %2281 = vmatprep.subr.bf16.mxu0 %v1966
    %2282 = vmatpush1.bf16.msra.mxu0 %v1965
    %2283 = vmatprep.subr.bf16.mxu0 %v1974
    %2284 = vmatpush1.bf16.msra.mxu0 %v1973
    %2285 = vmatprep.subr.bf16.mxu0 %v1982
    %2286 = vmatpush1.bf16.msra.mxu0 %v1981
    %2287 = vmatprep.subr.bf16.mxu0 %v1990
    %2288 = vmatpush1.bf16.msra.mxu0 %v1989
    %2289 = vmatprep.subr.bf16.mxu0 %v1998
    %2290 = vmatpush1.bf16.msra.mxu0 %v1997
    %2291 = vmatprep.subr.bf16.mxu0 %v2006
    %2292 = vmatpush1.bf16.msra.mxu0 %v2005
    %2293 = vmatprep.subr.bf16.mxu0 %v2014
    %2294 = vmatpush1.bf16.msra.mxu0 %v2013
    %2295 = vmatprep.subr.bf16.mxu0 %v2022
    %2296 = vmatpush1.bf16.msra.mxu0 %v2021
    %2297 = vmatprep.subr.bf16.mxu0 %v2030
    %2298 = vmatpush1.bf16.msra.mxu0 %v2029
    %2299 = vmatprep.subr.bf16.mxu0 %v2038
    %2300 = vmatpush1.bf16.msra.mxu0 %v2037
    %2301 = vmatprep.subr.bf16.mxu0 %v2046
    %2302 = vmatpush1.bf16.msra.mxu0 %v2045
    %2303 = vmatprep.subr.bf16.mxu0 %v2054
    %2304 = vmatpush1.bf16.msra.mxu0 %v2053
    %2305 = vmatprep.subr.bf16.mxu0 %v2062
    %2306 = vmatpush1.bf16.msra.mxu0 %v2061
    %2307 = vmatprep.mubr.bf16.mxu0 %v1552
    %2308 = vmatmul.mubr.bf16.gmra.mrb[0].mxu0 %v1551
    %v2309 = vpop.f32.mrb[0].mxu0
    %v2310 = vadd.f32 0.0, %v2309
    %v2311 = vpop.f32.mrb[0].mxu0
    %v2312 = vadd.f32 0.0, %v2311
    %v2313 = vpop.f32.mrb[0].mxu0
    %v2314 = vpop.f32.mrb[0].mxu0
    %2315 = vdwg.mxu0
    %2316 = vmatprep.subr.bf16.mxu0 %v1944
    %2317 = vmatpush1.bf16.msra.mxu0 %v1943
    %2318 = vmatprep.subr.bf16.mxu0 %v1952
    %2319 = vmatpush1.bf16.msra.mxu0 %v1951
    %2320 = vmatprep.subr.bf16.mxu0 %v1960
    %2321 = vmatpush1.bf16.msra.mxu0 %v1959
    %2322 = vmatprep.subr.bf16.mxu0 %v1968
    %2323 = vmatpush1.bf16.msra.mxu0 %v1967
    %2324 = vmatprep.subr.bf16.mxu0 %v1976
    %2325 = vmatpush1.bf16.msra.mxu0 %v1975
    %2326 = vmatprep.subr.bf16.mxu0 %v1984
    %2327 = vmatpush1.bf16.msra.mxu0 %v1983
    %2328 = vmatprep.subr.bf16.mxu0 %v1992
    %2329 = vmatpush1.bf16.msra.mxu0 %v1991
    %2330 = vmatprep.subr.bf16.mxu0 %v2000
    %2331 = vmatpush1.bf16.msra.mxu0 %v1999
    %2332 = vmatprep.subr.bf16.mxu0 %v2008
    %2333 = vmatpush1.bf16.msra.mxu0 %v2007
    %2334 = vmatprep.subr.bf16.mxu0 %v2016
    %2335 = vmatpush1.bf16.msra.mxu0 %v2015
    %2336 = vmatprep.subr.bf16.mxu0 %v2024
    %2337 = vmatpush1.bf16.msra.mxu0 %v2023
    %2338 = vmatprep.subr.bf16.mxu0 %v2032
    %2339 = vmatpush1.bf16.msra.mxu0 %v2031
    %2340 = vmatprep.subr.bf16.mxu0 %v2040
    %2341 = vmatpush1.bf16.msra.mxu0 %v2039
    %2342 = vmatprep.subr.bf16.mxu0 %v2048
    %2343 = vmatpush1.bf16.msra.mxu0 %v2047
    %2344 = vmatprep.subr.bf16.mxu0 %v2056
    %2345 = vmatpush1.bf16.msra.mxu0 %v2055
    %2346 = vmatprep.subr.bf16.mxu0 %v2064
    %2347 = vmatpush1.bf16.msra.mxu0 %v2063
    %2348 = vmatprep.mubr.bf16.mxu0 %v1552
    %2349 = vmatmul.mubr.bf16.gmra.mrb[0].mxu0 %v1551
    %v2350 = vpop.f32.mrb[0].mxu0
    %v2351 = vadd.f32 0.0, %v2350
    %v2352 = vpop.f32.mrb[0].mxu0
    %v2353 = vadd.f32 0.0, %v2352
    %v2354 = vpop.f32.mrb[0].mxu0
    %v2355 = vpop.f32.mrb[0].mxu0
    %2356 = vdwg.mxu0
    %v2357 = vadd.f32 %v1543, %v2228
    %v2358 = vadd.f32 %v1544, %v2230
    %v2359 = vadd.f32 %v1545, %v2269
    %v2360 = vadd.f32 %v1546, %v2271
    %v2361 = vadd.f32 %v1547, %v2310
    %v2362 = vadd.f32 %v1548, %v2312
    %v2363 = vadd.f32 %v1549, %v2351
    %v2364 = vadd.f32 %v1550, %v2353
    %v2365 = vxor.u32 %v2357, 2147483648
    %v2366 = vxor.u32 %v2358, 2147483648
    %v2367 = vmul.f32 %v2365, 1.442695
    %v2368 = vpow.pop %v2367
    %v2369 = vmul.f32 %v2366, 1.442695
    %v2370 = vpow.pop %v2369
    %v2371 = vadd.f32 %v2368, 1.0
    %v2372 = vadd.f32 %v2370, 1.0
    %v2373 = vrcp.pop %v2371
    %v2374 = vmul.f32 1.0, %v2373
    %v2375 = vrcp.pop %v2372
    %v2376 = vmul.f32 1.0, %v2375
    %v2377 = vxor.u32 %v2359, 2147483648
    %v2378 = vxor.u32 %v2360, 2147483648
    %v2379 = vmul.f32 %v2377, 1.442695
    %v2380 = vpow.pop %v2379
    %v2381 = vmul.f32 %v2378, 1.442695
    %v2382 = vpow.pop %v2381
    %v2383 = vadd.f32 %v2380, 1.0
    %v2384 = vadd.f32 %v2382, 1.0
    %v2385 = vrcp.pop %v2383
    %v2386 = vmul.f32 1.0, %v2385
    %v2387 = vrcp.pop %v2384
    %v2388 = vmul.f32 1.0, %v2387
    %v2389 = vtanh.pop %v2361
    %v2390 = vtanh.pop %v2362
    %v2391 = vxor.u32 %v2363, 2147483648
    %v2392 = vxor.u32 %v2364, 2147483648
    %v2393 = vmul.f32 %v2391, 1.442695
    %v2394 = vpow.pop %v2393
    %v2395 = vmul.f32 %v2392, 1.442695
    %v2396 = vpow.pop %v2395
    %v2397 = vadd.f32 %v2394, 1.0
    %v2398 = vadd.f32 %v2396, 1.0
    %v2399 = vrcp.pop %v2397
    %v2400 = vmul.f32 1.0, %v2399
    %v2401 = vrcp.pop %v2398
    %v2402 = vmul.f32 1.0, %v2401
    %v2403 = vmul.f32 %v2386, %v225
    %v2404 = vmul.f32 %v2388, %v226
    %v2405 = vmul.f32 %v2374, %v2389
    %v2406 = vmul.f32 %v2376, %v2390
    %v2407 = vadd.f32 %v2403, %v2405
    %v2408 = vadd.f32 %v2404, %v2406
    %v2409 = vtanh.pop %v2407
    %v2410 = vtanh.pop %v2408
    %v2411 = vmul.f32 %v2400, %v2409
    %v2412 = vmul.f32 %v2402, %v2410
    %v2413 = vpack.c.bf16 %v2411, %v2411
    %v2414 = vpack.c.bf16 %v2412, %v2412
    %2415 = vmatprep.subr.bf16.mxu0 %v1938
    %2416 = vmatpush1.bf16.msra.mxu0 %v1937
    %2417 = vmatprep.subr.bf16.mxu0 %v1946
    %2418 = vmatpush1.bf16.msra.mxu0 %v1945
    %2419 = vmatprep.subr.bf16.mxu0 %v1954
    %2420 = vmatpush1.bf16.msra.mxu0 %v1953
    %2421 = vmatprep.subr.bf16.mxu0 %v1962
    %2422 = vmatpush1.bf16.msra.mxu0 %v1961
    %2423 = vmatprep.subr.bf16.mxu0 %v1970
    %2424 = vmatpush1.bf16.msra.mxu0 %v1969
    %2425 = vmatprep.subr.bf16.mxu0 %v1978
    %2426 = vmatpush1.bf16.msra.mxu0 %v1977
    %2427 = vmatprep.subr.bf16.mxu0 %v1986
    %2428 = vmatpush1.bf16.msra.mxu0 %v1985
    %2429 = vmatprep.subr.bf16.mxu0 %v1994
    %2430 = vmatpush1.bf16.msra.mxu0 %v1993
    %2431 = vmatprep.subr.bf16.mxu0 %v2002
    %2432 = vmatpush1.bf16.msra.mxu0 %v2001
    %2433 = vmatprep.subr.bf16.mxu0 %v2010
    %2434 = vmatpush1.bf16.msra.mxu0 %v2009
    %2435 = vmatprep.subr.bf16.mxu0 %v2018
    %2436 = vmatpush1.bf16.msra.mxu0 %v2017
    %2437 = vmatprep.subr.bf16.mxu0 %v2026
    %2438 = vmatpush1.bf16.msra.mxu0 %v2025
    %2439 = vmatprep.subr.bf16.mxu0 %v2034
    %2440 = vmatpush1.bf16.msra.mxu0 %v2033
    %2441 = vmatprep.subr.bf16.mxu0 %v2042
    %2442 = vmatpush1.bf16.msra.mxu0 %v2041
    %2443 = vmatprep.subr.bf16.mxu0 %v2050
    %2444 = vmatpush1.bf16.msra.mxu0 %v2049
    %2445 = vmatprep.subr.bf16.mxu0 %v2058
    %2446 = vmatpush1.bf16.msra.mxu0 %v2057
    %2447 = vmatprep.mubr.bf16.mxu0 %v2414
    %2448 = vmatmul.mubr.bf16.gmra.mrb[0].mxu0 %v2413
    %v2449 = vpop.f32.mrb[0].mxu0
    %v2450 = vadd.f32 0.0, %v2449
    %v2451 = vpop.f32.mrb[0].mxu0
    %v2452 = vadd.f32 0.0, %v2451
    %v2453 = vpop.f32.mrb[0].mxu0
    %v2454 = vpop.f32.mrb[0].mxu0
    %2455 = vdwg.mxu0
    %2456 = vmatprep.subr.bf16.mxu0 %v1940
    %2457 = vmatpush1.bf16.msra.mxu0 %v1939
    %2458 = vmatprep.subr.bf16.mxu0 %v1948
    %2459 = vmatpush1.bf16.msra.mxu0 %v1947
    %2460 = vmatprep.subr.bf16.mxu0 %v1956
    %2461 = vmatpush1.bf16.msra.mxu0 %v1955
    %2462 = vmatprep.subr.bf16.mxu0 %v1964
    %2463 = vmatpush1.bf16.msra.mxu0 %v1963
    %2464 = vmatprep.subr.bf16.mxu0 %v1972
    %2465 = vmatpush1.bf16.msra.mxu0 %v1971
    %2466 = vmatprep.subr.bf16.mxu0 %v1980
    %2467 = vmatpush1.bf16.msra.mxu0 %v1979
    %2468 = vmatprep.subr.bf16.mxu0 %v1988
    %2469 = vmatpush1.bf16.msra.mxu0 %v1987
    %2470 = vmatprep.subr.bf16.mxu0 %v1996
    %2471 = vmatpush1.bf16.msra.mxu0 %v1995
    %2472 = vmatprep.subr.bf16.mxu0 %v2004
    %2473 = vmatpush1.bf16.msra.mxu0 %v2003
    %2474 = vmatprep.subr.bf16.mxu0 %v2012
    %2475 = vmatpush1.bf16.msra.mxu0 %v2011
    %2476 = vmatprep.subr.bf16.mxu0 %v2020
    %2477 = vmatpush1.bf16.msra.mxu0 %v2019
    %2478 = vmatprep.subr.bf16.mxu0 %v2028
    %2479 = vmatpush1.bf16.msra.mxu0 %v2027
    %2480 = vmatprep.subr.bf16.mxu0 %v2036
    %2481 = vmatpush1.bf16.msra.mxu0 %v2035
    %2482 = vmatprep.subr.bf16.mxu0 %v2044
    %2483 = vmatpush1.bf16.msra.mxu0 %v2043
    %2484 = vmatprep.subr.bf16.mxu0 %v2052
    %2485 = vmatpush1.bf16.msra.mxu0 %v2051
    %2486 = vmatprep.subr.bf16.mxu0 %v2060
    %2487 = vmatpush1.bf16.msra.mxu0 %v2059
    %2488 = vmatprep.mubr.bf16.mxu0 %v2414
    %2489 = vmatmul.mubr.bf16.gmra.mrb[0].mxu0 %v2413
    %v2490 = vpop.f32.mrb[0].mxu0
    %v2491 = vadd.f32 0.0, %v2490
    %v2492 = vpop.f32.mrb[0].mxu0
    %v2493 = vadd.f32 0.0, %v2492
    %v2494 = vpop.f32.mrb[0].mxu0
    %v2495 = vpop.f32.mrb[0].mxu0
    %2496 = vdwg.mxu0
    %2497 = vmatprep.subr.bf16.mxu0 %v1942
    %2498 = vmatpush1.bf16.msra.mxu0 %v1941
    %2499 = vmatprep.subr.bf16.mxu0 %v1950
    %2500 = vmatpush1.bf16.msra.mxu0 %v1949
    %2501 = vmatprep.subr.bf16.mxu0 %v1958
    %2502 = vmatpush1.bf16.msra.mxu0 %v1957
    %2503 = vmatprep.subr.bf16.mxu0 %v1966
    %2504 = vmatpush1.bf16.msra.mxu0 %v1965
    %2505 = vmatprep.subr.bf16.mxu0 %v1974
    %2506 = vmatpush1.bf16.msra.mxu0 %v1973
    %2507 = vmatprep.subr.bf16.mxu0 %v1982
    %2508 = vmatpush1.bf16.msra.mxu0 %v1981
    %2509 = vmatprep.subr.bf16.mxu0 %v1990
    %2510 = vmatpush1.bf16.msra.mxu0 %v1989
    %2511 = vmatprep.subr.bf16.mxu0 %v1998
    %2512 = vmatpush1.bf16.msra.mxu0 %v1997
    %2513 = vmatprep.subr.bf16.mxu0 %v2006
    %2514 = vmatpush1.bf16.msra.mxu0 %v2005
    %2515 = vmatprep.subr.bf16.mxu0 %v2014
    %2516 = vmatpush1.bf16.msra.mxu0 %v2013
    %2517 = vmatprep.subr.bf16.mxu0 %v2022
    %2518 = vmatpush1.bf16.msra.mxu0 %v2021
    %2519 = vmatprep.subr.bf16.mxu0 %v2030
    %2520 = vmatpush1.bf16.msra.mxu0 %v2029
    %2521 = vmatprep.subr.bf16.mxu0 %v2038
    %2522 = vmatpush1.bf16.msra.mxu0 %v2037
    %2523 = vmatprep.subr.bf16.mxu0 %v2046
    %2524 = vmatpush1.bf16.msra.mxu0 %v2045
    %2525 = vmatprep.subr.bf16.mxu0 %v2054
    %2526 = vmatpush1.bf16.msra.mxu0 %v2053
    %2527 = vmatprep.subr.bf16.mxu0 %v2062
    %2528 = vmatpush1.bf16.msra.mxu0 %v2061
    %2529 = vmatprep.mubr.bf16.mxu0 %v2414
    %2530 = vmatmul.mubr.bf16.gmra.mrb[0].mxu0 %v2413
    %v2531 = vpop.f32.mrb[0].mxu0
    %v2532 = vadd.f32 0.0, %v2531
    %v2533 = vpop.f32.mrb[0].mxu0
    %v2534 = vadd.f32 0.0, %v2533
    %v2535 = vpop.f32.mrb[0].mxu0
    %v2536 = vpop.f32.mrb[0].mxu0
    %2537 = vdwg.mxu0
    %2538 = vmatprep.subr.bf16.mxu0 %v1944
    %2539 = vmatpush1.bf16.msra.mxu0 %v1943
    %2540 = vmatprep.subr.bf16.mxu0 %v1952
    %2541 = vmatpush1.bf16.msra.mxu0 %v1951
    %2542 = vmatprep.subr.bf16.mxu0 %v1960
    %2543 = vmatpush1.bf16.msra.mxu0 %v1959
    %2544 = vmatprep.subr.bf16.mxu0 %v1968
    %2545 = vmatpush1.bf16.msra.mxu0 %v1967
    %2546 = vmatprep.subr.bf16.mxu0 %v1976
    %2547 = vmatpush1.bf16.msra.mxu0 %v1975
    %2548 = vmatprep.subr.bf16.mxu0 %v1984
    %2549 = vmatpush1.bf16.msra.mxu0 %v1983
    %2550 = vmatprep.subr.bf16.mxu0 %v1992
    %2551 = vmatpush1.bf16.msra.mxu0 %v1991
    %2552 = vmatprep.subr.bf16.mxu0 %v2000
    %2553 = vmatpush1.bf16.msra.mxu0 %v1999
    %2554 = vmatprep.subr.bf16.mxu0 %v2008
    %2555 = vmatpush1.bf16.msra.mxu0 %v2007
    %2556 = vmatprep.subr.bf16.mxu0 %v2016
    %2557 = vmatpush1.bf16.msra.mxu0 %v2015
    %2558 = vmatprep.subr.bf16.mxu0 %v2024
    %2559 = vmatpush1.bf16.msra.mxu0 %v2023
    %2560 = vmatprep.subr.bf16.mxu0 %v2032
    %2561 = vmatpush1.bf16.msra.mxu0 %v2031
    %2562 = vmatprep.subr.bf16.mxu0 %v2040
    %2563 = vmatpush1.bf16.msra.mxu0 %v2039
    %2564 = vmatprep.subr.bf16.mxu0 %v2048
    %2565 = vmatpush1.bf16.msra.mxu0 %v2047
    %2566 = vmatprep.subr.bf16.mxu0 %v2056
    %2567 = vmatpush1.bf16.msra.mxu0 %v2055
    %2568 = vmatprep.subr.bf16.mxu0 %v2064
    %2569 = vmatpush1.bf16.msra.mxu0 %v2063
    %2570 = vmatprep.mubr.bf16.mxu0 %v2414
    %2571 = vmatmul.mubr.bf16.gmra.mrb[0].mxu0 %v2413
    %v2572 = vpop.f32.mrb[0].mxu0
    %v2573 = vadd.f32 0.0, %v2572
    %v2574 = vpop.f32.mrb[0].mxu0
    %v2575 = vadd.f32 0.0, %v2574
    %v2576 = vpop.f32.mrb[0].mxu0
    %v2577 = vpop.f32.mrb[0].mxu0
    %2578 = vdwg.mxu0
    %v2579 = vadd.f32 %v1535, %v2450
    %v2580 = vadd.f32 %v1536, %v2452
    %v2581 = vadd.f32 %v1537, %v2491
    %v2582 = vadd.f32 %v1538, %v2493
    %v2583 = vadd.f32 %v1539, %v2532
    %v2584 = vadd.f32 %v1540, %v2534
    %v2585 = vadd.f32 %v1541, %v2573
    %v2586 = vadd.f32 %v1542, %v2575
    %v2587 = vxor.u32 %v2579, 2147483648
    %v2588 = vxor.u32 %v2580, 2147483648
    %v2589 = vmul.f32 %v2587, 1.442695
    %v2590 = vpow.pop %v2589
    %v2591 = vmul.f32 %v2588, 1.442695
    %v2592 = vpow.pop %v2591
    %v2593 = vadd.f32 %v2590, 1.0
    %v2594 = vadd.f32 %v2592, 1.0
    %v2595 = vrcp.pop %v2593
    %v2596 = vmul.f32 1.0, %v2595
    %v2597 = vrcp.pop %v2594
    %v2598 = vmul.f32 1.0, %v2597
    %v2599 = vxor.u32 %v2581, 2147483648
    %v2600 = vxor.u32 %v2582, 2147483648
    %v2601 = vmul.f32 %v2599, 1.442695
    %v2602 = vpow.pop %v2601
    %v2603 = vmul.f32 %v2600, 1.442695
    %v2604 = vpow.pop %v2603
    %v2605 = vadd.f32 %v2602, 1.0
    %v2606 = vadd.f32 %v2604, 1.0
    %v2607 = vrcp.pop %v2605
    %v2608 = vmul.f32 1.0, %v2607
    %v2609 = vrcp.pop %v2606
    %v2610 = vmul.f32 1.0, %v2609
    %v2611 = vtanh.pop %v2583
    %v2612 = vtanh.pop %v2584
    %v2613 = vxor.u32 %v2585, 2147483648
    %v2614 = vxor.u32 %v2586, 2147483648
    %v2615 = vmul.f32 %v2613, 1.442695
    %v2616 = vpow.pop %v2615
    %v2617 = vmul.f32 %v2614, 1.442695
    %v2618 = vpow.pop %v2617
    %v2619 = vadd.f32 %v2616, 1.0
    %v2620 = vadd.f32 %v2618, 1.0
    %v2621 = vrcp.pop %v2619
    %v2622 = vmul.f32 1.0, %v2621
    %v2623 = vrcp.pop %v2620
    %v2624 = vmul.f32 1.0, %v2623
    %v2625 = vmul.f32 %v2608, %v2407
    %v2626 = vmul.f32 %v2610, %v2408
    %v2627 = vmul.f32 %v2596, %v2611
    %v2628 = vmul.f32 %v2598, %v2612
    %v2629 = vadd.f32 %v2625, %v2627
    %v2630 = vadd.f32 %v2626, %v2628
    %v2631 = vtanh.pop %v2629
    %v2632 = vtanh.pop %v2630
    %v2633 = vmul.f32 %v2622, %v2631
    %v2634 = vmul.f32 %v2624, %v2632
    %v2635 = vpack.c.bf16 %v2633, %v2633
    %v2636 = vpack.c.bf16 %v2634, %v2634
    %2637 = vmatprep.subr.bf16.mxu0 %v1938
    %2638 = vmatpush1.bf16.msra.mxu0 %v1937
    %2639 = vmatprep.subr.bf16.mxu0 %v1946
    %2640 = vmatpush1.bf16.msra.mxu0 %v1945
    %2641 = vmatprep.subr.bf16.mxu0 %v1954
    %2642 = vmatpush1.bf16.msra.mxu0 %v1953
    %2643 = vmatprep.subr.bf16.mxu0 %v1962
    %2644 = vmatpush1.bf16.msra.mxu0 %v1961
    %2645 = vmatprep.subr.bf16.mxu0 %v1970
    %2646 = vmatpush1.bf16.msra.mxu0 %v1969
    %2647 = vmatprep.subr.bf16.mxu0 %v1978
    %2648 = vmatpush1.bf16.msra.mxu0 %v1977
    %2649 = vmatprep.subr.bf16.mxu0 %v1986
    %2650 = vmatpush1.bf16.msra.mxu0 %v1985
    %2651 = vmatprep.subr.bf16.mxu0 %v1994
    %2652 = vmatpush1.bf16.msra.mxu0 %v1993
    %2653 = vmatprep.subr.bf16.mxu0 %v2002
    %2654 = vmatpush1.bf16.msra.mxu0 %v2001
    %2655 = vmatprep.subr.bf16.mxu0 %v2010
    %2656 = vmatpush1.bf16.msra.mxu0 %v2009
    %2657 = vmatprep.subr.bf16.mxu0 %v2018
    %2658 = vmatpush1.bf16.msra.mxu0 %v2017
    %2659 = vmatprep.subr.bf16.mxu0 %v2026
    %2660 = vmatpush1.bf16.msra.mxu0 %v2025
    %2661 = vmatprep.subr.bf16.mxu0 %v2034
    %2662 = vmatpush1.bf16.msra.mxu0 %v2033
    %2663 = vmatprep.subr.bf16.mxu0 %v2042
    %2664 = vmatpush1.bf16.msra.mxu0 %v2041
    %2665 = vmatprep.subr.bf16.mxu0 %v2050
    %2666 = vmatpush1.bf16.msra.mxu0 %v2049
    %2667 = vmatprep.subr.bf16.mxu0 %v2058
    %2668 = vmatpush1.bf16.msra.mxu0 %v2057
    %2669 = vmatprep.mubr.bf16.mxu0 %v2636
    %2670 = vmatmul.mubr.bf16.gmra.mrb[0].mxu0 %v2635
    %v2671 = vpop.f32.mrb[0].mxu0
    %v2672 = vadd.f32 0.0, %v2671
    %v2673 = vpop.f32.mrb[0].mxu0
    %v2674 = vadd.f32 0.0, %v2673
    %v2675 = vpop.f32.mrb[0].mxu0
    %v2676 = vpop.f32.mrb[0].mxu0
    %2677 = vdwg.mxu0
    %2678 = vmatprep.subr.bf16.mxu0 %v1940
    %2679 = vmatpush1.bf16.msra.mxu0 %v1939
    %2680 = vmatprep.subr.bf16.mxu0 %v1948
    %2681 = vmatpush1.bf16.msra.mxu0 %v1947
    %2682 = vmatprep.subr.bf16.mxu0 %v1956
    %2683 = vmatpush1.bf16.msra.mxu0 %v1955
    %2684 = vmatprep.subr.bf16.mxu0 %v1964
    %2685 = vmatpush1.bf16.msra.mxu0 %v1963
    %2686 = vmatprep.subr.bf16.mxu0 %v1972
    %2687 = vmatpush1.bf16.msra.mxu0 %v1971
    %2688 = vmatprep.subr.bf16.mxu0 %v1980
    %2689 = vmatpush1.bf16.msra.mxu0 %v1979
    %2690 = vmatprep.subr.bf16.mxu0 %v1988
    %2691 = vmatpush1.bf16.msra.mxu0 %v1987
    %2692 = vmatprep.subr.bf16.mxu0 %v1996
    %2693 = vmatpush1.bf16.msra.mxu0 %v1995
    %2694 = vmatprep.subr.bf16.mxu0 %v2004
    %2695 = vmatpush1.bf16.msra.mxu0 %v2003
    %2696 = vmatprep.subr.bf16.mxu0 %v2012
    %2697 = vmatpush1.bf16.msra.mxu0 %v2011
    %2698 = vmatprep.subr.bf16.mxu0 %v2020
    %2699 = vmatpush1.bf16.msra.mxu0 %v2019
    %2700 = vmatprep.subr.bf16.mxu0 %v2028
    %2701 = vmatpush1.bf16.msra.mxu0 %v2027
    %2702 = vmatprep.subr.bf16.mxu0 %v2036
    %2703 = vmatpush1.bf16.msra.mxu0 %v2035
    %2704 = vmatprep.subr.bf16.mxu0 %v2044
    %2705 = vmatpush1.bf16.msra.mxu0 %v2043
    %2706 = vmatprep.subr.bf16.mxu0 %v2052
    %2707 = vmatpush1.bf16.msra.mxu0 %v2051
    %2708 = vmatprep.subr.bf16.mxu0 %v2060
    %2709 = vmatpush1.bf16.msra.mxu0 %v2059
    %2710 = vmatprep.mubr.bf16.mxu0 %v2636
    %2711 = vmatmul.mubr.bf16.gmra.mrb[0].mxu0 %v2635
    %v2712 = vpop.f32.mrb[0].mxu0
    %v2713 = vadd.f32 0.0, %v2712
    %v2714 = vpop.f32.mrb[0].mxu0
    %v2715 = vadd.f32 0.0, %v2714
    %v2716 = vpop.f32.mrb[0].mxu0
    %v2717 = vpop.f32.mrb[0].mxu0
    %2718 = vdwg.mxu0
    %2719 = vmatprep.subr.bf16.mxu0 %v1942
    %2720 = vmatpush1.bf16.msra.mxu0 %v1941
    %2721 = vmatprep.subr.bf16.mxu0 %v1950
    %2722 = vmatpush1.bf16.msra.mxu0 %v1949
    %2723 = vmatprep.subr.bf16.mxu0 %v1958
    %2724 = vmatpush1.bf16.msra.mxu0 %v1957
    %2725 = vmatprep.subr.bf16.mxu0 %v1966
    %2726 = vmatpush1.bf16.msra.mxu0 %v1965
    %2727 = vmatprep.subr.bf16.mxu0 %v1974
    %2728 = vmatpush1.bf16.msra.mxu0 %v1973
    %2729 = vmatprep.subr.bf16.mxu0 %v1982
    %2730 = vmatpush1.bf16.msra.mxu0 %v1981
    %2731 = vmatprep.subr.bf16.mxu0 %v1990
    %2732 = vmatpush1.bf16.msra.mxu0 %v1989
    %2733 = vmatprep.subr.bf16.mxu0 %v1998
    %2734 = vmatpush1.bf16.msra.mxu0 %v1997
    %2735 = vmatprep.subr.bf16.mxu0 %v2006
    %2736 = vmatpush1.bf16.msra.mxu0 %v2005
    %2737 = vmatprep.subr.bf16.mxu0 %v2014
    %2738 = vmatpush1.bf16.msra.mxu0 %v2013
    %2739 = vmatprep.subr.bf16.mxu0 %v2022
    %2740 = vmatpush1.bf16.msra.mxu0 %v2021
    %2741 = vmatprep.subr.bf16.mxu0 %v2030
    %2742 = vmatpush1.bf16.msra.mxu0 %v2029
    %2743 = vmatprep.subr.bf16.mxu0 %v2038
    %2744 = vmatpush1.bf16.msra.mxu0 %v2037
    %2745 = vmatprep.subr.bf16.mxu0 %v2046
    %2746 = vmatpush1.bf16.msra.mxu0 %v2045
    %2747 = vmatprep.subr.bf16.mxu0 %v2054
    %2748 = vmatpush1.bf16.msra.mxu0 %v2053
    %2749 = vmatprep.subr.bf16.mxu0 %v2062
    %2750 = vmatpush1.bf16.msra.mxu0 %v2061
    %2751 = vmatprep.mubr.bf16.mxu0 %v2636
    %2752 = vmatmul.mubr.bf16.gmra.mrb[0].mxu0 %v2635
    %v2753 = vpop.f32.mrb[0].mxu0
    %v2754 = vadd.f32 0.0, %v2753
    %v2755 = vpop.f32.mrb[0].mxu0
    %v2756 = vadd.f32 0.0, %v2755
    %v2757 = vpop.f32.mrb[0].mxu0
    %v2758 = vpop.f32.mrb[0].mxu0
    %2759 = vdwg.mxu0
    %2760 = vmatprep.subr.bf16.mxu0 %v1944
    %2761 = vmatpush1.bf16.msra.mxu0 %v1943
    %2762 = vmatprep.subr.bf16.mxu0 %v1952
    %2763 = vmatpush1.bf16.msra.mxu0 %v1951
    %2764 = vmatprep.subr.bf16.mxu0 %v1960
    %2765 = vmatpush1.bf16.msra.mxu0 %v1959
    %2766 = vmatprep.subr.bf16.mxu0 %v1968
    %2767 = vmatpush1.bf16.msra.mxu0 %v1967
    %2768 = vmatprep.subr.bf16.mxu0 %v1976
    %2769 = vmatpush1.bf16.msra.mxu0 %v1975
    %2770 = vmatprep.subr.bf16.mxu0 %v1984
    %2771 = vmatpush1.bf16.msra.mxu0 %v1983
    %2772 = vmatprep.subr.bf16.mxu0 %v1992
    %2773 = vmatpush1.bf16.msra.mxu0 %v1991
    %2774 = vmatprep.subr.bf16.mxu0 %v2000
    %2775 = vmatpush1.bf16.msra.mxu0 %v1999
    %2776 = vmatprep.subr.bf16.mxu0 %v2008
    %2777 = vmatpush1.bf16.msra.mxu0 %v2007
    %2778 = vmatprep.subr.bf16.mxu0 %v2016
    %2779 = vmatpush1.bf16.msra.mxu0 %v2015
    %2780 = vmatprep.subr.bf16.mxu0 %v2024
    %2781 = vmatpush1.bf16.msra.mxu0 %v2023
    %2782 = vmatprep.subr.bf16.mxu0 %v2032
    %2783 = vmatpush1.bf16.msra.mxu0 %v2031
    %2784 = vmatprep.subr.bf16.mxu0 %v2040
    %2785 = vmatpush1.bf16.msra.mxu0 %v2039
    %2786 = vmatprep.subr.bf16.mxu0 %v2048
    %2787 = vmatpush1.bf16.msra.mxu0 %v2047
    %2788 = vmatprep.subr.bf16.mxu0 %v2056
    %2789 = vmatpush1.bf16.msra.mxu0 %v2055
    %2790 = vmatprep.subr.bf16.mxu0 %v2064
    %2791 = vmatpush1.bf16.msra.mxu0 %v2063
    %2792 = vmatprep.mubr.bf16.mxu0 %v2636
    %2793 = vmatmul.mubr.bf16.gmra.mrb[0].mxu0 %v2635
    %v2794 = vpop.f32.mrb[0].mxu0
    %v2795 = vadd.f32 0.0, %v2794
    %v2796 = vpop.f32.mrb[0].mxu0
    %v2797 = vadd.f32 0.0, %v2796
    %v2798 = vpop.f32.mrb[0].mxu0
    %v2799 = vpop.f32.mrb[0].mxu0
    %2800 = vdwg.mxu0
    %v2801 = vadd.f32 %v1527, %v2672
    %v2802 = vadd.f32 %v1528, %v2674
    %v2803 = vadd.f32 %v1529, %v2713
    %v2804 = vadd.f32 %v1530, %v2715
    %v2805 = vadd.f32 %v1531, %v2754
    %v2806 = vadd.f32 %v1532, %v2756
    %v2807 = vadd.f32 %v1533, %v2795
    %v2808 = vadd.f32 %v1534, %v2797
    %v2809 = vxor.u32 %v2801, 2147483648
    %v2810 = vxor.u32 %v2802, 2147483648
    %v2811 = vmul.f32 %v2809, 1.442695
    %v2812 = vpow.pop %v2811
    %v2813 = vmul.f32 %v2810, 1.442695
    %v2814 = vpow.pop %v2813
    %v2815 = vadd.f32 %v2812, 1.0
    %v2816 = vadd.f32 %v2814, 1.0
    %v2817 = vrcp.pop %v2815
    %v2818 = vmul.f32 1.0, %v2817
    %v2819 = vrcp.pop %v2816
    %v2820 = vmul.f32 1.0, %v2819
    %v2821 = vxor.u32 %v2803, 2147483648
    %v2822 = vxor.u32 %v2804, 2147483648
    %v2823 = vmul.f32 %v2821, 1.442695
    %v2824 = vpow.pop %v2823
    %v2825 = vmul.f32 %v2822, 1.442695
    %v2826 = vpow.pop %v2825
    %v2827 = vadd.f32 %v2824, 1.0
    %v2828 = vadd.f32 %v2826, 1.0
    %v2829 = vrcp.pop %v2827
    %v2830 = vmul.f32 1.0, %v2829
    %v2831 = vrcp.pop %v2828
    %v2832 = vmul.f32 1.0, %v2831
    %v2833 = vtanh.pop %v2805
    %v2834 = vtanh.pop %v2806
    %v2835 = vxor.u32 %v2807, 2147483648
    %v2836 = vxor.u32 %v2808, 2147483648
    %v2837 = vmul.f32 %v2835, 1.442695
    %v2838 = vpow.pop %v2837
    %v2839 = vmul.f32 %v2836, 1.442695
    %v2840 = vpow.pop %v2839
    %v2841 = vadd.f32 %v2838, 1.0
    %v2842 = vadd.f32 %v2840, 1.0
    %v2843 = vrcp.pop %v2841
    %v2844 = vmul.f32 1.0, %v2843
    %v2845 = vrcp.pop %v2842
    %v2846 = vmul.f32 1.0, %v2845
    %v2847 = vmul.f32 %v2830, %v2629
    %v2848 = vmul.f32 %v2832, %v2630
    %v2849 = vmul.f32 %v2818, %v2833
    %v2850 = vmul.f32 %v2820, %v2834
    %v2851 = vadd.f32 %v2847, %v2849
    %v2852 = vadd.f32 %v2848, %v2850
    %v2853 = vtanh.pop %v2851
    %v2854 = vtanh.pop %v2852
    %v2855 = vmul.f32 %v2844, %v2853
    %v2856 = vmul.f32 %v2846, %v2854
    %v2858 = vlaneseq
    %v2859 = vshrl.u32 %v2858, 7
    %v2860 = vsub.s32 0, %v2859
    %v2861 = vrot.slane %v972, %v2860
    %v2862 = vlaneseq
    %v2863 = vshrl.u32 %v2862, 7
    %v2864 = vsub.s32 1, %v2863
    %v2865 = vrot.slane %v972, %v2864
    %v2866 = vlaneseq
    %v2867 = vshrl.u32 %v2866, 7
    %v2868 = vsub.s32 2, %v2867
    %v2869 = vrot.slane %v972, %v2868
    %v2870 = vlaneseq
    %v2871 = vshrl.u32 %v2870, 7
    %v2872 = vsub.s32 3, %v2871
    %v2873 = vrot.slane %v972, %v2872
    %v2874 = vlaneseq
    %v2875 = vshrl.u32 %v2874, 7
    %v2876 = vsub.s32 4, %v2875
    %v2877 = vrot.slane %v972, %v2876
    %v2878 = vlaneseq
    %v2879 = vshrl.u32 %v2878, 7
    %v2880 = vsub.s32 5, %v2879
    %v2881 = vrot.slane %v972, %v2880
    %v2882 = vlaneseq
    %v2883 = vshrl.u32 %v2882, 7
    %v2884 = vsub.s32 6, %v2883
    %v2885 = vrot.slane %v972, %v2884
    %v2886 = vlaneseq
    %v2887 = vshrl.u32 %v2886, 7
    %v2888 = vsub.s32 7, %v2887
    %v2889 = vrot.slane %v972, %v2888
    %v3026 = vunpack.c.l.b16 %v363
    %v3027 = vunpack.c.h.b16 %v363
    %v3028 = vunpack.c.l.b16 %v364
    %v3029 = vunpack.c.h.b16 %v364
    %v3030 = vunpack.c.l.b16 %v365
    %v3031 = vunpack.c.h.b16 %v365
    %v3032 = vunpack.c.l.b16 %v366
    %v3033 = vunpack.c.h.b16 %v366
    %v3034 = vunpack.c.l.b16 %v367
    %v3035 = vunpack.c.h.b16 %v367
    %v3036 = vunpack.c.l.b16 %v368
    %v3037 = vunpack.c.h.b16 %v368
    %v3038 = vunpack.c.l.b16 %v369
    %v3039 = vunpack.c.h.b16 %v369
    %v3040 = vunpack.c.l.b16 %v370
    %v3041 = vunpack.c.h.b16 %v370
    %v3042 = vunpack.c.l.b16 %v371
    %v3043 = vunpack.c.h.b16 %v371
    %v3044 = vunpack.c.l.b16 %v372
    %v3045 = vunpack.c.h.b16 %v372
    %v3046 = vunpack.c.l.b16 %v373
    %v3047 = vunpack.c.h.b16 %v373
    %v3048 = vunpack.c.l.b16 %v374
    %v3049 = vunpack.c.h.b16 %v374
    %v3050 = vunpack.c.l.b16 %v375
    %v3051 = vunpack.c.h.b16 %v375
    %v3052 = vunpack.c.l.b16 %v376
    %v3053 = vunpack.c.h.b16 %v376
    %v3054 = vunpack.c.l.b16 %v377
    %v3055 = vunpack.c.h.b16 %v377
    %v3056 = vunpack.c.l.b16 %v378
    %v3057 = vunpack.c.h.b16 %v378
    %v3058 = vunpack.c.l.b16 %v379
    %v3059 = vunpack.c.h.b16 %v379
    %v3060 = vunpack.c.l.b16 %v380
    %v3061 = vunpack.c.h.b16 %v380
    %v3062 = vunpack.c.l.b16 %v381
    %v3063 = vunpack.c.h.b16 %v381
    %v3064 = vunpack.c.l.b16 %v382
    %v3065 = vunpack.c.h.b16 %v382
    %v3066 = vunpack.c.l.b16 %v383
    %v3067 = vunpack.c.h.b16 %v383
    %v3068 = vunpack.c.l.b16 %v384
    %v3069 = vunpack.c.h.b16 %v384
    %v3070 = vunpack.c.l.b16 %v385
    %v3071 = vunpack.c.h.b16 %v385
    %v3072 = vunpack.c.l.b16 %v386
    %v3073 = vunpack.c.h.b16 %v386
    %v3074 = vunpack.c.l.b16 %v387
    %v3075 = vunpack.c.h.b16 %v387
    %v3076 = vunpack.c.l.b16 %v388
    %v3077 = vunpack.c.h.b16 %v388
    %v3078 = vunpack.c.l.b16 %v389
    %v3079 = vunpack.c.h.b16 %v389
    %v3080 = vunpack.c.l.b16 %v390
    %v3081 = vunpack.c.h.b16 %v390
    %v3082 = vunpack.c.l.b16 %v391
    %v3083 = vunpack.c.h.b16 %v391
    %v3084 = vunpack.c.l.b16 %v392
    %v3085 = vunpack.c.h.b16 %v392
    %v3086 = vunpack.c.l.b16 %v393
    %v3087 = vunpack.c.h.b16 %v393
    %v3088 = vunpack.c.l.b16 %v394
    %v3089 = vunpack.c.h.b16 %v394
    %v3090 = vunpack.c.l.b16 %v395
    %v3091 = vunpack.c.h.b16 %v395
    %v3092 = vunpack.c.l.b16 %v396
    %v3093 = vunpack.c.h.b16 %v396
    %v3094 = vunpack.c.l.b16 %v397
    %v3095 = vunpack.c.h.b16 %v397
    %v3096 = vunpack.c.l.b16 %v398
    %v3097 = vunpack.c.h.b16 %v398
    %v3098 = vunpack.c.l.b16 %v399
    %v3099 = vunpack.c.h.b16 %v399
    %v3100 = vunpack.c.l.b16 %v400
    %v3101 = vunpack.c.h.b16 %v400
    %v3102 = vunpack.c.l.b16 %v401
    %v3103 = vunpack.c.h.b16 %v401
    %v3104 = vunpack.c.l.b16 %v402
    %v3105 = vunpack.c.h.b16 %v402
    %v3106 = vunpack.c.l.b16 %v403
    %v3107 = vunpack.c.h.b16 %v403
    %v3108 = vunpack.c.l.b16 %v404
    %v3109 = vunpack.c.h.b16 %v404
    %v3110 = vunpack.c.l.b16 %v405
    %v3111 = vunpack.c.h.b16 %v405
    %v3112 = vunpack.c.l.b16 %v406
    %v3113 = vunpack.c.h.b16 %v406
    %v3114 = vunpack.c.l.b16 %v407
    %v3115 = vunpack.c.h.b16 %v407
    %v3116 = vunpack.c.l.b16 %v408
    %v3117 = vunpack.c.h.b16 %v408
    %v3118 = vunpack.c.l.b16 %v409
    %v3119 = vunpack.c.h.b16 %v409
    %v3120 = vunpack.c.l.b16 %v410
    %v3121 = vunpack.c.h.b16 %v410
    %v3122 = vunpack.c.l.b16 %v411
    %v3123 = vunpack.c.h.b16 %v411
    %v3124 = vunpack.c.l.b16 %v412
    %v3125 = vunpack.c.h.b16 %v412
    %v3126 = vunpack.c.l.b16 %v413
    %v3127 = vunpack.c.h.b16 %v413
    %v3128 = vunpack.c.l.b16 %v414
    %v3129 = vunpack.c.h.b16 %v414
    %v3130 = vunpack.c.l.b16 %v415
    %v3131 = vunpack.c.h.b16 %v415
    %v3132 = vunpack.c.l.b16 %v416
    %v3133 = vunpack.c.h.b16 %v416
    %v3134 = vunpack.c.l.b16 %v417
    %v3135 = vunpack.c.h.b16 %v417
    %v3136 = vunpack.c.l.b16 %v418
    %v3137 = vunpack.c.h.b16 %v418
    %v3138 = vunpack.c.l.b16 %v419
    %v3139 = vunpack.c.h.b16 %v419
    %v3140 = vunpack.c.l.b16 %v420
    %v3141 = vunpack.c.h.b16 %v420
    %v3142 = vunpack.c.l.b16 %v421
    %v3143 = vunpack.c.h.b16 %v421
    %v3144 = vunpack.c.l.b16 %v422
    %v3145 = vunpack.c.h.b16 %v422
    %v3146 = vunpack.c.l.b16 %v423
    %v3147 = vunpack.c.h.b16 %v423
    %v3148 = vunpack.c.l.b16 %v424
    %v3149 = vunpack.c.h.b16 %v424
    %v3150 = vunpack.c.l.b16 %v425
    %v3151 = vunpack.c.h.b16 %v425
    %v3152 = vunpack.c.l.b16 %v426
    %v3153 = vunpack.c.h.b16 %v426
    %v3154 = vunpack.c.l.b16 %v427
    %v3155 = vunpack.c.h.b16 %v427
    %v3156 = vunpack.c.l.b16 %v428
    %v3157 = vunpack.c.h.b16 %v428
    %v3158 = vunpack.c.l.b16 %v429
    %v3159 = vunpack.c.h.b16 %v429
    %v3160 = vunpack.c.l.b16 %v430
    %v3161 = vunpack.c.h.b16 %v430
    %v3162 = vunpack.c.l.b16 %v431
    %v3163 = vunpack.c.h.b16 %v431
    %v3164 = vunpack.c.l.b16 %v432
    %v3165 = vunpack.c.h.b16 %v432
    %v3166 = vunpack.c.l.b16 %v433
    %v3167 = vunpack.c.h.b16 %v433
    %v3168 = vunpack.c.l.b16 %v434
    %v3169 = vunpack.c.h.b16 %v434
    %v3170 = vunpack.c.l.b16 %v435
    %v3171 = vunpack.c.h.b16 %v435
    %v3172 = vunpack.c.l.b16 %v436
    %v3173 = vunpack.c.h.b16 %v436
    %v3174 = vunpack.c.l.b16 %v437
    %v3175 = vunpack.c.h.b16 %v437
    %v3176 = vunpack.c.l.b16 %v438
    %v3177 = vunpack.c.h.b16 %v438
    %v3178 = vunpack.c.l.b16 %v439
    %v3179 = vunpack.c.h.b16 %v439
    %v3180 = vunpack.c.l.b16 %v440
    %v3181 = vunpack.c.h.b16 %v440
    %v3182 = vunpack.c.l.b16 %v441
    %v3183 = vunpack.c.h.b16 %v441
    %v3184 = vunpack.c.l.b16 %v442
    %v3185 = vunpack.c.h.b16 %v442
    %v3186 = vunpack.c.l.b16 %v443
    %v3187 = vunpack.c.h.b16 %v443
    %v3188 = vunpack.c.l.b16 %v444
    %v3189 = vunpack.c.h.b16 %v444
    %v3190 = vunpack.c.l.b16 %v445
    %v3191 = vunpack.c.h.b16 %v445
    %v3192 = vunpack.c.l.b16 %v446
    %v3193 = vunpack.c.h.b16 %v446
    %v3194 = vunpack.c.l.b16 %v447
    %v3195 = vunpack.c.h.b16 %v447
    %v3196 = vunpack.c.l.b16 %v448
    %v3197 = vunpack.c.h.b16 %v448
    %v3198 = vunpack.c.l.b16 %v449
    %v3199 = vunpack.c.h.b16 %v449
    %v3200 = vunpack.c.l.b16 %v450
    %v3201 = vunpack.c.h.b16 %v450
    %v3202 = vunpack.c.l.b16 %v451
    %v3203 = vunpack.c.h.b16 %v451
    %v3204 = vunpack.c.l.b16 %v452
    %v3205 = vunpack.c.h.b16 %v452
    %v3206 = vunpack.c.l.b16 %v453
    %v3207 = vunpack.c.h.b16 %v453
    %v3208 = vunpack.c.l.b16 %v454
    %v3209 = vunpack.c.h.b16 %v454
    %v3210 = vunpack.c.l.b16 %v455
    %v3211 = vunpack.c.h.b16 %v455
    %v3212 = vunpack.c.l.b16 %v456
    %v3213 = vunpack.c.h.b16 %v456
    %v3214 = vunpack.c.l.b16 %v457
    %v3215 = vunpack.c.h.b16 %v457
    %v3216 = vunpack.c.l.b16 %v458
    %v3217 = vunpack.c.h.b16 %v458
    %v3218 = vunpack.c.l.b16 %v459
    %v3219 = vunpack.c.h.b16 %v459
    %v3220 = vunpack.c.l.b16 %v460
    %v3221 = vunpack.c.h.b16 %v460
    %v3222 = vunpack.c.l.b16 %v461
    %v3223 = vunpack.c.h.b16 %v461
    %v3224 = vunpack.c.l.b16 %v462
    %v3225 = vunpack.c.h.b16 %v462
    %v3226 = vunpack.c.l.b16 %v463
    %v3227 = vunpack.c.h.b16 %v463
    %v3228 = vunpack.c.l.b16 %v464
    %v3229 = vunpack.c.h.b16 %v464
    %v3230 = vunpack.c.l.b16 %v465
    %v3231 = vunpack.c.h.b16 %v465
    %v3232 = vunpack.c.l.b16 %v466
    %v3233 = vunpack.c.h.b16 %v466
    %v3234 = vunpack.c.l.b16 %v467
    %v3235 = vunpack.c.h.b16 %v467
    %v3236 = vunpack.c.l.b16 %v468
    %v3237 = vunpack.c.h.b16 %v468
    %v3238 = vunpack.c.l.b16 %v469
    %v3239 = vunpack.c.h.b16 %v469
    %v3240 = vunpack.c.l.b16 %v470
    %v3241 = vunpack.c.h.b16 %v470
    %v3242 = vunpack.c.l.b16 %v471
    %v3243 = vunpack.c.h.b16 %v471
    %v3244 = vunpack.c.l.b16 %v472
    %v3245 = vunpack.c.h.b16 %v472
    %v3246 = vunpack.c.l.b16 %v473
    %v3247 = vunpack.c.h.b16 %v473
    %v3248 = vunpack.c.l.b16 %v474
    %v3249 = vunpack.c.h.b16 %v474
    %v3250 = vunpack.c.l.b16 %v475
    %v3251 = vunpack.c.h.b16 %v475
    %v3252 = vunpack.c.l.b16 %v476
    %v3253 = vunpack.c.h.b16 %v476
    %v3254 = vunpack.c.l.b16 %v477
    %v3255 = vunpack.c.h.b16 %v477
    %v3256 = vunpack.c.l.b16 %v478
    %v3257 = vunpack.c.h.b16 %v478
    %v3258 = vunpack.c.l.b16 %v479
    %v3259 = vunpack.c.h.b16 %v479
    %v3260 = vunpack.c.l.b16 %v480
    %v3261 = vunpack.c.h.b16 %v480
    %v3262 = vunpack.c.l.b16 %v481
    %v3263 = vunpack.c.h.b16 %v481
    %v3264 = vunpack.c.l.b16 %v482
    %v3265 = vunpack.c.h.b16 %v482
    %v3266 = vunpack.c.l.b16 %v483
    %v3267 = vunpack.c.h.b16 %v483
    %v3268 = vunpack.c.l.b16 %v484
    %v3269 = vunpack.c.h.b16 %v484
    %v3270 = vunpack.c.l.b16 %v485
    %v3271 = vunpack.c.h.b16 %v485
    %v3272 = vunpack.c.l.b16 %v486
    %v3273 = vunpack.c.h.b16 %v486
    %v3274 = vunpack.c.l.b16 %v487
    %v3275 = vunpack.c.h.b16 %v487
    %v3276 = vunpack.c.l.b16 %v488
    %v3277 = vunpack.c.h.b16 %v488
    %v3278 = vunpack.c.l.b16 %v489
    %v3279 = vunpack.c.h.b16 %v489
    %v3280 = vunpack.c.l.b16 %v490
    %v3281 = vunpack.c.h.b16 %v490
    %v3282 = vpack.c.b16 %v3034, %v3026
    %v3283 = vpack.c.b16 %v3035, %v3027
    %v3284 = vpack.c.b16 %v3036, %v3028
    %v3285 = vpack.c.b16 %v3037, %v3029
    %v3286 = vpack.c.b16 %v3038, %v3030
    %v3287 = vpack.c.b16 %v3039, %v3031
    %v3288 = vpack.c.b16 %v3040, %v3032
    %v3289 = vpack.c.b16 %v3041, %v3033
    %v3290 = vpack.c.b16 %v3050, %v3042
    %v3291 = vpack.c.b16 %v3051, %v3043
    %v3292 = vpack.c.b16 %v3052, %v3044
    %v3293 = vpack.c.b16 %v3053, %v3045
    %v3294 = vpack.c.b16 %v3054, %v3046
    %v3295 = vpack.c.b16 %v3055, %v3047
    %v3296 = vpack.c.b16 %v3056, %v3048
    %v3297 = vpack.c.b16 %v3057, %v3049
    %v3298 = vpack.c.b16 %v3066, %v3058
    %v3299 = vpack.c.b16 %v3067, %v3059
    %v3300 = vpack.c.b16 %v3068, %v3060
    %v3301 = vpack.c.b16 %v3069, %v3061
    %v3302 = vpack.c.b16 %v3070, %v3062
    %v3303 = vpack.c.b16 %v3071, %v3063
    %v3304 = vpack.c.b16 %v3072, %v3064
    %v3305 = vpack.c.b16 %v3073, %v3065
    %v3306 = vpack.c.b16 %v3082, %v3074
    %v3307 = vpack.c.b16 %v3083, %v3075
    %v3308 = vpack.c.b16 %v3084, %v3076
    %v3309 = vpack.c.b16 %v3085, %v3077
    %v3310 = vpack.c.b16 %v3086, %v3078
    %v3311 = vpack.c.b16 %v3087, %v3079
    %v3312 = vpack.c.b16 %v3088, %v3080
    %v3313 = vpack.c.b16 %v3089, %v3081
    %v3314 = vpack.c.b16 %v3098, %v3090
    %v3315 = vpack.c.b16 %v3099, %v3091
    %v3316 = vpack.c.b16 %v3100, %v3092
    %v3317 = vpack.c.b16 %v3101, %v3093
    %v3318 = vpack.c.b16 %v3102, %v3094
    %v3319 = vpack.c.b16 %v3103, %v3095
    %v3320 = vpack.c.b16 %v3104, %v3096
    %v3321 = vpack.c.b16 %v3105, %v3097
    %v3322 = vpack.c.b16 %v3114, %v3106
    %v3323 = vpack.c.b16 %v3115, %v3107
    %v3324 = vpack.c.b16 %v3116, %v3108
    %v3325 = vpack.c.b16 %v3117, %v3109
    %v3326 = vpack.c.b16 %v3118, %v3110
    %v3327 = vpack.c.b16 %v3119, %v3111
    %v3328 = vpack.c.b16 %v3120, %v3112
    %v3329 = vpack.c.b16 %v3121, %v3113
    %v3330 = vpack.c.b16 %v3130, %v3122
    %v3331 = vpack.c.b16 %v3131, %v3123
    %v3332 = vpack.c.b16 %v3132, %v3124
    %v3333 = vpack.c.b16 %v3133, %v3125
    %v3334 = vpack.c.b16 %v3134, %v3126
    %v3335 = vpack.c.b16 %v3135, %v3127
    %v3336 = vpack.c.b16 %v3136, %v3128
    %v3337 = vpack.c.b16 %v3137, %v3129
    %v3338 = vpack.c.b16 %v3146, %v3138
    %v3339 = vpack.c.b16 %v3147, %v3139
    %v3340 = vpack.c.b16 %v3148, %v3140
    %v3341 = vpack.c.b16 %v3149, %v3141
    %v3342 = vpack.c.b16 %v3150, %v3142
    %v3343 = vpack.c.b16 %v3151, %v3143
    %v3344 = vpack.c.b16 %v3152, %v3144
    %v3345 = vpack.c.b16 %v3153, %v3145
    %v3346 = vpack.c.b16 %v3162, %v3154
    %v3347 = vpack.c.b16 %v3163, %v3155
    %v3348 = vpack.c.b16 %v3164, %v3156
    %v3349 = vpack.c.b16 %v3165, %v3157
    %v3350 = vpack.c.b16 %v3166, %v3158
    %v3351 = vpack.c.b16 %v3167, %v3159
    %v3352 = vpack.c.b16 %v3168, %v3160
    %v3353 = vpack.c.b16 %v3169, %v3161
    %v3354 = vpack.c.b16 %v3178, %v3170
    %v3355 = vpack.c.b16 %v3179, %v3171
    %v3356 = vpack.c.b16 %v3180, %v3172
    %v3357 = vpack.c.b16 %v3181, %v3173
    %v3358 = vpack.c.b16 %v3182, %v3174
    %v3359 = vpack.c.b16 %v3183, %v3175
    %v3360 = vpack.c.b16 %v3184, %v3176
    %v3361 = vpack.c.b16 %v3185, %v3177
    %v3362 = vpack.c.b16 %v3194, %v3186
    %v3363 = vpack.c.b16 %v3195, %v3187
    %v3364 = vpack.c.b16 %v3196, %v3188
    %v3365 = vpack.c.b16 %v3197, %v3189
    %v3366 = vpack.c.b16 %v3198, %v3190
    %v3367 = vpack.c.b16 %v3199, %v3191
    %v3368 = vpack.c.b16 %v3200, %v3192
    %v3369 = vpack.c.b16 %v3201, %v3193
    %v3370 = vpack.c.b16 %v3210, %v3202
    %v3371 = vpack.c.b16 %v3211, %v3203
    %v3372 = vpack.c.b16 %v3212, %v3204
    %v3373 = vpack.c.b16 %v3213, %v3205
    %v3374 = vpack.c.b16 %v3214, %v3206
    %v3375 = vpack.c.b16 %v3215, %v3207
    %v3376 = vpack.c.b16 %v3216, %v3208
    %v3377 = vpack.c.b16 %v3217, %v3209
    %v3378 = vpack.c.b16 %v3226, %v3218
    %v3379 = vpack.c.b16 %v3227, %v3219
    %v3380 = vpack.c.b16 %v3228, %v3220
    %v3381 = vpack.c.b16 %v3229, %v3221
    %v3382 = vpack.c.b16 %v3230, %v3222
    %v3383 = vpack.c.b16 %v3231, %v3223
    %v3384 = vpack.c.b16 %v3232, %v3224
    %v3385 = vpack.c.b16 %v3233, %v3225
    %v3386 = vpack.c.b16 %v3242, %v3234
    %v3387 = vpack.c.b16 %v3243, %v3235
    %v3388 = vpack.c.b16 %v3244, %v3236
    %v3389 = vpack.c.b16 %v3245, %v3237
    %v3390 = vpack.c.b16 %v3246, %v3238
    %v3391 = vpack.c.b16 %v3247, %v3239
    %v3392 = vpack.c.b16 %v3248, %v3240
    %v3393 = vpack.c.b16 %v3249, %v3241
    %v3394 = vpack.c.b16 %v3258, %v3250
    %v3395 = vpack.c.b16 %v3259, %v3251
    %v3396 = vpack.c.b16 %v3260, %v3252
    %v3397 = vpack.c.b16 %v3261, %v3253
    %v3398 = vpack.c.b16 %v3262, %v3254
    %v3399 = vpack.c.b16 %v3263, %v3255
    %v3400 = vpack.c.b16 %v3264, %v3256
    %v3401 = vpack.c.b16 %v3265, %v3257
    %v3402 = vpack.c.b16 %v3274, %v3266
    %v3403 = vpack.c.b16 %v3275, %v3267
    %v3404 = vpack.c.b16 %v3276, %v3268
    %v3405 = vpack.c.b16 %v3277, %v3269
    %v3406 = vpack.c.b16 %v3278, %v3270
    %v3407 = vpack.c.b16 %v3279, %v3271
    %v3408 = vpack.c.b16 %v3280, %v3272
    %v3409 = vpack.c.b16 %v3281, %v3273
    %3538 = vmatprep.subr.bf16.mxu0 %v3283
    %3539 = vmatpush1.bf16.msra.mxu0 %v3282
    %3540 = vmatprep.subr.bf16.mxu0 %v3291
    %3541 = vmatpush1.bf16.msra.mxu0 %v3290
    %3542 = vmatprep.subr.bf16.mxu0 %v3299
    %3543 = vmatpush1.bf16.msra.mxu0 %v3298
    %3544 = vmatprep.subr.bf16.mxu0 %v3307
    %3545 = vmatpush1.bf16.msra.mxu0 %v3306
    %3546 = vmatprep.subr.bf16.mxu0 %v3315
    %3547 = vmatpush1.bf16.msra.mxu0 %v3314
    %3548 = vmatprep.subr.bf16.mxu0 %v3323
    %3549 = vmatpush1.bf16.msra.mxu0 %v3322
    %3550 = vmatprep.subr.bf16.mxu0 %v3331
    %3551 = vmatpush1.bf16.msra.mxu0 %v3330
    %3552 = vmatprep.subr.bf16.mxu0 %v3339
    %3553 = vmatpush1.bf16.msra.mxu0 %v3338
    %3554 = vmatprep.subr.bf16.mxu0 %v3347
    %3555 = vmatpush1.bf16.msra.mxu0 %v3346
    %3556 = vmatprep.subr.bf16.mxu0 %v3355
    %3557 = vmatpush1.bf16.msra.mxu0 %v3354
    %3558 = vmatprep.subr.bf16.mxu0 %v3363
    %3559 = vmatpush1.bf16.msra.mxu0 %v3362
    %3560 = vmatprep.subr.bf16.mxu0 %v3371
    %3561 = vmatpush1.bf16.msra.mxu0 %v3370
    %3562 = vmatprep.subr.bf16.mxu0 %v3379
    %3563 = vmatpush1.bf16.msra.mxu0 %v3378
    %3564 = vmatprep.subr.bf16.mxu0 %v3387
    %3565 = vmatpush1.bf16.msra.mxu0 %v3386
    %3566 = vmatprep.subr.bf16.mxu0 %v3395
    %3567 = vmatpush1.bf16.msra.mxu0 %v3394
    %3568 = vmatprep.subr.bf16.mxu0 %v3403
    %3569 = vmatpush1.bf16.msra.mxu0 %v3402
    %3570 = vmatprep.mubr.bf16.mxu0 %v1552
    %3571 = vmatmul.mubr.bf16.gmra.mrb[0].mxu0 %v1551
    %v3572 = vpop.f32.mrb[0].mxu0
    %v3573 = vadd.f32 %v2861, %v3572
    %v3574 = vpop.f32.mrb[0].mxu0
    %v3575 = vadd.f32 %v2865, %v3574
    %v3576 = vpop.f32.mrb[0].mxu0
    %v3577 = vpop.f32.mrb[0].mxu0
    %3578 = vdwg.mxu0
    %3579 = vmatprep.subr.bf16.mxu0 %v3285
    %3580 = vmatpush1.bf16.msra.mxu0 %v3284
    %3581 = vmatprep.subr.bf16.mxu0 %v3293
    %3582 = vmatpush1.bf16.msra.mxu0 %v3292
    %3583 = vmatprep.subr.bf16.mxu0 %v3301
    %3584 = vmatpush1.bf16.msra.mxu0 %v3300
    %3585 = vmatprep.subr.bf16.mxu0 %v3309
    %3586 = vmatpush1.bf16.msra.mxu0 %v3308
    %3587 = vmatprep.subr.bf16.mxu0 %v3317
    %3588 = vmatpush1.bf16.msra.mxu0 %v3316
    %3589 = vmatprep.subr.bf16.mxu0 %v3325
    %3590 = vmatpush1.bf16.msra.mxu0 %v3324
    %3591 = vmatprep.subr.bf16.mxu0 %v3333
    %3592 = vmatpush1.bf16.msra.mxu0 %v3332
    %3593 = vmatprep.subr.bf16.mxu0 %v3341
    %3594 = vmatpush1.bf16.msra.mxu0 %v3340
    %3595 = vmatprep.subr.bf16.mxu0 %v3349
    %3596 = vmatpush1.bf16.msra.mxu0 %v3348
    %3597 = vmatprep.subr.bf16.mxu0 %v3357
    %3598 = vmatpush1.bf16.msra.mxu0 %v3356
    %3599 = vmatprep.subr.bf16.mxu0 %v3365
    %3600 = vmatpush1.bf16.msra.mxu0 %v3364
    %3601 = vmatprep.subr.bf16.mxu0 %v3373
    %3602 = vmatpush1.bf16.msra.mxu0 %v3372
    %3603 = vmatprep.subr.bf16.mxu0 %v3381
    %3604 = vmatpush1.bf16.msra.mxu0 %v3380
    %3605 = vmatprep.subr.bf16.mxu0 %v3389
    %3606 = vmatpush1.bf16.msra.mxu0 %v3388
    %3607 = vmatprep.subr.bf16.mxu0 %v3397
    %3608 = vmatpush1.bf16.msra.mxu0 %v3396
    %3609 = vmatprep.subr.bf16.mxu0 %v3405
    %3610 = vmatpush1.bf16.msra.mxu0 %v3404
    %3611 = vmatprep.mubr.bf16.mxu0 %v1552
    %3612 = vmatmul.mubr.bf16.gmra.mrb[0].mxu0 %v1551
    %v3613 = vpop.f32.mrb[0].mxu0
    %v3614 = vadd.f32 %v2869, %v3613
    %v3615 = vpop.f32.mrb[0].mxu0
    %v3616 = vadd.f32 %v2873, %v3615
    %v3617 = vpop.f32.mrb[0].mxu0
    %v3618 = vpop.f32.mrb[0].mxu0
    %3619 = vdwg.mxu0
    %3620 = vmatprep.subr.bf16.mxu0 %v3287
    %3621 = vmatpush1.bf16.msra.mxu0 %v3286
    %3622 = vmatprep.subr.bf16.mxu0 %v3295
    %3623 = vmatpush1.bf16.msra.mxu0 %v3294
    %3624 = vmatprep.subr.bf16.mxu0 %v3303
    %3625 = vmatpush1.bf16.msra.mxu0 %v3302
    %3626 = vmatprep.subr.bf16.mxu0 %v3311
    %3627 = vmatpush1.bf16.msra.mxu0 %v3310
    %3628 = vmatprep.subr.bf16.mxu0 %v3319
    %3629 = vmatpush1.bf16.msra.mxu0 %v3318
    %3630 = vmatprep.subr.bf16.mxu0 %v3327
    %3631 = vmatpush1.bf16.msra.mxu0 %v3326
    %3632 = vmatprep.subr.bf16.mxu0 %v3335
    %3633 = vmatpush1.bf16.msra.mxu0 %v3334
    %3634 = vmatprep.subr.bf16.mxu0 %v3343
    %3635 = vmatpush1.bf16.msra.mxu0 %v3342
    %3636 = vmatprep.subr.bf16.mxu0 %v3351
    %3637 = vmatpush1.bf16.msra.mxu0 %v3350
    %3638 = vmatprep.subr.bf16.mxu0 %v3359
    %3639 = vmatpush1.bf16.msra.mxu0 %v3358
    %3640 = vmatprep.subr.bf16.mxu0 %v3367
    %3641 = vmatpush1.bf16.msra.mxu0 %v3366
    %3642 = vmatprep.subr.bf16.mxu0 %v3375
    %3643 = vmatpush1.bf16.msra.mxu0 %v3374
    %3644 = vmatprep.subr.bf16.mxu0 %v3383
    %3645 = vmatpush1.bf16.msra.mxu0 %v3382
    %3646 = vmatprep.subr.bf16.mxu0 %v3391
    %3647 = vmatpush1.bf16.msra.mxu0 %v3390
    %3648 = vmatprep.subr.bf16.mxu0 %v3399
    %3649 = vmatpush1.bf16.msra.mxu0 %v3398
    %3650 = vmatprep.subr.bf16.mxu0 %v3407
    %3651 = vmatpush1.bf16.msra.mxu0 %v3406
    %3652 = vmatprep.mubr.bf16.mxu0 %v1552
    %3653 = vmatmul.mubr.bf16.gmra.mrb[0].mxu0 %v1551
    %v3654 = vpop.f32.mrb[0].mxu0
    %v3655 = vadd.f32 %v2877, %v3654
    %v3656 = vpop.f32.mrb[0].mxu0
    %v3657 = vadd.f32 %v2881, %v3656
    %v3658 = vpop.f32.mrb[0].mxu0
    %v3659 = vpop.f32.mrb[0].mxu0
    %3660 = vdwg.mxu0
    %3661 = vmatprep.subr.bf16.mxu0 %v3289
    %3662 = vmatpush1.bf16.msra.mxu0 %v3288
    %3663 = vmatprep.subr.bf16.mxu0 %v3297
    %3664 = vmatpush1.bf16.msra.mxu0 %v3296
    %3665 = vmatprep.subr.bf16.mxu0 %v3305
    %3666 = vmatpush1.bf16.msra.mxu0 %v3304
    %3667 = vmatprep.subr.bf16.mxu0 %v3313
    %3668 = vmatpush1.bf16.msra.mxu0 %v3312
    %3669 = vmatprep.subr.bf16.mxu0 %v3321
    %3670 = vmatpush1.bf16.msra.mxu0 %v3320
    %3671 = vmatprep.subr.bf16.mxu0 %v3329
    %3672 = vmatpush1.bf16.msra.mxu0 %v3328
    %3673 = vmatprep.subr.bf16.mxu0 %v3337
    %3674 = vmatpush1.bf16.msra.mxu0 %v3336
    %3675 = vmatprep.subr.bf16.mxu0 %v3345
    %3676 = vmatpush1.bf16.msra.mxu0 %v3344
    %3677 = vmatprep.subr.bf16.mxu0 %v3353
    %3678 = vmatpush1.bf16.msra.mxu0 %v3352
    %3679 = vmatprep.subr.bf16.mxu0 %v3361
    %3680 = vmatpush1.bf16.msra.mxu0 %v3360
    %3681 = vmatprep.subr.bf16.mxu0 %v3369
    %3682 = vmatpush1.bf16.msra.mxu0 %v3368
    %3683 = vmatprep.subr.bf16.mxu0 %v3377
    %3684 = vmatpush1.bf16.msra.mxu0 %v3376
    %3685 = vmatprep.subr.bf16.mxu0 %v3385
    %3686 = vmatpush1.bf16.msra.mxu0 %v3384
    %3687 = vmatprep.subr.bf16.mxu0 %v3393
    %3688 = vmatpush1.bf16.msra.mxu0 %v3392
    %3689 = vmatprep.subr.bf16.mxu0 %v3401
    %3690 = vmatpush1.bf16.msra.mxu0 %v3400
    %3691 = vmatprep.subr.bf16.mxu0 %v3409
    %3692 = vmatpush1.bf16.msra.mxu0 %v3408
    %3693 = vmatprep.mubr.bf16.mxu0 %v1552
    %3694 = vmatmul.mubr.bf16.gmra.mrb[0].mxu0 %v1551
    %v3695 = vpop.f32.mrb[0].mxu0
    %v3696 = vadd.f32 %v2885, %v3695
    %v3697 = vpop.f32.mrb[0].mxu0
    %v3698 = vadd.f32 %v2889, %v3697
    %v3699 = vpop.f32.mrb[0].mxu0
    %v3700 = vpop.f32.mrb[0].mxu0
    %3701 = vdwg.mxu0
    %v3702 = vadd.f32 %v1319, %v3573
    %v3703 = vadd.f32 %v1321, %v3575
    %v3704 = vadd.f32 %v1370, %v3614
    %v3705 = vadd.f32 %v1372, %v3616
    %v3706 = vadd.f32 %v1421, %v3655
    %v3707 = vadd.f32 %v1423, %v3657
    %v3708 = vadd.f32 %v1472, %v3696
    %v3709 = vadd.f32 %v1474, %v3698
    %v3710 = vadd.f32 %v1325, %v3573
    %v3711 = vadd.f32 %v1327, %v3575
    %v3712 = vadd.f32 %v1376, %v3614
    %v3713 = vadd.f32 %v1378, %v3616
    %v3714 = vadd.f32 %v1427, %v3655
    %v3715 = vadd.f32 %v1429, %v3657
    %v3716 = vadd.f32 %v1478, %v3696
    %v3717 = vadd.f32 %v1480, %v3698
    %v3718 = vadd.f32 %v1329, %v3573
    %v3719 = vadd.f32 %v1331, %v3575
    %v3720 = vadd.f32 %v1380, %v3614
    %v3721 = vadd.f32 %v1382, %v3616
    %v3722 = vadd.f32 %v1431, %v3655
    %v3723 = vadd.f32 %v1433, %v3657
    %v3724 = vadd.f32 %v1482, %v3696
    %v3725 = vadd.f32 %v1484, %v3698
    %v3726 = vxor.u32 %v3702, 2147483648
    %v3727 = vxor.u32 %v3703, 2147483648
    %v3728 = vxor.u32 %v3710, 2147483648
    %v3729 = vxor.u32 %v3711, 2147483648
    %v3730 = vxor.u32 %v3718, 2147483648
    %v3731 = vxor.u32 %v3719, 2147483648
    %v3732 = vmul.f32 %v3726, 1.442695
    %v3733 = vpow.pop %v3732
    %v3734 = vmul.f32 %v3727, 1.442695
    %v3735 = vpow.pop %v3734
    %v3736 = vmul.f32 %v3728, 1.442695
    %v3737 = vpow.pop %v3736
    %v3738 = vmul.f32 %v3729, 1.442695
    %v3739 = vpow.pop %v3738
    %v3740 = vmul.f32 %v3730, 1.442695
    %v3741 = vpow.pop %v3740
    %v3742 = vmul.f32 %v3731, 1.442695
    %v3743 = vpow.pop %v3742
    %v3744 = vadd.f32 %v3733, 1.0
    %v3745 = vadd.f32 %v3735, 1.0
    %v3746 = vadd.f32 %v3737, 1.0
    %v3747 = vadd.f32 %v3739, 1.0
    %v3748 = vadd.f32 %v3741, 1.0
    %v3749 = vadd.f32 %v3743, 1.0
    %v3750 = vrcp.pop %v3744
    %v3751 = vmul.f32 1.0, %v3750
    %v3752 = vrcp.pop %v3745
    %v3753 = vmul.f32 1.0, %v3752
    %v3754 = vrcp.pop %v3746
    %v3755 = vmul.f32 1.0, %v3754
    %v3756 = vrcp.pop %v3747
    %v3757 = vmul.f32 1.0, %v3756
    %v3758 = vrcp.pop %v3748
    %v3759 = vmul.f32 1.0, %v3758
    %v3760 = vrcp.pop %v3749
    %v3761 = vmul.f32 1.0, %v3760
    %v3762 = vxor.u32 %v3704, 2147483648
    %v3763 = vxor.u32 %v3705, 2147483648
    %v3764 = vxor.u32 %v3712, 2147483648
    %v3765 = vxor.u32 %v3713, 2147483648
    %v3766 = vxor.u32 %v3720, 2147483648
    %v3767 = vxor.u32 %v3721, 2147483648
    %v3768 = vmul.f32 %v3762, 1.442695
    %v3769 = vpow.pop %v3768
    %v3770 = vmul.f32 %v3763, 1.442695
    %v3771 = vpow.pop %v3770
    %v3772 = vmul.f32 %v3764, 1.442695
    %v3773 = vpow.pop %v3772
    %v3774 = vmul.f32 %v3765, 1.442695
    %v3775 = vpow.pop %v3774
    %v3776 = vmul.f32 %v3766, 1.442695
    %v3777 = vpow.pop %v3776
    %v3778 = vmul.f32 %v3767, 1.442695
    %v3779 = vpow.pop %v3778
    %v3780 = vadd.f32 %v3769, 1.0
    %v3781 = vadd.f32 %v3771, 1.0
    %v3782 = vadd.f32 %v3773, 1.0
    %v3783 = vadd.f32 %v3775, 1.0
    %v3784 = vadd.f32 %v3777, 1.0
    %v3785 = vadd.f32 %v3779, 1.0
    %v3786 = vrcp.pop %v3780
    %v3787 = vmul.f32 1.0, %v3786
    %v3788 = vrcp.pop %v3781
    %v3789 = vmul.f32 1.0, %v3788
    %v3790 = vrcp.pop %v3782
    %v3791 = vmul.f32 1.0, %v3790
    %v3792 = vrcp.pop %v3783
    %v3793 = vmul.f32 1.0, %v3792
    %v3794 = vrcp.pop %v3784
    %v3795 = vmul.f32 1.0, %v3794
    %v3796 = vrcp.pop %v3785
    %v3797 = vmul.f32 1.0, %v3796
    %v3798 = vtanh.pop %v3706
    %v3799 = vtanh.pop %v3707
    %v3800 = vtanh.pop %v3714
    %v3801 = vtanh.pop %v3715
    %v3802 = vtanh.pop %v3722
    %v3803 = vtanh.pop %v3723
    %v3804 = vxor.u32 %v3708, 2147483648
    %v3805 = vxor.u32 %v3709, 2147483648
    %v3806 = vxor.u32 %v3716, 2147483648
    %v3807 = vxor.u32 %v3717, 2147483648
    %v3808 = vxor.u32 %v3724, 2147483648
    %v3809 = vxor.u32 %v3725, 2147483648
    %v3810 = vmul.f32 %v3804, 1.442695
    %v3811 = vpow.pop %v3810
    %v3812 = vmul.f32 %v3805, 1.442695
    %v3813 = vpow.pop %v3812
    %v3814 = vmul.f32 %v3806, 1.442695
    %v3815 = vpow.pop %v3814
    %v3816 = vmul.f32 %v3807, 1.442695
    %v3817 = vpow.pop %v3816
    %v3818 = vmul.f32 %v3808, 1.442695
    %v3819 = vpow.pop %v3818
    %v3820 = vmul.f32 %v3809, 1.442695
    %v3821 = vpow.pop %v3820
    %v3822 = vadd.f32 %v3811, 1.0
    %v3823 = vadd.f32 %v3813, 1.0
    %v3824 = vadd.f32 %v3815, 1.0
    %v3825 = vadd.f32 %v3817, 1.0
    %v3826 = vadd.f32 %v3819, 1.0
    %v3827 = vadd.f32 %v3821, 1.0
    %v3828 = vrcp.pop %v3822
    %v3829 = vmul.f32 1.0, %v3828
    %v3830 = vrcp.pop %v3823
    %v3831 = vmul.f32 1.0, %v3830
    %v3832 = vrcp.pop %v3824
    %v3833 = vmul.f32 1.0, %v3832
    %v3834 = vrcp.pop %v3825
    %v3835 = vmul.f32 1.0, %v3834
    %v3836 = vrcp.pop %v3826
    %v3837 = vmul.f32 1.0, %v3836
    %v3838 = vrcp.pop %v3827
    %v3839 = vmul.f32 1.0, %v3838
    %v3840 = vmul.f32 %v3787, %v225
    %v3841 = vmul.f32 %v3789, %v226
    %v3842 = vmul.f32 %v3791, %v225
    %v3843 = vmul.f32 %v3793, %v226
    %v3844 = vmul.f32 %v3795, %v225
    %v3845 = vmul.f32 %v3797, %v226
    %v3846 = vmul.f32 %v3751, %v3798
    %v3847 = vmul.f32 %v3753, %v3799
    %v3848 = vmul.f32 %v3755, %v3800
    %v3849 = vmul.f32 %v3757, %v3801
    %v3850 = vmul.f32 %v3759, %v3802
    %v3851 = vmul.f32 %v3761, %v3803
    %v3852 = vadd.f32 %v3840, %v3846
    %v3853 = vadd.f32 %v3841, %v3847
    %v3854 = vadd.f32 %v3842, %v3848
    %v3855 = vadd.f32 %v3843, %v3849
    %v3856 = vadd.f32 %v3844, %v3850
    %v3857 = vadd.f32 %v3845, %v3851
    %v3858 = vtanh.pop %v3852
    %v3859 = vtanh.pop %v3853
    %v3860 = vtanh.pop %v3854
    %v3861 = vtanh.pop %v3855
    %v3862 = vtanh.pop %v3856
    %v3863 = vtanh.pop %v3857
    %v3864 = vmul.f32 %v3829, %v3858
    %v3865 = vmul.f32 %v3831, %v3859
    %v3866 = vmul.f32 %v3833, %v3860
    %v3867 = vmul.f32 %v3835, %v3861
    %v3868 = vmul.f32 %v3837, %v3862
    %v3869 = vmul.f32 %v3839, %v3863
    %v3870 = vpack.c.bf16 %v3866, %v3864
    %v3871 = vpack.c.bf16 %v3867, %v3865
    %v3872 = vpack.c.bf16 %v3868, %v3868
    %v3873 = vpack.c.bf16 %v3869, %v3869
    %v3875 = vlaneseq
    %v3876 = vshrl.u32 %v3875, 7
    %v3877 = vsub.s32 0, %v3876
    %v3878 = vrot.slane %v973, %v3877
    %v3879 = vlaneseq
    %v3880 = vshrl.u32 %v3879, 7
    %v3881 = vsub.s32 1, %v3880
    %v3882 = vrot.slane %v973, %v3881
    %v3917 = vunpack.c.l.b16 %v491
    %v3918 = vunpack.c.h.b16 %v491
    %v3919 = vunpack.c.l.b16 %v492
    %v3920 = vunpack.c.h.b16 %v492
    %v3921 = vunpack.c.l.b16 %v493
    %v3922 = vunpack.c.h.b16 %v493
    %v3923 = vunpack.c.l.b16 %v494
    %v3924 = vunpack.c.h.b16 %v494
    %v3925 = vunpack.c.l.b16 %v495
    %v3926 = vunpack.c.h.b16 %v495
    %v3927 = vunpack.c.l.b16 %v496
    %v3928 = vunpack.c.h.b16 %v496
    %v3929 = vunpack.c.l.b16 %v497
    %v3930 = vunpack.c.h.b16 %v497
    %v3931 = vunpack.c.l.b16 %v498
    %v3932 = vunpack.c.h.b16 %v498
    %v3933 = vunpack.c.l.b16 %v499
    %v3934 = vunpack.c.h.b16 %v499
    %v3935 = vunpack.c.l.b16 %v500
    %v3936 = vunpack.c.h.b16 %v500
    %v3937 = vunpack.c.l.b16 %v501
    %v3938 = vunpack.c.h.b16 %v501
    %v3939 = vunpack.c.l.b16 %v502
    %v3940 = vunpack.c.h.b16 %v502
    %v3941 = vunpack.c.l.b16 %v503
    %v3942 = vunpack.c.h.b16 %v503
    %v3943 = vunpack.c.l.b16 %v504
    %v3944 = vunpack.c.h.b16 %v504
    %v3945 = vunpack.c.l.b16 %v505
    %v3946 = vunpack.c.h.b16 %v505
    %v3947 = vunpack.c.l.b16 %v506
    %v3948 = vunpack.c.h.b16 %v506
    %v3949 = vunpack.c.l.b16 %v507
    %v3950 = vunpack.c.h.b16 %v507
    %v3951 = vunpack.c.l.b16 %v508
    %v3952 = vunpack.c.h.b16 %v508
    %v3953 = vunpack.c.l.b16 %v509
    %v3954 = vunpack.c.h.b16 %v509
    %v3955 = vunpack.c.l.b16 %v510
    %v3956 = vunpack.c.h.b16 %v510
    %v3957 = vunpack.c.l.b16 %v511
    %v3958 = vunpack.c.h.b16 %v511
    %v3959 = vunpack.c.l.b16 %v512
    %v3960 = vunpack.c.h.b16 %v512
    %v3961 = vunpack.c.l.b16 %v513
    %v3962 = vunpack.c.h.b16 %v513
    %v3963 = vunpack.c.l.b16 %v514
    %v3964 = vunpack.c.h.b16 %v514
    %v3965 = vunpack.c.l.b16 %v515
    %v3966 = vunpack.c.h.b16 %v515
    %v3967 = vunpack.c.l.b16 %v516
    %v3968 = vunpack.c.h.b16 %v516
    %v3969 = vunpack.c.l.b16 %v517
    %v3970 = vunpack.c.h.b16 %v517
    %v3971 = vunpack.c.l.b16 %v518
    %v3972 = vunpack.c.h.b16 %v518
    %v3973 = vunpack.c.l.b16 %v519
    %v3974 = vunpack.c.h.b16 %v519
    %v3975 = vunpack.c.l.b16 %v520
    %v3976 = vunpack.c.h.b16 %v520
    %v3977 = vunpack.c.l.b16 %v521
    %v3978 = vunpack.c.h.b16 %v521
    %v3979 = vunpack.c.l.b16 %v522
    %v3980 = vunpack.c.h.b16 %v522
    %v3981 = vpack.c.b16 %v3919, %v3917
    %v3982 = vpack.c.b16 %v3920, %v3918
    %v3983 = vpack.c.b16 %v3923, %v3921
    %v3984 = vpack.c.b16 %v3924, %v3922
    %v3985 = vpack.c.b16 %v3927, %v3925
    %v3986 = vpack.c.b16 %v3928, %v3926
    %v3987 = vpack.c.b16 %v3931, %v3929
    %v3988 = vpack.c.b16 %v3932, %v3930
    %v3989 = vpack.c.b16 %v3935, %v3933
    %v3990 = vpack.c.b16 %v3936, %v3934
    %v3991 = vpack.c.b16 %v3939, %v3937
    %v3992 = vpack.c.b16 %v3940, %v3938
    %v3993 = vpack.c.b16 %v3943, %v3941
    %v3994 = vpack.c.b16 %v3944, %v3942
    %v3995 = vpack.c.b16 %v3947, %v3945
    %v3996 = vpack.c.b16 %v3948, %v3946
    %v3997 = vpack.c.b16 %v3951, %v3949
    %v3998 = vpack.c.b16 %v3952, %v3950
    %v3999 = vpack.c.b16 %v3955, %v3953
    %v4000 = vpack.c.b16 %v3956, %v3954
    %v4001 = vpack.c.b16 %v3959, %v3957
    %v4002 = vpack.c.b16 %v3960, %v3958
    %v4003 = vpack.c.b16 %v3963, %v3961
    %v4004 = vpack.c.b16 %v3964, %v3962
    %v4005 = vpack.c.b16 %v3967, %v3965
    %v4006 = vpack.c.b16 %v3968, %v3966
    %v4007 = vpack.c.b16 %v3971, %v3969
    %v4008 = vpack.c.b16 %v3972, %v3970
    %v4009 = vpack.c.b16 %v3975, %v3973
    %v4010 = vpack.c.b16 %v3976, %v3974
    %v4011 = vpack.c.b16 %v3979, %v3977
    %v4012 = vpack.c.b16 %v3980, %v3978
    %4045 = vmatprep.subr.bf16.mxu0 %v3982
    %4046 = vmatpush1.bf16.msra.mxu0 %v3981
    %4047 = vmatprep.subr.bf16.mxu0 %v3984
    %4048 = vmatpush1.bf16.msra.mxu0 %v3983
    %4049 = vmatprep.subr.bf16.mxu0 %v3986
    %4050 = vmatpush1.bf16.msra.mxu0 %v3985
    %4051 = vmatprep.subr.bf16.mxu0 %v3988
    %4052 = vmatpush1.bf16.msra.mxu0 %v3987
    %4053 = vmatprep.subr.bf16.mxu0 %v3990
    %4054 = vmatpush1.bf16.msra.mxu0 %v3989
    %4055 = vmatprep.subr.bf16.mxu0 %v3992
    %4056 = vmatpush1.bf16.msra.mxu0 %v3991
    %4057 = vmatprep.subr.bf16.mxu0 %v3994
    %4058 = vmatpush1.bf16.msra.mxu0 %v3993
    %4059 = vmatprep.subr.bf16.mxu0 %v3996
    %4060 = vmatpush1.bf16.msra.mxu0 %v3995
    %4061 = vmatprep.subr.bf16.mxu0 %v3998
    %4062 = vmatpush1.bf16.msra.mxu0 %v3997
    %4063 = vmatprep.subr.bf16.mxu0 %v4000
    %4064 = vmatpush1.bf16.msra.mxu0 %v3999
    %4065 = vmatprep.subr.bf16.mxu0 %v4002
    %4066 = vmatpush1.bf16.msra.mxu0 %v4001
    %4067 = vmatprep.subr.bf16.mxu0 %v4004
    %4068 = vmatpush1.bf16.msra.mxu0 %v4003
    %4069 = vmatprep.subr.bf16.mxu0 %v4006
    %4070 = vmatpush1.bf16.msra.mxu0 %v4005
    %4071 = vmatprep.subr.bf16.mxu0 %v4008
    %4072 = vmatpush1.bf16.msra.mxu0 %v4007
    %4073 = vmatprep.subr.bf16.mxu0 %v4010
    %4074 = vmatpush1.bf16.msra.mxu0 %v4009
    %4075 = vmatprep.subr.bf16.mxu0 %v4012
    %4076 = vmatpush1.bf16.msra.mxu0 %v4011
    %4077 = vmatprep.mubr.bf16.mxu0 %v3871
    %4078 = vmatmul.mubr.bf16.gmra.mrb[0].mxu0 %v3870
    %v4079 = vpop.f32.mrb[0].mxu0
    %v4080 = vadd.f32 %v3878, %v4079
    %v4081 = vpop.f32.mrb[0].mxu0
    %v4082 = vadd.f32 %v3882, %v4081
    %v4083 = vpop.f32.mrb[0].mxu0
    %v4084 = vadd.f32 %v3878, %v4083
    %v4085 = vpop.f32.mrb[0].mxu0
    %v4086 = vadd.f32 %v3882, %v4085
    %4087 = vmatprep.mubr.bf16.mxu0 %v3873
    %4088 = vmatmul.mubr.bf16.gmra.mrb[0].mxu0 %v3872
    %v4089 = vpop.f32.mrb[0].mxu0
    %v4090 = vadd.f32 %v3878, %v4089
    %v4091 = vpop.f32.mrb[0].mxu0
    %v4092 = vadd.f32 %v3882, %v4091
    %v4093 = vpop.f32.mrb[0].mxu0
    %v4094 = vpop.f32.mrb[0].mxu0
    %4095 = vdwg.mxu0
    %v4096 = vlaneseq
    %v4097 = vand.u32 %v4096, 127
    %v4098 = vadd.s32 %v4097, 128
    %vm4099 = vcmp.lt.s32.totalorder %v4097, 128
    %vm4100 = vcmp.lt.s32.totalorder %v4098, 128
    %v4101 = vmul.f32 %v219, 0.1
    %v4102 = vmul.f32 %v220, 0.1
    %v4103 = vmul.f32 %v221, 0.1
    %v4104 = vmul.f32 %v222, 0.1
    %4106 = vset.pattern.permute.xlu0 0
    %4107 = vperm.xlu0 %4106, %v4101
    %v4108 = vpop.permute.xlu0 %4107
    %4111 = vset.pattern.permute.xlu0 0
    %4112 = vperm.xlu0 %4111, %v4102
    %v4113 = vpop.permute.xlu0 %4112
    %4116 = vset.pattern.permute.xlu0 0
    %4117 = vperm.xlu0 %4116, %v4103
    %v4118 = vpop.permute.xlu0 %4117
    %4121 = vset.pattern.permute.xlu0 0
    %4122 = vperm.xlu0 %4121, %v4104
    %v4123 = vpop.permute.xlu0 %4122
    %4126 = vset.pattern.permute.xlu0 1
    %4127 = vperm.xlu0 %4126, %v219
    %v4128 = vpop.permute.xlu0 %4127
    %4131 = vset.pattern.permute.xlu0 1
    %4132 = vperm.xlu0 %4131, %v220
    %v4133 = vpop.permute.xlu0 %4132
    %4136 = vset.pattern.permute.xlu0 1
    %4137 = vperm.xlu0 %4136, %v221
    %v4138 = vpop.permute.xlu0 %4137
    %4141 = vset.pattern.permute.xlu0 1
    %4142 = vperm.xlu0 %4141, %v222
    %v4143 = vpop.permute.xlu0 %4142
    %v4145 = vsel %vm4099, %v4108, %v4128
    %v4146 = vsel %vm4100, %v4108, %v4128
    %v4147 = vsel %vm4099, %v4113, %v4133
    %v4148 = vsel %vm4100, %v4113, %v4133
    %v4149 = vsel %vm4099, %v4118, %v4138
    %v4150 = vsel %vm4100, %v4118, %v4138
    %v4151 = vsel %vm4099, %v4123, %v4143
    %v4152 = vsel %vm4100, %v4123, %v4143
    %v4153 = vmul.f32 %v4080, %v4147
    %v4154 = vmul.f32 %v4082, %v4148
    %v4155 = vmul.f32 %v4084, %v4149
    %v4156 = vmul.f32 %v4086, %v4150
    %v4157 = vmul.f32 %v4090, %v4151
    %v4158 = vmul.f32 %v4092, %v4152
    %v4159 = vmul.f32 %v3878, %v4145
    %v4160 = vmul.f32 %v3882, %v4146
    %v4161 = vadd.f32 %v4159, %v4153
    %v4162 = vadd.f32 %v4160, %v4154
    %v4163 = vadd.f32 %v4161, %v4155
    %v4164 = vadd.f32 %v4162, %v4156
    %v4165 = vadd.f32 %v4163, %v4157
    %v4166 = vadd.f32 %v4164, %v4158
    %v4167 = vpack.c.bf16 %v2855, %v2855
    %v4168 = vpack.c.bf16 %v2856, %v2856
    %v4169 = vpack.c.bf16 %v4165, %v4165
    %v4170 = vpack.c.bf16 %v4166, %v4166
    %v4172 = vlaneseq
    %v4173 = vshrl.u32 %v4172, 7
    %v4174 = vsub.s32 0, %v4173
    %v4175 = vrot.slane %v974, %v4174
    %v4176 = vlaneseq
    %v4177 = vshrl.u32 %v4176, 7
    %v4178 = vsub.s32 1, %v4177
    %v4179 = vrot.slane %v974, %v4178
    %v4180 = vlaneseq
    %v4181 = vshrl.u32 %v4180, 7
    %v4182 = vsub.s32 2, %v4181
    %v4183 = vrot.slane %v974, %v4182
    %v4184 = vlaneseq
    %v4185 = vshrl.u32 %v4184, 7
    %v4186 = vsub.s32 3, %v4185
    %v4187 = vrot.slane %v974, %v4186
    %v4188 = vlaneseq
    %v4189 = vshrl.u32 %v4188, 7
    %v4190 = vsub.s32 4, %v4189
    %v4191 = vrot.slane %v974, %v4190
    %v4192 = vlaneseq
    %v4193 = vshrl.u32 %v4192, 7
    %v4194 = vsub.s32 5, %v4193
    %v4195 = vrot.slane %v974, %v4194
    %v4196 = vlaneseq
    %v4197 = vshrl.u32 %v4196, 7
    %v4198 = vsub.s32 6, %v4197
    %v4199 = vrot.slane %v974, %v4198
    %v4200 = vlaneseq
    %v4201 = vshrl.u32 %v4200, 7
    %v4202 = vsub.s32 7, %v4201
    %v4203 = vrot.slane %v974, %v4202
    %v4596 = vunpack.c.l.b16 %v523
    %v4597 = vunpack.c.h.b16 %v523
    %v4598 = vunpack.c.l.b16 %v524
    %v4599 = vunpack.c.h.b16 %v524
    %v4600 = vunpack.c.l.b16 %v525
    %v4601 = vunpack.c.h.b16 %v525
    %v4602 = vunpack.c.l.b16 %v526
    %v4603 = vunpack.c.h.b16 %v526
    %v4604 = vunpack.c.l.b16 %v527
    %v4605 = vunpack.c.h.b16 %v527
    %v4606 = vunpack.c.l.b16 %v528
    %v4607 = vunpack.c.h.b16 %v528
    %v4608 = vunpack.c.l.b16 %v529
    %v4609 = vunpack.c.h.b16 %v529
    %v4610 = vunpack.c.l.b16 %v530
    %v4611 = vunpack.c.h.b16 %v530
    %v4612 = vunpack.c.l.b16 %v531
    %v4613 = vunpack.c.h.b16 %v531
    %v4614 = vunpack.c.l.b16 %v532
    %v4615 = vunpack.c.h.b16 %v532
    %v4616 = vunpack.c.l.b16 %v533
    %v4617 = vunpack.c.h.b16 %v533
    %v4618 = vunpack.c.l.b16 %v534
    %v4619 = vunpack.c.h.b16 %v534
    %v4620 = vunpack.c.l.b16 %v535
    %v4621 = vunpack.c.h.b16 %v535
    %v4622 = vunpack.c.l.b16 %v536
    %v4623 = vunpack.c.h.b16 %v536
    %v4624 = vunpack.c.l.b16 %v537
    %v4625 = vunpack.c.h.b16 %v537
    %v4626 = vunpack.c.l.b16 %v538
    %v4627 = vunpack.c.h.b16 %v538
    %v4628 = vunpack.c.l.b16 %v539
    %v4629 = vunpack.c.h.b16 %v539
    %v4630 = vunpack.c.l.b16 %v540
    %v4631 = vunpack.c.h.b16 %v540
    %v4632 = vunpack.c.l.b16 %v541
    %v4633 = vunpack.c.h.b16 %v541
    %v4634 = vunpack.c.l.b16 %v542
    %v4635 = vunpack.c.h.b16 %v542
    %v4636 = vunpack.c.l.b16 %v543
    %v4637 = vunpack.c.h.b16 %v543
    %v4638 = vunpack.c.l.b16 %v544
    %v4639 = vunpack.c.h.b16 %v544
    %v4640 = vunpack.c.l.b16 %v545
    %v4641 = vunpack.c.h.b16 %v545
    %v4642 = vunpack.c.l.b16 %v546
    %v4643 = vunpack.c.h.b16 %v546
    %v4644 = vunpack.c.l.b16 %v547
    %v4645 = vunpack.c.h.b16 %v547
    %v4646 = vunpack.c.l.b16 %v548
    %v4647 = vunpack.c.h.b16 %v548
    %v4648 = vunpack.c.l.b16 %v549
    %v4649 = vunpack.c.h.b16 %v549
    %v4650 = vunpack.c.l.b16 %v550
    %v4651 = vunpack.c.h.b16 %v550
    %v4652 = vunpack.c.l.b16 %v551
    %v4653 = vunpack.c.h.b16 %v551
    %v4654 = vunpack.c.l.b16 %v552
    %v4655 = vunpack.c.h.b16 %v552
    %v4656 = vunpack.c.l.b16 %v553
    %v4657 = vunpack.c.h.b16 %v553
    %v4658 = vunpack.c.l.b16 %v554
    %v4659 = vunpack.c.h.b16 %v554
    %v4660 = vunpack.c.l.b16 %v555
    %v4661 = vunpack.c.h.b16 %v555
    %v4662 = vunpack.c.l.b16 %v556
    %v4663 = vunpack.c.h.b16 %v556
    %v4664 = vunpack.c.l.b16 %v557
    %v4665 = vunpack.c.h.b16 %v557
    %v4666 = vunpack.c.l.b16 %v558
    %v4667 = vunpack.c.h.b16 %v558
    %v4668 = vunpack.c.l.b16 %v559
    %v4669 = vunpack.c.h.b16 %v559
    %v4670 = vunpack.c.l.b16 %v560
    %v4671 = vunpack.c.h.b16 %v560
    %v4672 = vunpack.c.l.b16 %v561
    %v4673 = vunpack.c.h.b16 %v561
    %v4674 = vunpack.c.l.b16 %v562
    %v4675 = vunpack.c.h.b16 %v562
    %v4676 = vunpack.c.l.b16 %v563
    %v4677 = vunpack.c.h.b16 %v563
    %v4678 = vunpack.c.l.b16 %v564
    %v4679 = vunpack.c.h.b16 %v564
    %v4680 = vunpack.c.l.b16 %v565
    %v4681 = vunpack.c.h.b16 %v565
    %v4682 = vunpack.c.l.b16 %v566
    %v4683 = vunpack.c.h.b16 %v566
    %v4684 = vunpack.c.l.b16 %v567
    %v4685 = vunpack.c.h.b16 %v567
    %v4686 = vunpack.c.l.b16 %v568
    %v4687 = vunpack.c.h.b16 %v568
    %v4688 = vunpack.c.l.b16 %v569
    %v4689 = vunpack.c.h.b16 %v569
    %v4690 = vunpack.c.l.b16 %v570
    %v4691 = vunpack.c.h.b16 %v570
    %v4692 = vunpack.c.l.b16 %v571
    %v4693 = vunpack.c.h.b16 %v571
    %v4694 = vunpack.c.l.b16 %v572
    %v4695 = vunpack.c.h.b16 %v572
    %v4696 = vunpack.c.l.b16 %v573
    %v4697 = vunpack.c.h.b16 %v573
    %v4698 = vunpack.c.l.b16 %v574
    %v4699 = vunpack.c.h.b16 %v574
    %v4700 = vunpack.c.l.b16 %v575
    %v4701 = vunpack.c.h.b16 %v575
    %v4702 = vunpack.c.l.b16 %v576
    %v4703 = vunpack.c.h.b16 %v576
    %v4704 = vunpack.c.l.b16 %v577
    %v4705 = vunpack.c.h.b16 %v577
    %v4706 = vunpack.c.l.b16 %v578
    %v4707 = vunpack.c.h.b16 %v578
    %v4708 = vunpack.c.l.b16 %v579
    %v4709 = vunpack.c.h.b16 %v579
    %v4710 = vunpack.c.l.b16 %v580
    %v4711 = vunpack.c.h.b16 %v580
    %v4712 = vunpack.c.l.b16 %v581
    %v4713 = vunpack.c.h.b16 %v581
    %v4714 = vunpack.c.l.b16 %v582
    %v4715 = vunpack.c.h.b16 %v582
    %v4716 = vunpack.c.l.b16 %v583
    %v4717 = vunpack.c.h.b16 %v583
    %v4718 = vunpack.c.l.b16 %v584
    %v4719 = vunpack.c.h.b16 %v584
    %v4720 = vunpack.c.l.b16 %v585
    %v4721 = vunpack.c.h.b16 %v585
    %v4722 = vunpack.c.l.b16 %v586
    %v4723 = vunpack.c.h.b16 %v586
    %v4724 = vunpack.c.l.b16 %v587
    %v4725 = vunpack.c.h.b16 %v587
    %v4726 = vunpack.c.l.b16 %v588
    %v4727 = vunpack.c.h.b16 %v588
    %v4728 = vunpack.c.l.b16 %v589
    %v4729 = vunpack.c.h.b16 %v589
    %v4730 = vunpack.c.l.b16 %v590
    %v4731 = vunpack.c.h.b16 %v590
    %v4732 = vunpack.c.l.b16 %v591
    %v4733 = vunpack.c.h.b16 %v591
    %v4734 = vunpack.c.l.b16 %v592
    %v4735 = vunpack.c.h.b16 %v592
    %v4736 = vunpack.c.l.b16 %v593
    %v4737 = vunpack.c.h.b16 %v593
    %v4738 = vunpack.c.l.b16 %v594
    %v4739 = vunpack.c.h.b16 %v594
    %v4740 = vunpack.c.l.b16 %v595
    %v4741 = vunpack.c.h.b16 %v595
    %v4742 = vunpack.c.l.b16 %v596
    %v4743 = vunpack.c.h.b16 %v596
    %v4744 = vunpack.c.l.b16 %v597
    %v4745 = vunpack.c.h.b16 %v597
    %v4746 = vunpack.c.l.b16 %v598
    %v4747 = vunpack.c.h.b16 %v598
    %v4748 = vunpack.c.l.b16 %v599
    %v4749 = vunpack.c.h.b16 %v599
    %v4750 = vunpack.c.l.b16 %v600
    %v4751 = vunpack.c.h.b16 %v600
    %v4752 = vunpack.c.l.b16 %v601
    %v4753 = vunpack.c.h.b16 %v601
    %v4754 = vunpack.c.l.b16 %v602
    %v4755 = vunpack.c.h.b16 %v602
    %v4756 = vunpack.c.l.b16 %v603
    %v4757 = vunpack.c.h.b16 %v603
    %v4758 = vunpack.c.l.b16 %v604
    %v4759 = vunpack.c.h.b16 %v604
    %v4760 = vunpack.c.l.b16 %v605
    %v4761 = vunpack.c.h.b16 %v605
    %v4762 = vunpack.c.l.b16 %v606
    %v4763 = vunpack.c.h.b16 %v606
    %v4764 = vunpack.c.l.b16 %v607
    %v4765 = vunpack.c.h.b16 %v607
    %v4766 = vunpack.c.l.b16 %v608
    %v4767 = vunpack.c.h.b16 %v608
    %v4768 = vunpack.c.l.b16 %v609
    %v4769 = vunpack.c.h.b16 %v609
    %v4770 = vunpack.c.l.b16 %v610
    %v4771 = vunpack.c.h.b16 %v610
    %v4772 = vunpack.c.l.b16 %v611
    %v4773 = vunpack.c.h.b16 %v611
    %v4774 = vunpack.c.l.b16 %v612
    %v4775 = vunpack.c.h.b16 %v612
    %v4776 = vunpack.c.l.b16 %v613
    %v4777 = vunpack.c.h.b16 %v613
    %v4778 = vunpack.c.l.b16 %v614
    %v4779 = vunpack.c.h.b16 %v614
    %v4780 = vunpack.c.l.b16 %v615
    %v4781 = vunpack.c.h.b16 %v615
    %v4782 = vunpack.c.l.b16 %v616
    %v4783 = vunpack.c.h.b16 %v616
    %v4784 = vunpack.c.l.b16 %v617
    %v4785 = vunpack.c.h.b16 %v617
    %v4786 = vunpack.c.l.b16 %v618
    %v4787 = vunpack.c.h.b16 %v618
    %v4788 = vunpack.c.l.b16 %v619
    %v4789 = vunpack.c.h.b16 %v619
    %v4790 = vunpack.c.l.b16 %v620
    %v4791 = vunpack.c.h.b16 %v620
    %v4792 = vunpack.c.l.b16 %v621
    %v4793 = vunpack.c.h.b16 %v621
    %v4794 = vunpack.c.l.b16 %v622
    %v4795 = vunpack.c.h.b16 %v622
    %v4796 = vunpack.c.l.b16 %v623
    %v4797 = vunpack.c.h.b16 %v623
    %v4798 = vunpack.c.l.b16 %v624
    %v4799 = vunpack.c.h.b16 %v624
    %v4800 = vunpack.c.l.b16 %v625
    %v4801 = vunpack.c.h.b16 %v625
    %v4802 = vunpack.c.l.b16 %v626
    %v4803 = vunpack.c.h.b16 %v626
    %v4804 = vunpack.c.l.b16 %v627
    %v4805 = vunpack.c.h.b16 %v627
    %v4806 = vunpack.c.l.b16 %v628
    %v4807 = vunpack.c.h.b16 %v628
    %v4808 = vunpack.c.l.b16 %v629
    %v4809 = vunpack.c.h.b16 %v629
    %v4810 = vunpack.c.l.b16 %v630
    %v4811 = vunpack.c.h.b16 %v630
    %v4812 = vunpack.c.l.b16 %v631
    %v4813 = vunpack.c.h.b16 %v631
    %v4814 = vunpack.c.l.b16 %v632
    %v4815 = vunpack.c.h.b16 %v632
    %v4816 = vunpack.c.l.b16 %v633
    %v4817 = vunpack.c.h.b16 %v633
    %v4818 = vunpack.c.l.b16 %v634
    %v4819 = vunpack.c.h.b16 %v634
    %v4820 = vunpack.c.l.b16 %v635
    %v4821 = vunpack.c.h.b16 %v635
    %v4822 = vunpack.c.l.b16 %v636
    %v4823 = vunpack.c.h.b16 %v636
    %v4824 = vunpack.c.l.b16 %v637
    %v4825 = vunpack.c.h.b16 %v637
    %v4826 = vunpack.c.l.b16 %v638
    %v4827 = vunpack.c.h.b16 %v638
    %v4828 = vunpack.c.l.b16 %v639
    %v4829 = vunpack.c.h.b16 %v639
    %v4830 = vunpack.c.l.b16 %v640
    %v4831 = vunpack.c.h.b16 %v640
    %v4832 = vunpack.c.l.b16 %v641
    %v4833 = vunpack.c.h.b16 %v641
    %v4834 = vunpack.c.l.b16 %v642
    %v4835 = vunpack.c.h.b16 %v642
    %v4836 = vunpack.c.l.b16 %v643
    %v4837 = vunpack.c.h.b16 %v643
    %v4838 = vunpack.c.l.b16 %v644
    %v4839 = vunpack.c.h.b16 %v644
    %v4840 = vunpack.c.l.b16 %v645
    %v4841 = vunpack.c.h.b16 %v645
    %v4842 = vunpack.c.l.b16 %v646
    %v4843 = vunpack.c.h.b16 %v646
    %v4844 = vunpack.c.l.b16 %v647
    %v4845 = vunpack.c.h.b16 %v647
    %v4846 = vunpack.c.l.b16 %v648
    %v4847 = vunpack.c.h.b16 %v648
    %v4848 = vunpack.c.l.b16 %v649
    %v4849 = vunpack.c.h.b16 %v649
    %v4850 = vunpack.c.l.b16 %v650
    %v4851 = vunpack.c.h.b16 %v650
    %v4852 = vunpack.c.l.b16 %v651
    %v4853 = vunpack.c.h.b16 %v651
    %v4854 = vunpack.c.l.b16 %v652
    %v4855 = vunpack.c.h.b16 %v652
    %v4856 = vunpack.c.l.b16 %v653
    %v4857 = vunpack.c.h.b16 %v653
    %v4858 = vunpack.c.l.b16 %v654
    %v4859 = vunpack.c.h.b16 %v654
    %v4860 = vunpack.c.l.b16 %v655
    %v4861 = vunpack.c.h.b16 %v655
    %v4862 = vunpack.c.l.b16 %v656
    %v4863 = vunpack.c.h.b16 %v656
    %v4864 = vunpack.c.l.b16 %v657
    %v4865 = vunpack.c.h.b16 %v657
    %v4866 = vunpack.c.l.b16 %v658
    %v4867 = vunpack.c.h.b16 %v658
    %v4868 = vunpack.c.l.b16 %v659
    %v4869 = vunpack.c.h.b16 %v659
    %v4870 = vunpack.c.l.b16 %v660
    %v4871 = vunpack.c.h.b16 %v660
    %v4872 = vunpack.c.l.b16 %v661
    %v4873 = vunpack.c.h.b16 %v661
    %v4874 = vunpack.c.l.b16 %v662
    %v4875 = vunpack.c.h.b16 %v662
    %v4876 = vunpack.c.l.b16 %v663
    %v4877 = vunpack.c.h.b16 %v663
    %v4878 = vunpack.c.l.b16 %v664
    %v4879 = vunpack.c.h.b16 %v664
    %v4880 = vunpack.c.l.b16 %v665
    %v4881 = vunpack.c.h.b16 %v665
    %v4882 = vunpack.c.l.b16 %v666
    %v4883 = vunpack.c.h.b16 %v666
    %v4884 = vunpack.c.l.b16 %v667
    %v4885 = vunpack.c.h.b16 %v667
    %v4886 = vunpack.c.l.b16 %v668
    %v4887 = vunpack.c.h.b16 %v668
    %v4888 = vunpack.c.l.b16 %v669
    %v4889 = vunpack.c.h.b16 %v669
    %v4890 = vunpack.c.l.b16 %v670
    %v4891 = vunpack.c.h.b16 %v670
    %v4892 = vunpack.c.l.b16 %v671
    %v4893 = vunpack.c.h.b16 %v671
    %v4894 = vunpack.c.l.b16 %v672
    %v4895 = vunpack.c.h.b16 %v672
    %v4896 = vunpack.c.l.b16 %v673
    %v4897 = vunpack.c.h.b16 %v673
    %v4898 = vunpack.c.l.b16 %v674
    %v4899 = vunpack.c.h.b16 %v674
    %v4900 = vunpack.c.l.b16 %v675
    %v4901 = vunpack.c.h.b16 %v675
    %v4902 = vunpack.c.l.b16 %v676
    %v4903 = vunpack.c.h.b16 %v676
    %v4904 = vunpack.c.l.b16 %v677
    %v4905 = vunpack.c.h.b16 %v677
    %v4906 = vunpack.c.l.b16 %v678
    %v4907 = vunpack.c.h.b16 %v678
    %v4908 = vunpack.c.l.b16 %v679
    %v4909 = vunpack.c.h.b16 %v679
    %v4910 = vunpack.c.l.b16 %v680
    %v4911 = vunpack.c.h.b16 %v680
    %v4912 = vunpack.c.l.b16 %v681
    %v4913 = vunpack.c.h.b16 %v681
    %v4914 = vunpack.c.l.b16 %v682
    %v4915 = vunpack.c.h.b16 %v682
    %v4916 = vunpack.c.l.b16 %v683
    %v4917 = vunpack.c.h.b16 %v683
    %v4918 = vunpack.c.l.b16 %v684
    %v4919 = vunpack.c.h.b16 %v684
    %v4920 = vunpack.c.l.b16 %v685
    %v4921 = vunpack.c.h.b16 %v685
    %v4922 = vunpack.c.l.b16 %v686
    %v4923 = vunpack.c.h.b16 %v686
    %v4924 = vunpack.c.l.b16 %v687
    %v4925 = vunpack.c.h.b16 %v687
    %v4926 = vunpack.c.l.b16 %v688
    %v4927 = vunpack.c.h.b16 %v688
    %v4928 = vunpack.c.l.b16 %v689
    %v4929 = vunpack.c.h.b16 %v689
    %v4930 = vunpack.c.l.b16 %v690
    %v4931 = vunpack.c.h.b16 %v690
    %v4932 = vunpack.c.l.b16 %v691
    %v4933 = vunpack.c.h.b16 %v691
    %v4934 = vunpack.c.l.b16 %v692
    %v4935 = vunpack.c.h.b16 %v692
    %v4936 = vunpack.c.l.b16 %v693
    %v4937 = vunpack.c.h.b16 %v693
    %v4938 = vunpack.c.l.b16 %v694
    %v4939 = vunpack.c.h.b16 %v694
    %v4940 = vunpack.c.l.b16 %v695
    %v4941 = vunpack.c.h.b16 %v695
    %v4942 = vunpack.c.l.b16 %v696
    %v4943 = vunpack.c.h.b16 %v696
    %v4944 = vunpack.c.l.b16 %v697
    %v4945 = vunpack.c.h.b16 %v697
    %v4946 = vunpack.c.l.b16 %v698
    %v4947 = vunpack.c.h.b16 %v698
    %v4948 = vunpack.c.l.b16 %v699
    %v4949 = vunpack.c.h.b16 %v699
    %v4950 = vunpack.c.l.b16 %v700
    %v4951 = vunpack.c.h.b16 %v700
    %v4952 = vunpack.c.l.b16 %v701
    %v4953 = vunpack.c.h.b16 %v701
    %v4954 = vunpack.c.l.b16 %v702
    %v4955 = vunpack.c.h.b16 %v702
    %v4956 = vunpack.c.l.b16 %v703
    %v4957 = vunpack.c.h.b16 %v703
    %v4958 = vunpack.c.l.b16 %v704
    %v4959 = vunpack.c.h.b16 %v704
    %v4960 = vunpack.c.l.b16 %v705
    %v4961 = vunpack.c.h.b16 %v705
    %v4962 = vunpack.c.l.b16 %v706
    %v4963 = vunpack.c.h.b16 %v706
    %v4964 = vunpack.c.l.b16 %v707
    %v4965 = vunpack.c.h.b16 %v707
    %v4966 = vunpack.c.l.b16 %v708
    %v4967 = vunpack.c.h.b16 %v708
    %v4968 = vunpack.c.l.b16 %v709
    %v4969 = vunpack.c.h.b16 %v709
    %v4970 = vunpack.c.l.b16 %v710
    %v4971 = vunpack.c.h.b16 %v710
    %v4972 = vunpack.c.l.b16 %v711
    %v4973 = vunpack.c.h.b16 %v711
    %v4974 = vunpack.c.l.b16 %v712
    %v4975 = vunpack.c.h.b16 %v712
    %v4976 = vunpack.c.l.b16 %v713
    %v4977 = vunpack.c.h.b16 %v713
    %v4978 = vunpack.c.l.b16 %v714
    %v4979 = vunpack.c.h.b16 %v714
    %v4980 = vunpack.c.l.b16 %v715
    %v4981 = vunpack.c.h.b16 %v715
    %v4982 = vunpack.c.l.b16 %v716
    %v4983 = vunpack.c.h.b16 %v716
    %v4984 = vunpack.c.l.b16 %v717
    %v4985 = vunpack.c.h.b16 %v717
    %v4986 = vunpack.c.l.b16 %v718
    %v4987 = vunpack.c.h.b16 %v718
    %v4988 = vunpack.c.l.b16 %v719
    %v4989 = vunpack.c.h.b16 %v719
    %v4990 = vunpack.c.l.b16 %v720
    %v4991 = vunpack.c.h.b16 %v720
    %v4992 = vunpack.c.l.b16 %v721
    %v4993 = vunpack.c.h.b16 %v721
    %v4994 = vunpack.c.l.b16 %v722
    %v4995 = vunpack.c.h.b16 %v722
    %v4996 = vunpack.c.l.b16 %v723
    %v4997 = vunpack.c.h.b16 %v723
    %v4998 = vunpack.c.l.b16 %v724
    %v4999 = vunpack.c.h.b16 %v724
    %v5000 = vunpack.c.l.b16 %v725
    %v5001 = vunpack.c.h.b16 %v725
    %v5002 = vunpack.c.l.b16 %v726
    %v5003 = vunpack.c.h.b16 %v726
    %v5004 = vunpack.c.l.b16 %v727
    %v5005 = vunpack.c.h.b16 %v727
    %v5006 = vunpack.c.l.b16 %v728
    %v5007 = vunpack.c.h.b16 %v728
    %v5008 = vunpack.c.l.b16 %v729
    %v5009 = vunpack.c.h.b16 %v729
    %v5010 = vunpack.c.l.b16 %v730
    %v5011 = vunpack.c.h.b16 %v730
    %v5012 = vunpack.c.l.b16 %v731
    %v5013 = vunpack.c.h.b16 %v731
    %v5014 = vunpack.c.l.b16 %v732
    %v5015 = vunpack.c.h.b16 %v732
    %v5016 = vunpack.c.l.b16 %v733
    %v5017 = vunpack.c.h.b16 %v733
    %v5018 = vunpack.c.l.b16 %v734
    %v5019 = vunpack.c.h.b16 %v734
    %v5020 = vunpack.c.l.b16 %v735
    %v5021 = vunpack.c.h.b16 %v735
    %v5022 = vunpack.c.l.b16 %v736
    %v5023 = vunpack.c.h.b16 %v736
    %v5024 = vunpack.c.l.b16 %v737
    %v5025 = vunpack.c.h.b16 %v737
    %v5026 = vunpack.c.l.b16 %v738
    %v5027 = vunpack.c.h.b16 %v738
    %v5028 = vunpack.c.l.b16 %v739
    %v5029 = vunpack.c.h.b16 %v739
    %v5030 = vunpack.c.l.b16 %v740
    %v5031 = vunpack.c.h.b16 %v740
    %v5032 = vunpack.c.l.b16 %v741
    %v5033 = vunpack.c.h.b16 %v741
    %v5034 = vunpack.c.l.b16 %v742
    %v5035 = vunpack.c.h.b16 %v742
    %v5036 = vunpack.c.l.b16 %v743
    %v5037 = vunpack.c.h.b16 %v743
    %v5038 = vunpack.c.l.b16 %v744
    %v5039 = vunpack.c.h.b16 %v744
    %v5040 = vunpack.c.l.b16 %v745
    %v5041 = vunpack.c.h.b16 %v745
    %v5042 = vunpack.c.l.b16 %v746
    %v5043 = vunpack.c.h.b16 %v746
    %v5044 = vunpack.c.l.b16 %v747
    %v5045 = vunpack.c.h.b16 %v747
    %v5046 = vunpack.c.l.b16 %v748
    %v5047 = vunpack.c.h.b16 %v748
    %v5048 = vunpack.c.l.b16 %v749
    %v5049 = vunpack.c.h.b16 %v749
    %v5050 = vunpack.c.l.b16 %v750
    %v5051 = vunpack.c.h.b16 %v750
    %v5052 = vunpack.c.l.b16 %v751
    %v5053 = vunpack.c.h.b16 %v751
    %v5054 = vunpack.c.l.b16 %v752
    %v5055 = vunpack.c.h.b16 %v752
    %v5056 = vunpack.c.l.b16 %v753
    %v5057 = vunpack.c.h.b16 %v753
    %v5058 = vunpack.c.l.b16 %v754
    %v5059 = vunpack.c.h.b16 %v754
    %v5060 = vunpack.c.l.b16 %v755
    %v5061 = vunpack.c.h.b16 %v755
    %v5062 = vunpack.c.l.b16 %v756
    %v5063 = vunpack.c.h.b16 %v756
    %v5064 = vunpack.c.l.b16 %v757
    %v5065 = vunpack.c.h.b16 %v757
    %v5066 = vunpack.c.l.b16 %v758
    %v5067 = vunpack.c.h.b16 %v758
    %v5068 = vunpack.c.l.b16 %v759
    %v5069 = vunpack.c.h.b16 %v759
    %v5070 = vunpack.c.l.b16 %v760
    %v5071 = vunpack.c.h.b16 %v760
    %v5072 = vunpack.c.l.b16 %v761
    %v5073 = vunpack.c.h.b16 %v761
    %v5074 = vunpack.c.l.b16 %v762
    %v5075 = vunpack.c.h.b16 %v762
    %v5076 = vunpack.c.l.b16 %v763
    %v5077 = vunpack.c.h.b16 %v763
    %v5078 = vunpack.c.l.b16 %v764
    %v5079 = vunpack.c.h.b16 %v764
    %v5080 = vunpack.c.l.b16 %v765
    %v5081 = vunpack.c.h.b16 %v765
    %v5082 = vunpack.c.l.b16 %v766
    %v5083 = vunpack.c.h.b16 %v766
    %v5084 = vunpack.c.l.b16 %v767
    %v5085 = vunpack.c.h.b16 %v767
    %v5086 = vunpack.c.l.b16 %v768
    %v5087 = vunpack.c.h.b16 %v768
    %v5088 = vunpack.c.l.b16 %v769
    %v5089 = vunpack.c.h.b16 %v769
    %v5090 = vunpack.c.l.b16 %v770
    %v5091 = vunpack.c.h.b16 %v770
    %v5092 = vunpack.c.l.b16 %v771
    %v5093 = vunpack.c.h.b16 %v771
    %v5094 = vunpack.c.l.b16 %v772
    %v5095 = vunpack.c.h.b16 %v772
    %v5096 = vunpack.c.l.b16 %v773
    %v5097 = vunpack.c.h.b16 %v773
    %v5098 = vunpack.c.l.b16 %v774
    %v5099 = vunpack.c.h.b16 %v774
    %v5100 = vunpack.c.l.b16 %v775
    %v5101 = vunpack.c.h.b16 %v775
    %v5102 = vunpack.c.l.b16 %v776
    %v5103 = vunpack.c.h.b16 %v776
    %v5104 = vunpack.c.l.b16 %v777
    %v5105 = vunpack.c.h.b16 %v777
    %v5106 = vunpack.c.l.b16 %v778
    %v5107 = vunpack.c.h.b16 %v778
    %v5108 = vunpack.c.l.b16 %v779
    %v5109 = vunpack.c.h.b16 %v779
    %v5110 = vunpack.c.l.b16 %v780
    %v5111 = vunpack.c.h.b16 %v780
    %v5112 = vunpack.c.l.b16 %v781
    %v5113 = vunpack.c.h.b16 %v781
    %v5114 = vunpack.c.l.b16 %v782
    %v5115 = vunpack.c.h.b16 %v782
    %v5116 = vunpack.c.l.b16 %v783
    %v5117 = vunpack.c.h.b16 %v783
    %v5118 = vunpack.c.l.b16 %v784
    %v5119 = vunpack.c.h.b16 %v784
    %v5120 = vunpack.c.l.b16 %v785
    %v5121 = vunpack.c.h.b16 %v785
    %v5122 = vunpack.c.l.b16 %v786
    %v5123 = vunpack.c.h.b16 %v786
    %v5124 = vunpack.c.l.b16 %v787
    %v5125 = vunpack.c.h.b16 %v787
    %v5126 = vunpack.c.l.b16 %v788
    %v5127 = vunpack.c.h.b16 %v788
    %v5128 = vunpack.c.l.b16 %v789
    %v5129 = vunpack.c.h.b16 %v789
    %v5130 = vunpack.c.l.b16 %v790
    %v5131 = vunpack.c.h.b16 %v790
    %v5132 = vunpack.c.l.b16 %v791
    %v5133 = vunpack.c.h.b16 %v791
    %v5134 = vunpack.c.l.b16 %v792
    %v5135 = vunpack.c.h.b16 %v792
    %v5136 = vunpack.c.l.b16 %v793
    %v5137 = vunpack.c.h.b16 %v793
    %v5138 = vunpack.c.l.b16 %v794
    %v5139 = vunpack.c.h.b16 %v794
    %v5140 = vunpack.c.l.b16 %v795
    %v5141 = vunpack.c.h.b16 %v795
    %v5142 = vunpack.c.l.b16 %v796
    %v5143 = vunpack.c.h.b16 %v796
    %v5144 = vunpack.c.l.b16 %v797
    %v5145 = vunpack.c.h.b16 %v797
    %v5146 = vunpack.c.l.b16 %v798
    %v5147 = vunpack.c.h.b16 %v798
    %v5148 = vunpack.c.l.b16 %v799
    %v5149 = vunpack.c.h.b16 %v799
    %v5150 = vunpack.c.l.b16 %v800
    %v5151 = vunpack.c.h.b16 %v800
    %v5152 = vunpack.c.l.b16 %v801
    %v5153 = vunpack.c.h.b16 %v801
    %v5154 = vunpack.c.l.b16 %v802
    %v5155 = vunpack.c.h.b16 %v802
    %v5156 = vunpack.c.l.b16 %v803
    %v5157 = vunpack.c.h.b16 %v803
    %v5158 = vunpack.c.l.b16 %v804
    %v5159 = vunpack.c.h.b16 %v804
    %v5160 = vunpack.c.l.b16 %v805
    %v5161 = vunpack.c.h.b16 %v805
    %v5162 = vunpack.c.l.b16 %v806
    %v5163 = vunpack.c.h.b16 %v806
    %v5164 = vunpack.c.l.b16 %v807
    %v5165 = vunpack.c.h.b16 %v807
    %v5166 = vunpack.c.l.b16 %v808
    %v5167 = vunpack.c.h.b16 %v808
    %v5168 = vunpack.c.l.b16 %v809
    %v5169 = vunpack.c.h.b16 %v809
    %v5170 = vunpack.c.l.b16 %v810
    %v5171 = vunpack.c.h.b16 %v810
    %v5172 = vunpack.c.l.b16 %v811
    %v5173 = vunpack.c.h.b16 %v811
    %v5174 = vunpack.c.l.b16 %v812
    %v5175 = vunpack.c.h.b16 %v812
    %v5176 = vunpack.c.l.b16 %v813
    %v5177 = vunpack.c.h.b16 %v813
    %v5178 = vunpack.c.l.b16 %v814
    %v5179 = vunpack.c.h.b16 %v814
    %v5180 = vunpack.c.l.b16 %v815
    %v5181 = vunpack.c.h.b16 %v815
    %v5182 = vunpack.c.l.b16 %v816
    %v5183 = vunpack.c.h.b16 %v816
    %v5184 = vunpack.c.l.b16 %v817
    %v5185 = vunpack.c.h.b16 %v817
    %v5186 = vunpack.c.l.b16 %v818
    %v5187 = vunpack.c.h.b16 %v818
    %v5188 = vunpack.c.l.b16 %v819
    %v5189 = vunpack.c.h.b16 %v819
    %v5190 = vunpack.c.l.b16 %v820
    %v5191 = vunpack.c.h.b16 %v820
    %v5192 = vunpack.c.l.b16 %v821
    %v5193 = vunpack.c.h.b16 %v821
    %v5194 = vunpack.c.l.b16 %v822
    %v5195 = vunpack.c.h.b16 %v822
    %v5196 = vunpack.c.l.b16 %v823
    %v5197 = vunpack.c.h.b16 %v823
    %v5198 = vunpack.c.l.b16 %v824
    %v5199 = vunpack.c.h.b16 %v824
    %v5200 = vunpack.c.l.b16 %v825
    %v5201 = vunpack.c.h.b16 %v825
    %v5202 = vunpack.c.l.b16 %v826
    %v5203 = vunpack.c.h.b16 %v826
    %v5204 = vunpack.c.l.b16 %v827
    %v5205 = vunpack.c.h.b16 %v827
    %v5206 = vunpack.c.l.b16 %v828
    %v5207 = vunpack.c.h.b16 %v828
    %v5208 = vunpack.c.l.b16 %v829
    %v5209 = vunpack.c.h.b16 %v829
    %v5210 = vunpack.c.l.b16 %v830
    %v5211 = vunpack.c.h.b16 %v830
    %v5212 = vunpack.c.l.b16 %v831
    %v5213 = vunpack.c.h.b16 %v831
    %v5214 = vunpack.c.l.b16 %v832
    %v5215 = vunpack.c.h.b16 %v832
    %v5216 = vunpack.c.l.b16 %v833
    %v5217 = vunpack.c.h.b16 %v833
    %v5218 = vunpack.c.l.b16 %v834
    %v5219 = vunpack.c.h.b16 %v834
    %v5220 = vunpack.c.l.b16 %v835
    %v5221 = vunpack.c.h.b16 %v835
    %v5222 = vunpack.c.l.b16 %v836
    %v5223 = vunpack.c.h.b16 %v836
    %v5224 = vunpack.c.l.b16 %v837
    %v5225 = vunpack.c.h.b16 %v837
    %v5226 = vunpack.c.l.b16 %v838
    %v5227 = vunpack.c.h.b16 %v838
    %v5228 = vunpack.c.l.b16 %v839
    %v5229 = vunpack.c.h.b16 %v839
    %v5230 = vunpack.c.l.b16 %v840
    %v5231 = vunpack.c.h.b16 %v840
    %v5232 = vunpack.c.l.b16 %v841
    %v5233 = vunpack.c.h.b16 %v841
    %v5234 = vunpack.c.l.b16 %v842
    %v5235 = vunpack.c.h.b16 %v842
    %v5236 = vunpack.c.l.b16 %v843
    %v5237 = vunpack.c.h.b16 %v843
    %v5238 = vunpack.c.l.b16 %v844
    %v5239 = vunpack.c.h.b16 %v844
    %v5240 = vunpack.c.l.b16 %v845
    %v5241 = vunpack.c.h.b16 %v845
    %v5242 = vunpack.c.l.b16 %v846
    %v5243 = vunpack.c.h.b16 %v846
    %v5244 = vunpack.c.l.b16 %v847
    %v5245 = vunpack.c.h.b16 %v847
    %v5246 = vunpack.c.l.b16 %v848
    %v5247 = vunpack.c.h.b16 %v848
    %v5248 = vunpack.c.l.b16 %v849
    %v5249 = vunpack.c.h.b16 %v849
    %v5250 = vunpack.c.l.b16 %v850
    %v5251 = vunpack.c.h.b16 %v850
    %v5252 = vunpack.c.l.b16 %v851
    %v5253 = vunpack.c.h.b16 %v851
    %v5254 = vunpack.c.l.b16 %v852
    %v5255 = vunpack.c.h.b16 %v852
    %v5256 = vunpack.c.l.b16 %v853
    %v5257 = vunpack.c.h.b16 %v853
    %v5258 = vunpack.c.l.b16 %v854
    %v5259 = vunpack.c.h.b16 %v854
    %v5260 = vunpack.c.l.b16 %v855
    %v5261 = vunpack.c.h.b16 %v855
    %v5262 = vunpack.c.l.b16 %v856
    %v5263 = vunpack.c.h.b16 %v856
    %v5264 = vunpack.c.l.b16 %v857
    %v5265 = vunpack.c.h.b16 %v857
    %v5266 = vunpack.c.l.b16 %v858
    %v5267 = vunpack.c.h.b16 %v858
    %v5268 = vunpack.c.l.b16 %v859
    %v5269 = vunpack.c.h.b16 %v859
    %v5270 = vunpack.c.l.b16 %v860
    %v5271 = vunpack.c.h.b16 %v860
    %v5272 = vunpack.c.l.b16 %v861
    %v5273 = vunpack.c.h.b16 %v861
    %v5274 = vunpack.c.l.b16 %v862
    %v5275 = vunpack.c.h.b16 %v862
    %v5276 = vunpack.c.l.b16 %v863
    %v5277 = vunpack.c.h.b16 %v863
    %v5278 = vunpack.c.l.b16 %v864
    %v5279 = vunpack.c.h.b16 %v864
    %v5280 = vunpack.c.l.b16 %v865
    %v5281 = vunpack.c.h.b16 %v865
    %v5282 = vunpack.c.l.b16 %v866
    %v5283 = vunpack.c.h.b16 %v866
    %v5284 = vunpack.c.l.b16 %v867
    %v5285 = vunpack.c.h.b16 %v867
    %v5286 = vunpack.c.l.b16 %v868
    %v5287 = vunpack.c.h.b16 %v868
    %v5288 = vunpack.c.l.b16 %v869
    %v5289 = vunpack.c.h.b16 %v869
    %v5290 = vunpack.c.l.b16 %v870
    %v5291 = vunpack.c.h.b16 %v870
    %v5292 = vunpack.c.l.b16 %v871
    %v5293 = vunpack.c.h.b16 %v871
    %v5294 = vunpack.c.l.b16 %v872
    %v5295 = vunpack.c.h.b16 %v872
    %v5296 = vunpack.c.l.b16 %v873
    %v5297 = vunpack.c.h.b16 %v873
    %v5298 = vunpack.c.l.b16 %v874
    %v5299 = vunpack.c.h.b16 %v874
    %v5300 = vunpack.c.l.b16 %v875
    %v5301 = vunpack.c.h.b16 %v875
    %v5302 = vunpack.c.l.b16 %v876
    %v5303 = vunpack.c.h.b16 %v876
    %v5304 = vunpack.c.l.b16 %v877
    %v5305 = vunpack.c.h.b16 %v877
    %v5306 = vunpack.c.l.b16 %v878
    %v5307 = vunpack.c.h.b16 %v878
    %v5308 = vunpack.c.l.b16 %v879
    %v5309 = vunpack.c.h.b16 %v879
    %v5310 = vunpack.c.l.b16 %v880
    %v5311 = vunpack.c.h.b16 %v880
    %v5312 = vunpack.c.l.b16 %v881
    %v5313 = vunpack.c.h.b16 %v881
    %v5314 = vunpack.c.l.b16 %v882
    %v5315 = vunpack.c.h.b16 %v882
    %v5316 = vunpack.c.l.b16 %v883
    %v5317 = vunpack.c.h.b16 %v883
    %v5318 = vunpack.c.l.b16 %v884
    %v5319 = vunpack.c.h.b16 %v884
    %v5320 = vunpack.c.l.b16 %v885
    %v5321 = vunpack.c.h.b16 %v885
    %v5322 = vunpack.c.l.b16 %v886
    %v5323 = vunpack.c.h.b16 %v886
    %v5324 = vunpack.c.l.b16 %v887
    %v5325 = vunpack.c.h.b16 %v887
    %v5326 = vunpack.c.l.b16 %v888
    %v5327 = vunpack.c.h.b16 %v888
    %v5328 = vunpack.c.l.b16 %v889
    %v5329 = vunpack.c.h.b16 %v889
    %v5330 = vunpack.c.l.b16 %v890
    %v5331 = vunpack.c.h.b16 %v890
    %v5332 = vunpack.c.l.b16 %v891
    %v5333 = vunpack.c.h.b16 %v891
    %v5334 = vunpack.c.l.b16 %v892
    %v5335 = vunpack.c.h.b16 %v892
    %v5336 = vunpack.c.l.b16 %v893
    %v5337 = vunpack.c.h.b16 %v893
    %v5338 = vunpack.c.l.b16 %v894
    %v5339 = vunpack.c.h.b16 %v894
    %v5340 = vunpack.c.l.b16 %v895
    %v5341 = vunpack.c.h.b16 %v895
    %v5342 = vunpack.c.l.b16 %v896
    %v5343 = vunpack.c.h.b16 %v896
    %v5344 = vunpack.c.l.b16 %v897
    %v5345 = vunpack.c.h.b16 %v897
    %v5346 = vunpack.c.l.b16 %v898
    %v5347 = vunpack.c.h.b16 %v898
    %v5348 = vunpack.c.l.b16 %v899
    %v5349 = vunpack.c.h.b16 %v899
    %v5350 = vunpack.c.l.b16 %v900
    %v5351 = vunpack.c.h.b16 %v900
    %v5352 = vunpack.c.l.b16 %v901
    %v5353 = vunpack.c.h.b16 %v901
    %v5354 = vunpack.c.l.b16 %v902
    %v5355 = vunpack.c.h.b16 %v902
    %v5356 = vunpack.c.l.b16 %v903
    %v5357 = vunpack.c.h.b16 %v903
    %v5358 = vunpack.c.l.b16 %v904
    %v5359 = vunpack.c.h.b16 %v904
    %v5360 = vunpack.c.l.b16 %v905
    %v5361 = vunpack.c.h.b16 %v905
    %v5362 = vunpack.c.l.b16 %v906
    %v5363 = vunpack.c.h.b16 %v906
    %v5364 = vpack.c.b16 %v4604, %v4596
    %v5365 = vpack.c.b16 %v4605, %v4597
    %v5366 = vpack.c.b16 %v4606, %v4598
    %v5367 = vpack.c.b16 %v4607, %v4599
    %v5368 = vpack.c.b16 %v4608, %v4600
    %v5369 = vpack.c.b16 %v4609, %v4601
    %v5370 = vpack.c.b16 %v4610, %v4602
    %v5371 = vpack.c.b16 %v4611, %v4603
    %v5372 = vpack.c.b16 %v4620, %v4612
    %v5373 = vpack.c.b16 %v4621, %v4613
    %v5374 = vpack.c.b16 %v4622, %v4614
    %v5375 = vpack.c.b16 %v4623, %v4615
    %v5376 = vpack.c.b16 %v4624, %v4616
    %v5377 = vpack.c.b16 %v4625, %v4617
    %v5378 = vpack.c.b16 %v4626, %v4618
    %v5379 = vpack.c.b16 %v4627, %v4619
    %v5380 = vpack.c.b16 %v4636, %v4628
    %v5381 = vpack.c.b16 %v4637, %v4629
    %v5382 = vpack.c.b16 %v4638, %v4630
    %v5383 = vpack.c.b16 %v4639, %v4631
    %v5384 = vpack.c.b16 %v4640, %v4632
    %v5385 = vpack.c.b16 %v4641, %v4633
    %v5386 = vpack.c.b16 %v4642, %v4634
    %v5387 = vpack.c.b16 %v4643, %v4635
    %v5388 = vpack.c.b16 %v4652, %v4644
    %v5389 = vpack.c.b16 %v4653, %v4645
    %v5390 = vpack.c.b16 %v4654, %v4646
    %v5391 = vpack.c.b16 %v4655, %v4647
    %v5392 = vpack.c.b16 %v4656, %v4648
    %v5393 = vpack.c.b16 %v4657, %v4649
    %v5394 = vpack.c.b16 %v4658, %v4650
    %v5395 = vpack.c.b16 %v4659, %v4651
    %v5396 = vpack.c.b16 %v4668, %v4660
    %v5397 = vpack.c.b16 %v4669, %v4661
    %v5398 = vpack.c.b16 %v4670, %v4662
    %v5399 = vpack.c.b16 %v4671, %v4663
    %v5400 = vpack.c.b16 %v4672, %v4664
    %v5401 = vpack.c.b16 %v4673, %v4665
    %v5402 = vpack.c.b16 %v4674, %v4666
    %v5403 = vpack.c.b16 %v4675, %v4667
    %v5404 = vpack.c.b16 %v4684, %v4676
    %v5405 = vpack.c.b16 %v4685, %v4677
    %v5406 = vpack.c.b16 %v4686, %v4678
    %v5407 = vpack.c.b16 %v4687, %v4679
    %v5408 = vpack.c.b16 %v4688, %v4680
    %v5409 = vpack.c.b16 %v4689, %v4681
    %v5410 = vpack.c.b16 %v4690, %v4682
    %v5411 = vpack.c.b16 %v4691, %v4683
    %v5412 = vpack.c.b16 %v4700, %v4692
    %v5413 = vpack.c.b16 %v4701, %v4693
    %v5414 = vpack.c.b16 %v4702, %v4694
    %v5415 = vpack.c.b16 %v4703, %v4695
    %v5416 = vpack.c.b16 %v4704, %v4696
    %v5417 = vpack.c.b16 %v4705, %v4697
    %v5418 = vpack.c.b16 %v4706, %v4698
    %v5419 = vpack.c.b16 %v4707, %v4699
    %v5420 = vpack.c.b16 %v4716, %v4708
    %v5421 = vpack.c.b16 %v4717, %v4709
    %v5422 = vpack.c.b16 %v4718, %v4710
    %v5423 = vpack.c.b16 %v4719, %v4711
    %v5424 = vpack.c.b16 %v4720, %v4712
    %v5425 = vpack.c.b16 %v4721, %v4713
    %v5426 = vpack.c.b16 %v4722, %v4714
    %v5427 = vpack.c.b16 %v4723, %v4715
    %v5428 = vpack.c.b16 %v4732, %v4724
    %v5429 = vpack.c.b16 %v4733, %v4725
    %v5430 = vpack.c.b16 %v4734, %v4726
    %v5431 = vpack.c.b16 %v4735, %v4727
    %v5432 = vpack.c.b16 %v4736, %v4728
    %v5433 = vpack.c.b16 %v4737, %v4729
    %v5434 = vpack.c.b16 %v4738, %v4730
    %v5435 = vpack.c.b16 %v4739, %v4731
    %v5436 = vpack.c.b16 %v4748, %v4740
    %v5437 = vpack.c.b16 %v4749, %v4741
    %v5438 = vpack.c.b16 %v4750, %v4742
    %v5439 = vpack.c.b16 %v4751, %v4743
    %v5440 = vpack.c.b16 %v4752, %v4744
    %v5441 = vpack.c.b16 %v4753, %v4745
    %v5442 = vpack.c.b16 %v4754, %v4746
    %v5443 = vpack.c.b16 %v4755, %v4747
    %v5444 = vpack.c.b16 %v4764, %v4756
    %v5445 = vpack.c.b16 %v4765, %v4757
    %v5446 = vpack.c.b16 %v4766, %v4758
    %v5447 = vpack.c.b16 %v4767, %v4759
    %v5448 = vpack.c.b16 %v4768, %v4760
    %v5449 = vpack.c.b16 %v4769, %v4761
    %v5450 = vpack.c.b16 %v4770, %v4762
    %v5451 = vpack.c.b16 %v4771, %v4763
    %v5452 = vpack.c.b16 %v4780, %v4772
    %v5453 = vpack.c.b16 %v4781, %v4773
    %v5454 = vpack.c.b16 %v4782, %v4774
    %v5455 = vpack.c.b16 %v4783, %v4775
    %v5456 = vpack.c.b16 %v4784, %v4776
    %v5457 = vpack.c.b16 %v4785, %v4777
    %v5458 = vpack.c.b16 %v4786, %v4778
    %v5459 = vpack.c.b16 %v4787, %v4779
    %v5460 = vpack.c.b16 %v4796, %v4788
    %v5461 = vpack.c.b16 %v4797, %v4789
    %v5462 = vpack.c.b16 %v4798, %v4790
    %v5463 = vpack.c.b16 %v4799, %v4791
    %v5464 = vpack.c.b16 %v4800, %v4792
    %v5465 = vpack.c.b16 %v4801, %v4793
    %v5466 = vpack.c.b16 %v4802, %v4794
    %v5467 = vpack.c.b16 %v4803, %v4795
    %v5468 = vpack.c.b16 %v4812, %v4804
    %v5469 = vpack.c.b16 %v4813, %v4805
    %v5470 = vpack.c.b16 %v4814, %v4806
    %v5471 = vpack.c.b16 %v4815, %v4807
    %v5472 = vpack.c.b16 %v4816, %v4808
    %v5473 = vpack.c.b16 %v4817, %v4809
    %v5474 = vpack.c.b16 %v4818, %v4810
    %v5475 = vpack.c.b16 %v4819, %v4811
    %v5476 = vpack.c.b16 %v4828, %v4820
    %v5477 = vpack.c.b16 %v4829, %v4821
    %v5478 = vpack.c.b16 %v4830, %v4822
    %v5479 = vpack.c.b16 %v4831, %v4823
    %v5480 = vpack.c.b16 %v4832, %v4824
    %v5481 = vpack.c.b16 %v4833, %v4825
    %v5482 = vpack.c.b16 %v4834, %v4826
    %v5483 = vpack.c.b16 %v4835, %v4827
    %v5484 = vpack.c.b16 %v4844, %v4836
    %v5485 = vpack.c.b16 %v4845, %v4837
    %v5486 = vpack.c.b16 %v4846, %v4838
    %v5487 = vpack.c.b16 %v4847, %v4839
    %v5488 = vpack.c.b16 %v4848, %v4840
    %v5489 = vpack.c.b16 %v4849, %v4841
    %v5490 = vpack.c.b16 %v4850, %v4842
    %v5491 = vpack.c.b16 %v4851, %v4843
    %v5492 = vpack.c.b16 %v4860, %v4852
    %v5493 = vpack.c.b16 %v4861, %v4853
    %v5494 = vpack.c.b16 %v4862, %v4854
    %v5495 = vpack.c.b16 %v4863, %v4855
    %v5496 = vpack.c.b16 %v4864, %v4856
    %v5497 = vpack.c.b16 %v4865, %v4857
    %v5498 = vpack.c.b16 %v4866, %v4858
    %v5499 = vpack.c.b16 %v4867, %v4859
    %v5500 = vpack.c.b16 %v4876, %v4868
    %v5501 = vpack.c.b16 %v4877, %v4869
    %v5502 = vpack.c.b16 %v4878, %v4870
    %v5503 = vpack.c.b16 %v4879, %v4871
    %v5504 = vpack.c.b16 %v4880, %v4872
    %v5505 = vpack.c.b16 %v4881, %v4873
    %v5506 = vpack.c.b16 %v4882, %v4874
    %v5507 = vpack.c.b16 %v4883, %v4875
    %v5508 = vpack.c.b16 %v4892, %v4884
    %v5509 = vpack.c.b16 %v4893, %v4885
    %v5510 = vpack.c.b16 %v4894, %v4886
    %v5511 = vpack.c.b16 %v4895, %v4887
    %v5512 = vpack.c.b16 %v4896, %v4888
    %v5513 = vpack.c.b16 %v4897, %v4889
    %v5514 = vpack.c.b16 %v4898, %v4890
    %v5515 = vpack.c.b16 %v4899, %v4891
    %v5516 = vpack.c.b16 %v4908, %v4900
    %v5517 = vpack.c.b16 %v4909, %v4901
    %v5518 = vpack.c.b16 %v4910, %v4902
    %v5519 = vpack.c.b16 %v4911, %v4903
    %v5520 = vpack.c.b16 %v4912, %v4904
    %v5521 = vpack.c.b16 %v4913, %v4905
    %v5522 = vpack.c.b16 %v4914, %v4906
    %v5523 = vpack.c.b16 %v4915, %v4907
    %v5524 = vpack.c.b16 %v4924, %v4916
    %v5525 = vpack.c.b16 %v4925, %v4917
    %v5526 = vpack.c.b16 %v4926, %v4918
    %v5527 = vpack.c.b16 %v4927, %v4919
    %v5528 = vpack.c.b16 %v4928, %v4920
    %v5529 = vpack.c.b16 %v4929, %v4921
    %v5530 = vpack.c.b16 %v4930, %v4922
    %v5531 = vpack.c.b16 %v4931, %v4923
    %v5532 = vpack.c.b16 %v4940, %v4932
    %v5533 = vpack.c.b16 %v4941, %v4933
    %v5534 = vpack.c.b16 %v4942, %v4934
    %v5535 = vpack.c.b16 %v4943, %v4935
    %v5536 = vpack.c.b16 %v4944, %v4936
    %v5537 = vpack.c.b16 %v4945, %v4937
    %v5538 = vpack.c.b16 %v4946, %v4938
    %v5539 = vpack.c.b16 %v4947, %v4939
    %v5540 = vpack.c.b16 %v4956, %v4948
    %v5541 = vpack.c.b16 %v4957, %v4949
    %v5542 = vpack.c.b16 %v4958, %v4950
    %v5543 = vpack.c.b16 %v4959, %v4951
    %v5544 = vpack.c.b16 %v4960, %v4952
    %v5545 = vpack.c.b16 %v4961, %v4953
    %v5546 = vpack.c.b16 %v4962, %v4954
    %v5547 = vpack.c.b16 %v4963, %v4955
    %v5548 = vpack.c.b16 %v4972, %v4964
    %v5549 = vpack.c.b16 %v4973, %v4965
    %v5550 = vpack.c.b16 %v4974, %v4966
    %v5551 = vpack.c.b16 %v4975, %v4967
    %v5552 = vpack.c.b16 %v4976, %v4968
    %v5553 = vpack.c.b16 %v4977, %v4969
    %v5554 = vpack.c.b16 %v4978, %v4970
    %v5555 = vpack.c.b16 %v4979, %v4971
    %v5556 = vpack.c.b16 %v4988, %v4980
    %v5557 = vpack.c.b16 %v4989, %v4981
    %v5558 = vpack.c.b16 %v4990, %v4982
    %v5559 = vpack.c.b16 %v4991, %v4983
    %v5560 = vpack.c.b16 %v4992, %v4984
    %v5561 = vpack.c.b16 %v4993, %v4985
    %v5562 = vpack.c.b16 %v4994, %v4986
    %v5563 = vpack.c.b16 %v4995, %v4987
    %v5564 = vpack.c.b16 %v5004, %v4996
    %v5565 = vpack.c.b16 %v5005, %v4997
    %v5566 = vpack.c.b16 %v5006, %v4998
    %v5567 = vpack.c.b16 %v5007, %v4999
    %v5568 = vpack.c.b16 %v5008, %v5000
    %v5569 = vpack.c.b16 %v5009, %v5001
    %v5570 = vpack.c.b16 %v5010, %v5002
    %v5571 = vpack.c.b16 %v5011, %v5003
    %v5572 = vpack.c.b16 %v5020, %v5012
    %v5573 = vpack.c.b16 %v5021, %v5013
    %v5574 = vpack.c.b16 %v5022, %v5014
    %v5575 = vpack.c.b16 %v5023, %v5015
    %v5576 = vpack.c.b16 %v5024, %v5016
    %v5577 = vpack.c.b16 %v5025, %v5017
    %v5578 = vpack.c.b16 %v5026, %v5018
    %v5579 = vpack.c.b16 %v5027, %v5019
    %v5580 = vpack.c.b16 %v5036, %v5028
    %v5581 = vpack.c.b16 %v5037, %v5029
    %v5582 = vpack.c.b16 %v5038, %v5030
    %v5583 = vpack.c.b16 %v5039, %v5031
    %v5584 = vpack.c.b16 %v5040, %v5032
    %v5585 = vpack.c.b16 %v5041, %v5033
    %v5586 = vpack.c.b16 %v5042, %v5034
    %v5587 = vpack.c.b16 %v5043, %v5035
    %v5588 = vpack.c.b16 %v5052, %v5044
    %v5589 = vpack.c.b16 %v5053, %v5045
    %v5590 = vpack.c.b16 %v5054, %v5046
    %v5591 = vpack.c.b16 %v5055, %v5047
    %v5592 = vpack.c.b16 %v5056, %v5048
    %v5593 = vpack.c.b16 %v5057, %v5049
    %v5594 = vpack.c.b16 %v5058, %v5050
    %v5595 = vpack.c.b16 %v5059, %v5051
    %v5596 = vpack.c.b16 %v5068, %v5060
    %v5597 = vpack.c.b16 %v5069, %v5061
    %v5598 = vpack.c.b16 %v5070, %v5062
    %v5599 = vpack.c.b16 %v5071, %v5063
    %v5600 = vpack.c.b16 %v5072, %v5064
    %v5601 = vpack.c.b16 %v5073, %v5065
    %v5602 = vpack.c.b16 %v5074, %v5066
    %v5603 = vpack.c.b16 %v5075, %v5067
    %v5604 = vpack.c.b16 %v5084, %v5076
    %v5605 = vpack.c.b16 %v5085, %v5077
    %v5606 = vpack.c.b16 %v5086, %v5078
    %v5607 = vpack.c.b16 %v5087, %v5079
    %v5608 = vpack.c.b16 %v5088, %v5080
    %v5609 = vpack.c.b16 %v5089, %v5081
    %v5610 = vpack.c.b16 %v5090, %v5082
    %v5611 = vpack.c.b16 %v5091, %v5083
    %v5612 = vpack.c.b16 %v5100, %v5092
    %v5613 = vpack.c.b16 %v5101, %v5093
    %v5614 = vpack.c.b16 %v5102, %v5094
    %v5615 = vpack.c.b16 %v5103, %v5095
    %v5616 = vpack.c.b16 %v5104, %v5096
    %v5617 = vpack.c.b16 %v5105, %v5097
    %v5618 = vpack.c.b16 %v5106, %v5098
    %v5619 = vpack.c.b16 %v5107, %v5099
    %v5620 = vpack.c.b16 %v5116, %v5108
    %v5621 = vpack.c.b16 %v5117, %v5109
    %v5622 = vpack.c.b16 %v5118, %v5110
    %v5623 = vpack.c.b16 %v5119, %v5111
    %v5624 = vpack.c.b16 %v5120, %v5112
    %v5625 = vpack.c.b16 %v5121, %v5113
    %v5626 = vpack.c.b16 %v5122, %v5114
    %v5627 = vpack.c.b16 %v5123, %v5115
    %v5628 = vpack.c.b16 %v5132, %v5124
    %v5629 = vpack.c.b16 %v5133, %v5125
    %v5630 = vpack.c.b16 %v5134, %v5126
    %v5631 = vpack.c.b16 %v5135, %v5127
    %v5632 = vpack.c.b16 %v5136, %v5128
    %v5633 = vpack.c.b16 %v5137, %v5129
    %v5634 = vpack.c.b16 %v5138, %v5130
    %v5635 = vpack.c.b16 %v5139, %v5131
    %v5636 = vpack.c.b16 %v5148, %v5140
    %v5637 = vpack.c.b16 %v5149, %v5141
    %v5638 = vpack.c.b16 %v5150, %v5142
    %v5639 = vpack.c.b16 %v5151, %v5143
    %v5640 = vpack.c.b16 %v5152, %v5144
    %v5641 = vpack.c.b16 %v5153, %v5145
    %v5642 = vpack.c.b16 %v5154, %v5146
    %v5643 = vpack.c.b16 %v5155, %v5147
    %v5644 = vpack.c.b16 %v5164, %v5156
    %v5645 = vpack.c.b16 %v5165, %v5157
    %v5646 = vpack.c.b16 %v5166, %v5158
    %v5647 = vpack.c.b16 %v5167, %v5159
    %v5648 = vpack.c.b16 %v5168, %v5160
    %v5649 = vpack.c.b16 %v5169, %v5161
    %v5650 = vpack.c.b16 %v5170, %v5162
    %v5651 = vpack.c.b16 %v5171, %v5163
    %v5652 = vpack.c.b16 %v5180, %v5172
    %v5653 = vpack.c.b16 %v5181, %v5173
    %v5654 = vpack.c.b16 %v5182, %v5174
    %v5655 = vpack.c.b16 %v5183, %v5175
    %v5656 = vpack.c.b16 %v5184, %v5176
    %v5657 = vpack.c.b16 %v5185, %v5177
    %v5658 = vpack.c.b16 %v5186, %v5178
    %v5659 = vpack.c.b16 %v5187, %v5179
    %v5660 = vpack.c.b16 %v5196, %v5188
    %v5661 = vpack.c.b16 %v5197, %v5189
    %v5662 = vpack.c.b16 %v5198, %v5190
    %v5663 = vpack.c.b16 %v5199, %v5191
    %v5664 = vpack.c.b16 %v5200, %v5192
    %v5665 = vpack.c.b16 %v5201, %v5193
    %v5666 = vpack.c.b16 %v5202, %v5194
    %v5667 = vpack.c.b16 %v5203, %v5195
    %v5668 = vpack.c.b16 %v5212, %v5204
    %v5669 = vpack.c.b16 %v5213, %v5205
    %v5670 = vpack.c.b16 %v5214, %v5206
    %v5671 = vpack.c.b16 %v5215, %v5207
    %v5672 = vpack.c.b16 %v5216, %v5208
    %v5673 = vpack.c.b16 %v5217, %v5209
    %v5674 = vpack.c.b16 %v5218, %v5210
    %v5675 = vpack.c.b16 %v5219, %v5211
    %v5676 = vpack.c.b16 %v5228, %v5220
    %v5677 = vpack.c.b16 %v5229, %v5221
    %v5678 = vpack.c.b16 %v5230, %v5222
    %v5679 = vpack.c.b16 %v5231, %v5223
    %v5680 = vpack.c.b16 %v5232, %v5224
    %v5681 = vpack.c.b16 %v5233, %v5225
    %v5682 = vpack.c.b16 %v5234, %v5226
    %v5683 = vpack.c.b16 %v5235, %v5227
    %v5684 = vpack.c.b16 %v5244, %v5236
    %v5685 = vpack.c.b16 %v5245, %v5237
    %v5686 = vpack.c.b16 %v5246, %v5238
    %v5687 = vpack.c.b16 %v5247, %v5239
    %v5688 = vpack.c.b16 %v5248, %v5240
    %v5689 = vpack.c.b16 %v5249, %v5241
    %v5690 = vpack.c.b16 %v5250, %v5242
    %v5691 = vpack.c.b16 %v5251, %v5243
    %v5692 = vpack.c.b16 %v5260, %v5252
    %v5693 = vpack.c.b16 %v5261, %v5253
    %v5694 = vpack.c.b16 %v5262, %v5254
    %v5695 = vpack.c.b16 %v5263, %v5255
    %v5696 = vpack.c.b16 %v5264, %v5256
    %v5697 = vpack.c.b16 %v5265, %v5257
    %v5698 = vpack.c.b16 %v5266, %v5258
    %v5699 = vpack.c.b16 %v5267, %v5259
    %v5700 = vpack.c.b16 %v5276, %v5268
    %v5701 = vpack.c.b16 %v5277, %v5269
    %v5702 = vpack.c.b16 %v5278, %v5270
    %v5703 = vpack.c.b16 %v5279, %v5271
    %v5704 = vpack.c.b16 %v5280, %v5272
    %v5705 = vpack.c.b16 %v5281, %v5273
    %v5706 = vpack.c.b16 %v5282, %v5274
    %v5707 = vpack.c.b16 %v5283, %v5275
    %v5708 = vpack.c.b16 %v5292, %v5284
    %v5709 = vpack.c.b16 %v5293, %v5285
    %v5710 = vpack.c.b16 %v5294, %v5286
    %v5711 = vpack.c.b16 %v5295, %v5287
    %v5712 = vpack.c.b16 %v5296, %v5288
    %v5713 = vpack.c.b16 %v5297, %v5289
    %v5714 = vpack.c.b16 %v5298, %v5290
    %v5715 = vpack.c.b16 %v5299, %v5291
    %v5716 = vpack.c.b16 %v5308, %v5300
    %v5717 = vpack.c.b16 %v5309, %v5301
    %v5718 = vpack.c.b16 %v5310, %v5302
    %v5719 = vpack.c.b16 %v5311, %v5303
    %v5720 = vpack.c.b16 %v5312, %v5304
    %v5721 = vpack.c.b16 %v5313, %v5305
    %v5722 = vpack.c.b16 %v5314, %v5306
    %v5723 = vpack.c.b16 %v5315, %v5307
    %v5724 = vpack.c.b16 %v5324, %v5316
    %v5725 = vpack.c.b16 %v5325, %v5317
    %v5726 = vpack.c.b16 %v5326, %v5318
    %v5727 = vpack.c.b16 %v5327, %v5319
    %v5728 = vpack.c.b16 %v5328, %v5320
    %v5729 = vpack.c.b16 %v5329, %v5321
    %v5730 = vpack.c.b16 %v5330, %v5322
    %v5731 = vpack.c.b16 %v5331, %v5323
    %v5732 = vpack.c.b16 %v5340, %v5332
    %v5733 = vpack.c.b16 %v5341, %v5333
    %v5734 = vpack.c.b16 %v5342, %v5334
    %v5735 = vpack.c.b16 %v5343, %v5335
    %v5736 = vpack.c.b16 %v5344, %v5336
    %v5737 = vpack.c.b16 %v5345, %v5337
    %v5738 = vpack.c.b16 %v5346, %v5338
    %v5739 = vpack.c.b16 %v5347, %v5339
    %v5740 = vpack.c.b16 %v5356, %v5348
    %v5741 = vpack.c.b16 %v5357, %v5349
    %v5742 = vpack.c.b16 %v5358, %v5350
    %v5743 = vpack.c.b16 %v5359, %v5351
    %v5744 = vpack.c.b16 %v5360, %v5352
    %v5745 = vpack.c.b16 %v5361, %v5353
    %v5746 = vpack.c.b16 %v5362, %v5354
    %v5747 = vpack.c.b16 %v5363, %v5355
    %6132 = vmatprep.subr.bf16.mxu0 %v5365
    %6133 = vmatpush1.bf16.msra.mxu0 %v5364
    %6134 = vmatprep.subr.bf16.mxu0 %v5373
    %6135 = vmatpush1.bf16.msra.mxu0 %v5372
    %6136 = vmatprep.subr.bf16.mxu0 %v5381
    %6137 = vmatpush1.bf16.msra.mxu0 %v5380
    %6138 = vmatprep.subr.bf16.mxu0 %v5389
    %6139 = vmatpush1.bf16.msra.mxu0 %v5388
    %6140 = vmatprep.subr.bf16.mxu0 %v5397
    %6141 = vmatpush1.bf16.msra.mxu0 %v5396
    %6142 = vmatprep.subr.bf16.mxu0 %v5405
    %6143 = vmatpush1.bf16.msra.mxu0 %v5404
    %6144 = vmatprep.subr.bf16.mxu0 %v5413
    %6145 = vmatpush1.bf16.msra.mxu0 %v5412
    %6146 = vmatprep.subr.bf16.mxu0 %v5421
    %6147 = vmatpush1.bf16.msra.mxu0 %v5420
    %6148 = vmatprep.subr.bf16.mxu0 %v5429
    %6149 = vmatpush1.bf16.msra.mxu0 %v5428
    %6150 = vmatprep.subr.bf16.mxu0 %v5437
    %6151 = vmatpush1.bf16.msra.mxu0 %v5436
    %6152 = vmatprep.subr.bf16.mxu0 %v5445
    %6153 = vmatpush1.bf16.msra.mxu0 %v5444
    %6154 = vmatprep.subr.bf16.mxu0 %v5453
    %6155 = vmatpush1.bf16.msra.mxu0 %v5452
    %6156 = vmatprep.subr.bf16.mxu0 %v5461
    %6157 = vmatpush1.bf16.msra.mxu0 %v5460
    %6158 = vmatprep.subr.bf16.mxu0 %v5469
    %6159 = vmatpush1.bf16.msra.mxu0 %v5468
    %6160 = vmatprep.subr.bf16.mxu0 %v5477
    %6161 = vmatpush1.bf16.msra.mxu0 %v5476
    %6162 = vmatprep.subr.bf16.mxu0 %v5485
    %6163 = vmatpush1.bf16.msra.mxu0 %v5484
    %6164 = vmatprep.mubr.bf16.mxu0 %v4168
    %6165 = vmatmul.mubr.bf16.gmra.mrb[0].mxu0 %v4167
    %v6166 = vpop.f32.mrb[0].mxu0
    %v6167 = vadd.f32 %v4175, %v6166
    %v6168 = vpop.f32.mrb[0].mxu0
    %v6169 = vadd.f32 %v4179, %v6168
    %v6170 = vpop.f32.mrb[0].mxu0
    %v6171 = vpop.f32.mrb[0].mxu0
    %6172 = vdwg.mxu0
    %6173 = vmatprep.subr.bf16.mxu0 %v5493
    %6174 = vmatpush1.bf16.msra.mxu0 %v5492
    %6175 = vmatprep.subr.bf16.mxu0 %v5501
    %6176 = vmatpush1.bf16.msra.mxu0 %v5500
    %6177 = vmatprep.subr.bf16.mxu0 %v5509
    %6178 = vmatpush1.bf16.msra.mxu0 %v5508
    %6179 = vmatprep.subr.bf16.mxu0 %v5517
    %6180 = vmatpush1.bf16.msra.mxu0 %v5516
    %6181 = vmatprep.subr.bf16.mxu0 %v5525
    %6182 = vmatpush1.bf16.msra.mxu0 %v5524
    %6183 = vmatprep.subr.bf16.mxu0 %v5533
    %6184 = vmatpush1.bf16.msra.mxu0 %v5532
    %6185 = vmatprep.subr.bf16.mxu0 %v5541
    %6186 = vmatpush1.bf16.msra.mxu0 %v5540
    %6187 = vmatprep.subr.bf16.mxu0 %v5549
    %6188 = vmatpush1.bf16.msra.mxu0 %v5548
    %6189 = vmatprep.subr.bf16.mxu0 %v5557
    %6190 = vmatpush1.bf16.msra.mxu0 %v5556
    %6191 = vmatprep.subr.bf16.mxu0 %v5565
    %6192 = vmatpush1.bf16.msra.mxu0 %v5564
    %6193 = vmatprep.subr.bf16.mxu0 %v5573
    %6194 = vmatpush1.bf16.msra.mxu0 %v5572
    %6195 = vmatprep.subr.bf16.mxu0 %v5581
    %6196 = vmatpush1.bf16.msra.mxu0 %v5580
    %6197 = vmatprep.subr.bf16.mxu0 %v5589
    %6198 = vmatpush1.bf16.msra.mxu0 %v5588
    %6199 = vmatprep.subr.bf16.mxu0 %v5597
    %6200 = vmatpush1.bf16.msra.mxu0 %v5596
    %6201 = vmatprep.subr.bf16.mxu0 %v5605
    %6202 = vmatpush1.bf16.msra.mxu0 %v5604
    %6203 = vmatprep.subr.bf16.mxu0 %v5613
    %6204 = vmatpush1.bf16.msra.mxu0 %v5612
    %6205 = vmatprep.mubr.bf16.mxu0 %v4170
    %6206 = vmatmul.mubr.bf16.gmra.mrb[0].mxu0 %v4169
    %v6207 = vpop.f32.mrb[0].mxu0
    %v6208 = vadd.f32 %v6167, %v6207
    %v6209 = vpop.f32.mrb[0].mxu0
    %v6210 = vadd.f32 %v6169, %v6209
    %v6211 = vpop.f32.mrb[0].mxu0
    %v6212 = vpop.f32.mrb[0].mxu0
    %6213 = vdwg.mxu0
    %6214 = vmatprep.subr.bf16.mxu0 %v5621
    %6215 = vmatpush1.bf16.msra.mxu0 %v5620
    %6216 = vmatprep.subr.bf16.mxu0 %v5629
    %6217 = vmatpush1.bf16.msra.mxu0 %v5628
    %6218 = vmatprep.subr.bf16.mxu0 %v5637
    %6219 = vmatpush1.bf16.msra.mxu0 %v5636
    %6220 = vmatprep.subr.bf16.mxu0 %v5645
    %6221 = vmatpush1.bf16.msra.mxu0 %v5644
    %6222 = vmatprep.subr.bf16.mxu0 %v5653
    %6223 = vmatpush1.bf16.msra.mxu0 %v5652
    %6224 = vmatprep.subr.bf16.mxu0 %v5661
    %6225 = vmatpush1.bf16.msra.mxu0 %v5660
    %6226 = vmatprep.subr.bf16.mxu0 %v5669
    %6227 = vmatpush1.bf16.msra.mxu0 %v5668
    %6228 = vmatprep.subr.bf16.mxu0 %v5677
    %6229 = vmatpush1.bf16.msra.mxu0 %v5676
    %6230 = vmatprep.subr.bf16.mxu0 %v5685
    %6231 = vmatpush1.bf16.msra.mxu0 %v5684
    %6232 = vmatprep.subr.bf16.mxu0 %v5693
    %6233 = vmatpush1.bf16.msra.mxu0 %v5692
    %6234 = vmatprep.subr.bf16.mxu0 %v5701
    %6235 = vmatpush1.bf16.msra.mxu0 %v5700
    %6236 = vmatprep.subr.bf16.mxu0 %v5709
    %6237 = vmatpush1.bf16.msra.mxu0 %v5708
    %6238 = vmatprep.subr.bf16.mxu0 %v5717
    %6239 = vmatpush1.bf16.msra.mxu0 %v5716
    %6240 = vmatprep.subr.bf16.mxu0 %v5725
    %6241 = vmatpush1.bf16.msra.mxu0 %v5724
    %6242 = vmatprep.subr.bf16.mxu0 %v5733
    %6243 = vmatpush1.bf16.msra.mxu0 %v5732
    %6244 = vmatprep.subr.bf16.mxu0 %v5741
    %6245 = vmatpush1.bf16.msra.mxu0 %v5740
    %6246 = vmatprep.mubr.bf16.mxu0 %v1552
    %6247 = vmatmul.mubr.bf16.gmra.mrb[0].mxu0 %v1551
    %v6248 = vpop.f32.mrb[0].mxu0
    %v6249 = vadd.f32 %v6208, %v6248
    %v6250 = vpop.f32.mrb[0].mxu0
    %v6251 = vadd.f32 %v6210, %v6250
    %v6252 = vpop.f32.mrb[0].mxu0
    %v6253 = vpop.f32.mrb[0].mxu0
    %6254 = vdwg.mxu0
    %6255 = vmatprep.subr.bf16.mxu0 %v5367
    %6256 = vmatpush1.bf16.msra.mxu0 %v5366
    %6257 = vmatprep.subr.bf16.mxu0 %v5375
    %6258 = vmatpush1.bf16.msra.mxu0 %v5374
    %6259 = vmatprep.subr.bf16.mxu0 %v5383
    %6260 = vmatpush1.bf16.msra.mxu0 %v5382
    %6261 = vmatprep.subr.bf16.mxu0 %v5391
    %6262 = vmatpush1.bf16.msra.mxu0 %v5390
    %6263 = vmatprep.subr.bf16.mxu0 %v5399
    %6264 = vmatpush1.bf16.msra.mxu0 %v5398
    %6265 = vmatprep.subr.bf16.mxu0 %v5407
    %6266 = vmatpush1.bf16.msra.mxu0 %v5406
    %6267 = vmatprep.subr.bf16.mxu0 %v5415
    %6268 = vmatpush1.bf16.msra.mxu0 %v5414
    %6269 = vmatprep.subr.bf16.mxu0 %v5423
    %6270 = vmatpush1.bf16.msra.mxu0 %v5422
    %6271 = vmatprep.subr.bf16.mxu0 %v5431
    %6272 = vmatpush1.bf16.msra.mxu0 %v5430
    %6273 = vmatprep.subr.bf16.mxu0 %v5439
    %6274 = vmatpush1.bf16.msra.mxu0 %v5438
    %6275 = vmatprep.subr.bf16.mxu0 %v5447
    %6276 = vmatpush1.bf16.msra.mxu0 %v5446
    %6277 = vmatprep.subr.bf16.mxu0 %v5455
    %6278 = vmatpush1.bf16.msra.mxu0 %v5454
    %6279 = vmatprep.subr.bf16.mxu0 %v5463
    %6280 = vmatpush1.bf16.msra.mxu0 %v5462
    %6281 = vmatprep.subr.bf16.mxu0 %v5471
    %6282 = vmatpush1.bf16.msra.mxu0 %v5470
    %6283 = vmatprep.subr.bf16.mxu0 %v5479
    %6284 = vmatpush1.bf16.msra.mxu0 %v5478
    %6285 = vmatprep.subr.bf16.mxu0 %v5487
    %6286 = vmatpush1.bf16.msra.mxu0 %v5486
    %6287 = vmatprep.mubr.bf16.mxu0 %v4168
    %6288 = vmatmul.mubr.bf16.gmra.mrb[0].mxu0 %v4167
    %v6289 = vpop.f32.mrb[0].mxu0
    %v6290 = vadd.f32 %v4183, %v6289
    %v6291 = vpop.f32.mrb[0].mxu0
    %v6292 = vadd.f32 %v4187, %v6291
    %v6293 = vpop.f32.mrb[0].mxu0
    %v6294 = vpop.f32.mrb[0].mxu0
    %6295 = vdwg.mxu0
    %6296 = vmatprep.subr.bf16.mxu0 %v5495
    %6297 = vmatpush1.bf16.msra.mxu0 %v5494
    %6298 = vmatprep.subr.bf16.mxu0 %v5503
    %6299 = vmatpush1.bf16.msra.mxu0 %v5502
    %6300 = vmatprep.subr.bf16.mxu0 %v5511
    %6301 = vmatpush1.bf16.msra.mxu0 %v5510
    %6302 = vmatprep.subr.bf16.mxu0 %v5519
    %6303 = vmatpush1.bf16.msra.mxu0 %v5518
    %6304 = vmatprep.subr.bf16.mxu0 %v5527
    %6305 = vmatpush1.bf16.msra.mxu0 %v5526
    %6306 = vmatprep.subr.bf16.mxu0 %v5535
    %6307 = vmatpush1.bf16.msra.mxu0 %v5534
    %6308 = vmatprep.subr.bf16.mxu0 %v5543
    %6309 = vmatpush1.bf16.msra.mxu0 %v5542
    %6310 = vmatprep.subr.bf16.mxu0 %v5551
    %6311 = vmatpush1.bf16.msra.mxu0 %v5550
    %6312 = vmatprep.subr.bf16.mxu0 %v5559
    %6313 = vmatpush1.bf16.msra.mxu0 %v5558
    %6314 = vmatprep.subr.bf16.mxu0 %v5567
    %6315 = vmatpush1.bf16.msra.mxu0 %v5566
    %6316 = vmatprep.subr.bf16.mxu0 %v5575
    %6317 = vmatpush1.bf16.msra.mxu0 %v5574
    %6318 = vmatprep.subr.bf16.mxu0 %v5583
    %6319 = vmatpush1.bf16.msra.mxu0 %v5582
    %6320 = vmatprep.subr.bf16.mxu0 %v5591
    %6321 = vmatpush1.bf16.msra.mxu0 %v5590
    %6322 = vmatprep.subr.bf16.mxu0 %v5599
    %6323 = vmatpush1.bf16.msra.mxu0 %v5598
    %6324 = vmatprep.subr.bf16.mxu0 %v5607
    %6325 = vmatpush1.bf16.msra.mxu0 %v5606
    %6326 = vmatprep.subr.bf16.mxu0 %v5615
    %6327 = vmatpush1.bf16.msra.mxu0 %v5614
    %6328 = vmatprep.mubr.bf16.mxu0 %v4170
    %6329 = vmatmul.mubr.bf16.gmra.mrb[0].mxu0 %v4169
    %v6330 = vpop.f32.mrb[0].mxu0
    %v6331 = vadd.f32 %v6290, %v6330
    %v6332 = vpop.f32.mrb[0].mxu0
    %v6333 = vadd.f32 %v6292, %v6332
    %v6334 = vpop.f32.mrb[0].mxu0
    %v6335 = vpop.f32.mrb[0].mxu0
    %6336 = vdwg.mxu0
    %6337 = vmatprep.subr.bf16.mxu0 %v5623
    %6338 = vmatpush1.bf16.msra.mxu0 %v5622
    %6339 = vmatprep.subr.bf16.mxu0 %v5631
    %6340 = vmatpush1.bf16.msra.mxu0 %v5630
    %6341 = vmatprep.subr.bf16.mxu0 %v5639
    %6342 = vmatpush1.bf16.msra.mxu0 %v5638
    %6343 = vmatprep.subr.bf16.mxu0 %v5647
    %6344 = vmatpush1.bf16.msra.mxu0 %v5646
    %6345 = vmatprep.subr.bf16.mxu0 %v5655
    %6346 = vmatpush1.bf16.msra.mxu0 %v5654
    %6347 = vmatprep.subr.bf16.mxu0 %v5663
    %6348 = vmatpush1.bf16.msra.mxu0 %v5662
    %6349 = vmatprep.subr.bf16.mxu0 %v5671
    %6350 = vmatpush1.bf16.msra.mxu0 %v5670
    %6351 = vmatprep.subr.bf16.mxu0 %v5679
    %6352 = vmatpush1.bf16.msra.mxu0 %v5678
    %6353 = vmatprep.subr.bf16.mxu0 %v5687
    %6354 = vmatpush1.bf16.msra.mxu0 %v5686
    %6355 = vmatprep.subr.bf16.mxu0 %v5695
    %6356 = vmatpush1.bf16.msra.mxu0 %v5694
    %6357 = vmatprep.subr.bf16.mxu0 %v5703
    %6358 = vmatpush1.bf16.msra.mxu0 %v5702
    %6359 = vmatprep.subr.bf16.mxu0 %v5711
    %6360 = vmatpush1.bf16.msra.mxu0 %v5710
    %6361 = vmatprep.subr.bf16.mxu0 %v5719
    %6362 = vmatpush1.bf16.msra.mxu0 %v5718
    %6363 = vmatprep.subr.bf16.mxu0 %v5727
    %6364 = vmatpush1.bf16.msra.mxu0 %v5726
    %6365 = vmatprep.subr.bf16.mxu0 %v5735
    %6366 = vmatpush1.bf16.msra.mxu0 %v5734
    %6367 = vmatprep.subr.bf16.mxu0 %v5743
    %6368 = vmatpush1.bf16.msra.mxu0 %v5742
    %6369 = vmatprep.mubr.bf16.mxu0 %v1552
    %6370 = vmatmul.mubr.bf16.gmra.mrb[0].mxu0 %v1551
    %v6371 = vpop.f32.mrb[0].mxu0
    %v6372 = vadd.f32 %v6331, %v6371
    %v6373 = vpop.f32.mrb[0].mxu0
    %v6374 = vadd.f32 %v6333, %v6373
    %v6375 = vpop.f32.mrb[0].mxu0
    %v6376 = vpop.f32.mrb[0].mxu0
    %6377 = vdwg.mxu0
    %6378 = vmatprep.subr.bf16.mxu0 %v5369
    %6379 = vmatpush1.bf16.msra.mxu0 %v5368
    %6380 = vmatprep.subr.bf16.mxu0 %v5377
    %6381 = vmatpush1.bf16.msra.mxu0 %v5376
    %6382 = vmatprep.subr.bf16.mxu0 %v5385
    %6383 = vmatpush1.bf16.msra.mxu0 %v5384
    %6384 = vmatprep.subr.bf16.mxu0 %v5393
    %6385 = vmatpush1.bf16.msra.mxu0 %v5392
    %6386 = vmatprep.subr.bf16.mxu0 %v5401
    %6387 = vmatpush1.bf16.msra.mxu0 %v5400
    %6388 = vmatprep.subr.bf16.mxu0 %v5409
    %6389 = vmatpush1.bf16.msra.mxu0 %v5408
    %6390 = vmatprep.subr.bf16.mxu0 %v5417
    %6391 = vmatpush1.bf16.msra.mxu0 %v5416
    %6392 = vmatprep.subr.bf16.mxu0 %v5425
    %6393 = vmatpush1.bf16.msra.mxu0 %v5424
    %6394 = vmatprep.subr.bf16.mxu0 %v5433
    %6395 = vmatpush1.bf16.msra.mxu0 %v5432
    %6396 = vmatprep.subr.bf16.mxu0 %v5441
    %6397 = vmatpush1.bf16.msra.mxu0 %v5440
    %6398 = vmatprep.subr.bf16.mxu0 %v5449
    %6399 = vmatpush1.bf16.msra.mxu0 %v5448
    %6400 = vmatprep.subr.bf16.mxu0 %v5457
    %6401 = vmatpush1.bf16.msra.mxu0 %v5456
    %6402 = vmatprep.subr.bf16.mxu0 %v5465
    %6403 = vmatpush1.bf16.msra.mxu0 %v5464
    %6404 = vmatprep.subr.bf16.mxu0 %v5473
    %6405 = vmatpush1.bf16.msra.mxu0 %v5472
    %6406 = vmatprep.subr.bf16.mxu0 %v5481
    %6407 = vmatpush1.bf16.msra.mxu0 %v5480
    %6408 = vmatprep.subr.bf16.mxu0 %v5489
    %6409 = vmatpush1.bf16.msra.mxu0 %v5488
    %6410 = vmatprep.mubr.bf16.mxu0 %v4168
    %6411 = vmatmul.mubr.bf16.gmra.mrb[0].mxu0 %v4167
    %v6412 = vpop.f32.mrb[0].mxu0
    %v6413 = vadd.f32 %v4191, %v6412
    %v6414 = vpop.f32.mrb[0].mxu0
    %v6415 = vadd.f32 %v4195, %v6414
    %v6416 = vpop.f32.mrb[0].mxu0
    %v6417 = vpop.f32.mrb[0].mxu0
    %6418 = vdwg.mxu0
    %6419 = vmatprep.subr.bf16.mxu0 %v5497
    %6420 = vmatpush1.bf16.msra.mxu0 %v5496
    %6421 = vmatprep.subr.bf16.mxu0 %v5505
    %6422 = vmatpush1.bf16.msra.mxu0 %v5504
    %6423 = vmatprep.subr.bf16.mxu0 %v5513
    %6424 = vmatpush1.bf16.msra.mxu0 %v5512
    %6425 = vmatprep.subr.bf16.mxu0 %v5521
    %6426 = vmatpush1.bf16.msra.mxu0 %v5520
    %6427 = vmatprep.subr.bf16.mxu0 %v5529
    %6428 = vmatpush1.bf16.msra.mxu0 %v5528
    %6429 = vmatprep.subr.bf16.mxu0 %v5537
    %6430 = vmatpush1.bf16.msra.mxu0 %v5536
    %6431 = vmatprep.subr.bf16.mxu0 %v5545
    %6432 = vmatpush1.bf16.msra.mxu0 %v5544
    %6433 = vmatprep.subr.bf16.mxu0 %v5553
    %6434 = vmatpush1.bf16.msra.mxu0 %v5552
    %6435 = vmatprep.subr.bf16.mxu0 %v5561
    %6436 = vmatpush1.bf16.msra.mxu0 %v5560
    %6437 = vmatprep.subr.bf16.mxu0 %v5569
    %6438 = vmatpush1.bf16.msra.mxu0 %v5568
    %6439 = vmatprep.subr.bf16.mxu0 %v5577
    %6440 = vmatpush1.bf16.msra.mxu0 %v5576
    %6441 = vmatprep.subr.bf16.mxu0 %v5585
    %6442 = vmatpush1.bf16.msra.mxu0 %v5584
    %6443 = vmatprep.subr.bf16.mxu0 %v5593
    %6444 = vmatpush1.bf16.msra.mxu0 %v5592
    %6445 = vmatprep.subr.bf16.mxu0 %v5601
    %6446 = vmatpush1.bf16.msra.mxu0 %v5600
    %6447 = vmatprep.subr.bf16.mxu0 %v5609
    %6448 = vmatpush1.bf16.msra.mxu0 %v5608
    %6449 = vmatprep.subr.bf16.mxu0 %v5617
    %6450 = vmatpush1.bf16.msra.mxu0 %v5616
    %6451 = vmatprep.mubr.bf16.mxu0 %v4170
    %6452 = vmatmul.mubr.bf16.gmra.mrb[0].mxu0 %v4169
    %v6453 = vpop.f32.mrb[0].mxu0
    %v6454 = vadd.f32 %v6413, %v6453
    %v6455 = vpop.f32.mrb[0].mxu0
    %v6456 = vadd.f32 %v6415, %v6455
    %v6457 = vpop.f32.mrb[0].mxu0
    %v6458 = vpop.f32.mrb[0].mxu0
    %6459 = vdwg.mxu0
    %6460 = vmatprep.subr.bf16.mxu0 %v5625
    %6461 = vmatpush1.bf16.msra.mxu0 %v5624
    %6462 = vmatprep.subr.bf16.mxu0 %v5633
    %6463 = vmatpush1.bf16.msra.mxu0 %v5632
    %6464 = vmatprep.subr.bf16.mxu0 %v5641
    %6465 = vmatpush1.bf16.msra.mxu0 %v5640
    %6466 = vmatprep.subr.bf16.mxu0 %v5649
    %6467 = vmatpush1.bf16.msra.mxu0 %v5648
    %6468 = vmatprep.subr.bf16.mxu0 %v5657
    %6469 = vmatpush1.bf16.msra.mxu0 %v5656
    %6470 = vmatprep.subr.bf16.mxu0 %v5665
    %6471 = vmatpush1.bf16.msra.mxu0 %v5664
    %6472 = vmatprep.subr.bf16.mxu0 %v5673
    %6473 = vmatpush1.bf16.msra.mxu0 %v5672
    %6474 = vmatprep.subr.bf16.mxu0 %v5681
    %6475 = vmatpush1.bf16.msra.mxu0 %v5680
    %6476 = vmatprep.subr.bf16.mxu0 %v5689
    %6477 = vmatpush1.bf16.msra.mxu0 %v5688
    %6478 = vmatprep.subr.bf16.mxu0 %v5697
    %6479 = vmatpush1.bf16.msra.mxu0 %v5696
    %6480 = vmatprep.subr.bf16.mxu0 %v5705
    %6481 = vmatpush1.bf16.msra.mxu0 %v5704
    %6482 = vmatprep.subr.bf16.mxu0 %v5713
    %6483 = vmatpush1.bf16.msra.mxu0 %v5712
    %6484 = vmatprep.subr.bf16.mxu0 %v5721
    %6485 = vmatpush1.bf16.msra.mxu0 %v5720
    %6486 = vmatprep.subr.bf16.mxu0 %v5729
    %6487 = vmatpush1.bf16.msra.mxu0 %v5728
    %6488 = vmatprep.subr.bf16.mxu0 %v5737
    %6489 = vmatpush1.bf16.msra.mxu0 %v5736
    %6490 = vmatprep.subr.bf16.mxu0 %v5745
    %6491 = vmatpush1.bf16.msra.mxu0 %v5744
    %6492 = vmatprep.mubr.bf16.mxu0 %v1552
    %6493 = vmatmul.mubr.bf16.gmra.mrb[0].mxu0 %v1551
    %v6494 = vpop.f32.mrb[0].mxu0
    %v6495 = vadd.f32 %v6454, %v6494
    %v6496 = vpop.f32.mrb[0].mxu0
    %v6497 = vadd.f32 %v6456, %v6496
    %v6498 = vpop.f32.mrb[0].mxu0
    %v6499 = vpop.f32.mrb[0].mxu0
    %6500 = vdwg.mxu0
    %6501 = vmatprep.subr.bf16.mxu0 %v5371
    %6502 = vmatpush1.bf16.msra.mxu0 %v5370
    %6503 = vmatprep.subr.bf16.mxu0 %v5379
    %6504 = vmatpush1.bf16.msra.mxu0 %v5378
    %6505 = vmatprep.subr.bf16.mxu0 %v5387
    %6506 = vmatpush1.bf16.msra.mxu0 %v5386
    %6507 = vmatprep.subr.bf16.mxu0 %v5395
    %6508 = vmatpush1.bf16.msra.mxu0 %v5394
    %6509 = vmatprep.subr.bf16.mxu0 %v5403
    %6510 = vmatpush1.bf16.msra.mxu0 %v5402
    %6511 = vmatprep.subr.bf16.mxu0 %v5411
    %6512 = vmatpush1.bf16.msra.mxu0 %v5410
    %6513 = vmatprep.subr.bf16.mxu0 %v5419
    %6514 = vmatpush1.bf16.msra.mxu0 %v5418
    %6515 = vmatprep.subr.bf16.mxu0 %v5427
    %6516 = vmatpush1.bf16.msra.mxu0 %v5426
    %6517 = vmatprep.subr.bf16.mxu0 %v5435
    %6518 = vmatpush1.bf16.msra.mxu0 %v5434
    %6519 = vmatprep.subr.bf16.mxu0 %v5443
    %6520 = vmatpush1.bf16.msra.mxu0 %v5442
    %6521 = vmatprep.subr.bf16.mxu0 %v5451
    %6522 = vmatpush1.bf16.msra.mxu0 %v5450
    %6523 = vmatprep.subr.bf16.mxu0 %v5459
    %6524 = vmatpush1.bf16.msra.mxu0 %v5458
    %6525 = vmatprep.subr.bf16.mxu0 %v5467
    %6526 = vmatpush1.bf16.msra.mxu0 %v5466
    %6527 = vmatprep.subr.bf16.mxu0 %v5475
    %6528 = vmatpush1.bf16.msra.mxu0 %v5474
    %6529 = vmatprep.subr.bf16.mxu0 %v5483
    %6530 = vmatpush1.bf16.msra.mxu0 %v5482
    %6531 = vmatprep.subr.bf16.mxu0 %v5491
    %6532 = vmatpush1.bf16.msra.mxu0 %v5490
    %6533 = vmatprep.mubr.bf16.mxu0 %v4168
    %6534 = vmatmul.mubr.bf16.gmra.mrb[0].mxu0 %v4167
    %v6535 = vpop.f32.mrb[0].mxu0
    %v6536 = vadd.f32 %v4199, %v6535
    %v6537 = vpop.f32.mrb[0].mxu0
    %v6538 = vadd.f32 %v4203, %v6537
    %v6539 = vpop.f32.mrb[0].mxu0
    %v6540 = vpop.f32.mrb[0].mxu0
    %6541 = vdwg.mxu0
    %6542 = vmatprep.subr.bf16.mxu0 %v5499
    %6543 = vmatpush1.bf16.msra.mxu0 %v5498
    %6544 = vmatprep.subr.bf16.mxu0 %v5507
    %6545 = vmatpush1.bf16.msra.mxu0 %v5506
    %6546 = vmatprep.subr.bf16.mxu0 %v5515
    %6547 = vmatpush1.bf16.msra.mxu0 %v5514
    %6548 = vmatprep.subr.bf16.mxu0 %v5523
    %6549 = vmatpush1.bf16.msra.mxu0 %v5522
    %6550 = vmatprep.subr.bf16.mxu0 %v5531
    %6551 = vmatpush1.bf16.msra.mxu0 %v5530
    %6552 = vmatprep.subr.bf16.mxu0 %v5539
    %6553 = vmatpush1.bf16.msra.mxu0 %v5538
    %6554 = vmatprep.subr.bf16.mxu0 %v5547
    %6555 = vmatpush1.bf16.msra.mxu0 %v5546
    %6556 = vmatprep.subr.bf16.mxu0 %v5555
    %6557 = vmatpush1.bf16.msra.mxu0 %v5554
    %6558 = vmatprep.subr.bf16.mxu0 %v5563
    %6559 = vmatpush1.bf16.msra.mxu0 %v5562
    %6560 = vmatprep.subr.bf16.mxu0 %v5571
    %6561 = vmatpush1.bf16.msra.mxu0 %v5570
    %6562 = vmatprep.subr.bf16.mxu0 %v5579
    %6563 = vmatpush1.bf16.msra.mxu0 %v5578
    %6564 = vmatprep.subr.bf16.mxu0 %v5587
    %6565 = vmatpush1.bf16.msra.mxu0 %v5586
    %6566 = vmatprep.subr.bf16.mxu0 %v5595
    %6567 = vmatpush1.bf16.msra.mxu0 %v5594
    %6568 = vmatprep.subr.bf16.mxu0 %v5603
    %6569 = vmatpush1.bf16.msra.mxu0 %v5602
    %6570 = vmatprep.subr.bf16.mxu0 %v5611
    %6571 = vmatpush1.bf16.msra.mxu0 %v5610
    %6572 = vmatprep.subr.bf16.mxu0 %v5619
    %6573 = vmatpush1.bf16.msra.mxu0 %v5618
    %6574 = vmatprep.mubr.bf16.mxu0 %v4170
    %6575 = vmatmul.mubr.bf16.gmra.mrb[0].mxu0 %v4169
    %v6576 = vpop.f32.mrb[0].mxu0
    %v6577 = vadd.f32 %v6536, %v6576
    %v6578 = vpop.f32.mrb[0].mxu0
    %v6579 = vadd.f32 %v6538, %v6578
    %v6580 = vpop.f32.mrb[0].mxu0
    %v6581 = vpop.f32.mrb[0].mxu0
    %6582 = vdwg.mxu0
    %6583 = vmatprep.subr.bf16.mxu0 %v5627
    %6584 = vmatpush1.bf16.msra.mxu0 %v5626
    %6585 = vmatprep.subr.bf16.mxu0 %v5635
    %6586 = vmatpush1.bf16.msra.mxu0 %v5634
    %6587 = vmatprep.subr.bf16.mxu0 %v5643
    %6588 = vmatpush1.bf16.msra.mxu0 %v5642
    %6589 = vmatprep.subr.bf16.mxu0 %v5651
    %6590 = vmatpush1.bf16.msra.mxu0 %v5650
    %6591 = vmatprep.subr.bf16.mxu0 %v5659
    %6592 = vmatpush1.bf16.msra.mxu0 %v5658
    %6593 = vmatprep.subr.bf16.mxu0 %v5667
    %6594 = vmatpush1.bf16.msra.mxu0 %v5666
    %6595 = vmatprep.subr.bf16.mxu0 %v5675
    %6596 = vmatpush1.bf16.msra.mxu0 %v5674
    %6597 = vmatprep.subr.bf16.mxu0 %v5683
    %6598 = vmatpush1.bf16.msra.mxu0 %v5682
    %6599 = vmatprep.subr.bf16.mxu0 %v5691
    %6600 = vmatpush1.bf16.msra.mxu0 %v5690
    %6601 = vmatprep.subr.bf16.mxu0 %v5699
    %6602 = vmatpush1.bf16.msra.mxu0 %v5698
    %6603 = vmatprep.subr.bf16.mxu0 %v5707
    %6604 = vmatpush1.bf16.msra.mxu0 %v5706
    %6605 = vmatprep.subr.bf16.mxu0 %v5715
    %6606 = vmatpush1.bf16.msra.mxu0 %v5714
    %6607 = vmatprep.subr.bf16.mxu0 %v5723
    %6608 = vmatpush1.bf16.msra.mxu0 %v5722
    %6609 = vmatprep.subr.bf16.mxu0 %v5731
    %6610 = vmatpush1.bf16.msra.mxu0 %v5730
    %6611 = vmatprep.subr.bf16.mxu0 %v5739
    %6612 = vmatpush1.bf16.msra.mxu0 %v5738
    %6613 = vmatprep.subr.bf16.mxu0 %v5747
    %6614 = vmatpush1.bf16.msra.mxu0 %v5746
    %6615 = vmatprep.mubr.bf16.mxu0 %v1552
    %6616 = vmatmul.mubr.bf16.gmra.mrb[0].mxu0 %v1551
    %v6617 = vpop.f32.mrb[0].mxu0
    %v6618 = vadd.f32 %v6577, %v6617
    %v6619 = vpop.f32.mrb[0].mxu0
    %v6620 = vadd.f32 %v6579, %v6619
    %v6621 = vpop.f32.mrb[0].mxu0
    %v6622 = vpop.f32.mrb[0].mxu0
    %6623 = vdwg.mxu0
    %v6624 = vxor.u32 %v6249, 2147483648
    %v6625 = vxor.u32 %v6251, 2147483648
    %v6626 = vmul.f32 %v6624, 1.442695
    %v6627 = vpow.pop %v6626
    %v6628 = vmul.f32 %v6625, 1.442695
    %v6629 = vpow.pop %v6628
    %v6630 = vadd.f32 %v6627, 1.0
    %v6631 = vadd.f32 %v6629, 1.0
    %v6632 = vrcp.pop %v6630
    %v6633 = vmul.f32 1.0, %v6632
    %v6634 = vrcp.pop %v6631
    %v6635 = vmul.f32 1.0, %v6634
    %v6636 = vxor.u32 %v6372, 2147483648
    %v6637 = vxor.u32 %v6374, 2147483648
    %v6638 = vmul.f32 %v6636, 1.442695
    %v6639 = vpow.pop %v6638
    %v6640 = vmul.f32 %v6637, 1.442695
    %v6641 = vpow.pop %v6640
    %v6642 = vadd.f32 %v6639, 1.0
    %v6643 = vadd.f32 %v6641, 1.0
    %v6644 = vrcp.pop %v6642
    %v6645 = vmul.f32 1.0, %v6644
    %v6646 = vrcp.pop %v6643
    %v6647 = vmul.f32 1.0, %v6646
    %v6648 = vtanh.pop %v6495
    %v6649 = vtanh.pop %v6497
    %v6650 = vxor.u32 %v6618, 2147483648
    %v6651 = vxor.u32 %v6620, 2147483648
    %v6652 = vmul.f32 %v6650, 1.442695
    %v6653 = vpow.pop %v6652
    %v6654 = vmul.f32 %v6651, 1.442695
    %v6655 = vpow.pop %v6654
    %v6656 = vadd.f32 %v6653, 1.0
    %v6657 = vadd.f32 %v6655, 1.0
    %v6658 = vrcp.pop %v6656
    %v6659 = vmul.f32 1.0, %v6658
    %v6660 = vrcp.pop %v6657
    %v6661 = vmul.f32 1.0, %v6660
    %v6662 = vmul.f32 %v6645, %v225
    %v6663 = vmul.f32 %v6647, %v226
    %v6664 = vmul.f32 %v6633, %v6648
    %v6665 = vmul.f32 %v6635, %v6649
    %v6666 = vadd.f32 %v6662, %v6664
    %v6667 = vadd.f32 %v6663, %v6665
    %v6668 = vtanh.pop %v6666
    %v6669 = vtanh.pop %v6667
    %v6670 = vmul.f32 %v6659, %v6668
    %v6671 = vmul.f32 %v6661, %v6669
    %v6672 = vpack.c.bf16 %v6670, %v6670
    %v6673 = vpack.c.bf16 %v6671, %v6671
    %v6675 = vlaneseq
    %v6676 = vshrl.u32 %v6675, 7
    %v6677 = vsub.s32 0, %v6676
    %v6678 = vrot.slane %v975, %v6677
    %v6679 = vlaneseq
    %v6680 = vshrl.u32 %v6679, 7
    %v6681 = vsub.s32 1, %v6680
    %v6682 = vrot.slane %v975, %v6681
    %v6717 = vunpack.c.l.b16 %v907
    %v6718 = vunpack.c.h.b16 %v907
    %v6719 = vunpack.c.l.b16 %v908
    %v6720 = vunpack.c.h.b16 %v908
    %v6721 = vunpack.c.l.b16 %v909
    %v6722 = vunpack.c.h.b16 %v909
    %v6723 = vunpack.c.l.b16 %v910
    %v6724 = vunpack.c.h.b16 %v910
    %v6725 = vunpack.c.l.b16 %v911
    %v6726 = vunpack.c.h.b16 %v911
    %v6727 = vunpack.c.l.b16 %v912
    %v6728 = vunpack.c.h.b16 %v912
    %v6729 = vunpack.c.l.b16 %v913
    %v6730 = vunpack.c.h.b16 %v913
    %v6731 = vunpack.c.l.b16 %v914
    %v6732 = vunpack.c.h.b16 %v914
    %v6733 = vunpack.c.l.b16 %v915
    %v6734 = vunpack.c.h.b16 %v915
    %v6735 = vunpack.c.l.b16 %v916
    %v6736 = vunpack.c.h.b16 %v916
    %v6737 = vunpack.c.l.b16 %v917
    %v6738 = vunpack.c.h.b16 %v917
    %v6739 = vunpack.c.l.b16 %v918
    %v6740 = vunpack.c.h.b16 %v918
    %v6741 = vunpack.c.l.b16 %v919
    %v6742 = vunpack.c.h.b16 %v919
    %v6743 = vunpack.c.l.b16 %v920
    %v6744 = vunpack.c.h.b16 %v920
    %v6745 = vunpack.c.l.b16 %v921
    %v6746 = vunpack.c.h.b16 %v921
    %v6747 = vunpack.c.l.b16 %v922
    %v6748 = vunpack.c.h.b16 %v922
    %v6749 = vunpack.c.l.b16 %v923
    %v6750 = vunpack.c.h.b16 %v923
    %v6751 = vunpack.c.l.b16 %v924
    %v6752 = vunpack.c.h.b16 %v924
    %v6753 = vunpack.c.l.b16 %v925
    %v6754 = vunpack.c.h.b16 %v925
    %v6755 = vunpack.c.l.b16 %v926
    %v6756 = vunpack.c.h.b16 %v926
    %v6757 = vunpack.c.l.b16 %v927
    %v6758 = vunpack.c.h.b16 %v927
    %v6759 = vunpack.c.l.b16 %v928
    %v6760 = vunpack.c.h.b16 %v928
    %v6761 = vunpack.c.l.b16 %v929
    %v6762 = vunpack.c.h.b16 %v929
    %v6763 = vunpack.c.l.b16 %v930
    %v6764 = vunpack.c.h.b16 %v930
    %v6765 = vunpack.c.l.b16 %v931
    %v6766 = vunpack.c.h.b16 %v931
    %v6767 = vunpack.c.l.b16 %v932
    %v6768 = vunpack.c.h.b16 %v932
    %v6769 = vunpack.c.l.b16 %v933
    %v6770 = vunpack.c.h.b16 %v933
    %v6771 = vunpack.c.l.b16 %v934
    %v6772 = vunpack.c.h.b16 %v934
    %v6773 = vunpack.c.l.b16 %v935
    %v6774 = vunpack.c.h.b16 %v935
    %v6775 = vunpack.c.l.b16 %v936
    %v6776 = vunpack.c.h.b16 %v936
    %v6777 = vunpack.c.l.b16 %v937
    %v6778 = vunpack.c.h.b16 %v937
    %v6779 = vunpack.c.l.b16 %v938
    %v6780 = vunpack.c.h.b16 %v938
    %v6781 = vpack.c.b16 %v6719, %v6717
    %v6782 = vpack.c.b16 %v6720, %v6718
    %v6783 = vpack.c.b16 %v6723, %v6721
    %v6784 = vpack.c.b16 %v6724, %v6722
    %v6785 = vpack.c.b16 %v6727, %v6725
    %v6786 = vpack.c.b16 %v6728, %v6726
    %v6787 = vpack.c.b16 %v6731, %v6729
    %v6788 = vpack.c.b16 %v6732, %v6730
    %v6789 = vpack.c.b16 %v6735, %v6733
    %v6790 = vpack.c.b16 %v6736, %v6734
    %v6791 = vpack.c.b16 %v6739, %v6737
    %v6792 = vpack.c.b16 %v6740, %v6738
    %v6793 = vpack.c.b16 %v6743, %v6741
    %v6794 = vpack.c.b16 %v6744, %v6742
    %v6795 = vpack.c.b16 %v6747, %v6745
    %v6796 = vpack.c.b16 %v6748, %v6746
    %v6797 = vpack.c.b16 %v6751, %v6749
    %v6798 = vpack.c.b16 %v6752, %v6750
    %v6799 = vpack.c.b16 %v6755, %v6753
    %v6800 = vpack.c.b16 %v6756, %v6754
    %v6801 = vpack.c.b16 %v6759, %v6757
    %v6802 = vpack.c.b16 %v6760, %v6758
    %v6803 = vpack.c.b16 %v6763, %v6761
    %v6804 = vpack.c.b16 %v6764, %v6762
    %v6805 = vpack.c.b16 %v6767, %v6765
    %v6806 = vpack.c.b16 %v6768, %v6766
    %v6807 = vpack.c.b16 %v6771, %v6769
    %v6808 = vpack.c.b16 %v6772, %v6770
    %v6809 = vpack.c.b16 %v6775, %v6773
    %v6810 = vpack.c.b16 %v6776, %v6774
    %v6811 = vpack.c.b16 %v6779, %v6777
    %v6812 = vpack.c.b16 %v6780, %v6778
    %6845 = vmatprep.subr.bf16.mxu0 %v6782
    %6846 = vmatpush1.bf16.msra.mxu0 %v6781
    %6847 = vmatprep.subr.bf16.mxu0 %v6784
    %6848 = vmatpush1.bf16.msra.mxu0 %v6783
    %6849 = vmatprep.subr.bf16.mxu0 %v6786
    %6850 = vmatpush1.bf16.msra.mxu0 %v6785
    %6851 = vmatprep.subr.bf16.mxu0 %v6788
    %6852 = vmatpush1.bf16.msra.mxu0 %v6787
    %6853 = vmatprep.subr.bf16.mxu0 %v6790
    %6854 = vmatpush1.bf16.msra.mxu0 %v6789
    %6855 = vmatprep.subr.bf16.mxu0 %v6792
    %6856 = vmatpush1.bf16.msra.mxu0 %v6791
    %6857 = vmatprep.subr.bf16.mxu0 %v6794
    %6858 = vmatpush1.bf16.msra.mxu0 %v6793
    %6859 = vmatprep.subr.bf16.mxu0 %v6796
    %6860 = vmatpush1.bf16.msra.mxu0 %v6795
    %6861 = vmatprep.subr.bf16.mxu0 %v6798
    %6862 = vmatpush1.bf16.msra.mxu0 %v6797
    %6863 = vmatprep.subr.bf16.mxu0 %v6800
    %6864 = vmatpush1.bf16.msra.mxu0 %v6799
    %6865 = vmatprep.subr.bf16.mxu0 %v6802
    %6866 = vmatpush1.bf16.msra.mxu0 %v6801
    %6867 = vmatprep.subr.bf16.mxu0 %v6804
    %6868 = vmatpush1.bf16.msra.mxu0 %v6803
    %6869 = vmatprep.subr.bf16.mxu0 %v6806
    %6870 = vmatpush1.bf16.msra.mxu0 %v6805
    %6871 = vmatprep.subr.bf16.mxu0 %v6808
    %6872 = vmatpush1.bf16.msra.mxu0 %v6807
    %6873 = vmatprep.subr.bf16.mxu0 %v6810
    %6874 = vmatpush1.bf16.msra.mxu0 %v6809
    %6875 = vmatprep.subr.bf16.mxu0 %v6812
    %6876 = vmatpush1.bf16.msra.mxu0 %v6811
    %6877 = vmatprep.mubr.bf16.mxu0 %v6673
    %6878 = vmatmul.mubr.bf16.gmra.mrb[0].mxu0 %v6672
    %v6879 = vpop.f32.mrb[0].mxu0
    %v6880 = vadd.f32 %v6678, %v6879
    %v6881 = vpop.f32.mrb[0].mxu0
    %v6882 = vadd.f32 %v6682, %v6881
    %v6883 = vpop.f32.mrb[0].mxu0
    %v6884 = vpop.f32.mrb[0].mxu0
    %6885 = vdwg.mxu0
    %v6886 = vmax.f32 %v6880, 0.0
    %v6887 = vmax.f32 %v6882, 0.0
    %v6888 = vpack.c.bf16 %v6886, %v6886
    %v6889 = vpack.c.bf16 %v6887, %v6887
    %v6891 = vlaneseq
    %v6892 = vshrl.u32 %v6891, 7
    %v6893 = vsub.s32 0, %v6892
    %v6894 = vrot.slane %v976, %v6893
    %v6928 = vunpack.c.l.b16 %v939
    %v6929 = vunpack.c.l.b16 %v940
    %v6930 = vunpack.c.l.b16 %v941
    %v6931 = vunpack.c.l.b16 %v942
    %v6932 = vunpack.c.l.b16 %v943
    %v6933 = vunpack.c.l.b16 %v944
    %v6934 = vunpack.c.l.b16 %v945
    %v6935 = vunpack.c.l.b16 %v946
    %v6936 = vunpack.c.l.b16 %v947
    %v6937 = vunpack.c.l.b16 %v948
    %v6938 = vunpack.c.l.b16 %v949
    %v6939 = vunpack.c.l.b16 %v950
    %v6940 = vunpack.c.l.b16 %v951
    %v6941 = vunpack.c.l.b16 %v952
    %v6942 = vunpack.c.l.b16 %v953
    %v6943 = vunpack.c.l.b16 %v954
    %v6944 = vunpack.c.l.b16 %v955
    %v6945 = vunpack.c.l.b16 %v956
    %v6946 = vunpack.c.l.b16 %v957
    %v6947 = vunpack.c.l.b16 %v958
    %v6948 = vunpack.c.l.b16 %v959
    %v6949 = vunpack.c.l.b16 %v960
    %v6950 = vunpack.c.l.b16 %v961
    %v6951 = vunpack.c.l.b16 %v962
    %v6952 = vunpack.c.l.b16 %v963
    %v6953 = vunpack.c.l.b16 %v964
    %v6954 = vunpack.c.l.b16 %v965
    %v6955 = vunpack.c.l.b16 %v966
    %v6956 = vunpack.c.l.b16 %v967
    %v6957 = vunpack.c.l.b16 %v968
    %v6958 = vunpack.c.l.b16 %v969
    %v6959 = vunpack.c.l.b16 %v970
    %v6960 = vpack.c.b16 %v6929, %v6928
    %v6961 = vpack.c.b16 %v6931, %v6930
    %v6962 = vpack.c.b16 %v6933, %v6932
    %v6963 = vpack.c.b16 %v6935, %v6934
    %v6964 = vpack.c.b16 %v6937, %v6936
    %v6965 = vpack.c.b16 %v6939, %v6938
    %v6966 = vpack.c.b16 %v6941, %v6940
    %v6967 = vpack.c.b16 %v6943, %v6942
    %v6968 = vpack.c.b16 %v6945, %v6944
    %v6969 = vpack.c.b16 %v6947, %v6946
    %v6970 = vpack.c.b16 %v6949, %v6948
    %v6971 = vpack.c.b16 %v6951, %v6950
    %v6972 = vpack.c.b16 %v6953, %v6952
    %v6973 = vpack.c.b16 %v6955, %v6954
    %v6974 = vpack.c.b16 %v6957, %v6956
    %v6975 = vpack.c.b16 %v6959, %v6958
    %6992 = vmatprep.subr.bf16.mxu0 0
    %6993 = vmatpush1.bf16.msra.mxu0 %v6960
    %6994 = vmatprep.subr.bf16.mxu0 0
    %6995 = vmatpush1.bf16.msra.mxu0 %v6961
    %6996 = vmatprep.subr.bf16.mxu0 0
    %6997 = vmatpush1.bf16.msra.mxu0 %v6962
    %6998 = vmatprep.subr.bf16.mxu0 0
    %6999 = vmatpush1.bf16.msra.mxu0 %v6963
    %7000 = vmatprep.subr.bf16.mxu0 0
    %7001 = vmatpush1.bf16.msra.mxu0 %v6964
    %7002 = vmatprep.subr.bf16.mxu0 0
    %7003 = vmatpush1.bf16.msra.mxu0 %v6965
    %7004 = vmatprep.subr.bf16.mxu0 0
    %7005 = vmatpush1.bf16.msra.mxu0 %v6966
    %7006 = vmatprep.subr.bf16.mxu0 0
    %7007 = vmatpush1.bf16.msra.mxu0 %v6967
    %7008 = vmatprep.subr.bf16.mxu0 0
    %7009 = vmatpush1.bf16.msra.mxu0 %v6968
    %7010 = vmatprep.subr.bf16.mxu0 0
    %7011 = vmatpush1.bf16.msra.mxu0 %v6969
    %7012 = vmatprep.subr.bf16.mxu0 0
    %7013 = vmatpush1.bf16.msra.mxu0 %v6970
    %7014 = vmatprep.subr.bf16.mxu0 0
    %7015 = vmatpush1.bf16.msra.mxu0 %v6971
    %7016 = vmatprep.subr.bf16.mxu0 0
    %7017 = vmatpush1.bf16.msra.mxu0 %v6972
    %7018 = vmatprep.subr.bf16.mxu0 0
    %7019 = vmatpush1.bf16.msra.mxu0 %v6973
    %7020 = vmatprep.subr.bf16.mxu0 0
    %7021 = vmatpush1.bf16.msra.mxu0 %v6974
    %7022 = vmatprep.subr.bf16.mxu0 0
    %7023 = vmatpush1.bf16.msra.mxu0 %v6975
    %7024 = vmatprep.mubr.bf16.mxu0 %v6889
    %7025 = vmatmul.mubr.bf16.gmra.mrb[0].mxu0 %v6888
    %v7026 = vpop.f32.mrb[0].mxu0
    %v7027 = vadd.f32 %v6894, %v7026
    %v7028 = vpop.f32.mrb[0].mxu0
    %v7029 = vpop.f32.mrb[0].mxu0
    %v7030 = vpop.f32.mrb[0].mxu0
    %7031 = vdwg.mxu0
    %v7032 = vtanh.pop %v7027
    %v7033 = vmul.f32 %v7032, 2.0
    %7034 = vst [vmem:[%s16] sm:$0xff] %v7033
    %7035 = vst [vmem:[%s17] sm:$0xff] %v6670
    %7036 = vst [vmem:[%s17 + $0x8] sm:$0xff] %v6671
    %7037 = vst [vmem:[%s18] sm:$0xff] %v6666
    %7038 = vst [vmem:[%s18 + $0x8] sm:$0xff] %v6667
    // Predicated region
    $region118: #{actor_forward.1} parent=1 // pred_check
      _
    $region119: #{actor_forward.1} parent=1 // pred_check_branch
      %7040 = sbr.rel (0) target = $region121
    $region120: #{actor_forward.1} parent=1 // pred_region
      _
    $region121: #{actor_forward.1} parent=1 // pred_fallthru
      _
    // Predicated region
    $region122: #{actor_forward.1} parent=1 // pred_check
      _
    $region123: #{actor_forward.1} parent=1 // pred_check_branch
      %7042 = sbr.rel (0) target = $region125
    $region124: #{actor_forward.1} parent=1 // pred_region
      _
    $region125: #{actor_forward.1} parent=1 // pred_fallthru
      _
    // Predicated region
    $region126: #{actor_forward.1} parent=1 // pred_check
      _
    $region127: #{actor_forward.1} parent=1 // pred_check_branch
      %7044 = sbr.rel (0) target = $region129
    $region128: #{actor_forward.1} parent=1 // pred_region
      _
    $region129: #{actor_forward.1} parent=1 // pred_fallthru
      _
    // Predicated region
    $region130: #{actor_forward.1} parent=1 // pred_check
      _
    $region131: #{actor_forward.1} parent=1 // pred_check_branch
      %7046 = sbr.rel (0) target = $region133
    $region132: #{actor_forward.1} parent=1 // pred_region
      _
    $region133: #{actor_forward.1} parent=1 // pred_fallthru
      _
    // Predicated region
    $region134: #{actor_forward.1} parent=1 // pred_check
      _
    $region135: #{actor_forward.1} parent=1 // pred_check_branch
      %7048 = sbr.rel (0) target = $region137
    $region136: #{actor_forward.1} parent=1 // pred_region
      _
    $region137: #{actor_forward.1} parent=1 // pred_fallthru
      _
    // Predicated region
    $region138: #{actor_forward.1} parent=1 // pred_check
      _
    $region139: #{actor_forward.1} parent=1 // pred_check_branch
      %7050 = sbr.rel (0) target = $region141
    $region140: #{actor_forward.1} parent=1 // pred_region
      _
    $region141: #{actor_forward.1} parent=1 // pred_fallthru
      _
    %7051 = vsyncpa [#allocation3], 1
    %7052 = vsyncpa [#allocation5], 1
    %7053 = vsyncpa [#allocation8], 1
    %7054 = vsyncpa [#allocation11], 1
    %7055 = vsyncpa [#allocation14], 1
    %7056 = vsyncpa [#allocation17], 1
    %7057 = vsyncpa [#allocation20], 1

</llo_original>
